<compile_context>
chip_gen: v7x
topology: tpu7x:2x2x1
jax: 0.10.0
libtpu: 0.0.40
codegen_flags: <defaults>
</compile_context>

<pallas_src>
import jax
import jax.numpy as jnp
from jax import lax
from jax.experimental import pallas as pl
from jax.experimental.pallas import tpu as pltpu

_LANE = 128          # output channels are zero-padded to a multiple of the lane width
_TILE_M_CAP = 1024   # M-tile cap (double-buffered blocks stay tiny at these K / Cpad)


def _round_up(x, m):
    return ((x + m - 1) // m) * m


def _pick_tile_m(m, cap=_TILE_M_CAP):
    for t in (1024, 512, 256, 128, 64, 32, 16, 8):
        if t <= cap and m % t == 0:
            return t
    return m  # small/odd M: single full block (full-dim blocks are exempt from (8,128))


def _cparams():
    # parity axis and M-tile axis are independent -> both parallel (v7x 2-TC sharding).
    return pltpu.CompilerParams(dimension_semantics=("parallel", "parallel"))


# ---------------------------------------------------------------------------
# Pallas kernels
# ---------------------------------------------------------------------------

def _matmul_stats_kernel(p_ref, w_ref, y_ref, s_ref):
    # p: (1, TM, K) bf16, w: (1, K, C) bf16 -> y: (1, TM, C) f32,
    # s: (1, 1, 2, C) per-tile [sum ; sum-of-squares] (f32 epilogue, XLU reductions).
    y = jnp.dot(p_ref[0], w_ref[0], preferred_element_type=jnp.float32)
    y_ref[0] = y
    ssum = jnp.sum(y, axis=0, keepdims=True)
    ssq = jnp.sum(y * y, axis=0, keepdims=True)
    s_ref[0, 0] = jnp.concatenate([ssum, ssq], axis=0)


def _scale_shift_relu_kernel(y_ref, sc_ref, sh_ref, o_ref):
    # BatchNorm folded to per-channel scale/shift, + ReLU; f32 math, bf16 store.
    o_ref[0] = jnp.maximum(y_ref[0] * sc_ref[...] + sh_ref[...], 0.0).astype(o_ref.dtype)


def _matmul_bias_tanh_kernel(p_ref, w_ref, b_ref, o_ref):
    y = jnp.dot(p_ref[0], w_ref[0], preferred_element_type=jnp.float32)
    o_ref[0] = jnp.tanh(y + b_ref[...])


# ---------------------------------------------------------------------------
# pallas_call wrappers
# ---------------------------------------------------------------------------

def _matmul_with_stats(patches, w, tile_m):
    """patches (P, M, K) bf16, w (P, K, C) bf16 -> y (P, M, C) f32, colsums (2, C) f32."""
    P, M, K = patches.shape
    C = w.shape[2]
    nT = M // tile_m
    y, stats = pl.pallas_call(
        _matmul_stats_kernel,
        out_shape=(jax.ShapeDtypeStruct((P, M, C), jnp.float32),
                   jax.ShapeDtypeStruct((P, nT, 2, C), jnp.float32)),
        grid_spec=pltpu.PrefetchScalarGridSpec(
            num_scalar_prefetch=0,
            grid=(P, nT),
            in_specs=[pl.BlockSpec((1, tile_m, K), lambda p, i: (p, i, 0)),
                      pl.BlockSpec((1, K, C), lambda p, i: (p, 0, 0))],
            out_specs=[pl.BlockSpec((1, tile_m, C), lambda p, i: (p, i, 0)),
                       pl.BlockSpec((1, 1, 2, C), lambda p, i: (p, i, 0, 0))]),
        compiler_params=_cparams(),
    )(patches, w)
    return y, jnp.sum(stats, axis=(0, 1))


def _scale_shift_relu(y, scale_cols, shift_cols, tile_m):
    """y (P, M, C) f32; scale/shift (C,) f32 -> relu(y*scale+shift) as (P, M, C) bf16."""
    P, M, C = y.shape
    nT = M // tile_m
    sc = scale_cols.reshape(1, C).astype(jnp.float32)
    sh = shift_cols.reshape(1, C).astype(jnp.float32)
    return pl.pallas_call(
        _scale_shift_relu_kernel,
        out_shape=jax.ShapeDtypeStruct((P, M, C), jnp.bfloat16),
        grid_spec=pltpu.PrefetchScalarGridSpec(
            num_scalar_prefetch=0,
            grid=(P, nT),
            in_specs=[pl.BlockSpec((1, tile_m, C), lambda p, i: (p, i, 0)),
                      pl.BlockSpec((1, C), lambda p, i: (0, 0)),
                      pl.BlockSpec((1, C), lambda p, i: (0, 0))],
            out_specs=pl.BlockSpec((1, tile_m, C), lambda p, i: (p, i, 0))),
        compiler_params=_cparams(),
    )(y, sc, sh)


def _matmul_bias_tanh(patches, w, bias_cols, tile_m):
    """patches (P, M, K) bf16, w (P, K, C) bf16, bias (C,) -> tanh(p@w + b) (P, M, C) f32."""
    P, M, K = patches.shape
    C = w.shape[2]
    nT = M // tile_m
    b = bias_cols.reshape(1, C).astype(jnp.float32)
    return pl.pallas_call(
        _matmul_bias_tanh_kernel,
        out_shape=jax.ShapeDtypeStruct((P, M, C), jnp.float32),
        grid_spec=pltpu.PrefetchScalarGridSpec(
            num_scalar_prefetch=0,
            grid=(P, nT),
            in_specs=[pl.BlockSpec((1, tile_m, K), lambda p, i: (p, i, 0)),
                      pl.BlockSpec((1, K, C), lambda p, i: (p, 0, 0)),
                      pl.BlockSpec((1, C), lambda p, i: (0, 0))],
            out_specs=pl.BlockSpec((1, tile_m, C), lambda p, i: (p, i, 0))),
        compiler_params=_cparams(),
    )(patches, w, b)


# ---------------------------------------------------------------------------
# ConvTranspose2d glue: sub-pixel decomposition (k=4, s=2, p=1), NHWC activations
# ---------------------------------------------------------------------------
# TODO(synk): the patch extraction below could be moved in-kernel (pl.ds shifted reads
# from a VMEM-resident input tile) to cut patch HBM traffic a further 4x.

def _subpixel_patches(x_nhwc):
    """x (N, H, W, C) -> patches (4, N*H*W, 4*C).  Parity p = py*2+px produces output
    pixels (2r+py, 2c+px); each needs only a 2x2 input neighbourhood (no zero dilation)."""
    N, H, W, C = x_nhwc.shape
    xp = jnp.pad(x_nhwc, ((0, 0), (1, 1), (1, 1), (0, 0)))
    pats = []
    for py in (0, 1):
        for px in (0, 1):
            taps = [xp[:, py + ty:py + ty + H, px + tx:px + tx + W, :]
                    for ty in (0, 1) for tx in (0, 1)]
            pats.append(jnp.stack(taps, axis=3).reshape(N * H * W, 4 * C))
    return jnp.stack(pats, axis=0)


def _subpixel_weight(w_pt, c_cols):
    """PyTorch ConvTranspose2d weight (Cin, Cout, 4, 4) -> per-parity 2x2 sub-kernels
    flattened to (4, 4*Cin, c_cols), matching _subpixel_patches' (tap, cin) K-order."""
    Cin, Cout = w_pt.shape[0], w_pt.shape[1]
    mats = []
    for py in (0, 1):
        for px in (0, 1):
            taps = [w_pt[:, :, 3 - py - 2 * ty, 3 - px - 2 * tx]
                    for ty in (0, 1) for tx in (0, 1)]
            mats.append(jnp.stack(taps, axis=0).reshape(4 * Cin, Cout))
    w = jnp.stack(mats, axis=0)
    return jnp.pad(w, ((0, 0), (0, 0), (0, c_cols - Cout)))


def _interleave_parities(y, N, H, W, C):
    """(4, N*H*W, C), parity-major -> (N, 2H, 2W, C) NHWC."""
    y = y.reshape(2, 2, N, H, W, C).transpose(2, 3, 0, 4, 1, 5)
    return y.reshape(N, 2 * H, 2 * W, C)


def _bn_scale_shift(colsums, count, gamma_pad, beta_pad, eps=1e-5):
    """Fold train-mode batch statistics (biased variance, eps=1e-5) into scale/shift."""
    mean = colsums[0] / count
    var = colsums[1] / count - mean * mean
    scale = gamma_pad * lax.rsqrt(var + eps)
    shift = beta_pad - mean * scale
    return scale, shift


# ---------------------------------------------------------------------------
# Layers
# ---------------------------------------------------------------------------

def gnet_layer1(z_nchw, w_pt, gamma, beta):
    """First ConvTranspose2d (1x1 input, k=4, s=1, p=0) + BN + ReLU as one direct GEMM
    (the dilated im2col of a 1x1 input would be ~94% zeros)."""
    N, Cin = z_nchw.shape[0], z_nchw.shape[1]
    Cout = w_pt.shape[1]
    c_cols = _round_up(Cout, _LANE)
    z = z_nchw.reshape(1, N, Cin).astype(jnp.bfloat16)
    # Weight columns ordered (t = ky*4+kx, cout), cout zero-padded -> lane-dense output.
    wm = jnp.pad(w_pt.transpose(0, 2, 3, 1).reshape(Cin, 16, Cout),
                 ((0, 0), (0, 0), (0, c_cols - Cout)))
    wm = wm.reshape(1, Cin, 16 * c_cols).astype(jnp.bfloat16)
    tile_m = _pick_tile_m(N)
    y, colsums = _matmul_with_stats(z, wm, tile_m)            # (1, N, 16*c_cols) f32
    colsums = colsums.reshape(2, 16, c_cols).sum(axis=1)      # fold spatial groups
    g = jnp.pad(gamma, (0, c_cols - Cout))
    b = jnp.pad(beta, (0, c_cols - Cout))
    scale, shift = _bn_scale_shift(colsums, N * 16, g, b)
    out = _scale_shift_relu(y, jnp.tile(scale, 16), jnp.tile(shift, 16), tile_m)
    return out.reshape(N, 16, c_cols)[:, :, :Cout].reshape(N, 4, 4, Cout)   # NHWC bf16


def gnet_layer_s2(x_nhwc, w_pt, gamma, beta):
    """ConvTranspose2d(k=4, s=2, p=1, bias=False) + BatchNorm2d + ReLU, NHWC in/out."""
    N, H, W, _ = x_nhwc.shape
    Cout = w_pt.shape[1]
    c_cols = _round_up(Cout, _LANE)
    patches = _subpixel_patches(x_nhwc).astype(jnp.bfloat16)       # (4, NHW, 4*Cin)
    wm = _subpixel_weight(w_pt, c_cols).astype(jnp.bfloat16)       # (4, 4*Cin, c_cols)
    tile_m = _pick_tile_m(patches.shape[1])
    y, colsums = _matmul_with_stats(patches, wm, tile_m)
    g = jnp.pad(gamma, (0, c_cols - Cout))
    b = jnp.pad(beta, (0, c_cols - Cout))
    scale, shift = _bn_scale_shift(colsums, 4 * patches.shape[1], g, b)
    out = _scale_shift_relu(y, scale, shift, tile_m)               # (4, NHW, c_cols) bf16
    return _interleave_parities(out[:, :, :Cout], N, H, W, Cout)   # (N, 2H, 2W, Cout)


def final_layer_s2(x_nhwc, w_pt, bias):
    """ConvTranspose2d(k=4, s=2, p=1) + Tanh, fully fused (matmul + bias + tanh)."""
    N, H, W, _ = x_nhwc.shape
    Cout = w_pt.shape[1]
    c_cols = _round_up(Cout, _LANE)
    patches = _subpixel_patches(x_nhwc).astype(jnp.bfloat16)
    wm = _subpixel_weight(w_pt, c_cols).astype(jnp.bfloat16)
    b = jnp.pad(bias, (0, c_cols - Cout))
    tile_m = _pick_tile_m(patches.shape[1])
    out = _matmul_bias_tanh(patches, wm, b, tile_m)                # (4, NHW, c_cols) f32
    return _interleave_parities(out[:, :, :Cout], N, H, W, Cout)   # (N, 2H, 2W, Cout)


# ---------------------------------------------------------------------------
# Generator: 4 x [ConvT -> BN -> ReLU] + ConvT -> Tanh
# ---------------------------------------------------------------------------

def init_params(key, channels_noise, channels_img, features_g):
    dims = [channels_noise, features_g * 8, features_g * 4, features_g * 2, features_g]
    gnet = []
    for i in range(4):
        key, kw = jax.random.split(key)
        w = 0.02 * jax.random.normal(kw, (dims[i], dims[i + 1], 4, 4), jnp.float32)
        gamma = jnp.ones((dims[i + 1],), jnp.float32)   # BN weight init (PyTorch default)
        beta = jnp.zeros((dims[i + 1],), jnp.float32)   # BN bias init (PyTorch default)
        gnet.append((w, gamma, beta))
    key, kw, kb = jax.random.split(key, 3)
    w_final = 0.02 * jax.random.normal(kw, (features_g, channels_img, 4, 4), jnp.float32)
    b_final = 0.02 * jax.random.normal(kb, (channels_img,), jnp.float32)
    return gnet, (w_final, b_final)
    # TODO(synk): BatchNorm running_mean/running_var updates (momentum=0.9 as in the
    # module) are training-time state, not forward compute, and are omitted here.


def generator_forward(z_nchw, params):
    gnet, (w_final, b_final) = params
    w1, g1, b1 = gnet[0]
    x = gnet_layer1(z_nchw, w1, g1, b1)                 # (N, 4, 4, fg*8) NHWC bf16
    for (w, g, b) in gnet[1:]:
        x = gnet_layer_s2(x, w, g, b)
    img = final_layer_s2(x, w_final, b_final)           # (N, 64, 64, channels_img) f32
    return img.transpose(0, 3, 1, 2)                    # NCHW at the external boundary


# ---------------------------------------------------------------------------
# Pure-JAX f32 reference (for correctness check only)
# ---------------------------------------------------------------------------

def _ref_conv_transpose(x, w_pt, stride, pad):
    k = w_pt.shape[2]
    rhs = jnp.flip(w_pt, (2, 3)).transpose(1, 0, 2, 3)   # (Cout, Cin, k, k) OIHW
    return lax.conv_general_dilated(
        x, rhs, window_strides=(1, 1),
        padding=[(k - 1 - pad, k - 1 - pad)] * 2,
        lhs_dilation=(stride, stride),
        dimension_numbers=("NCHW", "OIHW", "NCHW"),
        precision=lax.Precision.HIGHEST)


def _reference_forward(z, params):
    gnet, (w_final, b_final) = params
    cfgs = [(4, 1, 0), (4, 2, 1), (4, 2, 1), (4, 2, 1)]
    x = z
    for (w, g, b), (_, s, p) in zip(gnet, cfgs):
        y = _ref_conv_transpose(x, w, s, p)
        mean = jnp.mean(y, axis=(0, 2, 3), keepdims=True)
        var = jnp.mean((y - mean) ** 2, axis=(0, 2, 3), keepdims=True)
        y = (y - mean) * lax.rsqrt(var + 1e-5)
        y = y * g.reshape(1, -1, 1, 1) + b.reshape(1, -1, 1, 1)
        x = jnp.maximum(y, 0.0)
    y = _ref_conv_transpose(x, w_final, 2, 1) + b_final.reshape(1, -1, 1, 1)
    return jnp.tanh(y)


# ---------------------------------------------------------------------------
# Main
# ---------------------------------------------------------------------------

if __name__ == "__main__":
    channels_noise, channels_img, features_g = 8, 3, 8
    batch = 2

    key = jax.random.PRNGKey(0)
    key, kz, kp = jax.random.split(key, 3)
    z = jax.random.normal(kz, (batch, channels_noise, 1, 1), jnp.float32)
    params = init_params(kp, channels_noise, channels_img, features_g)

    fwd = jax.jit(generator_forward)
    img = jax.block_until_ready(fwd(z, params))

    assert img.shape == (batch, channels_img, 64, 64), img.shape
    assert bool(jnp.all(jnp.isfinite(img)))
    assert bool(jnp.all(jnp.abs(img) <= 1.0 + 1e-6))  # tanh range

    ref = _reference_forward(z, params)
    rel = float(jnp.linalg.norm(img - ref) / (jnp.linalg.norm(ref) + 1e-12))
    assert rel < 0.2, f"relative L2 error vs f32 reference too large: {rel}"

    print("KERNEL_OK")
</pallas_src>

<mosaic_0001>
module attributes {stable_mosaic.version = 11 : i64} {
  func.func @_matmul_stats_kernel(%arg0: i32, %arg1: i32, %arg2: memref<1x2x8xbf16, #tpu.memory_space<vmem>>, %arg3: memref<1x8x2048xbf16, #tpu.memory_space<vmem>>, %arg4: memref<1x2x2048xf32, #tpu.memory_space<vmem>>, %arg5: memref<1x1x2x2048xf32, #tpu.memory_space<vmem>>) attributes {dimension_semantics = [#tpu.dimension_semantics<parallel>, #tpu.dimension_semantics<parallel>], iteration_bounds = array<i64: 1, 1>, scalar_prefetch = 0 : i64, scratch_operands = 0 : i64, tpu.core_type = #tpu.core_type<tc>, window_params = [{transform_indices = @transform_0, window_bounds = array<i64: 1, 2, 8>}, {transform_indices = @transform_1, window_bounds = array<i64: 1, 8, 2048>}, {transform_indices = @transform_2, window_bounds = array<i64: 1, 2, 2048>}, {transform_indices = @transform_3, window_bounds = array<i64: 1, 1, 2, 2048>}]} {
    %c0 = arith.constant 0 : index
    %c0_0 = arith.constant 0 : index
    %c0_1 = arith.constant 0 : index
    %0 = vector.load %arg2[%c0, %c0_0, %c0_1] : memref<1x2x8xbf16, #tpu.memory_space<vmem>>, vector<1x2x8xbf16>
    %1 = vector.shape_cast %0 : vector<1x2x8xbf16> to vector<2x8xbf16>
    %c0_2 = arith.constant 0 : index
    %c0_3 = arith.constant 0 : index
    %c0_4 = arith.constant 0 : index
    %2 = vector.load %arg3[%c0_2, %c0_3, %c0_4] : memref<1x8x2048xbf16, #tpu.memory_space<vmem>>, vector<1x8x2048xbf16>
    %3 = vector.shape_cast %2 : vector<1x8x2048xbf16> to vector<8x2048xbf16>
    %cst = arith.constant dense<0.000000e+00> : vector<2x2048xf32>
    %4 = tpu.matmul %1, %3, %cst {dimension_numbers = #tpu.dot_dimension_numbers<[1], [0], [0], [1], [0, 0, 1, 1], [], []>} : vector<2x8xbf16>, vector<8x2048xbf16>, vector<2x2048xf32> -> vector<2x2048xf32>
    %c0_5 = arith.constant 0 : index
    %c0_6 = arith.constant 0 : index
    %c0_7 = arith.constant 0 : index
    %5 = vector.load %arg4[%c0_5, %c0_6, %c0_7] : memref<1x2x2048xf32, #tpu.memory_space<vmem>>, vector<1x2x2048xf32>
    %6 = vector.shape_cast %5 : vector<1x2x2048xf32> to vector<2x2048xf32>
    %7 = vector.shape_cast %4 : vector<2x2048xf32> to vector<1x2x2048xf32>
    tpu.vector_store %arg4[%c0_5, %c0_6, %c0_7], %7 {strides = array<i32>} : memref<1x2x2048xf32, #tpu.memory_space<vmem>>, vector<1x2x2048xf32>,
    %cst_8 = arith.constant dense<0.000000e+00> : vector<2048xf32>
    %8 = vector.multi_reduction <add>, %4, %cst_8 [0] : vector<2x2048xf32> to vector<2048xf32>
    %9 = vector.shape_cast %8 : vector<2048xf32> to vector<1x2048xf32>
    %10 = arith.mulf %4, %4 : vector<2x2048xf32>
    %cst_9 = arith.constant dense<0.000000e+00> : vector<2048xf32>
    %11 = vector.multi_reduction <add>, %10, %cst_9 [0] : vector<2x2048xf32> to vector<2048xf32>
    %12 = vector.shape_cast %11 : vector<2048xf32> to vector<1x2048xf32>
    %13 = tpu.concatenate %9, %12 in 0 : vector<1x2048xf32>, vector<1x2048xf32> -> vector<2x2048xf32>
    %c0_10 = arith.constant 0 : index
    %c0_11 = arith.constant 0 : index
    %c0_12 = arith.constant 0 : index
    %c0_13 = arith.constant 0 : index
    %14 = vector.load %arg5[%c0_10, %c0_11, %c0_12, %c0_13] : memref<1x1x2x2048xf32, #tpu.memory_space<vmem>>, vector<1x1x2x2048xf32>
    %15 = vector.shape_cast %14 : vector<1x1x2x2048xf32> to vector<2x2048xf32>
    %16 = vector.shape_cast %13 : vector<2x2048xf32> to vector<1x1x2x2048xf32>
    tpu.vector_store %arg5[%c0_10, %c0_11, %c0_12, %c0_13], %16 {strides = array<i32>} : memref<1x1x2x2048xf32, #tpu.memory_space<vmem>>, vector<1x1x2x2048xf32>,
    return
  }
  func.func @transform_0(%arg0: i32, %arg1: i32) -> (i32, i32, i32) {
    %c0_i32 = arith.constant 0 : i32
    %c0_i32_0 = arith.constant 0 : i32
    return %arg0, %arg1, %c0_i32 : i32, i32, i32
  }
  func.func @transform_1(%arg0: i32, %arg1: i32) -> (i32, i32, i32) {
    %c0_i32 = arith.constant 0 : i32
    %c0_i32_0 = arith.constant 0 : i32
    %c0_i32_1 = arith.constant 0 : i32
    return %arg0, %c0_i32, %c0_i32_0 : i32, i32, i32
  }
  func.func @transform_2(%arg0: i32, %arg1: i32) -> (i32, i32, i32) {
    %c0_i32 = arith.constant 0 : i32
    %c0_i32_0 = arith.constant 0 : i32
    return %arg0, %arg1, %c0_i32 : i32, i32, i32
  }
  func.func @transform_3(%arg0: i32, %arg1: i32) -> (i32, i32, i32, i32) {
    %c0_i32 = arith.constant 0 : i32
    %c0_i32_0 = arith.constant 0 : i32
    %c0_i32_1 = arith.constant 0 : i32
    return %arg0, %arg1, %c0_i32, %c0_i32_0 : i32, i32, i32, i32
  }
}

module attributes {stable_mosaic.version = 11 : i64} {
  func.func @_scale_shift_relu_kernel(%arg0: i32, %arg1: i32, %arg2: memref<1x2x2048xf32, #tpu.memory_space<vmem>>, %arg3: memref<1x2048xf32, #tpu.memory_space<vmem>>, %arg4: memref<1x2048xf32, #tpu.memory_space<vmem>>, %arg5: memref<1x2x2048xbf16, #tpu.memory_space<vmem>>) attributes {dimension_semantics = [#tpu.dimension_semantics<parallel>, #tpu.dimension_semantics<parallel>], iteration_bounds = array<i64: 1, 1>, scalar_prefetch = 0 : i64, scratch_operands = 0 : i64, tpu.core_type = #tpu.core_type<tc>, window_params = [{transform_indices = @transform_0, window_bounds = array<i64: 1, 2, 2048>}, {pipeline_mode = #tpu.pipeline_mode<synchronous>, transform_indices = @transform_1, window_bounds = array<i64: 1, 2048>}, {pipeline_mode = #tpu.pipeline_mode<synchronous>, transform_indices = @transform_2, window_bounds = array<i64: 1, 2048>}, {transform_indices = @transform_3, window_bounds = array<i64: 1, 2, 2048>}]} {
    %c0 = arith.constant 0 : index
    %c0_0 = arith.constant 0 : index
    %c0_1 = arith.constant 0 : index
    %0 = vector.load %arg2[%c0, %c0_0, %c0_1] : memref<1x2x2048xf32, #tpu.memory_space<vmem>>, vector<1x2x2048xf32>
    %1 = vector.shape_cast %0 : vector<1x2x2048xf32> to vector<2x2048xf32>
    %c0_2 = arith.constant 0 : index
    %c0_3 = arith.constant 0 : index
    %2 = vector.load %arg3[%c0_2, %c0_3] : memref<1x2048xf32, #tpu.memory_space<vmem>>, vector<1x2048xf32>
    %3 = vector.broadcast %2 : vector<1x2048xf32> to vector<2x2048xf32>
    %4 = arith.mulf %1, %3 : vector<2x2048xf32>
    %c0_4 = arith.constant 0 : index
    %c0_5 = arith.constant 0 : index
    %5 = vector.load %arg4[%c0_4, %c0_5] : memref<1x2048xf32, #tpu.memory_space<vmem>>, vector<1x2048xf32>
    %6 = vector.broadcast %5 : vector<1x2048xf32> to vector<2x2048xf32>
    %7 = arith.addf %4, %6 : vector<2x2048xf32>
    %cst = arith.constant 0.000000e+00 : f32
    %8 = vector.broadcast %cst : f32 to vector<2x2048xf32>
    %9 = arith.maximumf %7, %8 : vector<2x2048xf32>
    %10 = arith.truncf %9 : vector<2x2048xf32> to vector<2x2048xbf16>
    %c0_6 = arith.constant 0 : index
    %c0_7 = arith.constant 0 : index
    %c0_8 = arith.constant 0 : index
    %11 = vector.load %arg5[%c0_6, %c0_7, %c0_8] : memref<1x2x2048xbf16, #tpu.memory_space<vmem>>, vector<1x2x2048xbf16>
    %12 = vector.shape_cast %11 : vector<1x2x2048xbf16> to vector<2x2048xbf16>
    %13 = vector.shape_cast %10 : vector<2x2048xbf16> to vector<1x2x2048xbf16>
    tpu.vector_store %arg5[%c0_6, %c0_7, %c0_8], %13 {strides = array<i32>} : memref<1x2x2048xbf16, #tpu.memory_space<vmem>>, vector<1x2x2048xbf16>,
    return
  }
  func.func @transform_0(%arg0: i32, %arg1: i32) -> (i32, i32, i32) {
    %c0_i32 = arith.constant 0 : i32
    %c0_i32_0 = arith.constant 0 : i32
    return %arg0, %arg1, %c0_i32 : i32, i32, i32
  }
  func.func @transform_1(%arg0: i32, %arg1: i32) -> (i32, i32) {
    %c0_i32 = arith.constant 0 : i32
    %c0_i32_0 = arith.constant 0 : i32
    %c0_i32_1 = arith.constant 0 : i32
    return %c0_i32, %c0_i32_0 : i32, i32
  }
  func.func @transform_2(%arg0: i32, %arg1: i32) -> (i32, i32) {
    %c0_i32 = arith.constant 0 : i32
    %c0_i32_0 = arith.constant 0 : i32
    %c0_i32_1 = arith.constant 0 : i32
    return %c0_i32, %c0_i32_0 : i32, i32
  }
  func.func @transform_3(%arg0: i32, %arg1: i32) -> (i32, i32, i32) {
    %c0_i32 = arith.constant 0 : i32
    %c0_i32_0 = arith.constant 0 : i32
    return %arg0, %arg1, %c0_i32 : i32, i32, i32
  }
}

module attributes {stable_mosaic.version = 11 : i64} {
  func.func @_matmul_stats_kernel(%arg0: i32, %arg1: i32, %arg2: memref<1x32x256xbf16, #tpu.memory_space<vmem>>, %arg3: memref<1x256x128xbf16, #tpu.memory_space<vmem>>, %arg4: memref<1x32x128xf32, #tpu.memory_space<vmem>>, %arg5: memref<1x1x2x128xf32, #tpu.memory_space<vmem>>) attributes {dimension_semantics = [#tpu.dimension_semantics<parallel>, #tpu.dimension_semantics<parallel>], iteration_bounds = array<i64: 4, 1>, scalar_prefetch = 0 : i64, scratch_operands = 0 : i64, tpu.core_type = #tpu.core_type<tc>, window_params = [{transform_indices = @transform_0, window_bounds = array<i64: 1, 32, 256>}, {transform_indices = @transform_1, window_bounds = array<i64: 1, 256, 128>}, {transform_indices = @transform_2, window_bounds = array<i64: 1, 32, 128>}, {transform_indices = @transform_3, window_bounds = array<i64: 1, 1, 2, 128>}]} {
    %c0 = arith.constant 0 : index
    %c0_0 = arith.constant 0 : index
    %c0_1 = arith.constant 0 : index
    %0 = vector.load %arg2[%c0, %c0_0, %c0_1] : memref<1x32x256xbf16, #tpu.memory_space<vmem>>, vector<1x32x256xbf16>
    %1 = vector.shape_cast %0 : vector<1x32x256xbf16> to vector<32x256xbf16>
    %c0_2 = arith.constant 0 : index
    %c0_3 = arith.constant 0 : index
    %c0_4 = arith.constant 0 : index
    %2 = vector.load %arg3[%c0_2, %c0_3, %c0_4] : memref<1x256x128xbf16, #tpu.memory_space<vmem>>, vector<1x256x128xbf16>
    %3 = vector.shape_cast %2 : vector<1x256x128xbf16> to vector<256x128xbf16>
    %cst = arith.constant dense<0.000000e+00> : vector<32x128xf32>
    %4 = tpu.matmul %1, %3, %cst {dimension_numbers = #tpu.dot_dimension_numbers<[1], [0], [0], [1], [0, 0, 1, 1], [], []>} : vector<32x256xbf16>, vector<256x128xbf16>, vector<32x128xf32> -> vector<32x128xf32>
    %c0_5 = arith.constant 0 : index
    %c0_6 = arith.constant 0 : index
    %c0_7 = arith.constant 0 : index
    %5 = vector.load %arg4[%c0_5, %c0_6, %c0_7] : memref<1x32x128xf32, #tpu.memory_space<vmem>>, vector<1x32x128xf32>
    %6 = vector.shape_cast %5 : vector<1x32x128xf32> to vector<32x128xf32>
    %7 = vector.shape_cast %4 : vector<32x128xf32> to vector<1x32x128xf32>
    tpu.vector_store %arg4[%c0_5, %c0_6, %c0_7], %7 {strides = array<i32>} : memref<1x32x128xf32, #tpu.memory_space<vmem>>, vector<1x32x128xf32>,
    %cst_8 = arith.constant dense<0.000000e+00> : vector<128xf32>
    %8 = vector.multi_reduction <add>, %4, %cst_8 [0] : vector<32x128xf32> to vector<128xf32>
    %9 = vector.shape_cast %8 : vector<128xf32> to vector<1x128xf32>
    %10 = arith.mulf %4, %4 : vector<32x128xf32>
    %cst_9 = arith.constant dense<0.000000e+00> : vector<128xf32>
    %11 = vector.multi_reduction <add>, %10, %cst_9 [0] : vector<32x128xf32> to vector<128xf32>
    %12 = vector.shape_cast %11 : vector<128xf32> to vector<1x128xf32>
    %13 = tpu.concatenate %9, %12 in 0 : vector<1x128xf32>, vector<1x128xf32> -> vector<2x128xf32>
    %c0_10 = arith.constant 0 : index
    %c0_11 = arith.constant 0 : index
    %c0_12 = arith.constant 0 : index
    %c0_13 = arith.constant 0 : index
    %14 = vector.load %arg5[%c0_10, %c0_11, %c0_12, %c0_13] : memref<1x1x2x128xf32, #tpu.memory_space<vmem>>, vector<1x1x2x128xf32>
    %15 = vector.shape_cast %14 : vector<1x1x2x128xf32> to vector<2x128xf32>
    %16 = vector.shape_cast %13 : vector<2x128xf32> to vector<1x1x2x128xf32>
    tpu.vector_store %arg5[%c0_10, %c0_11, %c0_12, %c0_13], %16 {strides = array<i32>} : memref<1x1x2x128xf32, #tpu.memory_space<vmem>>, vector<1x1x2x128xf32>,
    return
  }
  func.func @transform_0(%arg0: i32, %arg1: i32) -> (i32, i32, i32) {
    %c0_i32 = arith.constant 0 : i32
    %c0_i32_0 = arith.constant 0 : i32
    return %arg0, %arg1, %c0_i32 : i32, i32, i32
  }
  func.func @transform_1(%arg0: i32, %arg1: i32) -> (i32, i32, i32) {
    %c0_i32 = arith.constant 0 : i32
    %c0_i32_0 = arith.constant 0 : i32
    %c0_i32_1 = arith.constant 0 : i32
    return %arg0, %c0_i32, %c0_i32_0 : i32, i32, i32
  }
  func.func @transform_2(%arg0: i32, %arg1: i32) -> (i32, i32, i32) {
    %c0_i32 = arith.constant 0 : i32
    %c0_i32_0 = arith.constant 0 : i32
    return %arg0, %arg1, %c0_i32 : i32, i32, i32
  }
  func.func @transform_3(%arg0: i32, %arg1: i32) -> (i32, i32, i32, i32) {
    %c0_i32 = arith.constant 0 : i32
    %c0_i32_0 = arith.constant 0 : i32
    %c0_i32_1 = arith.constant 0 : i32
    return %arg0, %arg1, %c0_i32, %c0_i32_0 : i32, i32, i32, i32
  }
}

module attributes {stable_mosaic.version = 11 : i64} {
  func.func @_scale_shift_relu_kernel(%arg0: i32, %arg1: i32, %arg2: memref<1x32x128xf32, #tpu.memory_space<vmem>>, %arg3: memref<1x128xf32, #tpu.memory_space<vmem>>, %arg4: memref<1x128xf32, #tpu.memory_space<vmem>>, %arg5: memref<1x32x128xbf16, #tpu.memory_space<vmem>>) attributes {dimension_semantics = [#tpu.dimension_semantics<parallel>, #tpu.dimension_semantics<parallel>], iteration_bounds = array<i64: 4, 1>, scalar_prefetch = 0 : i64, scratch_operands = 0 : i64, tpu.core_type = #tpu.core_type<tc>, window_params = [{transform_indices = @transform_0, window_bounds = array<i64: 1, 32, 128>}, {pipeline_mode = #tpu.pipeline_mode<synchronous>, transform_indices = @transform_1, window_bounds = array<i64: 1, 128>}, {pipeline_mode = #tpu.pipeline_mode<synchronous>, transform_indices = @transform_2, window_bounds = array<i64: 1, 128>}, {transform_indices = @transform_3, window_bounds = array<i64: 1, 32, 128>}]} {
    %c0 = arith.constant 0 : index
    %c0_0 = arith.constant 0 : index
    %c0_1 = arith.constant 0 : index
    %0 = vector.load %arg2[%c0, %c0_0, %c0_1] : memref<1x32x128xf32, #tpu.memory_space<vmem>>, vector<1x32x128xf32>
    %1 = vector.shape_cast %0 : vector<1x32x128xf32> to vector<32x128xf32>
    %c0_2 = arith.constant 0 : index
    %c0_3 = arith.constant 0 : index
    %2 = vector.load %arg3[%c0_2, %c0_3] : memref<1x128xf32, #tpu.memory_space<vmem>>, vector<1x128xf32>
    %3 = vector.broadcast %2 : vector<1x128xf32> to vector<32x128xf32>
    %4 = arith.mulf %1, %3 : vector<32x128xf32>
    %c0_4 = arith.constant 0 : index
    %c0_5 = arith.constant 0 : index
    %5 = vector.load %arg4[%c0_4, %c0_5] : memref<1x128xf32, #tpu.memory_space<vmem>>, vector<1x128xf32>
    %6 = vector.broadcast %5 : vector<1x128xf32> to vector<32x128xf32>
    %7 = arith.addf %4, %6 : vector<32x128xf32>
    %cst = arith.constant 0.000000e+00 : f32
    %8 = vector.broadcast %cst : f32 to vector<32x128xf32>
    %9 = arith.maximumf %7, %8 : vector<32x128xf32>
    %10 = arith.truncf %9 : vector<32x128xf32> to vector<32x128xbf16>
    %c0_6 = arith.constant 0 : index
    %c0_7 = arith.constant 0 : index
    %c0_8 = arith.constant 0 : index
    %11 = vector.load %arg5[%c0_6, %c0_7, %c0_8] : memref<1x32x128xbf16, #tpu.memory_space<vmem>>, vector<1x32x128xbf16>
    %12 = vector.shape_cast %11 : vector<1x32x128xbf16> to vector<32x128xbf16>
    %13 = vector.shape_cast %10 : vector<32x128xbf16> to vector<1x32x128xbf16>
    tpu.vector_store %arg5[%c0_6, %c0_7, %c0_8], %13 {strides = array<i32>} : memref<1x32x128xbf16, #tpu.memory_space<vmem>>, vector<1x32x128xbf16>,
    return
  }
  func.func @transform_0(%arg0: i32, %arg1: i32) -> (i32, i32, i32) {
    %c0_i32 = arith.constant 0 : i32
    %c0_i32_0 = arith.constant 0 : i32
    return %arg0, %arg1, %c0_i32 : i32, i32, i32
  }
  func.func @transform_1(%arg0: i32, %arg1: i32) -> (i32, i32) {
    %c0_i32 = arith.constant 0 : i32
    %c0_i32_0 = arith.constant 0 : i32
    %c0_i32_1 = arith.constant 0 : i32
    return %c0_i32, %c0_i32_0 : i32, i32
  }
  func.func @transform_2(%arg0: i32, %arg1: i32) -> (i32, i32) {
    %c0_i32 = arith.constant 0 : i32
    %c0_i32_0 = arith.constant 0 : i32
    %c0_i32_1 = arith.constant 0 : i32
    return %c0_i32, %c0_i32_0 : i32, i32
  }
  func.func @transform_3(%arg0: i32, %arg1: i32) -> (i32, i32, i32) {
    %c0_i32 = arith.constant 0 : i32
    %c0_i32_0 = arith.constant 0 : i32
    return %arg0, %arg1, %c0_i32 : i32, i32, i32
  }
}

module attributes {stable_mosaic.version = 11 : i64} {
  func.func @_matmul_stats_kernel(%arg0: i32, %arg1: i32, %arg2: memref<1x128x128xbf16, #tpu.memory_space<vmem>>, %arg3: memref<1x128x128xbf16, #tpu.memory_space<vmem>>, %arg4: memref<1x128x128xf32, #tpu.memory_space<vmem>>, %arg5: memref<1x1x2x128xf32, #tpu.memory_space<vmem>>) attributes {dimension_semantics = [#tpu.dimension_semantics<parallel>, #tpu.dimension_semantics<parallel>], iteration_bounds = array<i64: 4, 1>, scalar_prefetch = 0 : i64, scratch_operands = 0 : i64, tpu.core_type = #tpu.core_type<tc>, window_params = [{transform_indices = @transform_0, window_bounds = array<i64: 1, 128, 128>}, {transform_indices = @transform_1, window_bounds = array<i64: 1, 128, 128>}, {transform_indices = @transform_2, window_bounds = array<i64: 1, 128, 128>}, {transform_indices = @transform_3, window_bounds = array<i64: 1, 1, 2, 128>}]} {
    %c0 = arith.constant 0 : index
    %c0_0 = arith.constant 0 : index
    %c0_1 = arith.constant 0 : index
    %0 = vector.load %arg2[%c0, %c0_0, %c0_1] : memref<1x128x128xbf16, #tpu.memory_space<vmem>>, vector<1x128x128xbf16>
    %1 = vector.shape_cast %0 : vector<1x128x128xbf16> to vector<128x128xbf16>
    %c0_2 = arith.constant 0 : index
    %c0_3 = arith.constant 0 : index
    %c0_4 = arith.constant 0 : index
    %2 = vector.load %arg3[%c0_2, %c0_3, %c0_4] : memref<1x128x128xbf16, #tpu.memory_space<vmem>>, vector<1x128x128xbf16>
    %3 = vector.shape_cast %2 : vector<1x128x128xbf16> to vector<128x128xbf16>
    %cst = arith.constant dense<0.000000e+00> : vector<128x128xf32>
    %4 = tpu.matmul %1, %3, %cst {dimension_numbers = #tpu.dot_dimension_numbers<[1], [0], [0], [1], [0, 0, 1, 1], [], []>} : vector<128x128xbf16>, vector<128x128xbf16>, vector<128x128xf32> -> vector<128x128xf32>
    %c0_5 = arith.constant 0 : index
    %c0_6 = arith.constant 0 : index
    %c0_7 = arith.constant 0 : index
    %5 = vector.load %arg4[%c0_5, %c0_6, %c0_7] : memref<1x128x128xf32, #tpu.memory_space<vmem>>, vector<1x128x128xf32>
    %6 = vector.shape_cast %5 : vector<1x128x128xf32> to vector<128x128xf32>
    %7 = vector.shape_cast %4 : vector<128x128xf32> to vector<1x128x128xf32>
    tpu.vector_store %arg4[%c0_5, %c0_6, %c0_7], %7 {strides = array<i32>} : memref<1x128x128xf32, #tpu.memory_space<vmem>>, vector<1x128x128xf32>,
    %cst_8 = arith.constant dense<0.000000e+00> : vector<128xf32>
    %8 = vector.multi_reduction <add>, %4, %cst_8 [0] : vector<128x128xf32> to vector<128xf32>
    %9 = vector.shape_cast %8 : vector<128xf32> to vector<1x128xf32>
    %10 = arith.mulf %4, %4 : vector<128x128xf32>
    %cst_9 = arith.constant dense<0.000000e+00> : vector<128xf32>
    %11 = vector.multi_reduction <add>, %10, %cst_9 [0] : vector<128x128xf32> to vector<128xf32>
    %12 = vector.shape_cast %11 : vector<128xf32> to vector<1x128xf32>
    %13 = tpu.concatenate %9, %12 in 0 : vector<1x128xf32>, vector<1x128xf32> -> vector<2x128xf32>
    %c0_10 = arith.constant 0 : index
    %c0_11 = arith.constant 0 : index
    %c0_12 = arith.constant 0 : index
    %c0_13 = arith.constant 0 : index
    %14 = vector.load %arg5[%c0_10, %c0_11, %c0_12, %c0_13] : memref<1x1x2x128xf32, #tpu.memory_space<vmem>>, vector<1x1x2x128xf32>
    %15 = vector.shape_cast %14 : vector<1x1x2x128xf32> to vector<2x128xf32>
    %16 = vector.shape_cast %13 : vector<2x128xf32> to vector<1x1x2x128xf32>
    tpu.vector_store %arg5[%c0_10, %c0_11, %c0_12, %c0_13], %16 {strides = array<i32>} : memref<1x1x2x128xf32, #tpu.memory_space<vmem>>, vector<1x1x2x128xf32>,
    return
  }
  func.func @transform_0(%arg0: i32, %arg1: i32) -> (i32, i32, i32) {
    %c0_i32 = arith.constant 0 : i32
    %c0_i32_0 = arith.constant 0 : i32
    return %arg0, %arg1, %c0_i32 : i32, i32, i32
  }
  func.func @transform_1(%arg0: i32, %arg1: i32) -> (i32, i32, i32) {
    %c0_i32 = arith.constant 0 : i32
    %c0_i32_0 = arith.constant 0 : i32
    %c0_i32_1 = arith.constant 0 : i32
    return %arg0, %c0_i32, %c0_i32_0 : i32, i32, i32
  }
  func.func @transform_2(%arg0: i32, %arg1: i32) -> (i32, i32, i32) {
    %c0_i32 = arith.constant 0 : i32
    %c0_i32_0 = arith.constant 0 : i32
    return %arg0, %arg1, %c0_i32 : i32, i32, i32
  }
  func.func @transform_3(%arg0: i32, %arg1: i32) -> (i32, i32, i32, i32) {
    %c0_i32 = arith.constant 0 : i32
    %c0_i32_0 = arith.constant 0 : i32
    %c0_i32_1 = arith.constant 0 : i32
    return %arg0, %arg1, %c0_i32, %c0_i32_0 : i32, i32, i32, i32
  }
}

module attributes {stable_mosaic.version = 11 : i64} {
  func.func @_scale_shift_relu_kernel(%arg0: i32, %arg1: i32, %arg2: memref<1x128x128xf32, #tpu.memory_space<vmem>>, %arg3: memref<1x128xf32, #tpu.memory_space<vmem>>, %arg4: memref<1x128xf32, #tpu.memory_space<vmem>>, %arg5: memref<1x128x128xbf16, #tpu.memory_space<vmem>>) attributes {dimension_semantics = [#tpu.dimension_semantics<parallel>, #tpu.dimension_semantics<parallel>], iteration_bounds = array<i64: 4, 1>, scalar_prefetch = 0 : i64, scratch_operands = 0 : i64, tpu.core_type = #tpu.core_type<tc>, window_params = [{transform_indices = @transform_0, window_bounds = array<i64: 1, 128, 128>}, {pipeline_mode = #tpu.pipeline_mode<synchronous>, transform_indices = @transform_1, window_bounds = array<i64: 1, 128>}, {pipeline_mode = #tpu.pipeline_mode<synchronous>, transform_indices = @transform_2, window_bounds = array<i64: 1, 128>}, {transform_indices = @transform_3, window_bounds = array<i64: 1, 128, 128>}]} {
    %c0 = arith.constant 0 : index
    %c0_0 = arith.constant 0 : index
    %c0_1 = arith.constant 0 : index
    %0 = vector.load %arg2[%c0, %c0_0, %c0_1] : memref<1x128x128xf32, #tpu.memory_space<vmem>>, vector<1x128x128xf32>
    %1 = vector.shape_cast %0 : vector<1x128x128xf32> to vector<128x128xf32>
    %c0_2 = arith.constant 0 : index
    %c0_3 = arith.constant 0 : index
    %2 = vector.load %arg3[%c0_2, %c0_3] : memref<1x128xf32, #tpu.memory_space<vmem>>, vector<1x128xf32>
    %3 = vector.broadcast %2 : vector<1x128xf32> to vector<128x128xf32>
    %4 = arith.mulf %1, %3 : vector<128x128xf32>
    %c0_4 = arith.constant 0 : index
    %c0_5 = arith.constant 0 : index
    %5 = vector.load %arg4[%c0_4, %c0_5] : memref<1x128xf32, #tpu.memory_space<vmem>>, vector<1x128xf32>
    %6 = vector.broadcast %5 : vector<1x128xf32> to vector<128x128xf32>
    %7 = arith.addf %4, %6 : vector<128x128xf32>
    %cst = arith.constant 0.000000e+00 : f32
    %8 = vector.broadcast %cst : f32 to vector<128x128xf32>
    %9 = arith.maximumf %7, %8 : vector<128x128xf32>
    %10 = arith.truncf %9 : vector<128x128xf32> to vector<128x128xbf16>
    %c0_6 = arith.constant 0 : index
    %c0_7 = arith.constant 0 : index
    %c0_8 = arith.constant 0 : index
    %11 = vector.load %arg5[%c0_6, %c0_7, %c0_8] : memref<1x128x128xbf16, #tpu.memory_space<vmem>>, vector<1x128x128xbf16>
    %12 = vector.shape_cast %11 : vector<1x128x128xbf16> to vector<128x128xbf16>
    %13 = vector.shape_cast %10 : vector<128x128xbf16> to vector<1x128x128xbf16>
    tpu.vector_store %arg5[%c0_6, %c0_7, %c0_8], %13 {strides = array<i32>} : memref<1x128x128xbf16, #tpu.memory_space<vmem>>, vector<1x128x128xbf16>,
    return
  }
  func.func @transform_0(%arg0: i32, %arg1: i32) -> (i32, i32, i32) {
    %c0_i32 = arith.constant 0 : i32
    %c0_i32_0 = arith.constant 0 : i32
    return %arg0, %arg1, %c0_i32 : i32, i32, i32
  }
  func.func @transform_1(%arg0: i32, %arg1: i32) -> (i32, i32) {
    %c0_i32 = arith.constant 0 : i32
    %c0_i32_0 = arith.constant 0 : i32
    %c0_i32_1 = arith.constant 0 : i32
    return %c0_i32, %c0_i32_0 : i32, i32
  }
  func.func @transform_2(%arg0: i32, %arg1: i32) -> (i32, i32) {
    %c0_i32 = arith.constant 0 : i32
    %c0_i32_0 = arith.constant 0 : i32
    %c0_i32_1 = arith.constant 0 : i32
    return %c0_i32, %c0_i32_0 : i32, i32
  }
  func.func @transform_3(%arg0: i32, %arg1: i32) -> (i32, i32, i32) {
    %c0_i32 = arith.constant 0 : i32
    %c0_i32_0 = arith.constant 0 : i32
    return %arg0, %arg1, %c0_i32 : i32, i32, i32
  }
}

module attributes {stable_mosaic.version = 11 : i64} {
  func.func @_scale_shift_relu_kernel(%arg0: i32, %arg1: i32, %arg2: memref<1x512x128xf32, #tpu.memory_space<vmem>>, %arg3: memref<1x128xf32, #tpu.memory_space<vmem>>, %arg4: memref<1x128xf32, #tpu.memory_space<vmem>>, %arg5: memref<1x512x128xbf16, #tpu.memory_space<vmem>>) attributes {dimension_semantics = [#tpu.dimension_semantics<parallel>, #tpu.dimension_semantics<parallel>], iteration_bounds = array<i64: 4, 1>, scalar_prefetch = 0 : i64, scratch_operands = 0 : i64, tpu.core_type = #tpu.core_type<tc>, window_params = [{transform_indices = @transform_0, window_bounds = array<i64: 1, 512, 128>}, {pipeline_mode = #tpu.pipeline_mode<synchronous>, transform_indices = @transform_1, window_bounds = array<i64: 1, 128>}, {pipeline_mode = #tpu.pipeline_mode<synchronous>, transform_indices = @transform_2, window_bounds = array<i64: 1, 128>}, {transform_indices = @transform_3, window_bounds = array<i64: 1, 512, 128>}]} {
    %c0 = arith.constant 0 : index
    %c0_0 = arith.constant 0 : index
    %c0_1 = arith.constant 0 : index
    %0 = vector.load %arg2[%c0, %c0_0, %c0_1] : memref<1x512x128xf32, #tpu.memory_space<vmem>>, vector<1x512x128xf32>
    %1 = vector.shape_cast %0 : vector<1x512x128xf32> to vector<512x128xf32>
    %c0_2 = arith.constant 0 : index
    %c0_3 = arith.constant 0 : index
    %2 = vector.load %arg3[%c0_2, %c0_3] : memref<1x128xf32, #tpu.memory_space<vmem>>, vector<1x128xf32>
    %3 = vector.broadcast %2 : vector<1x128xf32> to vector<512x128xf32>
    %4 = arith.mulf %1, %3 : vector<512x128xf32>
    %c0_4 = arith.constant 0 : index
    %c0_5 = arith.constant 0 : index
    %5 = vector.load %arg4[%c0_4, %c0_5] : memref<1x128xf32, #tpu.memory_space<vmem>>, vector<1x128xf32>
    %6 = vector.broadcast %5 : vector<1x128xf32> to vector<512x128xf32>
    %7 = arith.addf %4, %6 : vector<512x128xf32>
    %cst = arith.constant 0.000000e+00 : f32
    %8 = vector.broadcast %cst : f32 to vector<512x128xf32>
    %9 = arith.maximumf %7, %8 : vector<512x128xf32>
    %10 = arith.truncf %9 : vector<512x128xf32> to vector<512x128xbf16>
    %c0_6 = arith.constant 0 : index
    %c0_7 = arith.constant 0 : index
    %c0_8 = arith.constant 0 : index
    %11 = vector.load %arg5[%c0_6, %c0_7, %c0_8] : memref<1x512x128xbf16, #tpu.memory_space<vmem>>, vector<1x512x128xbf16>
    %12 = vector.shape_cast %11 : vector<1x512x128xbf16> to vector<512x128xbf16>
    %13 = vector.shape_cast %10 : vector<512x128xbf16> to vector<1x512x128xbf16>
    tpu.vector_store %arg5[%c0_6, %c0_7, %c0_8], %13 {strides = array<i32>} : memref<1x512x128xbf16, #tpu.memory_space<vmem>>, vector<1x512x128xbf16>,
    return
  }
  func.func @transform_0(%arg0: i32, %arg1: i32) -> (i32, i32, i32) {
    %c0_i32 = arith.constant 0 : i32
    %c0_i32_0 = arith.constant 0 : i32
    return %arg0, %arg1, %c0_i32 : i32, i32, i32
  }
  func.func @transform_1(%arg0: i32, %arg1: i32) -> (i32, i32) {
    %c0_i32 = arith.constant 0 : i32
    %c0_i32_0 = arith.constant 0 : i32
    %c0_i32_1 = arith.constant 0 : i32
    return %c0_i32, %c0_i32_0 : i32, i32
  }
  func.func @transform_2(%arg0: i32, %arg1: i32) -> (i32, i32) {
    %c0_i32 = arith.constant 0 : i32
    %c0_i32_0 = arith.constant 0 : i32
    %c0_i32_1 = arith.constant 0 : i32
    return %c0_i32, %c0_i32_0 : i32, i32
  }
  func.func @transform_3(%arg0: i32, %arg1: i32) -> (i32, i32, i32) {
    %c0_i32 = arith.constant 0 : i32
    %c0_i32_0 = arith.constant 0 : i32
    return %arg0, %arg1, %c0_i32 : i32, i32, i32
  }
}

module attributes {stable_mosaic.version = 11 : i64} {
  func.func @_matmul_stats_kernel(%arg0: i32, %arg1: i32, %arg2: memref<1x512x64xbf16, #tpu.memory_space<vmem>>, %arg3: memref<1x64x128xbf16, #tpu.memory_space<vmem>>, %arg4: memref<1x512x128xf32, #tpu.memory_space<vmem>>, %arg5: memref<1x1x2x128xf32, #tpu.memory_space<vmem>>) attributes {dimension_semantics = [#tpu.dimension_semantics<parallel>, #tpu.dimension_semantics<parallel>], iteration_bounds = array<i64: 4, 1>, scalar_prefetch = 0 : i64, scratch_operands = 0 : i64, tpu.core_type = #tpu.core_type<tc>, window_params = [{transform_indices = @transform_0, window_bounds = array<i64: 1, 512, 64>}, {transform_indices = @transform_1, window_bounds = array<i64: 1, 64, 128>}, {transform_indices = @transform_2, window_bounds = array<i64: 1, 512, 128>}, {transform_indices = @transform_3, window_bounds = array<i64: 1, 1, 2, 128>}]} {
    %c0 = arith.constant 0 : index
    %c0_0 = arith.constant 0 : index
    %c0_1 = arith.constant 0 : index
    %0 = vector.load %arg2[%c0, %c0_0, %c0_1] : memref<1x512x64xbf16, #tpu.memory_space<vmem>>, vector<1x512x64xbf16>
    %1 = vector.shape_cast %0 : vector<1x512x64xbf16> to vector<512x64xbf16>
    %c0_2 = arith.constant 0 : index
    %c0_3 = arith.constant 0 : index
    %c0_4 = arith.constant 0 : index
    %2 = vector.load %arg3[%c0_2, %c0_3, %c0_4] : memref<1x64x128xbf16, #tpu.memory_space<vmem>>, vector<1x64x128xbf16>
    %3 = vector.shape_cast %2 : vector<1x64x128xbf16> to vector<64x128xbf16>
    %cst = arith.constant dense<0.000000e+00> : vector<512x128xf32>
    %4 = tpu.matmul %1, %3, %cst {dimension_numbers = #tpu.dot_dimension_numbers<[1], [0], [0], [1], [0, 0, 1, 1], [], []>} : vector<512x64xbf16>, vector<64x128xbf16>, vector<512x128xf32> -> vector<512x128xf32>
    %c0_5 = arith.constant 0 : index
    %c0_6 = arith.constant 0 : index
    %c0_7 = arith.constant 0 : index
    %5 = vector.load %arg4[%c0_5, %c0_6, %c0_7] : memref<1x512x128xf32, #tpu.memory_space<vmem>>, vector<1x512x128xf32>
    %6 = vector.shape_cast %5 : vector<1x512x128xf32> to vector<512x128xf32>
    %7 = vector.shape_cast %4 : vector<512x128xf32> to vector<1x512x128xf32>
    tpu.vector_store %arg4[%c0_5, %c0_6, %c0_7], %7 {strides = array<i32>} : memref<1x512x128xf32, #tpu.memory_space<vmem>>, vector<1x512x128xf32>,
    %cst_8 = arith.constant dense<0.000000e+00> : vector<128xf32>
    %8 = vector.multi_reduction <add>, %4, %cst_8 [0] : vector<512x128xf32> to vector<128xf32>
    %9 = vector.shape_cast %8 : vector<128xf32> to vector<1x128xf32>
    %10 = arith.mulf %4, %4 : vector<512x128xf32>
    %cst_9 = arith.constant dense<0.000000e+00> : vector<128xf32>
    %11 = vector.multi_reduction <add>, %10, %cst_9 [0] : vector<512x128xf32> to vector<128xf32>
    %12 = vector.shape_cast %11 : vector<128xf32> to vector<1x128xf32>
    %13 = tpu.concatenate %9, %12 in 0 : vector<1x128xf32>, vector<1x128xf32> -> vector<2x128xf32>
    %c0_10 = arith.constant 0 : index
    %c0_11 = arith.constant 0 : index
    %c0_12 = arith.constant 0 : index
    %c0_13 = arith.constant 0 : index
    %14 = vector.load %arg5[%c0_10, %c0_11, %c0_12, %c0_13] : memref<1x1x2x128xf32, #tpu.memory_space<vmem>>, vector<1x1x2x128xf32>
    %15 = vector.shape_cast %14 : vector<1x1x2x128xf32> to vector<2x128xf32>
    %16 = vector.shape_cast %13 : vector<2x128xf32> to vector<1x1x2x128xf32>
    tpu.vector_store %arg5[%c0_10, %c0_11, %c0_12, %c0_13], %16 {strides = array<i32>} : memref<1x1x2x128xf32, #tpu.memory_space<vmem>>, vector<1x1x2x128xf32>,
    return
  }
  func.func @transform_0(%arg0: i32, %arg1: i32) -> (i32, i32, i32) {
    %c0_i32 = arith.constant 0 : i32
    %c0_i32_0 = arith.constant 0 : i32
    return %arg0, %arg1, %c0_i32 : i32, i32, i32
  }
  func.func @transform_1(%arg0: i32, %arg1: i32) -> (i32, i32, i32) {
    %c0_i32 = arith.constant 0 : i32
    %c0_i32_0 = arith.constant 0 : i32
    %c0_i32_1 = arith.constant 0 : i32
    return %arg0, %c0_i32, %c0_i32_0 : i32, i32, i32
  }
  func.func @transform_2(%arg0: i32, %arg1: i32) -> (i32, i32, i32) {
    %c0_i32 = arith.constant 0 : i32
    %c0_i32_0 = arith.constant 0 : i32
    return %arg0, %arg1, %c0_i32 : i32, i32, i32
  }
  func.func @transform_3(%arg0: i32, %arg1: i32) -> (i32, i32, i32, i32) {
    %c0_i32 = arith.constant 0 : i32
    %c0_i32_0 = arith.constant 0 : i32
    %c0_i32_1 = arith.constant 0 : i32
    return %arg0, %arg1, %c0_i32, %c0_i32_0 : i32, i32, i32, i32
  }
}

module attributes {stable_mosaic.version = 11 : i64} {
  func.func @_matmul_bias_tanh_kernel(%arg0: i32, %arg1: i32, %arg2: memref<1x1024x32xbf16, #tpu.memory_space<vmem>>, %arg3: memref<1x32x128xbf16, #tpu.memory_space<vmem>>, %arg4: memref<1x128xf32, #tpu.memory_space<vmem>>, %arg5: memref<1x1024x128xf32, #tpu.memory_space<vmem>>) attributes {dimension_semantics = [#tpu.dimension_semantics<parallel>, #tpu.dimension_semantics<parallel>], iteration_bounds = array<i64: 4, 2>, scalar_prefetch = 0 : i64, scratch_operands = 0 : i64, tpu.core_type = #tpu.core_type<tc>, window_params = [{transform_indices = @transform_0, window_bounds = array<i64: 1, 1024, 32>}, {transform_indices = @transform_1, window_bounds = array<i64: 1, 32, 128>}, {pipeline_mode = #tpu.pipeline_mode<synchronous>, transform_indices = @transform_2, window_bounds = array<i64: 1, 128>}, {transform_indices = @transform_3, window_bounds = array<i64: 1, 1024, 128>}]} {
    %c0 = arith.constant 0 : index
    %c0_0 = arith.constant 0 : index
    %c0_1 = arith.constant 0 : index
    %0 = vector.load %arg2[%c0, %c0_0, %c0_1] : memref<1x1024x32xbf16, #tpu.memory_space<vmem>>, vector<1x1024x32xbf16>
    %1 = vector.shape_cast %0 : vector<1x1024x32xbf16> to vector<1024x32xbf16>
    %c0_2 = arith.constant 0 : index
    %c0_3 = arith.constant 0 : index
    %c0_4 = arith.constant 0 : index
    %2 = vector.load %arg3[%c0_2, %c0_3, %c0_4] : memref<1x32x128xbf16, #tpu.memory_space<vmem>>, vector<1x32x128xbf16>
    %3 = vector.shape_cast %2 : vector<1x32x128xbf16> to vector<32x128xbf16>
    %cst = arith.constant dense<0.000000e+00> : vector<1024x128xf32>
    %4 = tpu.matmul %1, %3, %cst {dimension_numbers = #tpu.dot_dimension_numbers<[1], [0], [0], [1], [0, 0, 1, 1], [], []>} : vector<1024x32xbf16>, vector<32x128xbf16>, vector<1024x128xf32> -> vector<1024x128xf32>
    %c0_5 = arith.constant 0 : index
    %c0_6 = arith.constant 0 : index
    %5 = vector.load %arg4[%c0_5, %c0_6] : memref<1x128xf32, #tpu.memory_space<vmem>>, vector<1x128xf32>
    %6 = vector.broadcast %5 : vector<1x128xf32> to vector<1024x128xf32>
    %7 = arith.addf %4, %6 : vector<1024x128xf32>
    %8 = math.tanh %7 : vector<1024x128xf32>
    %c0_7 = arith.constant 0 : index
    %c0_8 = arith.constant 0 : index
    %c0_9 = arith.constant 0 : index
    %9 = vector.load %arg5[%c0_7, %c0_8, %c0_9] : memref<1x1024x128xf32, #tpu.memory_space<vmem>>, vector<1x1024x128xf32>
    %10 = vector.shape_cast %9 : vector<1x1024x128xf32> to vector<1024x128xf32>
    %11 = vector.shape_cast %8 : vector<1024x128xf32> to vector<1x1024x128xf32>
    tpu.vector_store %arg5[%c0_7, %c0_8, %c0_9], %11 {strides = array<i32>} : memref<1x1024x128xf32, #tpu.memory_space<vmem>>, vector<1x1024x128xf32>,
    return
  }
  func.func @transform_0(%arg0: i32, %arg1: i32) -> (i32, i32, i32) {
    %c0_i32 = arith.constant 0 : i32
    %c0_i32_0 = arith.constant 0 : i32
    return %arg0, %arg1, %c0_i32 : i32, i32, i32
  }
  func.func @transform_1(%arg0: i32, %arg1: i32) -> (i32, i32, i32) {
    %c0_i32 = arith.constant 0 : i32
    %c0_i32_0 = arith.constant 0 : i32
    %c0_i32_1 = arith.constant 0 : i32
    return %arg0, %c0_i32, %c0_i32_0 : i32, i32, i32
  }
  func.func @transform_2(%arg0: i32, %arg1: i32) -> (i32, i32) {
    %c0_i32 = arith.constant 0 : i32
    %c0_i32_0 = arith.constant 0 : i32
    %c0_i32_1 = arith.constant 0 : i32
    return %c0_i32, %c0_i32_0 : i32, i32
  }
  func.func @transform_3(%arg0: i32, %arg1: i32) -> (i32, i32, i32) {
    %c0_i32 = arith.constant 0 : i32
    %c0_i32_0 = arith.constant 0 : i32
    return %arg0, %arg1, %c0_i32 : i32, i32, i32
  }
}

</mosaic_0001>

<llo_original>
// kernel: tile.13
$region0: #{tile.13}
  #allocation0 [shape = 's32[1]{0}', space=sflag, size = 0x4, scoped, tag = 'scoped memory for tile.13']
  %s0 = inlined_call_operand.vmem [shape: f32[128], index: 0, kind: input, shape index: {}]
  %s1 = inlined_call_operand.vmem [shape: f32[16,128], index: 1, kind: output, shape index: {}]
  // Predicated region
  $region2: #{tile.13} parent=0 // pred_check
    _
  $region3: #{tile.13} parent=0 // pred_check_branch
    %3 = sbr.rel (0) target = $region5
  $region4: #{tile.13} parent=0 // pred_region
    _
  $region5: #{tile.13} parent=0 // pred_fallthru
    _
  %v4 = vld [vmem:[%s0] ss:$0 sm:$0xff]
  %5 = vst [vmem:[%s1] sm:$0xff] %v4
  %s6 = scalar_lea.vmem %s1, 8
  %7 = vst [vmem:[%s6] sm:$0xff] %v4

// kernel: generator_forward.10
$region0: #{generator_forward.10}
  #allocation0 [shape = 'u32[]', space=smem, size = 0x4, offset = 0x4, fixed_abs, tag = 'smem constant byte address 0x4 - core index']
  #allocation1 [shape = 'u32[144,128]{1,0:T(1,128)}', space=vmem, size = 0x12000, scoped, tag = 'internal scratch']
  %s0 = inlined_call_operand.vmem [shape: f32[1,2,2048], index: 0, kind: input, shape index: {}]
  %s1 = inlined_call_operand.vmem [shape: f32[1,2048], index: 1, kind: input, shape index: {}]
  %s2 = inlined_call_operand.vmem [shape: f32[1,2048], index: 2, kind: input, shape index: {}]
  %s3 = inlined_call_operand.vmem [shape: bf16[1,2,2048], index: 3, kind: output, shape index: {}]
  %s4 = sld [smem:[#allocation0]]
  $region22: #{generator_forward.10} parent=0
    _
  %s6 = ssub.s32 1, %s4
  %s7 = scalar_select 0, %s6, %s4
  // Predicated region
  $region2: #{generator_forward.10} parent=0 // pred_check
    _
  $region3: #{generator_forward.10} parent=0 // pred_check_branch
    %9 = sbr.rel (0) target = $region5
  $region4: #{generator_forward.10} parent=0 // pred_region
    _
  $region5: #{generator_forward.10} parent=0 // pred_fallthru
    _
  // Predicated region
  $region6: #{generator_forward.10} parent=0 // pred_check
    _
  $region7: #{generator_forward.10} parent=0 // pred_check_branch
    %11 = sbr.rel (0) target = $region9
  $region8: #{generator_forward.10} parent=0 // pred_region
    _
  $region9: #{generator_forward.10} parent=0 // pred_fallthru
    _
  // Predicated region
  $region10: #{generator_forward.10} parent=0 // pred_check
    _
  $region11: #{generator_forward.10} parent=0 // pred_check_branch
    %13 = sbr.rel (0) target = $region13
  $region12: #{generator_forward.10} parent=0 // pred_region
    _
  $region13: #{generator_forward.10} parent=0 // pred_fallthru
    _
  %v14 = vld [vmem:[%s0] sm:$0xff]
  %v15 = vld [vmem:[%s0 + $0x8] sm:$0xff]
  %v16 = vld [vmem:[%s0 + $0x10] sm:$0xff]
  %v17 = vld [vmem:[%s0 + $0x18] sm:$0xff]
  %v18 = vld [vmem:[%s1] sm:$0xff]
  %v19 = vld [vmem:[%s1 + $0x8] sm:$0xff]
  %v22 = vlaneseq
  %v23 = vshrl.u32 %v22, 7
  %v24 = vsub.s32 0, %v23
  %v25 = vrot.slane %v18, %v24
  %v26 = vlaneseq
  %v27 = vshrl.u32 %v26, 7
  %v28 = vsub.s32 1, %v27
  %v29 = vrot.slane %v18, %v28
  %v30 = vlaneseq
  %v31 = vshrl.u32 %v30, 7
  %v32 = vsub.s32 2, %v31
  %v33 = vrot.slane %v18, %v32
  %v34 = vlaneseq
  %v35 = vshrl.u32 %v34, 7
  %v36 = vsub.s32 3, %v35
  %v37 = vrot.slane %v18, %v36
  %v38 = vlaneseq
  %v39 = vshrl.u32 %v38, 7
  %v40 = vsub.s32 4, %v39
  %v41 = vrot.slane %v18, %v40
  %v42 = vlaneseq
  %v43 = vshrl.u32 %v42, 7
  %v44 = vsub.s32 5, %v43
  %v45 = vrot.slane %v18, %v44
  %v46 = vlaneseq
  %v47 = vshrl.u32 %v46, 7
  %v48 = vsub.s32 6, %v47
  %v49 = vrot.slane %v18, %v48
  %v50 = vlaneseq
  %v51 = vshrl.u32 %v50, 7
  %v52 = vsub.s32 7, %v51
  %v53 = vrot.slane %v18, %v52
  %v54 = vlaneseq
  %v55 = vshrl.u32 %v54, 7
  %v56 = vsub.s32 0, %v55
  %v57 = vrot.slane %v19, %v56
  %v58 = vlaneseq
  %v59 = vshrl.u32 %v58, 7
  %v60 = vsub.s32 1, %v59
  %v61 = vrot.slane %v19, %v60
  %v62 = vlaneseq
  %v63 = vshrl.u32 %v62, 7
  %v64 = vsub.s32 2, %v63
  %v65 = vrot.slane %v19, %v64
  %v66 = vlaneseq
  %v67 = vshrl.u32 %v66, 7
  %v68 = vsub.s32 3, %v67
  %v69 = vrot.slane %v19, %v68
  %v70 = vlaneseq
  %v71 = vshrl.u32 %v70, 7
  %v72 = vsub.s32 4, %v71
  %v73 = vrot.slane %v19, %v72
  %v74 = vlaneseq
  %v75 = vshrl.u32 %v74, 7
  %v76 = vsub.s32 5, %v75
  %v77 = vrot.slane %v19, %v76
  %v78 = vlaneseq
  %v79 = vshrl.u32 %v78, 7
  %v80 = vsub.s32 6, %v79
  %v81 = vrot.slane %v19, %v80
  %v82 = vlaneseq
  %v83 = vshrl.u32 %v82, 7
  %v84 = vsub.s32 7, %v83
  %v85 = vrot.slane %v19, %v84
  %v86 = vcombine.low %v25, %v29
  %v87 = vcombine.low %v33, %v37
  %v89 = vunpack.c.l.s4 1983009808
  %v90 = vunpack.c.0.s8 %v89
  %v91 = vlaneseq
  %v92 = vshrl.u32 %v91, 7
  %v93 = vsub.s32 %v90, %v92
  %v94 = vrot.slane %v86, %v93
  %v96 = vunpack.c.l.s4 1983009808
  %v97 = vunpack.c.0.s8 %v96
  %v98 = vlaneseq
  %v99 = vshrl.u32 %v98, 7
  %v100 = vsub.s32 %v97, %v99
  %v101 = vrot.slane %v87, %v100
  %v102 = vcombine.low %v94, %v101
  %v103 = vcombine.low %v41, %v45
  %v104 = vcombine.low %v49, %v53
  %v106 = vunpack.c.l.s4 1983009808
  %v107 = vunpack.c.0.s8 %v106
  %v108 = vlaneseq
  %v109 = vshrl.u32 %v108, 7
  %v110 = vsub.s32 %v107, %v109
  %v111 = vrot.slane %v103, %v110
  %v113 = vunpack.c.l.s4 1983009808
  %v114 = vunpack.c.0.s8 %v113
  %v115 = vlaneseq
  %v116 = vshrl.u32 %v115, 7
  %v117 = vsub.s32 %v114, %v116
  %v118 = vrot.slane %v104, %v117
  %v119 = vcombine.low %v111, %v118
  %v120 = vcombine.low %v57, %v61
  %v121 = vcombine.low %v65, %v69
  %v123 = vunpack.c.l.s4 1983009808
  %v124 = vunpack.c.0.s8 %v123
  %v125 = vlaneseq
  %v126 = vshrl.u32 %v125, 7
  %v127 = vsub.s32 %v124, %v126
  %v128 = vrot.slane %v120, %v127
  %v130 = vunpack.c.l.s4 1983009808
  %v131 = vunpack.c.0.s8 %v130
  %v132 = vlaneseq
  %v133 = vshrl.u32 %v132, 7
  %v134 = vsub.s32 %v131, %v133
  %v135 = vrot.slane %v121, %v134
  %v136 = vcombine.low %v128, %v135
  %v137 = vcombine.low %v73, %v77
  %v138 = vcombine.low %v81, %v85
  %v140 = vunpack.c.l.s4 1983009808
  %v141 = vunpack.c.0.s8 %v140
  %v142 = vlaneseq
  %v143 = vshrl.u32 %v142, 7
  %v144 = vsub.s32 %v141, %v143
  %v145 = vrot.slane %v137, %v144
  %v147 = vunpack.c.l.s4 1983009808
  %v148 = vunpack.c.0.s8 %v147
  %v149 = vlaneseq
  %v150 = vshrl.u32 %v149, 7
  %v151 = vsub.s32 %v148, %v150
  %v152 = vrot.slane %v138, %v151
  %v153 = vcombine.low %v145, %v152
  %v158 = vmul.f32 %v14, %v102
  %v159 = vmul.f32 %v15, %v119
  %v160 = vmul.f32 %v16, %v136
  %v161 = vmul.f32 %v17, %v153
  %v162 = vld [vmem:[%s2] sm:$0xff]
  %v163 = vld [vmem:[%s2 + $0x8] sm:$0xff]
  %v166 = vlaneseq
  %v167 = vshrl.u32 %v166, 7
  %v168 = vsub.s32 0, %v167
  %v169 = vrot.slane %v162, %v168
  %v170 = vlaneseq
  %v171 = vshrl.u32 %v170, 7
  %v172 = vsub.s32 1, %v171
  %v173 = vrot.slane %v162, %v172
  %v174 = vlaneseq
  %v175 = vshrl.u32 %v174, 7
  %v176 = vsub.s32 2, %v175
  %v177 = vrot.slane %v162, %v176
  %v178 = vlaneseq
  %v179 = vshrl.u32 %v178, 7
  %v180 = vsub.s32 3, %v179
  %v181 = vrot.slane %v162, %v180
  %v182 = vlaneseq
  %v183 = vshrl.u32 %v182, 7
  %v184 = vsub.s32 4, %v183
  %v185 = vrot.slane %v162, %v184
  %v186 = vlaneseq
  %v187 = vshrl.u32 %v186, 7
  %v188 = vsub.s32 5, %v187
  %v189 = vrot.slane %v162, %v188
  %v190 = vlaneseq
  %v191 = vshrl.u32 %v190, 7
  %v192 = vsub.s32 6, %v191
  %v193 = vrot.slane %v162, %v192
  %v194 = vlaneseq
  %v195 = vshrl.u32 %v194, 7
  %v196 = vsub.s32 7, %v195
  %v197 = vrot.slane %v162, %v196
  %v198 = vlaneseq
  %v199 = vshrl.u32 %v198, 7
  %v200 = vsub.s32 0, %v199
  %v201 = vrot.slane %v163, %v200
  %v202 = vlaneseq
  %v203 = vshrl.u32 %v202, 7
  %v204 = vsub.s32 1, %v203
  %v205 = vrot.slane %v163, %v204
  %v206 = vlaneseq
  %v207 = vshrl.u32 %v206, 7
  %v208 = vsub.s32 2, %v207
  %v209 = vrot.slane %v163, %v208
  %v210 = vlaneseq
  %v211 = vshrl.u32 %v210, 7
  %v212 = vsub.s32 3, %v211
  %v213 = vrot.slane %v163, %v212
  %v214 = vlaneseq
  %v215 = vshrl.u32 %v214, 7
  %v216 = vsub.s32 4, %v215
  %v217 = vrot.slane %v163, %v216
  %v218 = vlaneseq
  %v219 = vshrl.u32 %v218, 7
  %v220 = vsub.s32 5, %v219
  %v221 = vrot.slane %v163, %v220
  %v222 = vlaneseq
  %v223 = vshrl.u32 %v222, 7
  %v224 = vsub.s32 6, %v223
  %v225 = vrot.slane %v163, %v224
  %v226 = vlaneseq
  %v227 = vshrl.u32 %v226, 7
  %v228 = vsub.s32 7, %v227
  %v229 = vrot.slane %v163, %v228
  %v230 = vcombine.low %v169, %v173
  %v231 = vcombine.low %v177, %v181
  %v233 = vunpack.c.l.s4 1983009808
  %v234 = vunpack.c.0.s8 %v233
  %v235 = vlaneseq
  %v236 = vshrl.u32 %v235, 7
  %v237 = vsub.s32 %v234, %v236
  %v238 = vrot.slane %v230, %v237
  %v240 = vunpack.c.l.s4 1983009808
  %v241 = vunpack.c.0.s8 %v240
  %v242 = vlaneseq
  %v243 = vshrl.u32 %v242, 7
  %v244 = vsub.s32 %v241, %v243
  %v245 = vrot.slane %v231, %v244
  %v246 = vcombine.low %v238, %v245
  %v247 = vcombine.low %v185, %v189
  %v248 = vcombine.low %v193, %v197
  %v250 = vunpack.c.l.s4 1983009808
  %v251 = vunpack.c.0.s8 %v250
  %v252 = vlaneseq
  %v253 = vshrl.u32 %v252, 7
  %v254 = vsub.s32 %v251, %v253
  %v255 = vrot.slane %v247, %v254
  %v257 = vunpack.c.l.s4 1983009808
  %v258 = vunpack.c.0.s8 %v257
  %v259 = vlaneseq
  %v260 = vshrl.u32 %v259, 7
  %v261 = vsub.s32 %v258, %v260
  %v262 = vrot.slane %v248, %v261
  %v263 = vcombine.low %v255, %v262
  %v264 = vcombine.low %v201, %v205
  %v265 = vcombine.low %v209, %v213
  %v267 = vunpack.c.l.s4 1983009808
  %v268 = vunpack.c.0.s8 %v267
  %v269 = vlaneseq
  %v270 = vshrl.u32 %v269, 7
  %v271 = vsub.s32 %v268, %v270
  %v272 = vrot.slane %v264, %v271
  %v274 = vunpack.c.l.s4 1983009808
  %v275 = vunpack.c.0.s8 %v274
  %v276 = vlaneseq
  %v277 = vshrl.u32 %v276, 7
  %v278 = vsub.s32 %v275, %v277
  %v279 = vrot.slane %v265, %v278
  %v280 = vcombine.low %v272, %v279
  %v281 = vcombine.low %v217, %v221
  %v282 = vcombine.low %v225, %v229
  %v284 = vunpack.c.l.s4 1983009808
  %v285 = vunpack.c.0.s8 %v284
  %v286 = vlaneseq
  %v287 = vshrl.u32 %v286, 7
  %v288 = vsub.s32 %v285, %v287
  %v289 = vrot.slane %v281, %v288
  %v291 = vunpack.c.l.s4 1983009808
  %v292 = vunpack.c.0.s8 %v291
  %v293 = vlaneseq
  %v294 = vshrl.u32 %v293, 7
  %v295 = vsub.s32 %v292, %v294
  %v296 = vrot.slane %v282, %v295
  %v297 = vcombine.low %v289, %v296
  %v302 = vadd.f32 %v158, %v246
  %v303 = vadd.f32 %v159, %v263
  %v304 = vadd.f32 %v160, %v280
  %v305 = vadd.f32 %v161, %v297
  %v306 = vmax.f32 %v302, 0.0
  %v307 = vmax.f32 %v303, 0.0
  %v308 = vmax.f32 %v304, 0.0
  %v309 = vmax.f32 %v305, 0.0
  %v314 = vcombine.high %v306, %v306
  %v316 = vunpack.c.l.s4 1983009808
  %v317 = vunpack.c.0.s8 %v316
  %v318 = vlaneseq
  %v319 = vshrl.u32 %v318, 7
  %v320 = vsub.s32 %v317, %v319
  %v321 = vrot.slane %v306, %v320
  %v323 = vunpack.c.l.s4 1983009808
  %v324 = vunpack.c.0.s8 %v323
  %v325 = vlaneseq
  %v326 = vshrl.u32 %v325, 7
  %v327 = vsub.s32 %v324, %v326
  %v328 = vrot.slane %v314, %v327
  %v329 = vcombine.high %v321, %v321
  %v330 = vcombine.high %v328, %v328
  %v331 = vcombine.high %v307, %v307
  %v333 = vunpack.c.l.s4 1983009808
  %v334 = vunpack.c.0.s8 %v333
  %v335 = vlaneseq
  %v336 = vshrl.u32 %v335, 7
  %v337 = vsub.s32 %v334, %v336
  %v338 = vrot.slane %v307, %v337
  %v340 = vunpack.c.l.s4 1983009808
  %v341 = vunpack.c.0.s8 %v340
  %v342 = vlaneseq
  %v343 = vshrl.u32 %v342, 7
  %v344 = vsub.s32 %v341, %v343
  %v345 = vrot.slane %v331, %v344
  %v346 = vcombine.high %v338, %v338
  %v347 = vcombine.high %v345, %v345
  %v348 = vcombine.high %v308, %v308
  %v350 = vunpack.c.l.s4 1983009808
  %v351 = vunpack.c.0.s8 %v350
  %v352 = vlaneseq
  %v353 = vshrl.u32 %v352, 7
  %v354 = vsub.s32 %v351, %v353
  %v355 = vrot.slane %v308, %v354
  %v357 = vunpack.c.l.s4 1983009808
  %v358 = vunpack.c.0.s8 %v357
  %v359 = vlaneseq
  %v360 = vshrl.u32 %v359, 7
  %v361 = vsub.s32 %v358, %v360
  %v362 = vrot.slane %v348, %v361
  %v363 = vcombine.high %v355, %v355
  %v364 = vcombine.high %v362, %v362
  %v365 = vcombine.high %v309, %v309
  %v367 = vunpack.c.l.s4 1983009808
  %v368 = vunpack.c.0.s8 %v367
  %v369 = vlaneseq
  %v370 = vshrl.u32 %v369, 7
  %v371 = vsub.s32 %v368, %v370
  %v372 = vrot.slane %v309, %v371
  %v374 = vunpack.c.l.s4 1983009808
  %v375 = vunpack.c.0.s8 %v374
  %v376 = vlaneseq
  %v377 = vshrl.u32 %v376, 7
  %v378 = vsub.s32 %v375, %v377
  %v379 = vrot.slane %v365, %v378
  %v380 = vcombine.high %v372, %v372
  %v381 = vcombine.high %v379, %v379
  %v398 = vpack.c.bf16 %v321, %v321
  %v399 = vpack.c.bf16 %v329, %v329
  %v400 = vpack.c.bf16 %v328, %v328
  %v401 = vpack.c.bf16 %v330, %v330
  %v402 = vpack.c.bf16 %v338, %v338
  %v403 = vpack.c.bf16 %v346, %v346
  %v404 = vpack.c.bf16 %v345, %v345
  %v405 = vpack.c.bf16 %v347, %v347
  %v406 = vpack.c.bf16 %v355, %v355
  %v407 = vpack.c.bf16 %v363, %v363
  %v408 = vpack.c.bf16 %v362, %v362
  %v409 = vpack.c.bf16 %v364, %v364
  %v410 = vpack.c.bf16 %v372, %v372
  %v411 = vpack.c.bf16 %v380, %v380
  %v412 = vpack.c.bf16 %v379, %v379
  %v413 = vpack.c.bf16 %v381, %v381
  %v430 = vcombine.low %v398, %v399
  %v431 = vcombine.low %v400, %v401
  %v432 = vcombine.low %v402, %v403
  %v433 = vcombine.low %v404, %v405
  %v435 = vunpack.c.l.s4 1966171168
  %v436 = vunpack.c.0.s8 %v435
  %v437 = vlaneseq
  %v438 = vshrl.u32 %v437, 7
  %v439 = vsub.s32 %v436, %v438
  %v440 = vrot.slane %v430, %v439
  %v442 = vunpack.c.l.s4 1966171168
  %v443 = vunpack.c.0.s8 %v442
  %v444 = vlaneseq
  %v445 = vshrl.u32 %v444, 7
  %v446 = vsub.s32 %v443, %v445
  %v447 = vrot.slane %v431, %v446
  %v449 = vunpack.c.l.s4 1966171168
  %v450 = vunpack.c.0.s8 %v449
  %v451 = vlaneseq
  %v452 = vshrl.u32 %v451, 7
  %v453 = vsub.s32 %v450, %v452
  %v454 = vrot.slane %v432, %v453
  %v456 = vunpack.c.l.s4 1966171168
  %v457 = vunpack.c.0.s8 %v456
  %v458 = vlaneseq
  %v459 = vshrl.u32 %v458, 7
  %v460 = vsub.s32 %v457, %v459
  %v461 = vrot.slane %v433, %v460
  %v462 = vcombine.low %v440, %v447
  %v463 = vcombine.low %v454, %v461
  %v465 = vunpack.c.l.s4 1966171168
  %v466 = vunpack.c.0.s8 %v465
  %v467 = vlaneseq
  %v468 = vshrl.u32 %v467, 7
  %v469 = vsub.s32 %v466, %v468
  %v470 = vrot.slane %v462, %v469
  %v472 = vunpack.c.l.s4 1966171168
  %v473 = vunpack.c.0.s8 %v472
  %v474 = vlaneseq
  %v475 = vshrl.u32 %v474, 7
  %v476 = vsub.s32 %v473, %v475
  %v477 = vrot.slane %v463, %v476
  %v478 = vcombine.low %v470, %v477
  %v479 = vcombine.low %v406, %v407
  %v480 = vcombine.low %v408, %v409
  %v481 = vcombine.low %v410, %v411
  %v482 = vcombine.low %v412, %v413
  %v484 = vunpack.c.l.s4 1966171168
  %v485 = vunpack.c.0.s8 %v484
  %v486 = vlaneseq
  %v487 = vshrl.u32 %v486, 7
  %v488 = vsub.s32 %v485, %v487
  %v489 = vrot.slane %v479, %v488
  %v491 = vunpack.c.l.s4 1966171168
  %v492 = vunpack.c.0.s8 %v491
  %v493 = vlaneseq
  %v494 = vshrl.u32 %v493, 7
  %v495 = vsub.s32 %v492, %v494
  %v496 = vrot.slane %v480, %v495
  %v498 = vunpack.c.l.s4 1966171168
  %v499 = vunpack.c.0.s8 %v498
  %v500 = vlaneseq
  %v501 = vshrl.u32 %v500, 7
  %v502 = vsub.s32 %v499, %v501
  %v503 = vrot.slane %v481, %v502
  %v505 = vunpack.c.l.s4 1966171168
  %v506 = vunpack.c.0.s8 %v505
  %v507 = vlaneseq
  %v508 = vshrl.u32 %v507, 7
  %v509 = vsub.s32 %v506, %v508
  %v510 = vrot.slane %v482, %v509
  %v511 = vcombine.low %v489, %v496
  %v512 = vcombine.low %v503, %v510
  %v514 = vunpack.c.l.s4 1966171168
  %v515 = vunpack.c.0.s8 %v514
  %v516 = vlaneseq
  %v517 = vshrl.u32 %v516, 7
  %v518 = vsub.s32 %v515, %v517
  %v519 = vrot.slane %v511, %v518
  %v521 = vunpack.c.l.s4 1966171168
  %v522 = vunpack.c.0.s8 %v521
  %v523 = vlaneseq
  %v524 = vshrl.u32 %v523, 7
  %v525 = vsub.s32 %v522, %v524
  %v526 = vrot.slane %v512, %v525
  %v527 = vcombine.low %v519, %v526
  %530 = vst [vmem:[%s3] sm:$0xff] %v478
  %531 = vst [vmem:[%s3 + $0x8] sm:$0xff] %v527
  // Predicated region
  $region14: #{generator_forward.10} parent=0 // pred_check
    _
  $region15: #{generator_forward.10} parent=0 // pred_check_branch
    %533 = sbr.rel (0) target = $region17
  $region16: #{generator_forward.10} parent=0 // pred_region
    _
  $region17: #{generator_forward.10} parent=0 // pred_fallthru
    _
  // Predicated region
  $region18: #{generator_forward.10} parent=0 // pred_check
    _
  $region19: #{generator_forward.10} parent=0 // pred_check_branch
    %535 = sbr.rel (0) target = $region21
  $region20: #{generator_forward.10} parent=0 // pred_region
    _
  $region21: #{generator_forward.10} parent=0 // pred_fallthru
    _

// kernel: generator_forward.9
$region0: #{generator_forward.9}
  #allocation0 [shape = 'u32[]', space=smem, size = 0x4, offset = 0x4, fixed_abs, tag = 'smem constant byte address 0x4 - core index']
  #allocation1 [shape = 'u32[144,128]{1,0:T(1,128)}', space=vmem, size = 0x12000, scoped, tag = 'internal scratch']
  %s0 = inlined_call_operand.vmem [shape: bf16[1,2,8], index: 0, kind: input, shape index: {}]
  %s1 = inlined_call_operand.vmem [shape: bf16[1,8,2048], index: 1, kind: input, shape index: {}]
  %s2 = inlined_call_operand.vmem [shape: f32[1,2,2048], index: 2, kind: output, shape index: {0}]
  %s3 = inlined_call_operand.vmem [shape: f32[1,1,2,2048], index: 3, kind: output, shape index: {1}]
  %4 = xla_tuple %s2, %s3
  %s5 = sld [smem:[#allocation0]]
  $region26: #{generator_forward.9} parent=0
    _
  %s7 = ssub.s32 1, %s5
  %s8 = scalar_select 0, %s7, %s5
  // Predicated region
  $region2: #{generator_forward.9} parent=0 // pred_check
    _
  $region3: #{generator_forward.9} parent=0 // pred_check_branch
    %10 = sbr.rel (0) target = $region5
  $region4: #{generator_forward.9} parent=0 // pred_region
    _
  $region5: #{generator_forward.9} parent=0 // pred_fallthru
    _
  // Predicated region
  $region6: #{generator_forward.9} parent=0 // pred_check
    _
  $region7: #{generator_forward.9} parent=0 // pred_check_branch
    %12 = sbr.rel (0) target = $region9
  $region8: #{generator_forward.9} parent=0 // pred_region
    _
  $region9: #{generator_forward.9} parent=0 // pred_fallthru
    _
  %v14 = vld [vmem:[%s0] sm:$0x1]
  %v15 = vld [vmem:[%s1] sm:$0xff]
  %v16 = vld [vmem:[%s1 + $0x8] sm:$0xff]
  %v17 = vld [vmem:[%s1 + $0x10] sm:$0xff]
  %v18 = vld [vmem:[%s1 + $0x18] sm:$0xff]
  %v19 = vld [vmem:[%s1 + $0x20] sm:$0xff]
  %v20 = vld [vmem:[%s1 + $0x28] sm:$0xff]
  %v21 = vld [vmem:[%s1 + $0x30] sm:$0xff]
  %v22 = vld [vmem:[%s1 + $0x38] sm:$0xff]
  %v31 = vunpack.c.l.b16 %v15
  %v32 = vunpack.c.h.b16 %v15
  %v33 = vunpack.c.l.b16 %v16
  %v34 = vunpack.c.h.b16 %v16
  %v35 = vunpack.c.l.b16 %v17
  %v36 = vunpack.c.h.b16 %v17
  %v37 = vunpack.c.l.b16 %v18
  %v38 = vunpack.c.h.b16 %v18
  %v39 = vunpack.c.l.b16 %v19
  %v40 = vunpack.c.h.b16 %v19
  %v41 = vunpack.c.l.b16 %v20
  %v42 = vunpack.c.h.b16 %v20
  %v43 = vunpack.c.l.b16 %v21
  %v44 = vunpack.c.h.b16 %v21
  %v45 = vunpack.c.l.b16 %v22
  %v46 = vunpack.c.h.b16 %v22
  %v47 = vpack.c.b16 %v31, %v31
  %v48 = vpack.c.b16 %v32, %v32
  %v49 = vpack.c.b16 %v33, %v33
  %v50 = vpack.c.b16 %v34, %v34
  %v51 = vpack.c.b16 %v35, %v35
  %v52 = vpack.c.b16 %v36, %v36
  %v53 = vpack.c.b16 %v37, %v37
  %v54 = vpack.c.b16 %v38, %v38
  %v55 = vpack.c.b16 %v39, %v39
  %v56 = vpack.c.b16 %v40, %v40
  %v57 = vpack.c.b16 %v41, %v41
  %v58 = vpack.c.b16 %v42, %v42
  %v59 = vpack.c.b16 %v43, %v43
  %v60 = vpack.c.b16 %v44, %v44
  %v61 = vpack.c.b16 %v45, %v45
  %v62 = vpack.c.b16 %v46, %v46
  %vm63 = vcmask 64512
  %v65 = vsel %vm63, %v14, 0
  %vm67 = vcmask 1043456
  %v69 = vsel %vm67, %v47, 0
  %v72 = vsel %vm67, %v48, 0
  %v75 = vsel %vm67, %v49, 0
  %v78 = vsel %vm67, %v50, 0
  %v81 = vsel %vm67, %v51, 0
  %v84 = vsel %vm67, %v52, 0
  %v87 = vsel %vm67, %v53, 0
  %v90 = vsel %vm67, %v54, 0
  %v93 = vsel %vm67, %v55, 0
  %v96 = vsel %vm67, %v56, 0
  %v99 = vsel %vm67, %v57, 0
  %v102 = vsel %vm67, %v58, 0
  %v105 = vsel %vm67, %v59, 0
  %v108 = vsel %vm67, %v60, 0
  %v111 = vsel %vm67, %v61, 0
  %v114 = vsel %vm67, %v62, 0
  %116 = vmatprep.subr.bf16.mxu0 %v72
  %117 = vmatpush1.bf16.msra.mxu0 %v69
  %118 = vmatprep.subr.bf16.mxu0 0
  %119 = vmatpush1.bf16.msra.mxu0 0
  %120 = vmatprep.subr.bf16.mxu0 0
  %121 = vmatpush1.bf16.msra.mxu0 0
  %122 = vmatprep.subr.bf16.mxu0 0
  %123 = vmatpush1.bf16.msra.mxu0 0
  %124 = vmatprep.subr.bf16.mxu0 0
  %125 = vmatpush1.bf16.msra.mxu0 0
  %126 = vmatprep.subr.bf16.mxu0 0
  %127 = vmatpush1.bf16.msra.mxu0 0
  %128 = vmatprep.subr.bf16.mxu0 0
  %129 = vmatpush1.bf16.msra.mxu0 0
  %130 = vmatprep.subr.bf16.mxu0 0
  %131 = vmatpush1.bf16.msra.mxu0 0
  %132 = vmatprep.subr.bf16.mxu0 0
  %133 = vmatpush1.bf16.msra.mxu0 0
  %134 = vmatprep.subr.bf16.mxu0 0
  %135 = vmatpush1.bf16.msra.mxu0 0
  %136 = vmatprep.subr.bf16.mxu0 0
  %137 = vmatpush1.bf16.msra.mxu0 0
  %138 = vmatprep.subr.bf16.mxu0 0
  %139 = vmatpush1.bf16.msra.mxu0 0
  %140 = vmatprep.subr.bf16.mxu0 0
  %141 = vmatpush1.bf16.msra.mxu0 0
  %142 = vmatprep.subr.bf16.mxu0 0
  %143 = vmatpush1.bf16.msra.mxu0 0
  %144 = vmatprep.subr.bf16.mxu0 0
  %145 = vmatpush1.bf16.msra.mxu0 0
  %146 = vmatprep.subr.bf16.mxu0 0
  %147 = vmatpush1.bf16.msra.mxu0 0
  %148 = vmatprep.mubr.bf16.mxu0 0
  %149 = vmatmul.mubr.bf16.gmra.mrb[0].mxu0 %v65
  %v150 = vpop.f32.mrb[0].mxu0
  %v151 = vadd.f32 0.0, %v150
  %v152 = vpop.f32.mrb[0].mxu0
  %v153 = vadd.f32 0.0, %v152
  %v154 = vpop.f32.mrb[0].mxu0
  %v155 = vpop.f32.mrb[0].mxu0
  %156 = vdwg.mxu0
  %157 = vmatprep.subr.bf16.mxu0 %v78
  %158 = vmatpush1.bf16.msra.mxu0 %v75
  %159 = vmatprep.subr.bf16.mxu0 0
  %160 = vmatpush1.bf16.msra.mxu0 0
  %161 = vmatprep.subr.bf16.mxu0 0
  %162 = vmatpush1.bf16.msra.mxu0 0
  %163 = vmatprep.subr.bf16.mxu0 0
  %164 = vmatpush1.bf16.msra.mxu0 0
  %165 = vmatprep.subr.bf16.mxu0 0
  %166 = vmatpush1.bf16.msra.mxu0 0
  %167 = vmatprep.subr.bf16.mxu0 0
  %168 = vmatpush1.bf16.msra.mxu0 0
  %169 = vmatprep.subr.bf16.mxu0 0
  %170 = vmatpush1.bf16.msra.mxu0 0
  %171 = vmatprep.subr.bf16.mxu0 0
  %172 = vmatpush1.bf16.msra.mxu0 0
  %173 = vmatprep.subr.bf16.mxu0 0
  %174 = vmatpush1.bf16.msra.mxu0 0
  %175 = vmatprep.subr.bf16.mxu0 0
  %176 = vmatpush1.bf16.msra.mxu0 0
  %177 = vmatprep.subr.bf16.mxu0 0
  %178 = vmatpush1.bf16.msra.mxu0 0
  %179 = vmatprep.subr.bf16.mxu0 0
  %180 = vmatpush1.bf16.msra.mxu0 0
  %181 = vmatprep.subr.bf16.mxu0 0
  %182 = vmatpush1.bf16.msra.mxu0 0
  %183 = vmatprep.subr.bf16.mxu0 0
  %184 = vmatpush1.bf16.msra.mxu0 0
  %185 = vmatprep.subr.bf16.mxu0 0
  %186 = vmatpush1.bf16.msra.mxu0 0
  %187 = vmatprep.subr.bf16.mxu0 0
  %188 = vmatpush1.bf16.msra.mxu0 0
  %189 = vmatprep.mubr.bf16.mxu0 0
  %190 = vmatmul.mubr.bf16.gmra.mrb[0].mxu0 %v65
  %v191 = vpop.f32.mrb[0].mxu0
  %v192 = vadd.f32 0.0, %v191
  %v193 = vpop.f32.mrb[0].mxu0
  %v194 = vadd.f32 0.0, %v193
  %v195 = vpop.f32.mrb[0].mxu0
  %v196 = vpop.f32.mrb[0].mxu0
  %197 = vdwg.mxu0
  %198 = vmatprep.subr.bf16.mxu0 %v84
  %199 = vmatpush1.bf16.msra.mxu0 %v81
  %200 = vmatprep.subr.bf16.mxu0 0
  %201 = vmatpush1.bf16.msra.mxu0 0
  %202 = vmatprep.subr.bf16.mxu0 0
  %203 = vmatpush1.bf16.msra.mxu0 0
  %204 = vmatprep.subr.bf16.mxu0 0
  %205 = vmatpush1.bf16.msra.mxu0 0
  %206 = vmatprep.subr.bf16.mxu0 0
  %207 = vmatpush1.bf16.msra.mxu0 0
  %208 = vmatprep.subr.bf16.mxu0 0
  %209 = vmatpush1.bf16.msra.mxu0 0
  %210 = vmatprep.subr.bf16.mxu0 0
  %211 = vmatpush1.bf16.msra.mxu0 0
  %212 = vmatprep.subr.bf16.mxu0 0
  %213 = vmatpush1.bf16.msra.mxu0 0
  %214 = vmatprep.subr.bf16.mxu0 0
  %215 = vmatpush1.bf16.msra.mxu0 0
  %216 = vmatprep.subr.bf16.mxu0 0
  %217 = vmatpush1.bf16.msra.mxu0 0
  %218 = vmatprep.subr.bf16.mxu0 0
  %219 = vmatpush1.bf16.msra.mxu0 0
  %220 = vmatprep.subr.bf16.mxu0 0
  %221 = vmatpush1.bf16.msra.mxu0 0
  %222 = vmatprep.subr.bf16.mxu0 0
  %223 = vmatpush1.bf16.msra.mxu0 0
  %224 = vmatprep.subr.bf16.mxu0 0
  %225 = vmatpush1.bf16.msra.mxu0 0
  %226 = vmatprep.subr.bf16.mxu0 0
  %227 = vmatpush1.bf16.msra.mxu0 0
  %228 = vmatprep.subr.bf16.mxu0 0
  %229 = vmatpush1.bf16.msra.mxu0 0
  %230 = vmatprep.mubr.bf16.mxu0 0
  %231 = vmatmul.mubr.bf16.gmra.mrb[0].mxu0 %v65
  %v232 = vpop.f32.mrb[0].mxu0
  %v233 = vadd.f32 0.0, %v232
  %v234 = vpop.f32.mrb[0].mxu0
  %v235 = vadd.f32 0.0, %v234
  %v236 = vpop.f32.mrb[0].mxu0
  %v237 = vpop.f32.mrb[0].mxu0
  %238 = vdwg.mxu0
  %239 = vmatprep.subr.bf16.mxu0 %v90
  %240 = vmatpush1.bf16.msra.mxu0 %v87
  %241 = vmatprep.subr.bf16.mxu0 0
  %242 = vmatpush1.bf16.msra.mxu0 0
  %243 = vmatprep.subr.bf16.mxu0 0
  %244 = vmatpush1.bf16.msra.mxu0 0
  %245 = vmatprep.subr.bf16.mxu0 0
  %246 = vmatpush1.bf16.msra.mxu0 0
  %247 = vmatprep.subr.bf16.mxu0 0
  %248 = vmatpush1.bf16.msra.mxu0 0
  %249 = vmatprep.subr.bf16.mxu0 0
  %250 = vmatpush1.bf16.msra.mxu0 0
  %251 = vmatprep.subr.bf16.mxu0 0
  %252 = vmatpush1.bf16.msra.mxu0 0
  %253 = vmatprep.subr.bf16.mxu0 0
  %254 = vmatpush1.bf16.msra.mxu0 0
  %255 = vmatprep.subr.bf16.mxu0 0
  %256 = vmatpush1.bf16.msra.mxu0 0
  %257 = vmatprep.subr.bf16.mxu0 0
  %258 = vmatpush1.bf16.msra.mxu0 0
  %259 = vmatprep.subr.bf16.mxu0 0
  %260 = vmatpush1.bf16.msra.mxu0 0
  %261 = vmatprep.subr.bf16.mxu0 0
  %262 = vmatpush1.bf16.msra.mxu0 0
  %263 = vmatprep.subr.bf16.mxu0 0
  %264 = vmatpush1.bf16.msra.mxu0 0
  %265 = vmatprep.subr.bf16.mxu0 0
  %266 = vmatpush1.bf16.msra.mxu0 0
  %267 = vmatprep.subr.bf16.mxu0 0
  %268 = vmatpush1.bf16.msra.mxu0 0
  %269 = vmatprep.subr.bf16.mxu0 0
  %270 = vmatpush1.bf16.msra.mxu0 0
  %271 = vmatprep.mubr.bf16.mxu0 0
  %272 = vmatmul.mubr.bf16.gmra.mrb[0].mxu0 %v65
  %v273 = vpop.f32.mrb[0].mxu0
  %v274 = vadd.f32 0.0, %v273
  %v275 = vpop.f32.mrb[0].mxu0
  %v276 = vadd.f32 0.0, %v275
  %v277 = vpop.f32.mrb[0].mxu0
  %v278 = vpop.f32.mrb[0].mxu0
  %279 = vdwg.mxu0
  %280 = vmatprep.subr.bf16.mxu0 %v96
  %281 = vmatpush1.bf16.msra.mxu0 %v93
  %282 = vmatprep.subr.bf16.mxu0 0
  %283 = vmatpush1.bf16.msra.mxu0 0
  %284 = vmatprep.subr.bf16.mxu0 0
  %285 = vmatpush1.bf16.msra.mxu0 0
  %286 = vmatprep.subr.bf16.mxu0 0
  %287 = vmatpush1.bf16.msra.mxu0 0
  %288 = vmatprep.subr.bf16.mxu0 0
  %289 = vmatpush1.bf16.msra.mxu0 0
  %290 = vmatprep.subr.bf16.mxu0 0
  %291 = vmatpush1.bf16.msra.mxu0 0
  %292 = vmatprep.subr.bf16.mxu0 0
  %293 = vmatpush1.bf16.msra.mxu0 0
  %294 = vmatprep.subr.bf16.mxu0 0
  %295 = vmatpush1.bf16.msra.mxu0 0
  %296 = vmatprep.subr.bf16.mxu0 0
  %297 = vmatpush1.bf16.msra.mxu0 0
  %298 = vmatprep.subr.bf16.mxu0 0
  %299 = vmatpush1.bf16.msra.mxu0 0
  %300 = vmatprep.subr.bf16.mxu0 0
  %301 = vmatpush1.bf16.msra.mxu0 0
  %302 = vmatprep.subr.bf16.mxu0 0
  %303 = vmatpush1.bf16.msra.mxu0 0
  %304 = vmatprep.subr.bf16.mxu0 0
  %305 = vmatpush1.bf16.msra.mxu0 0
  %306 = vmatprep.subr.bf16.mxu0 0
  %307 = vmatpush1.bf16.msra.mxu0 0
  %308 = vmatprep.subr.bf16.mxu0 0
  %309 = vmatpush1.bf16.msra.mxu0 0
  %310 = vmatprep.subr.bf16.mxu0 0
  %311 = vmatpush1.bf16.msra.mxu0 0
  %312 = vmatprep.mubr.bf16.mxu0 0
  %313 = vmatmul.mubr.bf16.gmra.mrb[0].mxu0 %v65
  %v314 = vpop.f32.mrb[0].mxu0
  %v315 = vadd.f32 0.0, %v314
  %v316 = vpop.f32.mrb[0].mxu0
  %v317 = vadd.f32 0.0, %v316
  %v318 = vpop.f32.mrb[0].mxu0
  %v319 = vpop.f32.mrb[0].mxu0
  %320 = vdwg.mxu0
  %321 = vmatprep.subr.bf16.mxu0 %v102
  %322 = vmatpush1.bf16.msra.mxu0 %v99
  %323 = vmatprep.subr.bf16.mxu0 0
  %324 = vmatpush1.bf16.msra.mxu0 0
  %325 = vmatprep.subr.bf16.mxu0 0
  %326 = vmatpush1.bf16.msra.mxu0 0
  %327 = vmatprep.subr.bf16.mxu0 0
  %328 = vmatpush1.bf16.msra.mxu0 0
  %329 = vmatprep.subr.bf16.mxu0 0
  %330 = vmatpush1.bf16.msra.mxu0 0
  %331 = vmatprep.subr.bf16.mxu0 0
  %332 = vmatpush1.bf16.msra.mxu0 0
  %333 = vmatprep.subr.bf16.mxu0 0
  %334 = vmatpush1.bf16.msra.mxu0 0
  %335 = vmatprep.subr.bf16.mxu0 0
  %336 = vmatpush1.bf16.msra.mxu0 0
  %337 = vmatprep.subr.bf16.mxu0 0
  %338 = vmatpush1.bf16.msra.mxu0 0
  %339 = vmatprep.subr.bf16.mxu0 0
  %340 = vmatpush1.bf16.msra.mxu0 0
  %341 = vmatprep.subr.bf16.mxu0 0
  %342 = vmatpush1.bf16.msra.mxu0 0
  %343 = vmatprep.subr.bf16.mxu0 0
  %344 = vmatpush1.bf16.msra.mxu0 0
  %345 = vmatprep.subr.bf16.mxu0 0
  %346 = vmatpush1.bf16.msra.mxu0 0
  %347 = vmatprep.subr.bf16.mxu0 0
  %348 = vmatpush1.bf16.msra.mxu0 0
  %349 = vmatprep.subr.bf16.mxu0 0
  %350 = vmatpush1.bf16.msra.mxu0 0
  %351 = vmatprep.subr.bf16.mxu0 0
  %352 = vmatpush1.bf16.msra.mxu0 0
  %353 = vmatprep.mubr.bf16.mxu0 0
  %354 = vmatmul.mubr.bf16.gmra.mrb[0].mxu0 %v65
  %v355 = vpop.f32.mrb[0].mxu0
  %v356 = vadd.f32 0.0, %v355
  %v357 = vpop.f32.mrb[0].mxu0
  %v358 = vadd.f32 0.0, %v357
  %v359 = vpop.f32.mrb[0].mxu0
  %v360 = vpop.f32.mrb[0].mxu0
  %361 = vdwg.mxu0
  %362 = vmatprep.subr.bf16.mxu0 %v108
  %363 = vmatpush1.bf16.msra.mxu0 %v105
  %364 = vmatprep.subr.bf16.mxu0 0
  %365 = vmatpush1.bf16.msra.mxu0 0
  %366 = vmatprep.subr.bf16.mxu0 0
  %367 = vmatpush1.bf16.msra.mxu0 0
  %368 = vmatprep.subr.bf16.mxu0 0
  %369 = vmatpush1.bf16.msra.mxu0 0
  %370 = vmatprep.subr.bf16.mxu0 0
  %371 = vmatpush1.bf16.msra.mxu0 0
  %372 = vmatprep.subr.bf16.mxu0 0
  %373 = vmatpush1.bf16.msra.mxu0 0
  %374 = vmatprep.subr.bf16.mxu0 0
  %375 = vmatpush1.bf16.msra.mxu0 0
  %376 = vmatprep.subr.bf16.mxu0 0
  %377 = vmatpush1.bf16.msra.mxu0 0
  %378 = vmatprep.subr.bf16.mxu0 0
  %379 = vmatpush1.bf16.msra.mxu0 0
  %380 = vmatprep.subr.bf16.mxu0 0
  %381 = vmatpush1.bf16.msra.mxu0 0
  %382 = vmatprep.subr.bf16.mxu0 0
  %383 = vmatpush1.bf16.msra.mxu0 0
  %384 = vmatprep.subr.bf16.mxu0 0
  %385 = vmatpush1.bf16.msra.mxu0 0
  %386 = vmatprep.subr.bf16.mxu0 0
  %387 = vmatpush1.bf16.msra.mxu0 0
  %388 = vmatprep.subr.bf16.mxu0 0
  %389 = vmatpush1.bf16.msra.mxu0 0
  %390 = vmatprep.subr.bf16.mxu0 0
  %391 = vmatpush1.bf16.msra.mxu0 0
  %392 = vmatprep.subr.bf16.mxu0 0
  %393 = vmatpush1.bf16.msra.mxu0 0
  %394 = vmatprep.mubr.bf16.mxu0 0
  %395 = vmatmul.mubr.bf16.gmra.mrb[0].mxu0 %v65
  %v396 = vpop.f32.mrb[0].mxu0
  %v397 = vadd.f32 0.0, %v396
  %v398 = vpop.f32.mrb[0].mxu0
  %v399 = vadd.f32 0.0, %v398
  %v400 = vpop.f32.mrb[0].mxu0
  %v401 = vpop.f32.mrb[0].mxu0
  %402 = vdwg.mxu0
  %403 = vmatprep.subr.bf16.mxu0 %v114
  %404 = vmatpush1.bf16.msra.mxu0 %v111
  %405 = vmatprep.subr.bf16.mxu0 0
  %406 = vmatpush1.bf16.msra.mxu0 0
  %407 = vmatprep.subr.bf16.mxu0 0
  %408 = vmatpush1.bf16.msra.mxu0 0
  %409 = vmatprep.subr.bf16.mxu0 0
  %410 = vmatpush1.bf16.msra.mxu0 0
  %411 = vmatprep.subr.bf16.mxu0 0
  %412 = vmatpush1.bf16.msra.mxu0 0
  %413 = vmatprep.subr.bf16.mxu0 0
  %414 = vmatpush1.bf16.msra.mxu0 0
  %415 = vmatprep.subr.bf16.mxu0 0
  %416 = vmatpush1.bf16.msra.mxu0 0
  %417 = vmatprep.subr.bf16.mxu0 0
  %418 = vmatpush1.bf16.msra.mxu0 0
  %419 = vmatprep.subr.bf16.mxu0 0
  %420 = vmatpush1.bf16.msra.mxu0 0
  %421 = vmatprep.subr.bf16.mxu0 0
  %422 = vmatpush1.bf16.msra.mxu0 0
  %423 = vmatprep.subr.bf16.mxu0 0
  %424 = vmatpush1.bf16.msra.mxu0 0
  %425 = vmatprep.subr.bf16.mxu0 0
  %426 = vmatpush1.bf16.msra.mxu0 0
  %427 = vmatprep.subr.bf16.mxu0 0
  %428 = vmatpush1.bf16.msra.mxu0 0
  %429 = vmatprep.subr.bf16.mxu0 0
  %430 = vmatpush1.bf16.msra.mxu0 0
  %431 = vmatprep.subr.bf16.mxu0 0
  %432 = vmatpush1.bf16.msra.mxu0 0
  %433 = vmatprep.subr.bf16.mxu0 0
  %434 = vmatpush1.bf16.msra.mxu0 0
  %435 = vmatprep.mubr.bf16.mxu0 0
  %436 = vmatmul.mubr.bf16.gmra.mrb[0].mxu0 %v65
  %v437 = vpop.f32.mrb[0].mxu0
  %v438 = vadd.f32 0.0, %v437
  %v439 = vpop.f32.mrb[0].mxu0
  %v440 = vadd.f32 0.0, %v439
  %v441 = vpop.f32.mrb[0].mxu0
  %v442 = vpop.f32.mrb[0].mxu0
  %443 = vdwg.mxu0
  %v460 = vcombine.low %v151, %v153
  %v461 = vcombine.low %v192, %v194
  %v463 = vunpack.c.l.s4 1983009808
  %v464 = vunpack.c.0.s8 %v463
  %v465 = vlaneseq
  %v466 = vshrl.u32 %v465, 7
  %v467 = vsub.s32 %v464, %v466
  %v468 = vrot.slane %v460, %v467
  %v470 = vunpack.c.l.s4 1983009808
  %v471 = vunpack.c.0.s8 %v470
  %v472 = vlaneseq
  %v473 = vshrl.u32 %v472, 7
  %v474 = vsub.s32 %v471, %v473
  %v475 = vrot.slane %v461, %v474
  %v476 = vcombine.low %v468, %v475
  %v477 = vcombine.low %v233, %v235
  %v478 = vcombine.low %v274, %v276
  %v480 = vunpack.c.l.s4 1983009808
  %v481 = vunpack.c.0.s8 %v480
  %v482 = vlaneseq
  %v483 = vshrl.u32 %v482, 7
  %v484 = vsub.s32 %v481, %v483
  %v485 = vrot.slane %v477, %v484
  %v487 = vunpack.c.l.s4 1983009808
  %v488 = vunpack.c.0.s8 %v487
  %v489 = vlaneseq
  %v490 = vshrl.u32 %v489, 7
  %v491 = vsub.s32 %v488, %v490
  %v492 = vrot.slane %v478, %v491
  %v493 = vcombine.low %v485, %v492
  %v494 = vcombine.low %v315, %v317
  %v495 = vcombine.low %v356, %v358
  %v497 = vunpack.c.l.s4 1983009808
  %v498 = vunpack.c.0.s8 %v497
  %v499 = vlaneseq
  %v500 = vshrl.u32 %v499, 7
  %v501 = vsub.s32 %v498, %v500
  %v502 = vrot.slane %v494, %v501
  %v504 = vunpack.c.l.s4 1983009808
  %v505 = vunpack.c.0.s8 %v504
  %v506 = vlaneseq
  %v507 = vshrl.u32 %v506, 7
  %v508 = vsub.s32 %v505, %v507
  %v509 = vrot.slane %v495, %v508
  %v510 = vcombine.low %v502, %v509
  %v511 = vcombine.low %v397, %v399
  %v512 = vcombine.low %v438, %v440
  %v514 = vunpack.c.l.s4 1983009808
  %v515 = vunpack.c.0.s8 %v514
  %v516 = vlaneseq
  %v517 = vshrl.u32 %v516, 7
  %v518 = vsub.s32 %v515, %v517
  %v519 = vrot.slane %v511, %v518
  %v521 = vunpack.c.l.s4 1983009808
  %v522 = vunpack.c.0.s8 %v521
  %v523 = vlaneseq
  %v524 = vshrl.u32 %v523, 7
  %v525 = vsub.s32 %v522, %v524
  %v526 = vrot.slane %v512, %v525
  %v527 = vcombine.low %v519, %v526
  %532 = vst [vmem:[%s2] sm:$0xff] %v476
  %533 = vst [vmem:[%s2 + $0x8] sm:$0xff] %v493
  %534 = vst [vmem:[%s2 + $0x10] sm:$0xff] %v510
  %535 = vst [vmem:[%s2 + $0x18] sm:$0xff] %v527
  %vm536 = vcmask 1041408
  %v537 = vsel %vm536, %v151, 0.0
  %v538 = vrot.slane %v537, 4
  %v539 = vadd.f32 %v537, %v538
  %v540 = vrot.slane %v539, 2
  %v541 = vadd.f32 %v539, %v540
  %v542 = vrot.slane %v541, 1
  %v543 = vadd.f32 %v541, %v542
  %v544 = vsel %vm536, %v153, 0.0
  %v545 = vrot.slane %v544, 4
  %v546 = vadd.f32 %v544, %v545
  %v547 = vrot.slane %v546, 2
  %v548 = vadd.f32 %v546, %v547
  %v549 = vrot.slane %v548, 1
  %v550 = vadd.f32 %v548, %v549
  %v551 = vsel %vm536, %v192, 0.0
  %v552 = vrot.slane %v551, 4
  %v553 = vadd.f32 %v551, %v552
  %v554 = vrot.slane %v553, 2
  %v555 = vadd.f32 %v553, %v554
  %v556 = vrot.slane %v555, 1
  %v557 = vadd.f32 %v555, %v556
  %v558 = vsel %vm536, %v194, 0.0
  %v559 = vrot.slane %v558, 4
  %v560 = vadd.f32 %v558, %v559
  %v561 = vrot.slane %v560, 2
  %v562 = vadd.f32 %v560, %v561
  %v563 = vrot.slane %v562, 1
  %v564 = vadd.f32 %v562, %v563
  %v565 = vsel %vm536, %v233, 0.0
  %v566 = vrot.slane %v565, 4
  %v567 = vadd.f32 %v565, %v566
  %v568 = vrot.slane %v567, 2
  %v569 = vadd.f32 %v567, %v568
  %v570 = vrot.slane %v569, 1
  %v571 = vadd.f32 %v569, %v570
  %v572 = vsel %vm536, %v235, 0.0
  %v573 = vrot.slane %v572, 4
  %v574 = vadd.f32 %v572, %v573
  %v575 = vrot.slane %v574, 2
  %v576 = vadd.f32 %v574, %v575
  %v577 = vrot.slane %v576, 1
  %v578 = vadd.f32 %v576, %v577
  %v579 = vsel %vm536, %v274, 0.0
  %v580 = vrot.slane %v579, 4
  %v581 = vadd.f32 %v579, %v580
  %v582 = vrot.slane %v581, 2
  %v583 = vadd.f32 %v581, %v582
  %v584 = vrot.slane %v583, 1
  %v585 = vadd.f32 %v583, %v584
  %v586 = vsel %vm536, %v276, 0.0
  %v587 = vrot.slane %v586, 4
  %v588 = vadd.f32 %v586, %v587
  %v589 = vrot.slane %v588, 2
  %v590 = vadd.f32 %v588, %v589
  %v591 = vrot.slane %v590, 1
  %v592 = vadd.f32 %v590, %v591
  %v593 = vsel %vm536, %v315, 0.0
  %v594 = vrot.slane %v593, 4
  %v595 = vadd.f32 %v593, %v594
  %v596 = vrot.slane %v595, 2
  %v597 = vadd.f32 %v595, %v596
  %v598 = vrot.slane %v597, 1
  %v599 = vadd.f32 %v597, %v598
  %v600 = vsel %vm536, %v317, 0.0
  %v601 = vrot.slane %v600, 4
  %v602 = vadd.f32 %v600, %v601
  %v603 = vrot.slane %v602, 2
  %v604 = vadd.f32 %v602, %v603
  %v605 = vrot.slane %v604, 1
  %v606 = vadd.f32 %v604, %v605
  %v607 = vsel %vm536, %v356, 0.0
  %v608 = vrot.slane %v607, 4
  %v609 = vadd.f32 %v607, %v608
  %v610 = vrot.slane %v609, 2
  %v611 = vadd.f32 %v609, %v610
  %v612 = vrot.slane %v611, 1
  %v613 = vadd.f32 %v611, %v612
  %v614 = vsel %vm536, %v358, 0.0
  %v615 = vrot.slane %v614, 4
  %v616 = vadd.f32 %v614, %v615
  %v617 = vrot.slane %v616, 2
  %v618 = vadd.f32 %v616, %v617
  %v619 = vrot.slane %v618, 1
  %v620 = vadd.f32 %v618, %v619
  %v621 = vsel %vm536, %v397, 0.0
  %v622 = vrot.slane %v621, 4
  %v623 = vadd.f32 %v621, %v622
  %v624 = vrot.slane %v623, 2
  %v625 = vadd.f32 %v623, %v624
  %v626 = vrot.slane %v625, 1
  %v627 = vadd.f32 %v625, %v626
  %v628 = vsel %vm536, %v399, 0.0
  %v629 = vrot.slane %v628, 4
  %v630 = vadd.f32 %v628, %v629
  %v631 = vrot.slane %v630, 2
  %v632 = vadd.f32 %v630, %v631
  %v633 = vrot.slane %v632, 1
  %v634 = vadd.f32 %v632, %v633
  %v635 = vsel %vm536, %v438, 0.0
  %v636 = vrot.slane %v635, 4
  %v637 = vadd.f32 %v635, %v636
  %v638 = vrot.slane %v637, 2
  %v639 = vadd.f32 %v637, %v638
  %v640 = vrot.slane %v639, 1
  %v641 = vadd.f32 %v639, %v640
  %v642 = vsel %vm536, %v440, 0.0
  %v643 = vrot.slane %v642, 4
  %v644 = vadd.f32 %v642, %v643
  %v645 = vrot.slane %v644, 2
  %v646 = vadd.f32 %v644, %v645
  %v647 = vrot.slane %v646, 1
  %v648 = vadd.f32 %v646, %v647
  %v649 = vmul.f32 %v151, %v151
  %v650 = vmul.f32 %v153, %v153
  %v651 = vmul.f32 %v192, %v192
  %v652 = vmul.f32 %v194, %v194
  %v653 = vmul.f32 %v233, %v233
  %v654 = vmul.f32 %v235, %v235
  %v655 = vmul.f32 %v274, %v274
  %v656 = vmul.f32 %v276, %v276
  %v657 = vmul.f32 %v315, %v315
  %v658 = vmul.f32 %v317, %v317
  %v659 = vmul.f32 %v356, %v356
  %v660 = vmul.f32 %v358, %v358
  %v661 = vmul.f32 %v397, %v397
  %v662 = vmul.f32 %v399, %v399
  %v663 = vmul.f32 %v438, %v438
  %v664 = vmul.f32 %v440, %v440
  %v665 = vsel %vm536, %v649, 0.0
  %v666 = vrot.slane %v665, 4
  %v667 = vadd.f32 %v665, %v666
  %v668 = vrot.slane %v667, 2
  %v669 = vadd.f32 %v667, %v668
  %v670 = vrot.slane %v669, 1
  %v671 = vadd.f32 %v669, %v670
  %v672 = vsel %vm536, %v650, 0.0
  %v673 = vrot.slane %v672, 4
  %v674 = vadd.f32 %v672, %v673
  %v675 = vrot.slane %v674, 2
  %v676 = vadd.f32 %v674, %v675
  %v677 = vrot.slane %v676, 1
  %v678 = vadd.f32 %v676, %v677
  %v679 = vsel %vm536, %v651, 0.0
  %v680 = vrot.slane %v679, 4
  %v681 = vadd.f32 %v679, %v680
  %v682 = vrot.slane %v681, 2
  %v683 = vadd.f32 %v681, %v682
  %v684 = vrot.slane %v683, 1
  %v685 = vadd.f32 %v683, %v684
  %v686 = vsel %vm536, %v652, 0.0
  %v687 = vrot.slane %v686, 4
  %v688 = vadd.f32 %v686, %v687
  %v689 = vrot.slane %v688, 2
  %v690 = vadd.f32 %v688, %v689
  %v691 = vrot.slane %v690, 1
  %v692 = vadd.f32 %v690, %v691
  %v693 = vsel %vm536, %v653, 0.0
  %v694 = vrot.slane %v693, 4
  %v695 = vadd.f32 %v693, %v694
  %v696 = vrot.slane %v695, 2
  %v697 = vadd.f32 %v695, %v696
  %v698 = vrot.slane %v697, 1
  %v699 = vadd.f32 %v697, %v698
  %v700 = vsel %vm536, %v654, 0.0
  %v701 = vrot.slane %v700, 4
  %v702 = vadd.f32 %v700, %v701
  %v703 = vrot.slane %v702, 2
  %v704 = vadd.f32 %v702, %v703
  %v705 = vrot.slane %v704, 1
  %v706 = vadd.f32 %v704, %v705
  %v707 = vsel %vm536, %v655, 0.0
  %v708 = vrot.slane %v707, 4
  %v709 = vadd.f32 %v707, %v708
  %v710 = vrot.slane %v709, 2
  %v711 = vadd.f32 %v709, %v710
  %v712 = vrot.slane %v711, 1
  %v713 = vadd.f32 %v711, %v712
  %v714 = vsel %vm536, %v656, 0.0
  %v715 = vrot.slane %v714, 4
  %v716 = vadd.f32 %v714, %v715
  %v717 = vrot.slane %v716, 2
  %v718 = vadd.f32 %v716, %v717
  %v719 = vrot.slane %v718, 1
  %v720 = vadd.f32 %v718, %v719
  %v721 = vsel %vm536, %v657, 0.0
  %v722 = vrot.slane %v721, 4
  %v723 = vadd.f32 %v721, %v722
  %v724 = vrot.slane %v723, 2
  %v725 = vadd.f32 %v723, %v724
  %v726 = vrot.slane %v725, 1
  %v727 = vadd.f32 %v725, %v726
  %v728 = vsel %vm536, %v658, 0.0
  %v729 = vrot.slane %v728, 4
  %v730 = vadd.f32 %v728, %v729
  %v731 = vrot.slane %v730, 2
  %v732 = vadd.f32 %v730, %v731
  %v733 = vrot.slane %v732, 1
  %v734 = vadd.f32 %v732, %v733
  %v735 = vsel %vm536, %v659, 0.0
  %v736 = vrot.slane %v735, 4
  %v737 = vadd.f32 %v735, %v736
  %v738 = vrot.slane %v737, 2
  %v739 = vadd.f32 %v737, %v738
  %v740 = vrot.slane %v739, 1
  %v741 = vadd.f32 %v739, %v740
  %v742 = vsel %vm536, %v660, 0.0
  %v743 = vrot.slane %v742, 4
  %v744 = vadd.f32 %v742, %v743
  %v745 = vrot.slane %v744, 2
  %v746 = vadd.f32 %v744, %v745
  %v747 = vrot.slane %v746, 1
  %v748 = vadd.f32 %v746, %v747
  %v749 = vsel %vm536, %v661, 0.0
  %v750 = vrot.slane %v749, 4
  %v751 = vadd.f32 %v749, %v750
  %v752 = vrot.slane %v751, 2
  %v753 = vadd.f32 %v751, %v752
  %v754 = vrot.slane %v753, 1
  %v755 = vadd.f32 %v753, %v754
  %v756 = vsel %vm536, %v662, 0.0
  %v757 = vrot.slane %v756, 4
  %v758 = vadd.f32 %v756, %v757
  %v759 = vrot.slane %v758, 2
  %v760 = vadd.f32 %v758, %v759
  %v761 = vrot.slane %v760, 1
  %v762 = vadd.f32 %v760, %v761
  %v763 = vsel %vm536, %v663, 0.0
  %v764 = vrot.slane %v763, 4
  %v765 = vadd.f32 %v763, %v764
  %v766 = vrot.slane %v765, 2
  %v767 = vadd.f32 %v765, %v766
  %v768 = vrot.slane %v767, 1
  %v769 = vadd.f32 %v767, %v768
  %v770 = vsel %vm536, %v664, 0.0
  %v771 = vrot.slane %v770, 4
  %v772 = vadd.f32 %v770, %v771
  %v773 = vrot.slane %v772, 2
  %v774 = vadd.f32 %v772, %v773
  %v775 = vrot.slane %v774, 1
  %v776 = vadd.f32 %v774, %v775
  %vm777 = vcmask 1040384
  %v778 = vsel %vm777, %v543, %v671
  %v779 = vsel %vm777, %v550, %v678
  %v780 = vsel %vm777, %v557, %v685
  %v781 = vsel %vm777, %v564, %v692
  %v782 = vsel %vm777, %v571, %v699
  %v783 = vsel %vm777, %v578, %v706
  %v784 = vsel %vm777, %v585, %v713
  %v785 = vsel %vm777, %v592, %v720
  %v786 = vsel %vm777, %v599, %v727
  %v787 = vsel %vm777, %v606, %v734
  %v788 = vsel %vm777, %v613, %v741
  %v789 = vsel %vm777, %v620, %v748
  %v790 = vsel %vm777, %v627, %v755
  %v791 = vsel %vm777, %v634, %v762
  %v792 = vsel %vm777, %v641, %v769
  %v793 = vsel %vm777, %v648, %v776
  %v810 = vcombine.low %v778, %v779
  %v811 = vcombine.low %v780, %v781
  %v813 = vunpack.c.l.s4 1983009808
  %v814 = vunpack.c.0.s8 %v813
  %v815 = vlaneseq
  %v816 = vshrl.u32 %v815, 7
  %v817 = vsub.s32 %v814, %v816
  %v818 = vrot.slane %v810, %v817
  %v820 = vunpack.c.l.s4 1983009808
  %v821 = vunpack.c.0.s8 %v820
  %v822 = vlaneseq
  %v823 = vshrl.u32 %v822, 7
  %v824 = vsub.s32 %v821, %v823
  %v825 = vrot.slane %v811, %v824
  %v826 = vcombine.low %v818, %v825
  %v827 = vcombine.low %v782, %v783
  %v828 = vcombine.low %v784, %v785
  %v830 = vunpack.c.l.s4 1983009808
  %v831 = vunpack.c.0.s8 %v830
  %v832 = vlaneseq
  %v833 = vshrl.u32 %v832, 7
  %v834 = vsub.s32 %v831, %v833
  %v835 = vrot.slane %v827, %v834
  %v837 = vunpack.c.l.s4 1983009808
  %v838 = vunpack.c.0.s8 %v837
  %v839 = vlaneseq
  %v840 = vshrl.u32 %v839, 7
  %v841 = vsub.s32 %v838, %v840
  %v842 = vrot.slane %v828, %v841
  %v843 = vcombine.low %v835, %v842
  %v844 = vcombine.low %v786, %v787
  %v845 = vcombine.low %v788, %v789
  %v847 = vunpack.c.l.s4 1983009808
  %v848 = vunpack.c.0.s8 %v847
  %v849 = vlaneseq
  %v850 = vshrl.u32 %v849, 7
  %v851 = vsub.s32 %v848, %v850
  %v852 = vrot.slane %v844, %v851
  %v854 = vunpack.c.l.s4 1983009808
  %v855 = vunpack.c.0.s8 %v854
  %v856 = vlaneseq
  %v857 = vshrl.u32 %v856, 7
  %v858 = vsub.s32 %v855, %v857
  %v859 = vrot.slane %v845, %v858
  %v860 = vcombine.low %v852, %v859
  %v861 = vcombine.low %v790, %v791
  %v862 = vcombine.low %v792, %v793
  %v864 = vunpack.c.l.s4 1983009808
  %v865 = vunpack.c.0.s8 %v864
  %v866 = vlaneseq
  %v867 = vshrl.u32 %v866, 7
  %v868 = vsub.s32 %v865, %v867
  %v869 = vrot.slane %v861, %v868
  %v871 = vunpack.c.l.s4 1983009808
  %v872 = vunpack.c.0.s8 %v871
  %v873 = vlaneseq
  %v874 = vshrl.u32 %v873, 7
  %v875 = vsub.s32 %v872, %v874
  %v876 = vrot.slane %v862, %v875
  %v877 = vcombine.low %v869, %v876
  %882 = vst [vmem:[%s3] sm:$0xff] %v826
  %883 = vst [vmem:[%s3 + $0x8] sm:$0xff] %v843
  %884 = vst [vmem:[%s3 + $0x10] sm:$0xff] %v860
  %885 = vst [vmem:[%s3 + $0x18] sm:$0xff] %v877
  // Predicated region
  $region10: #{generator_forward.9} parent=0 // pred_check
    _
  $region11: #{generator_forward.9} parent=0 // pred_check_branch
    %887 = sbr.rel (0) target = $region13
  $region12: #{generator_forward.9} parent=0 // pred_region
    _
  $region13: #{generator_forward.9} parent=0 // pred_fallthru
    _
  // Predicated region
  $region14: #{generator_forward.9} parent=0 // pred_check
    _
  $region15: #{generator_forward.9} parent=0 // pred_check_branch
    %889 = sbr.rel (0) target = $region17
  $region16: #{generator_forward.9} parent=0 // pred_region
    _
  $region17: #{generator_forward.9} parent=0 // pred_fallthru
    _
  // Predicated region
  $region18: #{generator_forward.9} parent=0 // pred_check
    _
  $region19: #{generator_forward.9} parent=0 // pred_check_branch
    %891 = sbr.rel (0) target = $region21
  $region20: #{generator_forward.9} parent=0 // pred_region
    _
  $region21: #{generator_forward.9} parent=0 // pred_fallthru
    _
  // Predicated region
  $region22: #{generator_forward.9} parent=0 // pred_check
    _
  $region23: #{generator_forward.9} parent=0 // pred_check_branch
    %893 = sbr.rel (0) target = $region25
  $region24: #{generator_forward.9} parent=0 // pred_region
    _
  $region25: #{generator_forward.9} parent=0 // pred_fallthru
    _

// kernel: generator_forward.11
$region0: #{generator_forward.11}
  #allocation0 [shape = 'u32[]', space=smem, size = 0x4, offset = 0x4, fixed_abs, tag = 'smem constant byte address 0x4 - core index']
  #allocation1 [shape = 'u32[144,128]{1,0:T(1,128)}', space=vmem, size = 0x12000, scoped, tag = 'internal scratch']
  %s0 = inlined_call_operand.vmem [shape: bf16[4,32,256], index: 0, kind: input, shape index: {}]
  %s1 = inlined_call_operand.vmem [shape: bf16[4,256,128], index: 1, kind: input, shape index: {}]
  %s2 = inlined_call_operand.vmem [shape: f32[4,32,128], index: 2, kind: output, shape index: {0}]
  %s3 = inlined_call_operand.vmem [shape: f32[4,1,2,128], index: 3, kind: output, shape index: {1}]
  %4 = xla_tuple %s2, %s3
  %s5 = sld [smem:[#allocation0]]
  $region49: #{generator_forward.11} parent=0
    _
  %s7 = ssub.s32 1, %s5
  %s8 = scalar_select 0, %s7, %s5
  loop: start=0, step=1, limit=6
  $region2: #{generator_forward.11} parent=0 // loop_pre_header
    _
  $region3: #{generator_forward.11} parent=0 // loop_header
    %s10 = sphi 0, %s14
    %p11 = scmp.ge.s32.totalorder %s10, 6
    %s17 = sphi 0, %s29
    %s18 = sphi 0, %s25
    %s19 = sphi 0, %s17
    %s20 = sphi 0, %s18
    %s21 = sphi 0, %s19
    %s22 = sphi 0, %s20
    %s34 = sphi 0, %s36
    %s37 = sphi 0, %s34
    %s38 = sphi 0, %s37
    %s54 = sphi 0, %s38
    %s60 = sphi 0, %s62
    %s63 = sphi 0, %s60
    %s64 = sphi 0, %s63
    %s80 = sphi 0, %s64
    %s88 = sphi 0, %s90
    %s91 = sphi 0, %s88
    %s92 = sphi 0, %s91
    %s108 = sphi 0, %s92
    %s116 = sphi 0, %s118
    %s119 = sphi 0, %s116
    %s120 = sphi 0, %s119
    %s136 = sphi 0, %s120
  $region4: #{generator_forward.11} parent=0 // loop_header_branch
    %13 = sbr.rel (%p11) target = $region8
  $region5: #{generator_forward.11} parent=0 // loop_body
    %s15 = ssub.s32 %s10, 1
    %s16 = ssub.s32 %s10, 2
    %s23 = sadd.s32 1, %s18
    %p24 = scmp.ge.s32.totalorder %s23, 1
    %s25 = scalar_select %p24, 0, %s23
    %s26 = sadd.s32 1, %s17
    %s27 = scalar_select %p24, %s26, %s17
    %p28 = scmp.ge.s32.totalorder %s27, 4
    %s29 = scalar_select %p28, 0, %s27
    %s30 = ssub.s32 %s17, %s29
    %s31 = ssub.s32 %s18, %s25
    %s32 = sor.u32 %s30, %s31
    %p33 = scmp.eq.s32.totalorder %s32, 0
    %s35 = sadd.s32 %s34, 1
    %s36 = scalar_select %p33, %s34, %s35
    %p39 = pneg %p33
    %p40 = scmp.eq.s32.totalorder %s10, 3
    %p41 = por %p39, %p40
    %p42 = scmp.ne.s32.totalorder %s34, %s37
    %p43 = scmp.eq.s32.totalorder %s10, 0
    %p44 = por %p42, %p43
    %p45 = scmp.ne.s32.totalorder %s34, %s37
    %p46 = scmp.eq.s32.totalorder %s15, 3
    %p47 = por %p45, %p46
    %p48 = scmp.ne.s32.totalorder %s37, %s38
    %p49 = scmp.eq.s32.totalorder %s15, 0
    %p50 = por %p48, %p49
    %p51 = scmp.ne.s32.totalorder %s37, %s38
    %p52 = scmp.eq.s32.totalorder %s16, 3
    %p53 = por %p51, %p52
    %p55 = scmp.ne.s32.totalorder %s38, %s54
    %p56 = scmp.eq.s32.totalorder %s16, 0
    %p57 = por %p55, %p56
    %s58 = ssub.s32 %s17, %s29
    %p59 = scmp.eq.s32.totalorder %s58, 0
    %s61 = sadd.s32 %s60, 1
    %s62 = scalar_select %p59, %s60, %s61
    %p65 = pneg %p59
    %p66 = scmp.eq.s32.totalorder %s10, 3
    %p67 = por %p65, %p66
    %p68 = scmp.ne.s32.totalorder %s60, %s63
    %p69 = scmp.eq.s32.totalorder %s10, 0
    %p70 = por %p68, %p69
    %p71 = scmp.ne.s32.totalorder %s60, %s63
    %p72 = scmp.eq.s32.totalorder %s15, 3
    %p73 = por %p71, %p72
    %p74 = scmp.ne.s32.totalorder %s63, %s64
    %p75 = scmp.eq.s32.totalorder %s15, 0
    %p76 = por %p74, %p75
    %p77 = scmp.ne.s32.totalorder %s63, %s64
    %p78 = scmp.eq.s32.totalorder %s16, 3
    %p79 = por %p77, %p78
    %p81 = scmp.ne.s32.totalorder %s64, %s80
    %p82 = scmp.eq.s32.totalorder %s16, 0
    %p83 = por %p81, %p82
    %s84 = ssub.s32 %s17, %s29
    %s85 = ssub.s32 %s18, %s25
    %s86 = sor.u32 %s84, %s85
    %p87 = scmp.eq.s32.totalorder %s86, 0
    %s89 = sadd.s32 %s88, 1
    %s90 = scalar_select %p87, %s88, %s89
    %p93 = pneg %p87
    %p94 = scmp.eq.s32.totalorder %s10, 3
    %p95 = por %p93, %p94
    %p96 = scmp.ne.s32.totalorder %s88, %s91
    %p97 = scmp.eq.s32.totalorder %s10, 0
    %p98 = por %p96, %p97
    %p99 = scmp.ne.s32.totalorder %s88, %s91
    %p100 = scmp.eq.s32.totalorder %s15, 3
    %p101 = por %p99, %p100
    %p102 = scmp.ne.s32.totalorder %s91, %s92
    %p103 = scmp.eq.s32.totalorder %s15, 0
    %p104 = por %p102, %p103
    %p105 = scmp.ne.s32.totalorder %s91, %s92
    %p106 = scmp.eq.s32.totalorder %s16, 3
    %p107 = por %p105, %p106
    %p109 = scmp.ne.s32.totalorder %s92, %s108
    %p110 = scmp.eq.s32.totalorder %s16, 0
    %p111 = por %p109, %p110
    %s112 = ssub.s32 %s17, %s29
    %s113 = ssub.s32 %s18, %s25
    %s114 = sor.u32 %s112, %s113
    %p115 = scmp.eq.s32.totalorder %s114, 0
    %s117 = sadd.s32 %s116, 1
    %s118 = scalar_select %p115, %s116, %s117
    %p121 = pneg %p115
    %p122 = scmp.eq.s32.totalorder %s10, 3
    %p123 = por %p121, %p122
    %p124 = scmp.ne.s32.totalorder %s116, %s119
    %p125 = scmp.eq.s32.totalorder %s10, 0
    %p126 = por %p124, %p125
    %p127 = scmp.ne.s32.totalorder %s116, %s119
    %p128 = scmp.eq.s32.totalorder %s15, 3
    %p129 = por %p127, %p128
    %p130 = scmp.ne.s32.totalorder %s119, %s120
    %p131 = scmp.eq.s32.totalorder %s15, 0
    %p132 = por %p130, %p131
    %p133 = scmp.ne.s32.totalorder %s119, %s120
    %p134 = scmp.eq.s32.totalorder %s16, 3
    %p135 = por %p133, %p134
    %p137 = scmp.ne.s32.totalorder %s120, %s136
    %p138 = scmp.eq.s32.totalorder %s16, 0
    %p139 = por %p137, %p138
    %p140 = scmp.le.s32.totalorder 1, %s10
    %p141 = scmp.lt.s32.totalorder %s10, 5
    %p142 = pnand %p140, %p141
    %p143 = pneg %p142
    // Predicated region
    $region9: #{generator_forward.11} parent=5 // pred_check
      _
    $region10: #{generator_forward.11} parent=5 // pred_check_branch
      %145 = sbr.rel (%p142) target = $region12
    $region11: #{generator_forward.11} parent=5 // pred_region
      %s146 = ssub.s32 %s10, 1
    $region12: #{generator_forward.11} parent=5 // pred_fallthru
      _
    %p147 = scmp.lt.s32.totalorder %s10, 4
    // Predicated region
    $region13: #{generator_forward.11} parent=5 // pred_check
      %p148 = pneg %p147
    $region14: #{generator_forward.11} parent=5 // pred_check_branch
      %150 = sbr.rel (%p148) target = $region16
    $region15: #{generator_forward.11} parent=5 // pred_region
      // Predicated region
      $region17: #{generator_forward.11} parent=15 // pred_check
        %p151 = pneg %p44
      $region18: #{generator_forward.11} parent=15 // pred_check_branch
        %153 = sbr.rel (%p151) target = $region20
      $region19: #{generator_forward.11} parent=15 // pred_region
        %s154 = smul.u32 4, %s18
        %p155 = scmp.lt.s32.totalorder %s17, 3
        %s156 = scalar_select %p155, %s17, 3
        %p157 = scmp.lt.s32.totalorder %s154, 3
        %s158 = scalar_select %p157, %s154, 3
        %s159 = smul.addr %s158, 2
        %s160 = smul.addr %s156, 8
        %s161 = sadd.s32 %s159, %s160
        %s162 = smul.addr %s161, 4
        %s163 = scalar_lea.vmem %s0, %s162
        %s164 = smul.u32 4, %s18
      $region20: #{generator_forward.11} parent=15 // pred_fallthru
        _
      // Predicated region
      $region21: #{generator_forward.11} parent=15 // pred_check
        %p165 = pneg %p70
      $region22: #{generator_forward.11} parent=15 // pred_check_branch
        %167 = sbr.rel (%p165) target = $region24
      $region23: #{generator_forward.11} parent=15 // pred_region
        %p168 = scmp.lt.s32.totalorder %s17, 3
        %s169 = scalar_select %p168, %s17, 3
        %s170 = smul.addr %s169, 32
        %s171 = smul.addr %s170, 4
        %s172 = scalar_lea.vmem %s1, %s171
      $region24: #{generator_forward.11} parent=15 // pred_fallthru
        _
    $region16: #{generator_forward.11} parent=5 // pred_fallthru
      _
    %p173 = scmp.le.s32.totalorder 1, %s10
    %p174 = scmp.lt.s32.totalorder %s10, 5
    %p175 = pnand %p173, %p174
    %p176 = pneg %p175
    // Predicated region
    $region25: #{generator_forward.11} parent=5 // pred_check
      _
    $region26: #{generator_forward.11} parent=5 // pred_check_branch
      %178 = sbr.rel (%p175) target = $region28
    $region27: #{generator_forward.11} parent=5 // pred_region
      %s179 = ssub.s32 %s10, 1
      %s180 = smul.u32 4, %s20
      %p181 = scmp.lt.s32.totalorder %s19, 3
      %s182 = scalar_select %p181, %s19, 3
      %p183 = scmp.lt.s32.totalorder %s180, 3
      %s184 = scalar_select %p183, %s180, 3
      %s185 = smul.addr %s184, 2
      %s186 = smul.addr %s182, 8
      %s187 = sadd.s32 %s185, %s186
      %s188 = smul.addr %s187, 4
      %s189 = scalar_lea.vmem %s0, %s188
      %p190 = pneg %p50
      %p191 = pneg %p47
      %p192 = scmp.lt.s32.totalorder %s19, 3
      %s193 = scalar_select %p192, %s19, 3
      %s194 = smul.addr %s193, 32
      %s195 = smul.addr %s194, 4
      %s196 = scalar_lea.vmem %s1, %s195
      %p197 = pneg %p76
      %p198 = pneg %p73
      %p199 = pneg %p104
      %p200 = pneg %p101
      %s201 = smul.u32 4, %s20
      %p202 = scmp.lt.s32.totalorder %s19, 3
      %s203 = scalar_select %p202, %s19, 3
      %p204 = scmp.lt.s32.totalorder %s201, 3
      %s205 = scalar_select %p204, %s201, 3
      %s206 = smul.addr %s203, 4
      %s207 = sadd.s32 %s205, %s206
      %s208 = smul.addr %s207, 8
      %s209 = scalar_lea.vmem %s2, %s208
      %p210 = pneg %p132
      %p211 = pneg %p129
      %p212 = scmp.lt.s32.totalorder %s19, 3
      %s213 = scalar_select %p212, %s19, 3
      %p214 = scmp.lt.s32.totalorder %s20, 0
      %s215 = scalar_select %p214, %s20, 0
      %s216 = sadd.s32 %s215, %s213
      %s217 = smul.addr %s216, 2
      %s218 = scalar_lea.vmem %s3, %s217
      %s219 = smul.u32 4, %s20
      %p220 = scmp.lt.s32.totalorder %s19, 3
      %s221 = scalar_select %p220, %s19, 3
      %p222 = scmp.lt.s32.totalorder %s219, 3
      %s223 = scalar_select %p222, %s219, 3
      %s224 = smul.addr %s223, 2
      %s225 = smul.addr %s221, 8
      %s226 = sadd.s32 %s224, %s225
      %s227 = smul.addr %s226, 4
      %s228 = scalar_lea.vmem %s0, %s227
      %s229 = smul.u32 4, %s20
      %p230 = scmp.lt.s32.totalorder %s19, 3
      %s231 = scalar_select %p230, %s19, 3
      %s232 = smul.addr %s231, 32
      %s233 = smul.addr %s232, 4
      %s234 = scalar_lea.vmem %s1, %s233
      %s235 = smul.u32 4, %s20
      %p236 = scmp.lt.s32.totalorder %s19, 3
      %s237 = scalar_select %p236, %s19, 3
      %p238 = scmp.lt.s32.totalorder %s235, 3
      %s239 = scalar_select %p238, %s235, 3
      %s240 = smul.addr %s237, 4
      %s241 = sadd.s32 %s239, %s240
      %s242 = smul.addr %s241, 8
      %s243 = scalar_lea.vmem %s2, %s242
      %s244 = smul.u32 4, %s20
      %p245 = scmp.lt.s32.totalorder %s19, 3
      %s246 = scalar_select %p245, %s19, 3
      %p247 = scmp.lt.s32.totalorder %s20, 0
      %s248 = scalar_select %p247, %s20, 0
      %s249 = sadd.s32 %s248, %s246
      %s250 = smul.addr %s249, 2
      %s251 = scalar_lea.vmem %s3, %s250
      %v253 = vld [vmem:[%s228] sm:$0xff]
      %v254 = vld [vmem:[%s228 + $0x8] sm:$0xff]
      %v255 = vld [vmem:[%s228 + $0x10] sm:$0xff]
      %v256 = vld [vmem:[%s228 + $0x18] sm:$0xff]
      %v257 = vld [vmem:[%s234] sm:$0xf]
      %v258 = vld [vmem:[%s234 + $0x4] sm:$0xf]
      %v259 = vld [vmem:[%s234 + $0x8] sm:$0xf]
      %v260 = vld [vmem:[%s234 + $0xc] sm:$0xf]
      %v261 = vld [vmem:[%s234 + $0x10] sm:$0xf]
      %v262 = vld [vmem:[%s234 + $0x14] sm:$0xf]
      %v263 = vld [vmem:[%s234 + $0x18] sm:$0xf]
      %v264 = vld [vmem:[%s234 + $0x1c] sm:$0xf]
      %v265 = vld [vmem:[%s234 + $0x20] sm:$0xf]
      %v266 = vld [vmem:[%s234 + $0x24] sm:$0xf]
      %v267 = vld [vmem:[%s234 + $0x28] sm:$0xf]
      %v268 = vld [vmem:[%s234 + $0x2c] sm:$0xf]
      %v269 = vld [vmem:[%s234 + $0x30] sm:$0xf]
      %v270 = vld [vmem:[%s234 + $0x34] sm:$0xf]
      %v271 = vld [vmem:[%s234 + $0x38] sm:$0xf]
      %v272 = vld [vmem:[%s234 + $0x3c] sm:$0xf]
      %v273 = vld [vmem:[%s234 + $0x40] sm:$0xf]
      %v274 = vld [vmem:[%s234 + $0x44] sm:$0xf]
      %v275 = vld [vmem:[%s234 + $0x48] sm:$0xf]
      %v276 = vld [vmem:[%s234 + $0x4c] sm:$0xf]
      %v277 = vld [vmem:[%s234 + $0x50] sm:$0xf]
      %v278 = vld [vmem:[%s234 + $0x54] sm:$0xf]
      %v279 = vld [vmem:[%s234 + $0x58] sm:$0xf]
      %v280 = vld [vmem:[%s234 + $0x5c] sm:$0xf]
      %v281 = vld [vmem:[%s234 + $0x60] sm:$0xf]
      %v282 = vld [vmem:[%s234 + $0x64] sm:$0xf]
      %v283 = vld [vmem:[%s234 + $0x68] sm:$0xf]
      %v284 = vld [vmem:[%s234 + $0x6c] sm:$0xf]
      %v285 = vld [vmem:[%s234 + $0x70] sm:$0xf]
      %v286 = vld [vmem:[%s234 + $0x74] sm:$0xf]
      %v287 = vld [vmem:[%s234 + $0x78] sm:$0xf]
      %v288 = vld [vmem:[%s234 + $0x7c] sm:$0xf]
      %v293 = vunpack.c.l.b16 %v253
      %v294 = vunpack.c.h.b16 %v253
      %v295 = vunpack.c.l.b16 %v254
      %v296 = vunpack.c.h.b16 %v254
      %v297 = vunpack.c.l.b16 %v255
      %v298 = vunpack.c.h.b16 %v255
      %v299 = vunpack.c.l.b16 %v256
      %v300 = vunpack.c.h.b16 %v256
      %v301 = vpack.c.b16 %v295, %v293
      %v302 = vpack.c.b16 %v296, %v294
      %v303 = vpack.c.b16 %v299, %v297
      %v304 = vpack.c.b16 %v300, %v298
      %v341 = vunpack.c.l.b16 %v257
      %v342 = vunpack.c.l.b16 %v258
      %v343 = vunpack.c.l.b16 %v259
      %v344 = vunpack.c.l.b16 %v260
      %v345 = vunpack.c.l.b16 %v261
      %v346 = vunpack.c.l.b16 %v262
      %v347 = vunpack.c.l.b16 %v263
      %v348 = vunpack.c.l.b16 %v264
      %v349 = vunpack.c.l.b16 %v265
      %v350 = vunpack.c.l.b16 %v266
      %v351 = vunpack.c.l.b16 %v267
      %v352 = vunpack.c.l.b16 %v268
      %v353 = vunpack.c.l.b16 %v269
      %v354 = vunpack.c.l.b16 %v270
      %v355 = vunpack.c.l.b16 %v271
      %v356 = vunpack.c.l.b16 %v272
      %v357 = vunpack.c.l.b16 %v273
      %v358 = vunpack.c.l.b16 %v274
      %v359 = vunpack.c.l.b16 %v275
      %v360 = vunpack.c.l.b16 %v276
      %v361 = vunpack.c.l.b16 %v277
      %v362 = vunpack.c.l.b16 %v278
      %v363 = vunpack.c.l.b16 %v279
      %v364 = vunpack.c.l.b16 %v280
      %v365 = vunpack.c.l.b16 %v281
      %v366 = vunpack.c.l.b16 %v282
      %v367 = vunpack.c.l.b16 %v283
      %v368 = vunpack.c.l.b16 %v284
      %v369 = vunpack.c.l.b16 %v285
      %v370 = vunpack.c.l.b16 %v286
      %v371 = vunpack.c.l.b16 %v287
      %v372 = vunpack.c.l.b16 %v288
      %v373 = vpack.c.b16 %v342, %v341
      %v374 = vpack.c.b16 %v344, %v343
      %v375 = vpack.c.b16 %v346, %v345
      %v376 = vpack.c.b16 %v348, %v347
      %v377 = vpack.c.b16 %v350, %v349
      %v378 = vpack.c.b16 %v352, %v351
      %v379 = vpack.c.b16 %v354, %v353
      %v380 = vpack.c.b16 %v356, %v355
      %v381 = vpack.c.b16 %v358, %v357
      %v382 = vpack.c.b16 %v360, %v359
      %v383 = vpack.c.b16 %v362, %v361
      %v384 = vpack.c.b16 %v364, %v363
      %v385 = vpack.c.b16 %v366, %v365
      %v386 = vpack.c.b16 %v368, %v367
      %v387 = vpack.c.b16 %v370, %v369
      %v388 = vpack.c.b16 %v372, %v371
      %405 = vmatprep.subr.bf16.mxu0 0
      %406 = vmatpush1.bf16.msra.mxu0 %v373
      %407 = vmatprep.subr.bf16.mxu0 0
      %408 = vmatpush1.bf16.msra.mxu0 %v374
      %409 = vmatprep.subr.bf16.mxu0 0
      %410 = vmatpush1.bf16.msra.mxu0 %v375
      %411 = vmatprep.subr.bf16.mxu0 0
      %412 = vmatpush1.bf16.msra.mxu0 %v376
      %413 = vmatprep.subr.bf16.mxu0 0
      %414 = vmatpush1.bf16.msra.mxu0 %v377
      %415 = vmatprep.subr.bf16.mxu0 0
      %416 = vmatpush1.bf16.msra.mxu0 %v378
      %417 = vmatprep.subr.bf16.mxu0 0
      %418 = vmatpush1.bf16.msra.mxu0 %v379
      %419 = vmatprep.subr.bf16.mxu0 0
      %420 = vmatpush1.bf16.msra.mxu0 %v380
      %421 = vmatprep.subr.bf16.mxu0 0
      %422 = vmatpush1.bf16.msra.mxu0 %v381
      %423 = vmatprep.subr.bf16.mxu0 0
      %424 = vmatpush1.bf16.msra.mxu0 %v382
      %425 = vmatprep.subr.bf16.mxu0 0
      %426 = vmatpush1.bf16.msra.mxu0 %v383
      %427 = vmatprep.subr.bf16.mxu0 0
      %428 = vmatpush1.bf16.msra.mxu0 %v384
      %429 = vmatprep.subr.bf16.mxu0 0
      %430 = vmatpush1.bf16.msra.mxu0 %v385
      %431 = vmatprep.subr.bf16.mxu0 0
      %432 = vmatpush1.bf16.msra.mxu0 %v386
      %433 = vmatprep.subr.bf16.mxu0 0
      %434 = vmatpush1.bf16.msra.mxu0 %v387
      %435 = vmatprep.subr.bf16.mxu0 0
      %436 = vmatpush1.bf16.msra.mxu0 %v388
      %437 = vmatprep.mubr.bf16.mxu0 %v302
      %438 = vmatmul.mubr.bf16.gmra.mrb[0].mxu0 %v301
      %v439 = vpop.f32.mrb[0].mxu0
      %v440 = vadd.f32 0.0, %v439
      %v441 = vpop.f32.mrb[0].mxu0
      %v442 = vpop.f32.mrb[0].mxu0
      %v443 = vadd.f32 0.0, %v442
      %v444 = vpop.f32.mrb[0].mxu0
      %445 = vmatprep.mubr.bf16.mxu0 %v304
      %446 = vmatmul.mubr.bf16.gmra.mrb[0].mxu0 %v303
      %v447 = vpop.f32.mrb[0].mxu0
      %v448 = vadd.f32 0.0, %v447
      %v449 = vpop.f32.mrb[0].mxu0
      %v450 = vpop.f32.mrb[0].mxu0
      %v451 = vadd.f32 0.0, %v450
      %v452 = vpop.f32.mrb[0].mxu0
      %453 = vdwg.mxu0
      %454 = vst [vmem:[%s243] sm:$0xff] %v440
      %455 = vst [vmem:[%s243 + $0x8] sm:$0xff] %v443
      %456 = vst [vmem:[%s243 + $0x10] sm:$0xff] %v448
      %457 = vst [vmem:[%s243 + $0x18] sm:$0xff] %v451
      %v458 = vadd.f32 %v440, %v443
      %v459 = vadd.f32 %v458, %v448
      %v460 = vadd.f32 %v459, %v451
      %v461 = vrot.slane %v460, 4
      %v462 = vadd.f32 %v460, %v461
      %v463 = vrot.slane %v462, 2
      %v464 = vadd.f32 %v462, %v463
      %v465 = vrot.slane %v464, 1
      %v466 = vadd.f32 %v464, %v465
      %v467 = vmul.f32 %v440, %v440
      %v468 = vmul.f32 %v443, %v443
      %v469 = vmul.f32 %v448, %v448
      %v470 = vmul.f32 %v451, %v451
      %v471 = vadd.f32 %v467, %v468
      %v472 = vadd.f32 %v471, %v469
      %v473 = vadd.f32 %v472, %v470
      %v474 = vrot.slane %v473, 4
      %v475 = vadd.f32 %v473, %v474
      %v476 = vrot.slane %v475, 2
      %v477 = vadd.f32 %v475, %v476
      %v478 = vrot.slane %v477, 1
      %v479 = vadd.f32 %v477, %v478
      %vm480 = vcmask 1040384
      %v481 = vsel %vm480, %v466, %v479
      %482 = vst [vmem:[%s251] sm:$0x3] %v481
      %s483 = smul.u32 4, %s20
      %p484 = scmp.lt.s32.totalorder %s19, 3
      %s485 = scalar_select %p484, %s19, 3
      %p486 = scmp.lt.s32.totalorder %s483, 3
      %s487 = scalar_select %p486, %s483, 3
      %s488 = smul.addr %s485, 4
      %s489 = sadd.s32 %s487, %s488
      %s490 = smul.addr %s489, 8
      %s491 = scalar_lea.vmem %s2, %s490
      %p492 = scmp.lt.s32.totalorder %s19, 3
      %s493 = scalar_select %p492, %s19, 3
      %p494 = scmp.lt.s32.totalorder %s20, 0
      %s495 = scalar_select %p494, %s20, 0
      %s496 = sadd.s32 %s495, %s493
      %s497 = smul.addr %s496, 2
      %s498 = scalar_lea.vmem %s3, %s497
      // Predicated region
      $region29: #{generator_forward.11} parent=27 // pred_check
        %p499 = pneg %p101
      $region30: #{generator_forward.11} parent=27 // pred_check_branch
        %501 = sbr.rel (%p499) target = $region32
      $region31: #{generator_forward.11} parent=27 // pred_region
        %s502 = smul.u32 4, %s20
      $region32: #{generator_forward.11} parent=27 // pred_fallthru
        _
      // Predicated region
      $region33: #{generator_forward.11} parent=27 // pred_check
        %p503 = pneg %p129
      $region34: #{generator_forward.11} parent=27 // pred_check_branch
        %505 = sbr.rel (%p503) target = $region36
      $region35: #{generator_forward.11} parent=27 // pred_region
        _
      $region36: #{generator_forward.11} parent=27 // pred_fallthru
        _
    $region28: #{generator_forward.11} parent=5 // pred_fallthru
      _
    %p506 = scmp.le.s32.totalorder 2, %s10
    // Predicated region
    $region37: #{generator_forward.11} parent=5 // pred_check
      %p507 = pneg %p506
    $region38: #{generator_forward.11} parent=5 // pred_check_branch
      %509 = sbr.rel (%p507) target = $region40
    $region39: #{generator_forward.11} parent=5 // pred_region
      %s510 = ssub.s32 %s10, 2
      // Predicated region
      $region41: #{generator_forward.11} parent=39 // pred_check
        %p511 = pneg %p107
      $region42: #{generator_forward.11} parent=39 // pred_check_branch
        %513 = sbr.rel (%p511) target = $region44
      $region43: #{generator_forward.11} parent=39 // pred_region
        %s514 = smul.u32 4, %s22
        %p515 = scmp.lt.s32.totalorder %s21, 3
        %s516 = scalar_select %p515, %s21, 3
        %p517 = scmp.lt.s32.totalorder %s514, 3
        %s518 = scalar_select %p517, %s514, 3
        %s519 = smul.addr %s516, 4
        %s520 = sadd.s32 %s518, %s519
        %s521 = smul.addr %s520, 8
        %s522 = scalar_lea.vmem %s2, %s521
      $region44: #{generator_forward.11} parent=39 // pred_fallthru
        _
      // Predicated region
      $region45: #{generator_forward.11} parent=39 // pred_check
        %p523 = pneg %p135
      $region46: #{generator_forward.11} parent=39 // pred_check_branch
        %525 = sbr.rel (%p523) target = $region48
      $region47: #{generator_forward.11} parent=39 // pred_region
        %p526 = scmp.lt.s32.totalorder %s21, 3
        %s527 = scalar_select %p526, %s21, 3
        %p528 = scmp.lt.s32.totalorder %s22, 0
        %s529 = scalar_select %p528, %s22, 0
        %s530 = sadd.s32 %s529, %s527
        %s531 = smul.addr %s530, 2
        %s532 = scalar_lea.vmem %s3, %s531
      $region48: #{generator_forward.11} parent=39 // pred_fallthru
        _
    $region40: #{generator_forward.11} parent=5 // pred_fallthru
      _
  $region6: #{generator_forward.11} parent=0 // loop_footer
    %s14 = sadd.s32 1, %s10
  $region7: #{generator_forward.11} parent=0 // loop_footer_branch
    %9 = sbr.rel target = $region3
  $region8: #{generator_forward.11} parent=0 // loop_exit
    _

// kernel: generator_forward.12
$region0: #{generator_forward.12}
  #allocation0 [shape = 'u32[]', space=smem, size = 0x4, offset = 0x4, fixed_abs, tag = 'smem constant byte address 0x4 - core index']
  #allocation1 [shape = 'u32[144,128]{1,0:T(1,128)}', space=vmem, size = 0x12000, scoped, tag = 'internal scratch']
  %s0 = inlined_call_operand.vmem [shape: f32[4,32,128], index: 0, kind: input, shape index: {}]
  %s1 = inlined_call_operand.vmem [shape: f32[1,128], index: 1, kind: input, shape index: {}]
  %s2 = inlined_call_operand.vmem [shape: f32[1,128], index: 2, kind: input, shape index: {}]
  %s3 = inlined_call_operand.vmem [shape: bf16[4,32,128], index: 3, kind: output, shape index: {}]
  %s4 = sld [smem:[#allocation0]]
  $region45: #{generator_forward.12} parent=0
    _
  %s6 = ssub.s32 1, %s4
  %s7 = scalar_select 0, %s6, %s4
  loop: start=0, step=1, limit=6
  $region2: #{generator_forward.12} parent=0 // loop_pre_header
    _
  $region3: #{generator_forward.12} parent=0 // loop_header
    %s9 = sphi 0, %s13
    %p10 = scmp.ge.s32.totalorder %s9, 6
    %s16 = sphi 0, %s28
    %s17 = sphi 0, %s24
    %s18 = sphi 0, %s16
    %s19 = sphi 0, %s17
    %s20 = sphi 0, %s18
    %s21 = sphi 0, %s19
    %s33 = sphi 0, %s35
    %s36 = sphi 0, %s33
    %s37 = sphi 0, %s36
    %s53 = sphi 0, %s37
    %s57 = sphi 0, %s57
    %s59 = sphi 0, %s57
    %s60 = sphi 0, %s59
    %s74 = sphi 0, %s60
    %s78 = sphi 0, %s78
    %s80 = sphi 0, %s78
    %s81 = sphi 0, %s80
    %s95 = sphi 0, %s81
    %s103 = sphi 0, %s105
    %s106 = sphi 0, %s103
    %s107 = sphi 0, %s106
    %s123 = sphi 0, %s107
  $region4: #{generator_forward.12} parent=0 // loop_header_branch
    %12 = sbr.rel (%p10) target = $region8
  $region5: #{generator_forward.12} parent=0 // loop_body
    %s14 = ssub.s32 %s9, 1
    %s15 = ssub.s32 %s9, 2
    %s22 = sadd.s32 1, %s17
    %p23 = scmp.ge.s32.totalorder %s22, 1
    %s24 = scalar_select %p23, 0, %s22
    %s25 = sadd.s32 1, %s16
    %s26 = scalar_select %p23, %s25, %s16
    %p27 = scmp.ge.s32.totalorder %s26, 4
    %s28 = scalar_select %p27, 0, %s26
    %s29 = ssub.s32 %s16, %s28
    %s30 = ssub.s32 %s17, %s24
    %s31 = sor.u32 %s29, %s30
    %p32 = scmp.eq.s32.totalorder %s31, 0
    %s34 = sadd.s32 %s33, 1
    %s35 = scalar_select %p32, %s33, %s34
    %p38 = pneg %p32
    %p39 = scmp.eq.s32.totalorder %s9, 3
    %p40 = por %p38, %p39
    %p41 = scmp.ne.s32.totalorder %s33, %s36
    %p42 = scmp.eq.s32.totalorder %s9, 0
    %p43 = por %p41, %p42
    %p44 = scmp.ne.s32.totalorder %s33, %s36
    %p45 = scmp.eq.s32.totalorder %s14, 3
    %p46 = por %p44, %p45
    %p47 = scmp.ne.s32.totalorder %s36, %s37
    %p48 = scmp.eq.s32.totalorder %s14, 0
    %p49 = por %p47, %p48
    %p50 = scmp.ne.s32.totalorder %s36, %s37
    %p51 = scmp.eq.s32.totalorder %s15, 3
    %p52 = por %p50, %p51
    %p54 = scmp.ne.s32.totalorder %s37, %s53
    %p55 = scmp.eq.s32.totalorder %s15, 0
    %p56 = por %p54, %p55
    %s58 = sadd.s32 %s57, 1
    %p61 = scmp.eq.s32.totalorder %s9, 3
    %p62 = scmp.ne.s32.totalorder %s57, %s59
    %p63 = scmp.eq.s32.totalorder %s9, 0
    %p64 = por %p62, %p63
    %p65 = scmp.ne.s32.totalorder %s57, %s59
    %p66 = scmp.eq.s32.totalorder %s14, 3
    %p67 = por %p65, %p66
    %p68 = scmp.ne.s32.totalorder %s59, %s60
    %p69 = scmp.eq.s32.totalorder %s14, 0
    %p70 = por %p68, %p69
    %p71 = scmp.ne.s32.totalorder %s59, %s60
    %p72 = scmp.eq.s32.totalorder %s15, 3
    %p73 = por %p71, %p72
    %p75 = scmp.ne.s32.totalorder %s60, %s74
    %p76 = scmp.eq.s32.totalorder %s15, 0
    %p77 = por %p75, %p76
    %s79 = sadd.s32 %s78, 1
    %p82 = scmp.eq.s32.totalorder %s9, 3
    %p83 = scmp.ne.s32.totalorder %s78, %s80
    %p84 = scmp.eq.s32.totalorder %s9, 0
    %p85 = por %p83, %p84
    %p86 = scmp.ne.s32.totalorder %s78, %s80
    %p87 = scmp.eq.s32.totalorder %s14, 3
    %p88 = por %p86, %p87
    %p89 = scmp.ne.s32.totalorder %s80, %s81
    %p90 = scmp.eq.s32.totalorder %s14, 0
    %p91 = por %p89, %p90
    %p92 = scmp.ne.s32.totalorder %s80, %s81
    %p93 = scmp.eq.s32.totalorder %s15, 3
    %p94 = por %p92, %p93
    %p96 = scmp.ne.s32.totalorder %s81, %s95
    %p97 = scmp.eq.s32.totalorder %s15, 0
    %p98 = por %p96, %p97
    %s99 = ssub.s32 %s16, %s28
    %s100 = ssub.s32 %s17, %s24
    %s101 = sor.u32 %s99, %s100
    %p102 = scmp.eq.s32.totalorder %s101, 0
    %s104 = sadd.s32 %s103, 1
    %s105 = scalar_select %p102, %s103, %s104
    %p108 = pneg %p102
    %p109 = scmp.eq.s32.totalorder %s9, 3
    %p110 = por %p108, %p109
    %p111 = scmp.ne.s32.totalorder %s103, %s106
    %p112 = scmp.eq.s32.totalorder %s9, 0
    %p113 = por %p111, %p112
    %p114 = scmp.ne.s32.totalorder %s103, %s106
    %p115 = scmp.eq.s32.totalorder %s14, 3
    %p116 = por %p114, %p115
    %p117 = scmp.ne.s32.totalorder %s106, %s107
    %p118 = scmp.eq.s32.totalorder %s14, 0
    %p119 = por %p117, %p118
    %p120 = scmp.ne.s32.totalorder %s106, %s107
    %p121 = scmp.eq.s32.totalorder %s15, 3
    %p122 = por %p120, %p121
    %p124 = scmp.ne.s32.totalorder %s107, %s123
    %p125 = scmp.eq.s32.totalorder %s15, 0
    %p126 = por %p124, %p125
    %p127 = scmp.le.s32.totalorder 1, %s9
    %p128 = scmp.lt.s32.totalorder %s9, 5
    %p129 = pnand %p127, %p128
    %p130 = pneg %p129
    // Predicated region
    $region9: #{generator_forward.12} parent=5 // pred_check
      _
    $region10: #{generator_forward.12} parent=5 // pred_check_branch
      %132 = sbr.rel (%p129) target = $region12
    $region11: #{generator_forward.12} parent=5 // pred_region
      %s133 = ssub.s32 %s9, 1
      // Predicated region
      $region13: #{generator_forward.12} parent=11 // pred_check
        %p134 = pneg %p70
      $region14: #{generator_forward.12} parent=11 // pred_check_branch
        %136 = sbr.rel (%p134) target = $region16
      $region15: #{generator_forward.12} parent=11 // pred_region
        _
      $region16: #{generator_forward.12} parent=11 // pred_fallthru
        _
      // Predicated region
      $region17: #{generator_forward.12} parent=11 // pred_check
        %p137 = pneg %p91
      $region18: #{generator_forward.12} parent=11 // pred_check_branch
        %139 = sbr.rel (%p137) target = $region20
      $region19: #{generator_forward.12} parent=11 // pred_region
        _
      $region20: #{generator_forward.12} parent=11 // pred_fallthru
        _
    $region12: #{generator_forward.12} parent=5 // pred_fallthru
      _
    %p140 = scmp.lt.s32.totalorder %s9, 4
    // Predicated region
    $region21: #{generator_forward.12} parent=5 // pred_check
      %p141 = pneg %p140
    $region22: #{generator_forward.12} parent=5 // pred_check_branch
      %143 = sbr.rel (%p141) target = $region24
    $region23: #{generator_forward.12} parent=5 // pred_region
      // Predicated region
      $region25: #{generator_forward.12} parent=23 // pred_check
        %p144 = pneg %p43
      $region26: #{generator_forward.12} parent=23 // pred_check_branch
        %146 = sbr.rel (%p144) target = $region28
      $region27: #{generator_forward.12} parent=23 // pred_region
        %s147 = smul.u32 4, %s17
        %p148 = scmp.lt.s32.totalorder %s16, 3
        %s149 = scalar_select %p148, %s16, 3
        %p150 = scmp.lt.s32.totalorder %s147, 3
        %s151 = scalar_select %p150, %s147, 3
        %s152 = smul.addr %s149, 4
        %s153 = sadd.s32 %s151, %s152
        %s154 = smul.addr %s153, 8
        %s155 = scalar_lea.vmem %s0, %s154
        %s156 = smul.u32 4, %s17
      $region28: #{generator_forward.12} parent=23 // pred_fallthru
        _
    $region24: #{generator_forward.12} parent=5 // pred_fallthru
      _
    %p157 = scmp.le.s32.totalorder 1, %s9
    %p158 = scmp.lt.s32.totalorder %s9, 5
    %p159 = pnand %p157, %p158
    %p160 = pneg %p159
    // Predicated region
    $region29: #{generator_forward.12} parent=5 // pred_check
      _
    $region30: #{generator_forward.12} parent=5 // pred_check_branch
      %162 = sbr.rel (%p159) target = $region32
    $region31: #{generator_forward.12} parent=5 // pred_region
      %s163 = ssub.s32 %s9, 1
      %s164 = smul.u32 4, %s19
      %p165 = scmp.lt.s32.totalorder %s18, 3
      %s166 = scalar_select %p165, %s18, 3
      %p167 = scmp.lt.s32.totalorder %s164, 3
      %s168 = scalar_select %p167, %s164, 3
      %s169 = smul.addr %s166, 4
      %s170 = sadd.s32 %s168, %s169
      %s171 = smul.addr %s170, 8
      %s172 = scalar_lea.vmem %s0, %s171
      %p173 = pneg %p49
      %p174 = pneg %p46
      %p175 = pneg %p70
      %p176 = pneg %p67
      %p177 = pneg %p91
      %p178 = pneg %p88
      %p179 = pneg %p119
      %p180 = pneg %p116
      %s181 = smul.u32 4, %s19
      %p182 = scmp.lt.s32.totalorder %s18, 3
      %s183 = scalar_select %p182, %s18, 3
      %p184 = scmp.lt.s32.totalorder %s181, 3
      %s185 = scalar_select %p184, %s181, 3
      %s186 = smul.addr %s183, 4
      %s187 = sadd.s32 %s185, %s186
      %s188 = smul.addr %s187, 4
      %s189 = scalar_lea.vmem %s3, %s188
      %s190 = smul.u32 4, %s19
      %p191 = scmp.lt.s32.totalorder %s18, 3
      %s192 = scalar_select %p191, %s18, 3
      %p193 = scmp.lt.s32.totalorder %s190, 3
      %s194 = scalar_select %p193, %s190, 3
      %s195 = smul.addr %s192, 4
      %s196 = sadd.s32 %s194, %s195
      %s197 = smul.addr %s196, 8
      %s198 = scalar_lea.vmem %s0, %s197
      %s199 = smul.u32 4, %s19
      %s200 = smul.u32 4, %s19
      %p201 = scmp.lt.s32.totalorder %s18, 3
      %s202 = scalar_select %p201, %s18, 3
      %p203 = scmp.lt.s32.totalorder %s200, 3
      %s204 = scalar_select %p203, %s200, 3
      %s205 = smul.addr %s202, 4
      %s206 = sadd.s32 %s204, %s205
      %s207 = smul.addr %s206, 4
      %s208 = scalar_lea.vmem %s3, %s207
      %s209 = smul.u32 4, %s19
      %v210 = vld [vmem:[%s198] sm:$0xff]
      %v211 = vld [vmem:[%s198 + $0x8] sm:$0xff]
      %v212 = vld [vmem:[%s198 + $0x10] sm:$0xff]
      %v213 = vld [vmem:[%s198 + $0x18] sm:$0xff]
      %v214 = vld [vmem:[%s1] sm:$0x1]
      %v216 = vlaneseq
      %v217 = vshrl.u32 %v216, 7
      %v218 = vsub.s32 0, %v217
      %v219 = vrot.slane %v214, %v218
      %v221 = vmul.f32 %v210, %v219
      %v222 = vmul.f32 %v211, %v219
      %v223 = vmul.f32 %v212, %v219
      %v224 = vmul.f32 %v213, %v219
      %v225 = vld [vmem:[%s2] sm:$0x1]
      %v227 = vlaneseq
      %v228 = vshrl.u32 %v227, 7
      %v229 = vsub.s32 0, %v228
      %v230 = vrot.slane %v225, %v229
      %v232 = vadd.f32 %v221, %v230
      %v233 = vadd.f32 %v222, %v230
      %v234 = vadd.f32 %v223, %v230
      %v235 = vadd.f32 %v224, %v230
      %v236 = vmax.f32 %v232, 0.0
      %v237 = vmax.f32 %v233, 0.0
      %v238 = vmax.f32 %v234, 0.0
      %v239 = vmax.f32 %v235, 0.0
      %v240 = vpack.c.bf16 %v237, %v236
      %v241 = vpack.c.bf16 %v239, %v238
      %v244 = vunpack.c.l.b16 %v240
      %v245 = vunpack.c.h.b16 %v240
      %v246 = vunpack.c.l.b16 %v241
      %v247 = vunpack.c.h.b16 %v241
      %v248 = vpack.c.b16 %v244, %v244
      %v249 = vpack.c.b16 %v245, %v245
      %v250 = vpack.c.b16 %v246, %v246
      %v251 = vpack.c.b16 %v247, %v247
      %256 = vst [vmem:[%s208] sm:$0xf] %v248
      %257 = vst [vmem:[%s208 + $0x4] sm:$0xf] %v249
      %258 = vst [vmem:[%s208 + $0x8] sm:$0xf] %v250
      %259 = vst [vmem:[%s208 + $0xc] sm:$0xf] %v251
      %s260 = smul.u32 4, %s19
      %p261 = scmp.lt.s32.totalorder %s18, 3
      %s262 = scalar_select %p261, %s18, 3
      %p263 = scmp.lt.s32.totalorder %s260, 3
      %s264 = scalar_select %p263, %s260, 3
      %s265 = smul.addr %s262, 4
      %s266 = sadd.s32 %s264, %s265
      %s267 = smul.addr %s266, 4
      %s268 = scalar_lea.vmem %s3, %s267
      // Predicated region
      $region33: #{generator_forward.12} parent=31 // pred_check
        %p269 = pneg %p116
      $region34: #{generator_forward.12} parent=31 // pred_check_branch
        %271 = sbr.rel (%p269) target = $region36
      $region35: #{generator_forward.12} parent=31 // pred_region
        %s272 = smul.u32 4, %s19
      $region36: #{generator_forward.12} parent=31 // pred_fallthru
        _
    $region32: #{generator_forward.12} parent=5 // pred_fallthru
      _
    %p273 = scmp.le.s32.totalorder 2, %s9
    // Predicated region
    $region37: #{generator_forward.12} parent=5 // pred_check
      %p274 = pneg %p273
    $region38: #{generator_forward.12} parent=5 // pred_check_branch
      %276 = sbr.rel (%p274) target = $region40
    $region39: #{generator_forward.12} parent=5 // pred_region
      %s277 = ssub.s32 %s9, 2
      // Predicated region
      $region41: #{generator_forward.12} parent=39 // pred_check
        %p278 = pneg %p122
      $region42: #{generator_forward.12} parent=39 // pred_check_branch
        %280 = sbr.rel (%p278) target = $region44
      $region43: #{generator_forward.12} parent=39 // pred_region
        %s281 = smul.u32 4, %s21
        %p282 = scmp.lt.s32.totalorder %s20, 3
        %s283 = scalar_select %p282, %s20, 3
        %p284 = scmp.lt.s32.totalorder %s281, 3
        %s285 = scalar_select %p284, %s281, 3
        %s286 = smul.addr %s283, 4
        %s287 = sadd.s32 %s285, %s286
        %s288 = smul.addr %s287, 4
        %s289 = scalar_lea.vmem %s3, %s288
      $region44: #{generator_forward.12} parent=39 // pred_fallthru
        _
    $region40: #{generator_forward.12} parent=5 // pred_fallthru
      _
  $region6: #{generator_forward.12} parent=0 // loop_footer
    %s13 = sadd.s32 1, %s9
  $region7: #{generator_forward.12} parent=0 // loop_footer_branch
    %8 = sbr.rel target = $region3
  $region8: #{generator_forward.12} parent=0 // loop_exit
    _

// kernel: generator_forward.13
$region0: #{generator_forward.13}
  #allocation0 [shape = 'u32[]', space=smem, size = 0x4, offset = 0x4, fixed_abs, tag = 'smem constant byte address 0x4 - core index']
  #allocation1 [shape = 'u32[144,128]{1,0:T(1,128)}', space=vmem, size = 0x12000, scoped, tag = 'internal scratch']
  %s0 = inlined_call_operand.vmem [shape: bf16[4,128,128], index: 0, kind: input, shape index: {}]
  %s1 = inlined_call_operand.vmem [shape: bf16[4,128,128], index: 1, kind: input, shape index: {}]
  %s2 = inlined_call_operand.vmem [shape: f32[4,128,128], index: 2, kind: output, shape index: {0}]
  %s3 = inlined_call_operand.vmem [shape: f32[4,1,2,128], index: 3, kind: output, shape index: {1}]
  %4 = xla_tuple %s2, %s3
  %s5 = sld [smem:[#allocation0]]
  $region49: #{generator_forward.13} parent=0
    _
  %s7 = ssub.s32 1, %s5
  %s8 = scalar_select 0, %s7, %s5
  loop: start=0, step=1, limit=6
  $region2: #{generator_forward.13} parent=0 // loop_pre_header
    _
  $region3: #{generator_forward.13} parent=0 // loop_header
    %s10 = sphi 0, %s14
    %p11 = scmp.ge.s32.totalorder %s10, 6
    %s17 = sphi 0, %s29
    %s18 = sphi 0, %s25
    %s19 = sphi 0, %s17
    %s20 = sphi 0, %s18
    %s21 = sphi 0, %s19
    %s22 = sphi 0, %s20
    %s34 = sphi 0, %s36
    %s37 = sphi 0, %s34
    %s38 = sphi 0, %s37
    %s54 = sphi 0, %s38
    %s60 = sphi 0, %s62
    %s63 = sphi 0, %s60
    %s64 = sphi 0, %s63
    %s80 = sphi 0, %s64
    %s88 = sphi 0, %s90
    %s91 = sphi 0, %s88
    %s92 = sphi 0, %s91
    %s108 = sphi 0, %s92
    %s116 = sphi 0, %s118
    %s119 = sphi 0, %s116
    %s120 = sphi 0, %s119
    %s136 = sphi 0, %s120
  $region4: #{generator_forward.13} parent=0 // loop_header_branch
    %13 = sbr.rel (%p11) target = $region8
  $region5: #{generator_forward.13} parent=0 // loop_body
    %s15 = ssub.s32 %s10, 1
    %s16 = ssub.s32 %s10, 2
    %s23 = sadd.s32 1, %s18
    %p24 = scmp.ge.s32.totalorder %s23, 1
    %s25 = scalar_select %p24, 0, %s23
    %s26 = sadd.s32 1, %s17
    %s27 = scalar_select %p24, %s26, %s17
    %p28 = scmp.ge.s32.totalorder %s27, 4
    %s29 = scalar_select %p28, 0, %s27
    %s30 = ssub.s32 %s17, %s29
    %s31 = ssub.s32 %s18, %s25
    %s32 = sor.u32 %s30, %s31
    %p33 = scmp.eq.s32.totalorder %s32, 0
    %s35 = sadd.s32 %s34, 1
    %s36 = scalar_select %p33, %s34, %s35
    %p39 = pneg %p33
    %p40 = scmp.eq.s32.totalorder %s10, 3
    %p41 = por %p39, %p40
    %p42 = scmp.ne.s32.totalorder %s34, %s37
    %p43 = scmp.eq.s32.totalorder %s10, 0
    %p44 = por %p42, %p43
    %p45 = scmp.ne.s32.totalorder %s34, %s37
    %p46 = scmp.eq.s32.totalorder %s15, 3
    %p47 = por %p45, %p46
    %p48 = scmp.ne.s32.totalorder %s37, %s38
    %p49 = scmp.eq.s32.totalorder %s15, 0
    %p50 = por %p48, %p49
    %p51 = scmp.ne.s32.totalorder %s37, %s38
    %p52 = scmp.eq.s32.totalorder %s16, 3
    %p53 = por %p51, %p52
    %p55 = scmp.ne.s32.totalorder %s38, %s54
    %p56 = scmp.eq.s32.totalorder %s16, 0
    %p57 = por %p55, %p56
    %s58 = ssub.s32 %s17, %s29
    %p59 = scmp.eq.s32.totalorder %s58, 0
    %s61 = sadd.s32 %s60, 1
    %s62 = scalar_select %p59, %s60, %s61
    %p65 = pneg %p59
    %p66 = scmp.eq.s32.totalorder %s10, 3
    %p67 = por %p65, %p66
    %p68 = scmp.ne.s32.totalorder %s60, %s63
    %p69 = scmp.eq.s32.totalorder %s10, 0
    %p70 = por %p68, %p69
    %p71 = scmp.ne.s32.totalorder %s60, %s63
    %p72 = scmp.eq.s32.totalorder %s15, 3
    %p73 = por %p71, %p72
    %p74 = scmp.ne.s32.totalorder %s63, %s64
    %p75 = scmp.eq.s32.totalorder %s15, 0
    %p76 = por %p74, %p75
    %p77 = scmp.ne.s32.totalorder %s63, %s64
    %p78 = scmp.eq.s32.totalorder %s16, 3
    %p79 = por %p77, %p78
    %p81 = scmp.ne.s32.totalorder %s64, %s80
    %p82 = scmp.eq.s32.totalorder %s16, 0
    %p83 = por %p81, %p82
    %s84 = ssub.s32 %s17, %s29
    %s85 = ssub.s32 %s18, %s25
    %s86 = sor.u32 %s84, %s85
    %p87 = scmp.eq.s32.totalorder %s86, 0
    %s89 = sadd.s32 %s88, 1
    %s90 = scalar_select %p87, %s88, %s89
    %p93 = pneg %p87
    %p94 = scmp.eq.s32.totalorder %s10, 3
    %p95 = por %p93, %p94
    %p96 = scmp.ne.s32.totalorder %s88, %s91
    %p97 = scmp.eq.s32.totalorder %s10, 0
    %p98 = por %p96, %p97
    %p99 = scmp.ne.s32.totalorder %s88, %s91
    %p100 = scmp.eq.s32.totalorder %s15, 3
    %p101 = por %p99, %p100
    %p102 = scmp.ne.s32.totalorder %s91, %s92
    %p103 = scmp.eq.s32.totalorder %s15, 0
    %p104 = por %p102, %p103
    %p105 = scmp.ne.s32.totalorder %s91, %s92
    %p106 = scmp.eq.s32.totalorder %s16, 3
    %p107 = por %p105, %p106
    %p109 = scmp.ne.s32.totalorder %s92, %s108
    %p110 = scmp.eq.s32.totalorder %s16, 0
    %p111 = por %p109, %p110
    %s112 = ssub.s32 %s17, %s29
    %s113 = ssub.s32 %s18, %s25
    %s114 = sor.u32 %s112, %s113
    %p115 = scmp.eq.s32.totalorder %s114, 0
    %s117 = sadd.s32 %s116, 1
    %s118 = scalar_select %p115, %s116, %s117
    %p121 = pneg %p115
    %p122 = scmp.eq.s32.totalorder %s10, 3
    %p123 = por %p121, %p122
    %p124 = scmp.ne.s32.totalorder %s116, %s119
    %p125 = scmp.eq.s32.totalorder %s10, 0
    %p126 = por %p124, %p125
    %p127 = scmp.ne.s32.totalorder %s116, %s119
    %p128 = scmp.eq.s32.totalorder %s15, 3
    %p129 = por %p127, %p128
    %p130 = scmp.ne.s32.totalorder %s119, %s120
    %p131 = scmp.eq.s32.totalorder %s15, 0
    %p132 = por %p130, %p131
    %p133 = scmp.ne.s32.totalorder %s119, %s120
    %p134 = scmp.eq.s32.totalorder %s16, 3
    %p135 = por %p133, %p134
    %p137 = scmp.ne.s32.totalorder %s120, %s136
    %p138 = scmp.eq.s32.totalorder %s16, 0
    %p139 = por %p137, %p138
    %p140 = scmp.le.s32.totalorder 1, %s10
    %p141 = scmp.lt.s32.totalorder %s10, 5
    %p142 = pnand %p140, %p141
    %p143 = pneg %p142
    // Predicated region
    $region9: #{generator_forward.13} parent=5 // pred_check
      _
    $region10: #{generator_forward.13} parent=5 // pred_check_branch
      %145 = sbr.rel (%p142) target = $region12
    $region11: #{generator_forward.13} parent=5 // pred_region
      %s146 = ssub.s32 %s10, 1
    $region12: #{generator_forward.13} parent=5 // pred_fallthru
      _
    %p147 = scmp.lt.s32.totalorder %s10, 4
    // Predicated region
    $region13: #{generator_forward.13} parent=5 // pred_check
      %p148 = pneg %p147
    $region14: #{generator_forward.13} parent=5 // pred_check_branch
      %150 = sbr.rel (%p148) target = $region16
    $region15: #{generator_forward.13} parent=5 // pred_region
      // Predicated region
      $region17: #{generator_forward.13} parent=15 // pred_check
        %p151 = pneg %p44
      $region18: #{generator_forward.13} parent=15 // pred_check_branch
        %153 = sbr.rel (%p151) target = $region20
      $region19: #{generator_forward.13} parent=15 // pred_region
        %s154 = smul.u32 16, %s18
        %p155 = scmp.lt.s32.totalorder %s17, 3
        %s156 = scalar_select %p155, %s17, 3
        %p157 = scmp.lt.s32.totalorder %s154, 15
        %s158 = scalar_select %p157, %s154, 15
        %s159 = smul.addr %s156, 16
        %s160 = sadd.s32 %s158, %s159
        %s161 = smul.addr %s160, 4
        %s162 = scalar_lea.vmem %s0, %s161
        %s163 = smul.u32 16, %s18
      $region20: #{generator_forward.13} parent=15 // pred_fallthru
        _
      // Predicated region
      $region21: #{generator_forward.13} parent=15 // pred_check
        %p164 = pneg %p70
      $region22: #{generator_forward.13} parent=15 // pred_check_branch
        %166 = sbr.rel (%p164) target = $region24
      $region23: #{generator_forward.13} parent=15 // pred_region
        %p167 = scmp.lt.s32.totalorder %s17, 3
        %s168 = scalar_select %p167, %s17, 3
        %s169 = smul.addr %s168, 16
        %s170 = smul.addr %s169, 4
        %s171 = scalar_lea.vmem %s1, %s170
      $region24: #{generator_forward.13} parent=15 // pred_fallthru
        _
    $region16: #{generator_forward.13} parent=5 // pred_fallthru
      _
    %p172 = scmp.le.s32.totalorder 1, %s10
    %p173 = scmp.lt.s32.totalorder %s10, 5
    %p174 = pnand %p172, %p173
    %p175 = pneg %p174
    // Predicated region
    $region25: #{generator_forward.13} parent=5 // pred_check
      _
    $region26: #{generator_forward.13} parent=5 // pred_check_branch
      %177 = sbr.rel (%p174) target = $region28
    $region27: #{generator_forward.13} parent=5 // pred_region
      %s178 = ssub.s32 %s10, 1
      %s179 = smul.u32 16, %s20
      %p180 = scmp.lt.s32.totalorder %s19, 3
      %s181 = scalar_select %p180, %s19, 3
      %p182 = scmp.lt.s32.totalorder %s179, 15
      %s183 = scalar_select %p182, %s179, 15
      %s184 = smul.addr %s181, 16
      %s185 = sadd.s32 %s183, %s184
      %s186 = smul.addr %s185, 4
      %s187 = scalar_lea.vmem %s0, %s186
      %p188 = pneg %p50
      %p189 = pneg %p47
      %p190 = scmp.lt.s32.totalorder %s19, 3
      %s191 = scalar_select %p190, %s19, 3
      %s192 = smul.addr %s191, 16
      %s193 = smul.addr %s192, 4
      %s194 = scalar_lea.vmem %s1, %s193
      %p195 = pneg %p76
      %p196 = pneg %p73
      %p197 = pneg %p104
      %p198 = pneg %p101
      %s199 = smul.u32 16, %s20
      %p200 = scmp.lt.s32.totalorder %s19, 3
      %s201 = scalar_select %p200, %s19, 3
      %p202 = scmp.lt.s32.totalorder %s199, 15
      %s203 = scalar_select %p202, %s199, 15
      %s204 = smul.addr %s201, 16
      %s205 = sadd.s32 %s203, %s204
      %s206 = smul.addr %s205, 8
      %s207 = scalar_lea.vmem %s2, %s206
      %p208 = pneg %p132
      %p209 = pneg %p129
      %p210 = scmp.lt.s32.totalorder %s19, 3
      %s211 = scalar_select %p210, %s19, 3
      %p212 = scmp.lt.s32.totalorder %s20, 0
      %s213 = scalar_select %p212, %s20, 0
      %s214 = sadd.s32 %s213, %s211
      %s215 = smul.addr %s214, 2
      %s216 = scalar_lea.vmem %s3, %s215
      %s217 = smul.u32 16, %s20
      %p218 = scmp.lt.s32.totalorder %s19, 3
      %s219 = scalar_select %p218, %s19, 3
      %p220 = scmp.lt.s32.totalorder %s217, 15
      %s221 = scalar_select %p220, %s217, 15
      %s222 = smul.addr %s219, 16
      %s223 = sadd.s32 %s221, %s222
      %s224 = smul.addr %s223, 4
      %s225 = scalar_lea.vmem %s0, %s224
      %s226 = smul.u32 16, %s20
      %p227 = scmp.lt.s32.totalorder %s19, 3
      %s228 = scalar_select %p227, %s19, 3
      %s229 = smul.addr %s228, 16
      %s230 = smul.addr %s229, 4
      %s231 = scalar_lea.vmem %s1, %s230
      %s232 = smul.u32 16, %s20
      %p233 = scmp.lt.s32.totalorder %s19, 3
      %s234 = scalar_select %p233, %s19, 3
      %p235 = scmp.lt.s32.totalorder %s232, 15
      %s236 = scalar_select %p235, %s232, 15
      %s237 = smul.addr %s234, 16
      %s238 = sadd.s32 %s236, %s237
      %s239 = smul.addr %s238, 8
      %s240 = scalar_lea.vmem %s2, %s239
      %s241 = smul.u32 16, %s20
      %p242 = scmp.lt.s32.totalorder %s19, 3
      %s243 = scalar_select %p242, %s19, 3
      %p244 = scmp.lt.s32.totalorder %s20, 0
      %s245 = scalar_select %p244, %s20, 0
      %s246 = sadd.s32 %s245, %s243
      %s247 = smul.addr %s246, 2
      %s248 = scalar_lea.vmem %s3, %s247
      %v250 = vld [vmem:[%s225] sm:$0xf]
      %v251 = vld [vmem:[%s225 + $0x4] sm:$0xf]
      %v252 = vld [vmem:[%s225 + $0x8] sm:$0xf]
      %v253 = vld [vmem:[%s225 + $0xc] sm:$0xf]
      %v254 = vld [vmem:[%s225 + $0x10] sm:$0xf]
      %v255 = vld [vmem:[%s225 + $0x14] sm:$0xf]
      %v256 = vld [vmem:[%s225 + $0x18] sm:$0xf]
      %v257 = vld [vmem:[%s225 + $0x1c] sm:$0xf]
      %v258 = vld [vmem:[%s225 + $0x20] sm:$0xf]
      %v259 = vld [vmem:[%s225 + $0x24] sm:$0xf]
      %v260 = vld [vmem:[%s225 + $0x28] sm:$0xf]
      %v261 = vld [vmem:[%s225 + $0x2c] sm:$0xf]
      %v262 = vld [vmem:[%s225 + $0x30] sm:$0xf]
      %v263 = vld [vmem:[%s225 + $0x34] sm:$0xf]
      %v264 = vld [vmem:[%s225 + $0x38] sm:$0xf]
      %v265 = vld [vmem:[%s225 + $0x3c] sm:$0xf]
      %v266 = vld [vmem:[%s231] sm:$0xf]
      %v267 = vld [vmem:[%s231 + $0x4] sm:$0xf]
      %v268 = vld [vmem:[%s231 + $0x8] sm:$0xf]
      %v269 = vld [vmem:[%s231 + $0xc] sm:$0xf]
      %v270 = vld [vmem:[%s231 + $0x10] sm:$0xf]
      %v271 = vld [vmem:[%s231 + $0x14] sm:$0xf]
      %v272 = vld [vmem:[%s231 + $0x18] sm:$0xf]
      %v273 = vld [vmem:[%s231 + $0x1c] sm:$0xf]
      %v274 = vld [vmem:[%s231 + $0x20] sm:$0xf]
      %v275 = vld [vmem:[%s231 + $0x24] sm:$0xf]
      %v276 = vld [vmem:[%s231 + $0x28] sm:$0xf]
      %v277 = vld [vmem:[%s231 + $0x2c] sm:$0xf]
      %v278 = vld [vmem:[%s231 + $0x30] sm:$0xf]
      %v279 = vld [vmem:[%s231 + $0x34] sm:$0xf]
      %v280 = vld [vmem:[%s231 + $0x38] sm:$0xf]
      %v281 = vld [vmem:[%s231 + $0x3c] sm:$0xf]
      %v298 = vunpack.c.l.b16 %v250
      %v299 = vunpack.c.l.b16 %v251
      %v300 = vunpack.c.l.b16 %v252
      %v301 = vunpack.c.l.b16 %v253
      %v302 = vunpack.c.l.b16 %v254
      %v303 = vunpack.c.l.b16 %v255
      %v304 = vunpack.c.l.b16 %v256
      %v305 = vunpack.c.l.b16 %v257
      %v306 = vunpack.c.l.b16 %v258
      %v307 = vunpack.c.l.b16 %v259
      %v308 = vunpack.c.l.b16 %v260
      %v309 = vunpack.c.l.b16 %v261
      %v310 = vunpack.c.l.b16 %v262
      %v311 = vunpack.c.l.b16 %v263
      %v312 = vunpack.c.l.b16 %v264
      %v313 = vunpack.c.l.b16 %v265
      %v314 = vpack.c.b16 %v299, %v298
      %v315 = vpack.c.b16 %v301, %v300
      %v316 = vpack.c.b16 %v303, %v302
      %v317 = vpack.c.b16 %v305, %v304
      %v318 = vpack.c.b16 %v307, %v306
      %v319 = vpack.c.b16 %v309, %v308
      %v320 = vpack.c.b16 %v311, %v310
      %v321 = vpack.c.b16 %v313, %v312
      %v346 = vunpack.c.l.b16 %v266
      %v347 = vunpack.c.l.b16 %v267
      %v348 = vunpack.c.l.b16 %v268
      %v349 = vunpack.c.l.b16 %v269
      %v350 = vunpack.c.l.b16 %v270
      %v351 = vunpack.c.l.b16 %v271
      %v352 = vunpack.c.l.b16 %v272
      %v353 = vunpack.c.l.b16 %v273
      %v354 = vunpack.c.l.b16 %v274
      %v355 = vunpack.c.l.b16 %v275
      %v356 = vunpack.c.l.b16 %v276
      %v357 = vunpack.c.l.b16 %v277
      %v358 = vunpack.c.l.b16 %v278
      %v359 = vunpack.c.l.b16 %v279
      %v360 = vunpack.c.l.b16 %v280
      %v361 = vunpack.c.l.b16 %v281
      %v362 = vpack.c.b16 %v347, %v346
      %v363 = vpack.c.b16 %v349, %v348
      %v364 = vpack.c.b16 %v351, %v350
      %v365 = vpack.c.b16 %v353, %v352
      %v366 = vpack.c.b16 %v355, %v354
      %v367 = vpack.c.b16 %v357, %v356
      %v368 = vpack.c.b16 %v359, %v358
      %v369 = vpack.c.b16 %v361, %v360
      %378 = vmatprep.subr.bf16.mxu0 0
      %379 = vmatpush1.bf16.msra.mxu0 %v362
      %380 = vmatprep.subr.bf16.mxu0 0
      %381 = vmatpush1.bf16.msra.mxu0 %v363
      %382 = vmatprep.subr.bf16.mxu0 0
      %383 = vmatpush1.bf16.msra.mxu0 %v364
      %384 = vmatprep.subr.bf16.mxu0 0
      %385 = vmatpush1.bf16.msra.mxu0 %v365
      %386 = vmatprep.subr.bf16.mxu0 0
      %387 = vmatpush1.bf16.msra.mxu0 %v366
      %388 = vmatprep.subr.bf16.mxu0 0
      %389 = vmatpush1.bf16.msra.mxu0 %v367
      %390 = vmatprep.subr.bf16.mxu0 0
      %391 = vmatpush1.bf16.msra.mxu0 %v368
      %392 = vmatprep.subr.bf16.mxu0 0
      %393 = vmatpush1.bf16.msra.mxu0 %v369
      %394 = vmatprep.subr.bf16.mxu0 0
      %395 = vmatpush1.bf16.msra.mxu0 0
      %396 = vmatprep.subr.bf16.mxu0 0
      %397 = vmatpush1.bf16.msra.mxu0 0
      %398 = vmatprep.subr.bf16.mxu0 0
      %399 = vmatpush1.bf16.msra.mxu0 0
      %400 = vmatprep.subr.bf16.mxu0 0
      %401 = vmatpush1.bf16.msra.mxu0 0
      %402 = vmatprep.subr.bf16.mxu0 0
      %403 = vmatpush1.bf16.msra.mxu0 0
      %404 = vmatprep.subr.bf16.mxu0 0
      %405 = vmatpush1.bf16.msra.mxu0 0
      %406 = vmatprep.subr.bf16.mxu0 0
      %407 = vmatpush1.bf16.msra.mxu0 0
      %408 = vmatprep.subr.bf16.mxu0 0
      %409 = vmatpush1.bf16.msra.mxu0 0
      %410 = vmatprep.mubr.bf16.mxu0 0
      %411 = vmatmul.mubr.bf16.gmra.mrb[0].mxu0 %v314
      %v412 = vpop.f32.mrb[0].mxu0
      %v413 = vadd.f32 0.0, %v412
      %v414 = vpop.f32.mrb[0].mxu0
      %v415 = vpop.f32.mrb[0].mxu0
      %v416 = vadd.f32 0.0, %v415
      %v417 = vpop.f32.mrb[0].mxu0
      %418 = vmatprep.mubr.bf16.mxu0 0
      %419 = vmatmul.mubr.bf16.gmra.mrb[0].mxu0 %v315
      %v420 = vpop.f32.mrb[0].mxu0
      %v421 = vadd.f32 0.0, %v420
      %v422 = vpop.f32.mrb[0].mxu0
      %v423 = vpop.f32.mrb[0].mxu0
      %v424 = vadd.f32 0.0, %v423
      %v425 = vpop.f32.mrb[0].mxu0
      %426 = vmatprep.mubr.bf16.mxu0 0
      %427 = vmatmul.mubr.bf16.gmra.mrb[0].mxu0 %v316
      %v428 = vpop.f32.mrb[0].mxu0
      %v429 = vadd.f32 0.0, %v428
      %v430 = vpop.f32.mrb[0].mxu0
      %v431 = vpop.f32.mrb[0].mxu0
      %v432 = vadd.f32 0.0, %v431
      %v433 = vpop.f32.mrb[0].mxu0
      %434 = vmatprep.mubr.bf16.mxu0 0
      %435 = vmatmul.mubr.bf16.gmra.mrb[0].mxu0 %v317
      %v436 = vpop.f32.mrb[0].mxu0
      %v437 = vadd.f32 0.0, %v436
      %v438 = vpop.f32.mrb[0].mxu0
      %v439 = vpop.f32.mrb[0].mxu0
      %v440 = vadd.f32 0.0, %v439
      %v441 = vpop.f32.mrb[0].mxu0
      %442 = vmatprep.mubr.bf16.mxu0 0
      %443 = vmatmul.mubr.bf16.gmra.mrb[0].mxu0 %v318
      %v444 = vpop.f32.mrb[0].mxu0
      %v445 = vadd.f32 0.0, %v444
      %v446 = vpop.f32.mrb[0].mxu0
      %v447 = vpop.f32.mrb[0].mxu0
      %v448 = vadd.f32 0.0, %v447
      %v449 = vpop.f32.mrb[0].mxu0
      %450 = vmatprep.mubr.bf16.mxu0 0
      %451 = vmatmul.mubr.bf16.gmra.mrb[0].mxu0 %v319
      %v452 = vpop.f32.mrb[0].mxu0
      %v453 = vadd.f32 0.0, %v452
      %v454 = vpop.f32.mrb[0].mxu0
      %v455 = vpop.f32.mrb[0].mxu0
      %v456 = vadd.f32 0.0, %v455
      %v457 = vpop.f32.mrb[0].mxu0
      %458 = vmatprep.mubr.bf16.mxu0 0
      %459 = vmatmul.mubr.bf16.gmra.mrb[0].mxu0 %v320
      %v460 = vpop.f32.mrb[0].mxu0
      %v461 = vadd.f32 0.0, %v460
      %v462 = vpop.f32.mrb[0].mxu0
      %v463 = vpop.f32.mrb[0].mxu0
      %v464 = vadd.f32 0.0, %v463
      %v465 = vpop.f32.mrb[0].mxu0
      %466 = vmatprep.mubr.bf16.mxu0 0
      %467 = vmatmul.mubr.bf16.gmra.mrb[0].mxu0 %v321
      %v468 = vpop.f32.mrb[0].mxu0
      %v469 = vadd.f32 0.0, %v468
      %v470 = vpop.f32.mrb[0].mxu0
      %v471 = vpop.f32.mrb[0].mxu0
      %v472 = vadd.f32 0.0, %v471
      %v473 = vpop.f32.mrb[0].mxu0
      %474 = vdwg.mxu0
      %475 = vst [vmem:[%s240] sm:$0xff] %v413
      %476 = vst [vmem:[%s240 + $0x8] sm:$0xff] %v416
      %477 = vst [vmem:[%s240 + $0x10] sm:$0xff] %v421
      %478 = vst [vmem:[%s240 + $0x18] sm:$0xff] %v424
      %479 = vst [vmem:[%s240 + $0x20] sm:$0xff] %v429
      %480 = vst [vmem:[%s240 + $0x28] sm:$0xff] %v432
      %481 = vst [vmem:[%s240 + $0x30] sm:$0xff] %v437
      %482 = vst [vmem:[%s240 + $0x38] sm:$0xff] %v440
      %483 = vst [vmem:[%s240 + $0x40] sm:$0xff] %v445
      %484 = vst [vmem:[%s240 + $0x48] sm:$0xff] %v448
      %485 = vst [vmem:[%s240 + $0x50] sm:$0xff] %v453
      %486 = vst [vmem:[%s240 + $0x58] sm:$0xff] %v456
      %487 = vst [vmem:[%s240 + $0x60] sm:$0xff] %v461
      %488 = vst [vmem:[%s240 + $0x68] sm:$0xff] %v464
      %489 = vst [vmem:[%s240 + $0x70] sm:$0xff] %v469
      %490 = vst [vmem:[%s240 + $0x78] sm:$0xff] %v472
      %v491 = vadd.f32 %v413, %v416
      %v492 = vadd.f32 %v491, %v421
      %v493 = vadd.f32 %v492, %v424
      %v494 = vadd.f32 %v493, %v429
      %v495 = vadd.f32 %v494, %v432
      %v496 = vadd.f32 %v495, %v437
      %v497 = vadd.f32 %v496, %v440
      %v498 = vadd.f32 %v497, %v445
      %v499 = vadd.f32 %v498, %v448
      %v500 = vadd.f32 %v499, %v453
      %v501 = vadd.f32 %v500, %v456
      %v502 = vadd.f32 %v501, %v461
      %v503 = vadd.f32 %v502, %v464
      %v504 = vadd.f32 %v503, %v469
      %v505 = vadd.f32 %v504, %v472
      %v506 = vrot.slane %v505, 4
      %v507 = vadd.f32 %v505, %v506
      %v508 = vrot.slane %v507, 2
      %v509 = vadd.f32 %v507, %v508
      %v510 = vrot.slane %v509, 1
      %v511 = vadd.f32 %v509, %v510
      %v512 = vmul.f32 %v413, %v413
      %v513 = vmul.f32 %v416, %v416
      %v514 = vmul.f32 %v421, %v421
      %v515 = vmul.f32 %v424, %v424
      %v516 = vmul.f32 %v429, %v429
      %v517 = vmul.f32 %v432, %v432
      %v518 = vmul.f32 %v437, %v437
      %v519 = vmul.f32 %v440, %v440
      %v520 = vmul.f32 %v445, %v445
      %v521 = vmul.f32 %v448, %v448
      %v522 = vmul.f32 %v453, %v453
      %v523 = vmul.f32 %v456, %v456
      %v524 = vmul.f32 %v461, %v461
      %v525 = vmul.f32 %v464, %v464
      %v526 = vmul.f32 %v469, %v469
      %v527 = vmul.f32 %v472, %v472
      %v528 = vadd.f32 %v512, %v513
      %v529 = vadd.f32 %v528, %v514
      %v530 = vadd.f32 %v529, %v515
      %v531 = vadd.f32 %v530, %v516
      %v532 = vadd.f32 %v531, %v517
      %v533 = vadd.f32 %v532, %v518
      %v534 = vadd.f32 %v533, %v519
      %v535 = vadd.f32 %v534, %v520
      %v536 = vadd.f32 %v535, %v521
      %v537 = vadd.f32 %v536, %v522
      %v538 = vadd.f32 %v537, %v523
      %v539 = vadd.f32 %v538, %v524
      %v540 = vadd.f32 %v539, %v525
      %v541 = vadd.f32 %v540, %v526
      %v542 = vadd.f32 %v541, %v527
      %v543 = vrot.slane %v542, 4
      %v544 = vadd.f32 %v542, %v543
      %v545 = vrot.slane %v544, 2
      %v546 = vadd.f32 %v544, %v545
      %v547 = vrot.slane %v546, 1
      %v548 = vadd.f32 %v546, %v547
      %vm549 = vcmask 1040384
      %v550 = vsel %vm549, %v511, %v548
      %551 = vst [vmem:[%s248] sm:$0x3] %v550
      %s552 = smul.u32 16, %s20
      %p553 = scmp.lt.s32.totalorder %s19, 3
      %s554 = scalar_select %p553, %s19, 3
      %p555 = scmp.lt.s32.totalorder %s552, 15
      %s556 = scalar_select %p555, %s552, 15
      %s557 = smul.addr %s554, 16
      %s558 = sadd.s32 %s556, %s557
      %s559 = smul.addr %s558, 8
      %s560 = scalar_lea.vmem %s2, %s559
      %p561 = scmp.lt.s32.totalorder %s19, 3
      %s562 = scalar_select %p561, %s19, 3
      %p563 = scmp.lt.s32.totalorder %s20, 0
      %s564 = scalar_select %p563, %s20, 0
      %s565 = sadd.s32 %s564, %s562
      %s566 = smul.addr %s565, 2
      %s567 = scalar_lea.vmem %s3, %s566
      // Predicated region
      $region29: #{generator_forward.13} parent=27 // pred_check
        %p568 = pneg %p101
      $region30: #{generator_forward.13} parent=27 // pred_check_branch
        %570 = sbr.rel (%p568) target = $region32
      $region31: #{generator_forward.13} parent=27 // pred_region
        %s571 = smul.u32 16, %s20
      $region32: #{generator_forward.13} parent=27 // pred_fallthru
        _
      // Predicated region
      $region33: #{generator_forward.13} parent=27 // pred_check
        %p572 = pneg %p129
      $region34: #{generator_forward.13} parent=27 // pred_check_branch
        %574 = sbr.rel (%p572) target = $region36
      $region35: #{generator_forward.13} parent=27 // pred_region
        _
      $region36: #{generator_forward.13} parent=27 // pred_fallthru
        _
    $region28: #{generator_forward.13} parent=5 // pred_fallthru
      _
    %p575 = scmp.le.s32.totalorder 2, %s10
    // Predicated region
    $region37: #{generator_forward.13} parent=5 // pred_check
      %p576 = pneg %p575
    $region38: #{generator_forward.13} parent=5 // pred_check_branch
      %578 = sbr.rel (%p576) target = $region40
    $region39: #{generator_forward.13} parent=5 // pred_region
      %s579 = ssub.s32 %s10, 2
      // Predicated region
      $region41: #{generator_forward.13} parent=39 // pred_check
        %p580 = pneg %p107
      $region42: #{generator_forward.13} parent=39 // pred_check_branch
        %582 = sbr.rel (%p580) target = $region44
      $region43: #{generator_forward.13} parent=39 // pred_region
        %s583 = smul.u32 16, %s22
        %p584 = scmp.lt.s32.totalorder %s21, 3
        %s585 = scalar_select %p584, %s21, 3
        %p586 = scmp.lt.s32.totalorder %s583, 15
        %s587 = scalar_select %p586, %s583, 15
        %s588 = smul.addr %s585, 16
        %s589 = sadd.s32 %s587, %s588
        %s590 = smul.addr %s589, 8
        %s591 = scalar_lea.vmem %s2, %s590
      $region44: #{generator_forward.13} parent=39 // pred_fallthru
        _
      // Predicated region
      $region45: #{generator_forward.13} parent=39 // pred_check
        %p592 = pneg %p135
      $region46: #{generator_forward.13} parent=39 // pred_check_branch
        %594 = sbr.rel (%p592) target = $region48
      $region47: #{generator_forward.13} parent=39 // pred_region
        %p595 = scmp.lt.s32.totalorder %s21, 3
        %s596 = scalar_select %p595, %s21, 3
        %p597 = scmp.lt.s32.totalorder %s22, 0
        %s598 = scalar_select %p597, %s22, 0
        %s599 = sadd.s32 %s598, %s596
        %s600 = smul.addr %s599, 2
        %s601 = scalar_lea.vmem %s3, %s600
      $region48: #{generator_forward.13} parent=39 // pred_fallthru
        _
    $region40: #{generator_forward.13} parent=5 // pred_fallthru
      _
  $region6: #{generator_forward.13} parent=0 // loop_footer
    %s14 = sadd.s32 1, %s10
  $region7: #{generator_forward.13} parent=0 // loop_footer_branch
    %9 = sbr.rel target = $region3
  $region8: #{generator_forward.13} parent=0 // loop_exit
    _

// kernel: generator_forward.14
$region0: #{generator_forward.14}
  #allocation0 [shape = 'u32[]', space=smem, size = 0x4, offset = 0x4, fixed_abs, tag = 'smem constant byte address 0x4 - core index']
  #allocation1 [shape = 'u32[144,128]{1,0:T(1,128)}', space=vmem, size = 0x12000, scoped, tag = 'internal scratch']
  %s0 = inlined_call_operand.vmem [shape: f32[4,128,128], index: 0, kind: input, shape index: {}]
  %s1 = inlined_call_operand.vmem [shape: f32[1,128], index: 1, kind: input, shape index: {}]
  %s2 = inlined_call_operand.vmem [shape: f32[1,128], index: 2, kind: input, shape index: {}]
  %s3 = inlined_call_operand.vmem [shape: bf16[4,128,128], index: 3, kind: output, shape index: {}]
  %s4 = sld [smem:[#allocation0]]
  $region45: #{generator_forward.14} parent=0
    _
  %s6 = ssub.s32 1, %s4
  %s7 = scalar_select 0, %s6, %s4
  loop: start=0, step=1, limit=6
  $region2: #{generator_forward.14} parent=0 // loop_pre_header
    _
  $region3: #{generator_forward.14} parent=0 // loop_header
    %s9 = sphi 0, %s13
    %p10 = scmp.ge.s32.totalorder %s9, 6
    %s16 = sphi 0, %s28
    %s17 = sphi 0, %s24
    %s18 = sphi 0, %s16
    %s19 = sphi 0, %s17
    %s20 = sphi 0, %s18
    %s21 = sphi 0, %s19
    %s33 = sphi 0, %s35
    %s36 = sphi 0, %s33
    %s37 = sphi 0, %s36
    %s53 = sphi 0, %s37
    %s57 = sphi 0, %s57
    %s59 = sphi 0, %s57
    %s60 = sphi 0, %s59
    %s74 = sphi 0, %s60
    %s78 = sphi 0, %s78
    %s80 = sphi 0, %s78
    %s81 = sphi 0, %s80
    %s95 = sphi 0, %s81
    %s103 = sphi 0, %s105
    %s106 = sphi 0, %s103
    %s107 = sphi 0, %s106
    %s123 = sphi 0, %s107
  $region4: #{generator_forward.14} parent=0 // loop_header_branch
    %12 = sbr.rel (%p10) target = $region8
  $region5: #{generator_forward.14} parent=0 // loop_body
    %s14 = ssub.s32 %s9, 1
    %s15 = ssub.s32 %s9, 2
    %s22 = sadd.s32 1, %s17
    %p23 = scmp.ge.s32.totalorder %s22, 1
    %s24 = scalar_select %p23, 0, %s22
    %s25 = sadd.s32 1, %s16
    %s26 = scalar_select %p23, %s25, %s16
    %p27 = scmp.ge.s32.totalorder %s26, 4
    %s28 = scalar_select %p27, 0, %s26
    %s29 = ssub.s32 %s16, %s28
    %s30 = ssub.s32 %s17, %s24
    %s31 = sor.u32 %s29, %s30
    %p32 = scmp.eq.s32.totalorder %s31, 0
    %s34 = sadd.s32 %s33, 1
    %s35 = scalar_select %p32, %s33, %s34
    %p38 = pneg %p32
    %p39 = scmp.eq.s32.totalorder %s9, 3
    %p40 = por %p38, %p39
    %p41 = scmp.ne.s32.totalorder %s33, %s36
    %p42 = scmp.eq.s32.totalorder %s9, 0
    %p43 = por %p41, %p42
    %p44 = scmp.ne.s32.totalorder %s33, %s36
    %p45 = scmp.eq.s32.totalorder %s14, 3
    %p46 = por %p44, %p45
    %p47 = scmp.ne.s32.totalorder %s36, %s37
    %p48 = scmp.eq.s32.totalorder %s14, 0
    %p49 = por %p47, %p48
    %p50 = scmp.ne.s32.totalorder %s36, %s37
    %p51 = scmp.eq.s32.totalorder %s15, 3
    %p52 = por %p50, %p51
    %p54 = scmp.ne.s32.totalorder %s37, %s53
    %p55 = scmp.eq.s32.totalorder %s15, 0
    %p56 = por %p54, %p55
    %s58 = sadd.s32 %s57, 1
    %p61 = scmp.eq.s32.totalorder %s9, 3
    %p62 = scmp.ne.s32.totalorder %s57, %s59
    %p63 = scmp.eq.s32.totalorder %s9, 0
    %p64 = por %p62, %p63
    %p65 = scmp.ne.s32.totalorder %s57, %s59
    %p66 = scmp.eq.s32.totalorder %s14, 3
    %p67 = por %p65, %p66
    %p68 = scmp.ne.s32.totalorder %s59, %s60
    %p69 = scmp.eq.s32.totalorder %s14, 0
    %p70 = por %p68, %p69
    %p71 = scmp.ne.s32.totalorder %s59, %s60
    %p72 = scmp.eq.s32.totalorder %s15, 3
    %p73 = por %p71, %p72
    %p75 = scmp.ne.s32.totalorder %s60, %s74
    %p76 = scmp.eq.s32.totalorder %s15, 0
    %p77 = por %p75, %p76
    %s79 = sadd.s32 %s78, 1
    %p82 = scmp.eq.s32.totalorder %s9, 3
    %p83 = scmp.ne.s32.totalorder %s78, %s80
    %p84 = scmp.eq.s32.totalorder %s9, 0
    %p85 = por %p83, %p84
    %p86 = scmp.ne.s32.totalorder %s78, %s80
    %p87 = scmp.eq.s32.totalorder %s14, 3
    %p88 = por %p86, %p87
    %p89 = scmp.ne.s32.totalorder %s80, %s81
    %p90 = scmp.eq.s32.totalorder %s14, 0
    %p91 = por %p89, %p90
    %p92 = scmp.ne.s32.totalorder %s80, %s81
    %p93 = scmp.eq.s32.totalorder %s15, 3
    %p94 = por %p92, %p93
    %p96 = scmp.ne.s32.totalorder %s81, %s95
    %p97 = scmp.eq.s32.totalorder %s15, 0
    %p98 = por %p96, %p97
    %s99 = ssub.s32 %s16, %s28
    %s100 = ssub.s32 %s17, %s24
    %s101 = sor.u32 %s99, %s100
    %p102 = scmp.eq.s32.totalorder %s101, 0
    %s104 = sadd.s32 %s103, 1
    %s105 = scalar_select %p102, %s103, %s104
    %p108 = pneg %p102
    %p109 = scmp.eq.s32.totalorder %s9, 3
    %p110 = por %p108, %p109
    %p111 = scmp.ne.s32.totalorder %s103, %s106
    %p112 = scmp.eq.s32.totalorder %s9, 0
    %p113 = por %p111, %p112
    %p114 = scmp.ne.s32.totalorder %s103, %s106
    %p115 = scmp.eq.s32.totalorder %s14, 3
    %p116 = por %p114, %p115
    %p117 = scmp.ne.s32.totalorder %s106, %s107
    %p118 = scmp.eq.s32.totalorder %s14, 0
    %p119 = por %p117, %p118
    %p120 = scmp.ne.s32.totalorder %s106, %s107
    %p121 = scmp.eq.s32.totalorder %s15, 3
    %p122 = por %p120, %p121
    %p124 = scmp.ne.s32.totalorder %s107, %s123
    %p125 = scmp.eq.s32.totalorder %s15, 0
    %p126 = por %p124, %p125
    %p127 = scmp.le.s32.totalorder 1, %s9
    %p128 = scmp.lt.s32.totalorder %s9, 5
    %p129 = pnand %p127, %p128
    %p130 = pneg %p129
    // Predicated region
    $region9: #{generator_forward.14} parent=5 // pred_check
      _
    $region10: #{generator_forward.14} parent=5 // pred_check_branch
      %132 = sbr.rel (%p129) target = $region12
    $region11: #{generator_forward.14} parent=5 // pred_region
      %s133 = ssub.s32 %s9, 1
      // Predicated region
      $region13: #{generator_forward.14} parent=11 // pred_check
        %p134 = pneg %p70
      $region14: #{generator_forward.14} parent=11 // pred_check_branch
        %136 = sbr.rel (%p134) target = $region16
      $region15: #{generator_forward.14} parent=11 // pred_region
        _
      $region16: #{generator_forward.14} parent=11 // pred_fallthru
        _
      // Predicated region
      $region17: #{generator_forward.14} parent=11 // pred_check
        %p137 = pneg %p91
      $region18: #{generator_forward.14} parent=11 // pred_check_branch
        %139 = sbr.rel (%p137) target = $region20
      $region19: #{generator_forward.14} parent=11 // pred_region
        _
      $region20: #{generator_forward.14} parent=11 // pred_fallthru
        _
    $region12: #{generator_forward.14} parent=5 // pred_fallthru
      _
    %p140 = scmp.lt.s32.totalorder %s9, 4
    // Predicated region
    $region21: #{generator_forward.14} parent=5 // pred_check
      %p141 = pneg %p140
    $region22: #{generator_forward.14} parent=5 // pred_check_branch
      %143 = sbr.rel (%p141) target = $region24
    $region23: #{generator_forward.14} parent=5 // pred_region
      // Predicated region
      $region25: #{generator_forward.14} parent=23 // pred_check
        %p144 = pneg %p43
      $region26: #{generator_forward.14} parent=23 // pred_check_branch
        %146 = sbr.rel (%p144) target = $region28
      $region27: #{generator_forward.14} parent=23 // pred_region
        %s147 = smul.u32 16, %s17
        %p148 = scmp.lt.s32.totalorder %s16, 3
        %s149 = scalar_select %p148, %s16, 3
        %p150 = scmp.lt.s32.totalorder %s147, 15
        %s151 = scalar_select %p150, %s147, 15
        %s152 = smul.addr %s149, 16
        %s153 = sadd.s32 %s151, %s152
        %s154 = smul.addr %s153, 8
        %s155 = scalar_lea.vmem %s0, %s154
        %s156 = smul.u32 16, %s17
      $region28: #{generator_forward.14} parent=23 // pred_fallthru
        _
    $region24: #{generator_forward.14} parent=5 // pred_fallthru
      _
    %p157 = scmp.le.s32.totalorder 1, %s9
    %p158 = scmp.lt.s32.totalorder %s9, 5
    %p159 = pnand %p157, %p158
    %p160 = pneg %p159
    // Predicated region
    $region29: #{generator_forward.14} parent=5 // pred_check
      _
    $region30: #{generator_forward.14} parent=5 // pred_check_branch
      %162 = sbr.rel (%p159) target = $region32
    $region31: #{generator_forward.14} parent=5 // pred_region
      %s163 = ssub.s32 %s9, 1
      %s164 = smul.u32 16, %s19
      %p165 = scmp.lt.s32.totalorder %s18, 3
      %s166 = scalar_select %p165, %s18, 3
      %p167 = scmp.lt.s32.totalorder %s164, 15
      %s168 = scalar_select %p167, %s164, 15
      %s169 = smul.addr %s166, 16
      %s170 = sadd.s32 %s168, %s169
      %s171 = smul.addr %s170, 8
      %s172 = scalar_lea.vmem %s0, %s171
      %p173 = pneg %p49
      %p174 = pneg %p46
      %p175 = pneg %p70
      %p176 = pneg %p67
      %p177 = pneg %p91
      %p178 = pneg %p88
      %p179 = pneg %p119
      %p180 = pneg %p116
      %s181 = smul.u32 16, %s19
      %p182 = scmp.lt.s32.totalorder %s18, 3
      %s183 = scalar_select %p182, %s18, 3
      %p184 = scmp.lt.s32.totalorder %s181, 15
      %s185 = scalar_select %p184, %s181, 15
      %s186 = smul.addr %s183, 16
      %s187 = sadd.s32 %s185, %s186
      %s188 = smul.addr %s187, 4
      %s189 = scalar_lea.vmem %s3, %s188
      %s190 = smul.u32 16, %s19
      %p191 = scmp.lt.s32.totalorder %s18, 3
      %s192 = scalar_select %p191, %s18, 3
      %p193 = scmp.lt.s32.totalorder %s190, 15
      %s194 = scalar_select %p193, %s190, 15
      %s195 = smul.addr %s192, 16
      %s196 = sadd.s32 %s194, %s195
      %s197 = smul.addr %s196, 8
      %s198 = scalar_lea.vmem %s0, %s197
      %s199 = smul.u32 16, %s19
      %s200 = smul.u32 16, %s19
      %p201 = scmp.lt.s32.totalorder %s18, 3
      %s202 = scalar_select %p201, %s18, 3
      %p203 = scmp.lt.s32.totalorder %s200, 15
      %s204 = scalar_select %p203, %s200, 15
      %s205 = smul.addr %s202, 16
      %s206 = sadd.s32 %s204, %s205
      %s207 = smul.addr %s206, 4
      %s208 = scalar_lea.vmem %s3, %s207
      %s209 = smul.u32 16, %s19
      %v210 = vld [vmem:[%s198] sm:$0xff]
      %v211 = vld [vmem:[%s198 + $0x8] sm:$0xff]
      %v212 = vld [vmem:[%s198 + $0x10] sm:$0xff]
      %v213 = vld [vmem:[%s198 + $0x18] sm:$0xff]
      %v214 = vld [vmem:[%s198 + $0x20] sm:$0xff]
      %v215 = vld [vmem:[%s198 + $0x28] sm:$0xff]
      %v216 = vld [vmem:[%s198 + $0x30] sm:$0xff]
      %v217 = vld [vmem:[%s198 + $0x38] sm:$0xff]
      %v218 = vld [vmem:[%s198 + $0x40] sm:$0xff]
      %v219 = vld [vmem:[%s198 + $0x48] sm:$0xff]
      %v220 = vld [vmem:[%s198 + $0x50] sm:$0xff]
      %v221 = vld [vmem:[%s198 + $0x58] sm:$0xff]
      %v222 = vld [vmem:[%s198 + $0x60] sm:$0xff]
      %v223 = vld [vmem:[%s198 + $0x68] sm:$0xff]
      %v224 = vld [vmem:[%s198 + $0x70] sm:$0xff]
      %v225 = vld [vmem:[%s198 + $0x78] sm:$0xff]
      %v226 = vld [vmem:[%s1] sm:$0x1]
      %v228 = vlaneseq
      %v229 = vshrl.u32 %v228, 7
      %v230 = vsub.s32 0, %v229
      %v231 = vrot.slane %v226, %v230
      %v233 = vmul.f32 %v210, %v231
      %v234 = vmul.f32 %v211, %v231
      %v235 = vmul.f32 %v212, %v231
      %v236 = vmul.f32 %v213, %v231
      %v237 = vmul.f32 %v214, %v231
      %v238 = vmul.f32 %v215, %v231
      %v239 = vmul.f32 %v216, %v231
      %v240 = vmul.f32 %v217, %v231
      %v241 = vmul.f32 %v218, %v231
      %v242 = vmul.f32 %v219, %v231
      %v243 = vmul.f32 %v220, %v231
      %v244 = vmul.f32 %v221, %v231
      %v245 = vmul.f32 %v222, %v231
      %v246 = vmul.f32 %v223, %v231
      %v247 = vmul.f32 %v224, %v231
      %v248 = vmul.f32 %v225, %v231
      %v249 = vld [vmem:[%s2] sm:$0x1]
      %v251 = vlaneseq
      %v252 = vshrl.u32 %v251, 7
      %v253 = vsub.s32 0, %v252
      %v254 = vrot.slane %v249, %v253
      %v256 = vadd.f32 %v233, %v254
      %v257 = vadd.f32 %v234, %v254
      %v258 = vadd.f32 %v235, %v254
      %v259 = vadd.f32 %v236, %v254
      %v260 = vadd.f32 %v237, %v254
      %v261 = vadd.f32 %v238, %v254
      %v262 = vadd.f32 %v239, %v254
      %v263 = vadd.f32 %v240, %v254
      %v264 = vadd.f32 %v241, %v254
      %v265 = vadd.f32 %v242, %v254
      %v266 = vadd.f32 %v243, %v254
      %v267 = vadd.f32 %v244, %v254
      %v268 = vadd.f32 %v245, %v254
      %v269 = vadd.f32 %v246, %v254
      %v270 = vadd.f32 %v247, %v254
      %v271 = vadd.f32 %v248, %v254
      %v272 = vmax.f32 %v256, 0.0
      %v273 = vmax.f32 %v257, 0.0
      %v274 = vmax.f32 %v258, 0.0
      %v275 = vmax.f32 %v259, 0.0
      %v276 = vmax.f32 %v260, 0.0
      %v277 = vmax.f32 %v261, 0.0
      %v278 = vmax.f32 %v262, 0.0
      %v279 = vmax.f32 %v263, 0.0
      %v280 = vmax.f32 %v264, 0.0
      %v281 = vmax.f32 %v265, 0.0
      %v282 = vmax.f32 %v266, 0.0
      %v283 = vmax.f32 %v267, 0.0
      %v284 = vmax.f32 %v268, 0.0
      %v285 = vmax.f32 %v269, 0.0
      %v286 = vmax.f32 %v270, 0.0
      %v287 = vmax.f32 %v271, 0.0
      %v288 = vpack.c.bf16 %v273, %v272
      %v289 = vpack.c.bf16 %v275, %v274
      %v290 = vpack.c.bf16 %v277, %v276
      %v291 = vpack.c.bf16 %v279, %v278
      %v292 = vpack.c.bf16 %v281, %v280
      %v293 = vpack.c.bf16 %v283, %v282
      %v294 = vpack.c.bf16 %v285, %v284
      %v295 = vpack.c.bf16 %v287, %v286
      %v304 = vunpack.c.l.b16 %v288
      %v305 = vunpack.c.h.b16 %v288
      %v306 = vunpack.c.l.b16 %v289
      %v307 = vunpack.c.h.b16 %v289
      %v308 = vunpack.c.l.b16 %v290
      %v309 = vunpack.c.h.b16 %v290
      %v310 = vunpack.c.l.b16 %v291
      %v311 = vunpack.c.h.b16 %v291
      %v312 = vunpack.c.l.b16 %v292
      %v313 = vunpack.c.h.b16 %v292
      %v314 = vunpack.c.l.b16 %v293
      %v315 = vunpack.c.h.b16 %v293
      %v316 = vunpack.c.l.b16 %v294
      %v317 = vunpack.c.h.b16 %v294
      %v318 = vunpack.c.l.b16 %v295
      %v319 = vunpack.c.h.b16 %v295
      %v320 = vpack.c.b16 %v304, %v304
      %v321 = vpack.c.b16 %v305, %v305
      %v322 = vpack.c.b16 %v306, %v306
      %v323 = vpack.c.b16 %v307, %v307
      %v324 = vpack.c.b16 %v308, %v308
      %v325 = vpack.c.b16 %v309, %v309
      %v326 = vpack.c.b16 %v310, %v310
      %v327 = vpack.c.b16 %v311, %v311
      %v328 = vpack.c.b16 %v312, %v312
      %v329 = vpack.c.b16 %v313, %v313
      %v330 = vpack.c.b16 %v314, %v314
      %v331 = vpack.c.b16 %v315, %v315
      %v332 = vpack.c.b16 %v316, %v316
      %v333 = vpack.c.b16 %v317, %v317
      %v334 = vpack.c.b16 %v318, %v318
      %v335 = vpack.c.b16 %v319, %v319
      %352 = vst [vmem:[%s208] sm:$0xf] %v320
      %353 = vst [vmem:[%s208 + $0x4] sm:$0xf] %v321
      %354 = vst [vmem:[%s208 + $0x8] sm:$0xf] %v322
      %355 = vst [vmem:[%s208 + $0xc] sm:$0xf] %v323
      %356 = vst [vmem:[%s208 + $0x10] sm:$0xf] %v324
      %357 = vst [vmem:[%s208 + $0x14] sm:$0xf] %v325
      %358 = vst [vmem:[%s208 + $0x18] sm:$0xf] %v326
      %359 = vst [vmem:[%s208 + $0x1c] sm:$0xf] %v327
      %360 = vst [vmem:[%s208 + $0x20] sm:$0xf] %v328
      %361 = vst [vmem:[%s208 + $0x24] sm:$0xf] %v329
      %362 = vst [vmem:[%s208 + $0x28] sm:$0xf] %v330
      %363 = vst [vmem:[%s208 + $0x2c] sm:$0xf] %v331
      %364 = vst [vmem:[%s208 + $0x30] sm:$0xf] %v332
      %365 = vst [vmem:[%s208 + $0x34] sm:$0xf] %v333
      %366 = vst [vmem:[%s208 + $0x38] sm:$0xf] %v334
      %367 = vst [vmem:[%s208 + $0x3c] sm:$0xf] %v335
      %s368 = smul.u32 16, %s19
      %p369 = scmp.lt.s32.totalorder %s18, 3
      %s370 = scalar_select %p369, %s18, 3
      %p371 = scmp.lt.s32.totalorder %s368, 15
      %s372 = scalar_select %p371, %s368, 15
      %s373 = smul.addr %s370, 16
      %s374 = sadd.s32 %s372, %s373
      %s375 = smul.addr %s374, 4
      %s376 = scalar_lea.vmem %s3, %s375
      // Predicated region
      $region33: #{generator_forward.14} parent=31 // pred_check
        %p377 = pneg %p116
      $region34: #{generator_forward.14} parent=31 // pred_check_branch
        %379 = sbr.rel (%p377) target = $region36
      $region35: #{generator_forward.14} parent=31 // pred_region
        %s380 = smul.u32 16, %s19
      $region36: #{generator_forward.14} parent=31 // pred_fallthru
        _
    $region32: #{generator_forward.14} parent=5 // pred_fallthru
      _
    %p381 = scmp.le.s32.totalorder 2, %s9
    // Predicated region
    $region37: #{generator_forward.14} parent=5 // pred_check
      %p382 = pneg %p381
    $region38: #{generator_forward.14} parent=5 // pred_check_branch
      %384 = sbr.rel (%p382) target = $region40
    $region39: #{generator_forward.14} parent=5 // pred_region
      %s385 = ssub.s32 %s9, 2
      // Predicated region
      $region41: #{generator_forward.14} parent=39 // pred_check
        %p386 = pneg %p122
      $region42: #{generator_forward.14} parent=39 // pred_check_branch
        %388 = sbr.rel (%p386) target = $region44
      $region43: #{generator_forward.14} parent=39 // pred_region
        %s389 = smul.u32 16, %s21
        %p390 = scmp.lt.s32.totalorder %s20, 3
        %s391 = scalar_select %p390, %s20, 3
        %p392 = scmp.lt.s32.totalorder %s389, 15
        %s393 = scalar_select %p392, %s389, 15
        %s394 = smul.addr %s391, 16
        %s395 = sadd.s32 %s393, %s394
        %s396 = smul.addr %s395, 4
        %s397 = scalar_lea.vmem %s3, %s396
      $region44: #{generator_forward.14} parent=39 // pred_fallthru
        _
    $region40: #{generator_forward.14} parent=5 // pred_fallthru
      _
  $region6: #{generator_forward.14} parent=0 // loop_footer
    %s13 = sadd.s32 1, %s9
  $region7: #{generator_forward.14} parent=0 // loop_footer_branch
    %8 = sbr.rel target = $region3
  $region8: #{generator_forward.14} parent=0 // loop_exit
    _

// kernel: generator_forward.16
$region0: #{generator_forward.16}
  #allocation0 [shape = 'u32[]', space=smem, size = 0x4, offset = 0x4, fixed_abs, tag = 'smem constant byte address 0x4 - core index']
  #allocation1 [shape = 'u32[144,128]{1,0:T(1,128)}', space=vmem, size = 0x12000, scoped, tag = 'internal scratch']
  %s0 = inlined_call_operand.vmem [shape: f32[4,512,128], index: 0, kind: input, shape index: {}]
  %s1 = inlined_call_operand.vmem [shape: f32[1,128], index: 1, kind: input, shape index: {}]
  %s2 = inlined_call_operand.vmem [shape: f32[1,128], index: 2, kind: input, shape index: {}]
  %s3 = inlined_call_operand.vmem [shape: bf16[4,512,128], index: 3, kind: output, shape index: {}]
  %s4 = sld [smem:[#allocation0]]
  $region45: #{generator_forward.16} parent=0
    _
  %s6 = ssub.s32 1, %s4
  %s7 = scalar_select 0, %s6, %s4
  loop: start=0, step=1, limit=6
  $region2: #{generator_forward.16} parent=0 // loop_pre_header
    _
  $region3: #{generator_forward.16} parent=0 // loop_header
    %s9 = sphi 0, %s13
    %p10 = scmp.ge.s32.totalorder %s9, 6
    %s16 = sphi 0, %s28
    %s17 = sphi 0, %s24
    %s18 = sphi 0, %s16
    %s19 = sphi 0, %s17
    %s20 = sphi 0, %s18
    %s21 = sphi 0, %s19
    %s33 = sphi 0, %s35
    %s36 = sphi 0, %s33
    %s37 = sphi 0, %s36
    %s53 = sphi 0, %s37
    %s57 = sphi 0, %s57
    %s59 = sphi 0, %s57
    %s60 = sphi 0, %s59
    %s74 = sphi 0, %s60
    %s78 = sphi 0, %s78
    %s80 = sphi 0, %s78
    %s81 = sphi 0, %s80
    %s95 = sphi 0, %s81
    %s103 = sphi 0, %s105
    %s106 = sphi 0, %s103
    %s107 = sphi 0, %s106
    %s123 = sphi 0, %s107
  $region4: #{generator_forward.16} parent=0 // loop_header_branch
    %12 = sbr.rel (%p10) target = $region8
  $region5: #{generator_forward.16} parent=0 // loop_body
    %s14 = ssub.s32 %s9, 1
    %s15 = ssub.s32 %s9, 2
    %s22 = sadd.s32 1, %s17
    %p23 = scmp.ge.s32.totalorder %s22, 1
    %s24 = scalar_select %p23, 0, %s22
    %s25 = sadd.s32 1, %s16
    %s26 = scalar_select %p23, %s25, %s16
    %p27 = scmp.ge.s32.totalorder %s26, 4
    %s28 = scalar_select %p27, 0, %s26
    %s29 = ssub.s32 %s16, %s28
    %s30 = ssub.s32 %s17, %s24
    %s31 = sor.u32 %s29, %s30
    %p32 = scmp.eq.s32.totalorder %s31, 0
    %s34 = sadd.s32 %s33, 1
    %s35 = scalar_select %p32, %s33, %s34
    %p38 = pneg %p32
    %p39 = scmp.eq.s32.totalorder %s9, 3
    %p40 = por %p38, %p39
    %p41 = scmp.ne.s32.totalorder %s33, %s36
    %p42 = scmp.eq.s32.totalorder %s9, 0
    %p43 = por %p41, %p42
    %p44 = scmp.ne.s32.totalorder %s33, %s36
    %p45 = scmp.eq.s32.totalorder %s14, 3
    %p46 = por %p44, %p45
    %p47 = scmp.ne.s32.totalorder %s36, %s37
    %p48 = scmp.eq.s32.totalorder %s14, 0
    %p49 = por %p47, %p48
    %p50 = scmp.ne.s32.totalorder %s36, %s37
    %p51 = scmp.eq.s32.totalorder %s15, 3
    %p52 = por %p50, %p51
    %p54 = scmp.ne.s32.totalorder %s37, %s53
    %p55 = scmp.eq.s32.totalorder %s15, 0
    %p56 = por %p54, %p55
    %s58 = sadd.s32 %s57, 1
    %p61 = scmp.eq.s32.totalorder %s9, 3
    %p62 = scmp.ne.s32.totalorder %s57, %s59
    %p63 = scmp.eq.s32.totalorder %s9, 0
    %p64 = por %p62, %p63
    %p65 = scmp.ne.s32.totalorder %s57, %s59
    %p66 = scmp.eq.s32.totalorder %s14, 3
    %p67 = por %p65, %p66
    %p68 = scmp.ne.s32.totalorder %s59, %s60
    %p69 = scmp.eq.s32.totalorder %s14, 0
    %p70 = por %p68, %p69
    %p71 = scmp.ne.s32.totalorder %s59, %s60
    %p72 = scmp.eq.s32.totalorder %s15, 3
    %p73 = por %p71, %p72
    %p75 = scmp.ne.s32.totalorder %s60, %s74
    %p76 = scmp.eq.s32.totalorder %s15, 0
    %p77 = por %p75, %p76
    %s79 = sadd.s32 %s78, 1
    %p82 = scmp.eq.s32.totalorder %s9, 3
    %p83 = scmp.ne.s32.totalorder %s78, %s80
    %p84 = scmp.eq.s32.totalorder %s9, 0
    %p85 = por %p83, %p84
    %p86 = scmp.ne.s32.totalorder %s78, %s80
    %p87 = scmp.eq.s32.totalorder %s14, 3
    %p88 = por %p86, %p87
    %p89 = scmp.ne.s32.totalorder %s80, %s81
    %p90 = scmp.eq.s32.totalorder %s14, 0
    %p91 = por %p89, %p90
    %p92 = scmp.ne.s32.totalorder %s80, %s81
    %p93 = scmp.eq.s32.totalorder %s15, 3
    %p94 = por %p92, %p93
    %p96 = scmp.ne.s32.totalorder %s81, %s95
    %p97 = scmp.eq.s32.totalorder %s15, 0
    %p98 = por %p96, %p97
    %s99 = ssub.s32 %s16, %s28
    %s100 = ssub.s32 %s17, %s24
    %s101 = sor.u32 %s99, %s100
    %p102 = scmp.eq.s32.totalorder %s101, 0
    %s104 = sadd.s32 %s103, 1
    %s105 = scalar_select %p102, %s103, %s104
    %p108 = pneg %p102
    %p109 = scmp.eq.s32.totalorder %s9, 3
    %p110 = por %p108, %p109
    %p111 = scmp.ne.s32.totalorder %s103, %s106
    %p112 = scmp.eq.s32.totalorder %s9, 0
    %p113 = por %p111, %p112
    %p114 = scmp.ne.s32.totalorder %s103, %s106
    %p115 = scmp.eq.s32.totalorder %s14, 3
    %p116 = por %p114, %p115
    %p117 = scmp.ne.s32.totalorder %s106, %s107
    %p118 = scmp.eq.s32.totalorder %s14, 0
    %p119 = por %p117, %p118
    %p120 = scmp.ne.s32.totalorder %s106, %s107
    %p121 = scmp.eq.s32.totalorder %s15, 3
    %p122 = por %p120, %p121
    %p124 = scmp.ne.s32.totalorder %s107, %s123
    %p125 = scmp.eq.s32.totalorder %s15, 0
    %p126 = por %p124, %p125
    %p127 = scmp.le.s32.totalorder 1, %s9
    %p128 = scmp.lt.s32.totalorder %s9, 5
    %p129 = pnand %p127, %p128
    %p130 = pneg %p129
    // Predicated region
    $region9: #{generator_forward.16} parent=5 // pred_check
      _
    $region10: #{generator_forward.16} parent=5 // pred_check_branch
      %132 = sbr.rel (%p129) target = $region12
    $region11: #{generator_forward.16} parent=5 // pred_region
      %s133 = ssub.s32 %s9, 1
      // Predicated region
      $region13: #{generator_forward.16} parent=11 // pred_check
        %p134 = pneg %p70
      $region14: #{generator_forward.16} parent=11 // pred_check_branch
        %136 = sbr.rel (%p134) target = $region16
      $region15: #{generator_forward.16} parent=11 // pred_region
        _
      $region16: #{generator_forward.16} parent=11 // pred_fallthru
        _
      // Predicated region
      $region17: #{generator_forward.16} parent=11 // pred_check
        %p137 = pneg %p91
      $region18: #{generator_forward.16} parent=11 // pred_check_branch
        %139 = sbr.rel (%p137) target = $region20
      $region19: #{generator_forward.16} parent=11 // pred_region
        _
      $region20: #{generator_forward.16} parent=11 // pred_fallthru
        _
    $region12: #{generator_forward.16} parent=5 // pred_fallthru
      _
    %p140 = scmp.lt.s32.totalorder %s9, 4
    // Predicated region
    $region21: #{generator_forward.16} parent=5 // pred_check
      %p141 = pneg %p140
    $region22: #{generator_forward.16} parent=5 // pred_check_branch
      %143 = sbr.rel (%p141) target = $region24
    $region23: #{generator_forward.16} parent=5 // pred_region
      // Predicated region
      $region25: #{generator_forward.16} parent=23 // pred_check
        %p144 = pneg %p43
      $region26: #{generator_forward.16} parent=23 // pred_check_branch
        %146 = sbr.rel (%p144) target = $region28
      $region27: #{generator_forward.16} parent=23 // pred_region
        %s147 = smul.u32 64, %s17
        %p148 = scmp.lt.s32.totalorder %s16, 3
        %s149 = scalar_select %p148, %s16, 3
        %p150 = scmp.lt.s32.totalorder %s147, 63
        %s151 = scalar_select %p150, %s147, 63
        %s152 = smul.addr %s149, 64
        %s153 = sadd.s32 %s151, %s152
        %s154 = smul.addr %s153, 8
        %s155 = scalar_lea.vmem %s0, %s154
        %s156 = smul.u32 64, %s17
      $region28: #{generator_forward.16} parent=23 // pred_fallthru
        _
    $region24: #{generator_forward.16} parent=5 // pred_fallthru
      _
    %p157 = scmp.le.s32.totalorder 1, %s9
    %p158 = scmp.lt.s32.totalorder %s9, 5
    %p159 = pnand %p157, %p158
    %p160 = pneg %p159
    // Predicated region
    $region29: #{generator_forward.16} parent=5 // pred_check
      _
    $region30: #{generator_forward.16} parent=5 // pred_check_branch
      %162 = sbr.rel (%p159) target = $region32
    $region31: #{generator_forward.16} parent=5 // pred_region
      %s163 = ssub.s32 %s9, 1
      %s164 = smul.u32 64, %s19
      %p165 = scmp.lt.s32.totalorder %s18, 3
      %s166 = scalar_select %p165, %s18, 3
      %p167 = scmp.lt.s32.totalorder %s164, 63
      %s168 = scalar_select %p167, %s164, 63
      %s169 = smul.addr %s166, 64
      %s170 = sadd.s32 %s168, %s169
      %s171 = smul.addr %s170, 8
      %s172 = scalar_lea.vmem %s0, %s171
      %p173 = pneg %p49
      %p174 = pneg %p46
      %p175 = pneg %p70
      %p176 = pneg %p67
      %p177 = pneg %p91
      %p178 = pneg %p88
      %p179 = pneg %p119
      %p180 = pneg %p116
      %s181 = smul.u32 64, %s19
      %p182 = scmp.lt.s32.totalorder %s18, 3
      %s183 = scalar_select %p182, %s18, 3
      %p184 = scmp.lt.s32.totalorder %s181, 63
      %s185 = scalar_select %p184, %s181, 63
      %s186 = smul.addr %s183, 64
      %s187 = sadd.s32 %s185, %s186
      %s188 = smul.addr %s187, 4
      %s189 = scalar_lea.vmem %s3, %s188
      %s190 = smul.u32 64, %s19
      %p191 = scmp.lt.s32.totalorder %s18, 3
      %s192 = scalar_select %p191, %s18, 3
      %p193 = scmp.lt.s32.totalorder %s190, 63
      %s194 = scalar_select %p193, %s190, 63
      %s195 = smul.addr %s192, 64
      %s196 = sadd.s32 %s194, %s195
      %s197 = smul.addr %s196, 8
      %s198 = scalar_lea.vmem %s0, %s197
      %s199 = smul.u32 64, %s19
      %s200 = smul.u32 64, %s19
      %p201 = scmp.lt.s32.totalorder %s18, 3
      %s202 = scalar_select %p201, %s18, 3
      %p203 = scmp.lt.s32.totalorder %s200, 63
      %s204 = scalar_select %p203, %s200, 63
      %s205 = smul.addr %s202, 64
      %s206 = sadd.s32 %s204, %s205
      %s207 = smul.addr %s206, 4
      %s208 = scalar_lea.vmem %s3, %s207
      %s209 = smul.u32 64, %s19
      %v210 = vld [vmem:[%s198] sm:$0xff]
      %v211 = vld [vmem:[%s198 + $0x8] sm:$0xff]
      %v212 = vld [vmem:[%s198 + $0x10] sm:$0xff]
      %v213 = vld [vmem:[%s198 + $0x18] sm:$0xff]
      %v214 = vld [vmem:[%s198 + $0x20] sm:$0xff]
      %v215 = vld [vmem:[%s198 + $0x28] sm:$0xff]
      %v216 = vld [vmem:[%s198 + $0x30] sm:$0xff]
      %v217 = vld [vmem:[%s198 + $0x38] sm:$0xff]
      %v218 = vld [vmem:[%s198 + $0x40] sm:$0xff]
      %v219 = vld [vmem:[%s198 + $0x48] sm:$0xff]
      %v220 = vld [vmem:[%s198 + $0x50] sm:$0xff]
      %v221 = vld [vmem:[%s198 + $0x58] sm:$0xff]
      %v222 = vld [vmem:[%s198 + $0x60] sm:$0xff]
      %v223 = vld [vmem:[%s198 + $0x68] sm:$0xff]
      %v224 = vld [vmem:[%s198 + $0x70] sm:$0xff]
      %v225 = vld [vmem:[%s198 + $0x78] sm:$0xff]
      %v226 = vld [vmem:[%s198 + $0x80] sm:$0xff]
      %v227 = vld [vmem:[%s198 + $0x88] sm:$0xff]
      %v228 = vld [vmem:[%s198 + $0x90] sm:$0xff]
      %v229 = vld [vmem:[%s198 + $0x98] sm:$0xff]
      %v230 = vld [vmem:[%s198 + $0xa0] sm:$0xff]
      %v231 = vld [vmem:[%s198 + $0xa8] sm:$0xff]
      %v232 = vld [vmem:[%s198 + $0xb0] sm:$0xff]
      %v233 = vld [vmem:[%s198 + $0xb8] sm:$0xff]
      %v234 = vld [vmem:[%s198 + $0xc0] sm:$0xff]
      %v235 = vld [vmem:[%s198 + $0xc8] sm:$0xff]
      %v236 = vld [vmem:[%s198 + $0xd0] sm:$0xff]
      %v237 = vld [vmem:[%s198 + $0xd8] sm:$0xff]
      %v238 = vld [vmem:[%s198 + $0xe0] sm:$0xff]
      %v239 = vld [vmem:[%s198 + $0xe8] sm:$0xff]
      %v240 = vld [vmem:[%s198 + $0xf0] sm:$0xff]
      %v241 = vld [vmem:[%s198 + $0xf8] sm:$0xff]
      %v242 = vld [vmem:[%s198 + $0x100] sm:$0xff]
      %v243 = vld [vmem:[%s198 + $0x108] sm:$0xff]
      %v244 = vld [vmem:[%s198 + $0x110] sm:$0xff]
      %v245 = vld [vmem:[%s198 + $0x118] sm:$0xff]
      %v246 = vld [vmem:[%s198 + $0x120] sm:$0xff]
      %v247 = vld [vmem:[%s198 + $0x128] sm:$0xff]
      %v248 = vld [vmem:[%s198 + $0x130] sm:$0xff]
      %v249 = vld [vmem:[%s198 + $0x138] sm:$0xff]
      %v250 = vld [vmem:[%s198 + $0x140] sm:$0xff]
      %v251 = vld [vmem:[%s198 + $0x148] sm:$0xff]
      %v252 = vld [vmem:[%s198 + $0x150] sm:$0xff]
      %v253 = vld [vmem:[%s198 + $0x158] sm:$0xff]
      %v254 = vld [vmem:[%s198 + $0x160] sm:$0xff]
      %v255 = vld [vmem:[%s198 + $0x168] sm:$0xff]
      %v256 = vld [vmem:[%s198 + $0x170] sm:$0xff]
      %v257 = vld [vmem:[%s198 + $0x178] sm:$0xff]
      %v258 = vld [vmem:[%s198 + $0x180] sm:$0xff]
      %v259 = vld [vmem:[%s198 + $0x188] sm:$0xff]
      %v260 = vld [vmem:[%s198 + $0x190] sm:$0xff]
      %v261 = vld [vmem:[%s198 + $0x198] sm:$0xff]
      %v262 = vld [vmem:[%s198 + $0x1a0] sm:$0xff]
      %v263 = vld [vmem:[%s198 + $0x1a8] sm:$0xff]
      %v264 = vld [vmem:[%s198 + $0x1b0] sm:$0xff]
      %v265 = vld [vmem:[%s198 + $0x1b8] sm:$0xff]
      %v266 = vld [vmem:[%s198 + $0x1c0] sm:$0xff]
      %v267 = vld [vmem:[%s198 + $0x1c8] sm:$0xff]
      %v268 = vld [vmem:[%s198 + $0x1d0] sm:$0xff]
      %v269 = vld [vmem:[%s198 + $0x1d8] sm:$0xff]
      %v270 = vld [vmem:[%s198 + $0x1e0] sm:$0xff]
      %v271 = vld [vmem:[%s198 + $0x1e8] sm:$0xff]
      %v272 = vld [vmem:[%s198 + $0x1f0] sm:$0xff]
      %v273 = vld [vmem:[%s198 + $0x1f8] sm:$0xff]
      %v274 = vld [vmem:[%s1] sm:$0x1]
      %v276 = vlaneseq
      %v277 = vshrl.u32 %v276, 7
      %v278 = vsub.s32 0, %v277
      %v279 = vrot.slane %v274, %v278
      %v281 = vmul.f32 %v210, %v279
      %v282 = vmul.f32 %v211, %v279
      %v283 = vmul.f32 %v212, %v279
      %v284 = vmul.f32 %v213, %v279
      %v285 = vmul.f32 %v214, %v279
      %v286 = vmul.f32 %v215, %v279
      %v287 = vmul.f32 %v216, %v279
      %v288 = vmul.f32 %v217, %v279
      %v289 = vmul.f32 %v218, %v279
      %v290 = vmul.f32 %v219, %v279
      %v291 = vmul.f32 %v220, %v279
      %v292 = vmul.f32 %v221, %v279
      %v293 = vmul.f32 %v222, %v279
      %v294 = vmul.f32 %v223, %v279
      %v295 = vmul.f32 %v224, %v279
      %v296 = vmul.f32 %v225, %v279
      %v297 = vmul.f32 %v226, %v279
      %v298 = vmul.f32 %v227, %v279
      %v299 = vmul.f32 %v228, %v279
      %v300 = vmul.f32 %v229, %v279
      %v301 = vmul.f32 %v230, %v279
      %v302 = vmul.f32 %v231, %v279
      %v303 = vmul.f32 %v232, %v279
      %v304 = vmul.f32 %v233, %v279
      %v305 = vmul.f32 %v234, %v279
      %v306 = vmul.f32 %v235, %v279
      %v307 = vmul.f32 %v236, %v279
      %v308 = vmul.f32 %v237, %v279
      %v309 = vmul.f32 %v238, %v279
      %v310 = vmul.f32 %v239, %v279
      %v311 = vmul.f32 %v240, %v279
      %v312 = vmul.f32 %v241, %v279
      %v313 = vmul.f32 %v242, %v279
      %v314 = vmul.f32 %v243, %v279
      %v315 = vmul.f32 %v244, %v279
      %v316 = vmul.f32 %v245, %v279
      %v317 = vmul.f32 %v246, %v279
      %v318 = vmul.f32 %v247, %v279
      %v319 = vmul.f32 %v248, %v279
      %v320 = vmul.f32 %v249, %v279
      %v321 = vmul.f32 %v250, %v279
      %v322 = vmul.f32 %v251, %v279
      %v323 = vmul.f32 %v252, %v279
      %v324 = vmul.f32 %v253, %v279
      %v325 = vmul.f32 %v254, %v279
      %v326 = vmul.f32 %v255, %v279
      %v327 = vmul.f32 %v256, %v279
      %v328 = vmul.f32 %v257, %v279
      %v329 = vmul.f32 %v258, %v279
      %v330 = vmul.f32 %v259, %v279
      %v331 = vmul.f32 %v260, %v279
      %v332 = vmul.f32 %v261, %v279
      %v333 = vmul.f32 %v262, %v279
      %v334 = vmul.f32 %v263, %v279
      %v335 = vmul.f32 %v264, %v279
      %v336 = vmul.f32 %v265, %v279
      %v337 = vmul.f32 %v266, %v279
      %v338 = vmul.f32 %v267, %v279
      %v339 = vmul.f32 %v268, %v279
      %v340 = vmul.f32 %v269, %v279
      %v341 = vmul.f32 %v270, %v279
      %v342 = vmul.f32 %v271, %v279
      %v343 = vmul.f32 %v272, %v279
      %v344 = vmul.f32 %v273, %v279
      %v345 = vld [vmem:[%s2] sm:$0x1]
      %v347 = vlaneseq
      %v348 = vshrl.u32 %v347, 7
      %v349 = vsub.s32 0, %v348
      %v350 = vrot.slane %v345, %v349
      %v352 = vadd.f32 %v281, %v350
      %v353 = vadd.f32 %v282, %v350
      %v354 = vadd.f32 %v283, %v350
      %v355 = vadd.f32 %v284, %v350
      %v356 = vadd.f32 %v285, %v350
      %v357 = vadd.f32 %v286, %v350
      %v358 = vadd.f32 %v287, %v350
      %v359 = vadd.f32 %v288, %v350
      %v360 = vadd.f32 %v289, %v350
      %v361 = vadd.f32 %v290, %v350
      %v362 = vadd.f32 %v291, %v350
      %v363 = vadd.f32 %v292, %v350
      %v364 = vadd.f32 %v293, %v350
      %v365 = vadd.f32 %v294, %v350
      %v366 = vadd.f32 %v295, %v350
      %v367 = vadd.f32 %v296, %v350
      %v368 = vadd.f32 %v297, %v350
      %v369 = vadd.f32 %v298, %v350
      %v370 = vadd.f32 %v299, %v350
      %v371 = vadd.f32 %v300, %v350
      %v372 = vadd.f32 %v301, %v350
      %v373 = vadd.f32 %v302, %v350
      %v374 = vadd.f32 %v303, %v350
      %v375 = vadd.f32 %v304, %v350
      %v376 = vadd.f32 %v305, %v350
      %v377 = vadd.f32 %v306, %v350
      %v378 = vadd.f32 %v307, %v350
      %v379 = vadd.f32 %v308, %v350
      %v380 = vadd.f32 %v309, %v350
      %v381 = vadd.f32 %v310, %v350
      %v382 = vadd.f32 %v311, %v350
      %v383 = vadd.f32 %v312, %v350
      %v384 = vadd.f32 %v313, %v350
      %v385 = vadd.f32 %v314, %v350
      %v386 = vadd.f32 %v315, %v350
      %v387 = vadd.f32 %v316, %v350
      %v388 = vadd.f32 %v317, %v350
      %v389 = vadd.f32 %v318, %v350
      %v390 = vadd.f32 %v319, %v350
      %v391 = vadd.f32 %v320, %v350
      %v392 = vadd.f32 %v321, %v350
      %v393 = vadd.f32 %v322, %v350
      %v394 = vadd.f32 %v323, %v350
      %v395 = vadd.f32 %v324, %v350
      %v396 = vadd.f32 %v325, %v350
      %v397 = vadd.f32 %v326, %v350
      %v398 = vadd.f32 %v327, %v350
      %v399 = vadd.f32 %v328, %v350
      %v400 = vadd.f32 %v329, %v350
      %v401 = vadd.f32 %v330, %v350
      %v402 = vadd.f32 %v331, %v350
      %v403 = vadd.f32 %v332, %v350
      %v404 = vadd.f32 %v333, %v350
      %v405 = vadd.f32 %v334, %v350
      %v406 = vadd.f32 %v335, %v350
      %v407 = vadd.f32 %v336, %v350
      %v408 = vadd.f32 %v337, %v350
      %v409 = vadd.f32 %v338, %v350
      %v410 = vadd.f32 %v339, %v350
      %v411 = vadd.f32 %v340, %v350
      %v412 = vadd.f32 %v341, %v350
      %v413 = vadd.f32 %v342, %v350
      %v414 = vadd.f32 %v343, %v350
      %v415 = vadd.f32 %v344, %v350
      %v416 = vmax.f32 %v352, 0.0
      %v417 = vmax.f32 %v353, 0.0
      %v418 = vmax.f32 %v354, 0.0
      %v419 = vmax.f32 %v355, 0.0
      %v420 = vmax.f32 %v356, 0.0
      %v421 = vmax.f32 %v357, 0.0
      %v422 = vmax.f32 %v358, 0.0
      %v423 = vmax.f32 %v359, 0.0
      %v424 = vmax.f32 %v360, 0.0
      %v425 = vmax.f32 %v361, 0.0
      %v426 = vmax.f32 %v362, 0.0
      %v427 = vmax.f32 %v363, 0.0
      %v428 = vmax.f32 %v364, 0.0
      %v429 = vmax.f32 %v365, 0.0
      %v430 = vmax.f32 %v366, 0.0
      %v431 = vmax.f32 %v367, 0.0
      %v432 = vmax.f32 %v368, 0.0
      %v433 = vmax.f32 %v369, 0.0
      %v434 = vmax.f32 %v370, 0.0
      %v435 = vmax.f32 %v371, 0.0
      %v436 = vmax.f32 %v372, 0.0
      %v437 = vmax.f32 %v373, 0.0
      %v438 = vmax.f32 %v374, 0.0
      %v439 = vmax.f32 %v375, 0.0
      %v440 = vmax.f32 %v376, 0.0
      %v441 = vmax.f32 %v377, 0.0
      %v442 = vmax.f32 %v378, 0.0
      %v443 = vmax.f32 %v379, 0.0
      %v444 = vmax.f32 %v380, 0.0
      %v445 = vmax.f32 %v381, 0.0
      %v446 = vmax.f32 %v382, 0.0
      %v447 = vmax.f32 %v383, 0.0
      %v448 = vmax.f32 %v384, 0.0
      %v449 = vmax.f32 %v385, 0.0
      %v450 = vmax.f32 %v386, 0.0
      %v451 = vmax.f32 %v387, 0.0
      %v452 = vmax.f32 %v388, 0.0
      %v453 = vmax.f32 %v389, 0.0
      %v454 = vmax.f32 %v390, 0.0
      %v455 = vmax.f32 %v391, 0.0
      %v456 = vmax.f32 %v392, 0.0
      %v457 = vmax.f32 %v393, 0.0
      %v458 = vmax.f32 %v394, 0.0
      %v459 = vmax.f32 %v395, 0.0
      %v460 = vmax.f32 %v396, 0.0
      %v461 = vmax.f32 %v397, 0.0
      %v462 = vmax.f32 %v398, 0.0
      %v463 = vmax.f32 %v399, 0.0
      %v464 = vmax.f32 %v400, 0.0
      %v465 = vmax.f32 %v401, 0.0
      %v466 = vmax.f32 %v402, 0.0
      %v467 = vmax.f32 %v403, 0.0
      %v468 = vmax.f32 %v404, 0.0
      %v469 = vmax.f32 %v405, 0.0
      %v470 = vmax.f32 %v406, 0.0
      %v471 = vmax.f32 %v407, 0.0
      %v472 = vmax.f32 %v408, 0.0
      %v473 = vmax.f32 %v409, 0.0
      %v474 = vmax.f32 %v410, 0.0
      %v475 = vmax.f32 %v411, 0.0
      %v476 = vmax.f32 %v412, 0.0
      %v477 = vmax.f32 %v413, 0.0
      %v478 = vmax.f32 %v414, 0.0
      %v479 = vmax.f32 %v415, 0.0
      %v480 = vpack.c.bf16 %v417, %v416
      %v481 = vpack.c.bf16 %v419, %v418
      %v482 = vpack.c.bf16 %v421, %v420
      %v483 = vpack.c.bf16 %v423, %v422
      %v484 = vpack.c.bf16 %v425, %v424
      %v485 = vpack.c.bf16 %v427, %v426
      %v486 = vpack.c.bf16 %v429, %v428
      %v487 = vpack.c.bf16 %v431, %v430
      %v488 = vpack.c.bf16 %v433, %v432
      %v489 = vpack.c.bf16 %v435, %v434
      %v490 = vpack.c.bf16 %v437, %v436
      %v491 = vpack.c.bf16 %v439, %v438
      %v492 = vpack.c.bf16 %v441, %v440
      %v493 = vpack.c.bf16 %v443, %v442
      %v494 = vpack.c.bf16 %v445, %v444
      %v495 = vpack.c.bf16 %v447, %v446
      %v496 = vpack.c.bf16 %v449, %v448
      %v497 = vpack.c.bf16 %v451, %v450
      %v498 = vpack.c.bf16 %v453, %v452
      %v499 = vpack.c.bf16 %v455, %v454
      %v500 = vpack.c.bf16 %v457, %v456
      %v501 = vpack.c.bf16 %v459, %v458
      %v502 = vpack.c.bf16 %v461, %v460
      %v503 = vpack.c.bf16 %v463, %v462
      %v504 = vpack.c.bf16 %v465, %v464
      %v505 = vpack.c.bf16 %v467, %v466
      %v506 = vpack.c.bf16 %v469, %v468
      %v507 = vpack.c.bf16 %v471, %v470
      %v508 = vpack.c.bf16 %v473, %v472
      %v509 = vpack.c.bf16 %v475, %v474
      %v510 = vpack.c.bf16 %v477, %v476
      %v511 = vpack.c.bf16 %v479, %v478
      %v544 = vunpack.c.l.b16 %v480
      %v545 = vunpack.c.h.b16 %v480
      %v546 = vunpack.c.l.b16 %v481
      %v547 = vunpack.c.h.b16 %v481
      %v548 = vunpack.c.l.b16 %v482
      %v549 = vunpack.c.h.b16 %v482
      %v550 = vunpack.c.l.b16 %v483
      %v551 = vunpack.c.h.b16 %v483
      %v552 = vunpack.c.l.b16 %v484
      %v553 = vunpack.c.h.b16 %v484
      %v554 = vunpack.c.l.b16 %v485
      %v555 = vunpack.c.h.b16 %v485
      %v556 = vunpack.c.l.b16 %v486
      %v557 = vunpack.c.h.b16 %v486
      %v558 = vunpack.c.l.b16 %v487
      %v559 = vunpack.c.h.b16 %v487
      %v560 = vunpack.c.l.b16 %v488
      %v561 = vunpack.c.h.b16 %v488
      %v562 = vunpack.c.l.b16 %v489
      %v563 = vunpack.c.h.b16 %v489
      %v564 = vunpack.c.l.b16 %v490
      %v565 = vunpack.c.h.b16 %v490
      %v566 = vunpack.c.l.b16 %v491
      %v567 = vunpack.c.h.b16 %v491
      %v568 = vunpack.c.l.b16 %v492
      %v569 = vunpack.c.h.b16 %v492
      %v570 = vunpack.c.l.b16 %v493
      %v571 = vunpack.c.h.b16 %v493
      %v572 = vunpack.c.l.b16 %v494
      %v573 = vunpack.c.h.b16 %v494
      %v574 = vunpack.c.l.b16 %v495
      %v575 = vunpack.c.h.b16 %v495
      %v576 = vunpack.c.l.b16 %v496
      %v577 = vunpack.c.h.b16 %v496
      %v578 = vunpack.c.l.b16 %v497
      %v579 = vunpack.c.h.b16 %v497
      %v580 = vunpack.c.l.b16 %v498
      %v581 = vunpack.c.h.b16 %v498
      %v582 = vunpack.c.l.b16 %v499
      %v583 = vunpack.c.h.b16 %v499
      %v584 = vunpack.c.l.b16 %v500
      %v585 = vunpack.c.h.b16 %v500
      %v586 = vunpack.c.l.b16 %v501
      %v587 = vunpack.c.h.b16 %v501
      %v588 = vunpack.c.l.b16 %v502
      %v589 = vunpack.c.h.b16 %v502
      %v590 = vunpack.c.l.b16 %v503
      %v591 = vunpack.c.h.b16 %v503
      %v592 = vunpack.c.l.b16 %v504
      %v593 = vunpack.c.h.b16 %v504
      %v594 = vunpack.c.l.b16 %v505
      %v595 = vunpack.c.h.b16 %v505
      %v596 = vunpack.c.l.b16 %v506
      %v597 = vunpack.c.h.b16 %v506
      %v598 = vunpack.c.l.b16 %v507
      %v599 = vunpack.c.h.b16 %v507
      %v600 = vunpack.c.l.b16 %v508
      %v601 = vunpack.c.h.b16 %v508
      %v602 = vunpack.c.l.b16 %v509
      %v603 = vunpack.c.h.b16 %v509
      %v604 = vunpack.c.l.b16 %v510
      %v605 = vunpack.c.h.b16 %v510
      %v606 = vunpack.c.l.b16 %v511
      %v607 = vunpack.c.h.b16 %v511
      %v608 = vpack.c.b16 %v544, %v544
      %v609 = vpack.c.b16 %v545, %v545
      %v610 = vpack.c.b16 %v546, %v546
      %v611 = vpack.c.b16 %v547, %v547
      %v612 = vpack.c.b16 %v548, %v548
      %v613 = vpack.c.b16 %v549, %v549
      %v614 = vpack.c.b16 %v550, %v550
      %v615 = vpack.c.b16 %v551, %v551
      %v616 = vpack.c.b16 %v552, %v552
      %v617 = vpack.c.b16 %v553, %v553
      %v618 = vpack.c.b16 %v554, %v554
      %v619 = vpack.c.b16 %v555, %v555
      %v620 = vpack.c.b16 %v556, %v556
      %v621 = vpack.c.b16 %v557, %v557
      %v622 = vpack.c.b16 %v558, %v558
      %v623 = vpack.c.b16 %v559, %v559
      %v624 = vpack.c.b16 %v560, %v560
      %v625 = vpack.c.b16 %v561, %v561
      %v626 = vpack.c.b16 %v562, %v562
      %v627 = vpack.c.b16 %v563, %v563
      %v628 = vpack.c.b16 %v564, %v564
      %v629 = vpack.c.b16 %v565, %v565
      %v630 = vpack.c.b16 %v566, %v566
      %v631 = vpack.c.b16 %v567, %v567
      %v632 = vpack.c.b16 %v568, %v568
      %v633 = vpack.c.b16 %v569, %v569
      %v634 = vpack.c.b16 %v570, %v570
      %v635 = vpack.c.b16 %v571, %v571
      %v636 = vpack.c.b16 %v572, %v572
      %v637 = vpack.c.b16 %v573, %v573
      %v638 = vpack.c.b16 %v574, %v574
      %v639 = vpack.c.b16 %v575, %v575
      %v640 = vpack.c.b16 %v576, %v576
      %v641 = vpack.c.b16 %v577, %v577
      %v642 = vpack.c.b16 %v578, %v578
      %v643 = vpack.c.b16 %v579, %v579
      %v644 = vpack.c.b16 %v580, %v580
      %v645 = vpack.c.b16 %v581, %v581
      %v646 = vpack.c.b16 %v582, %v582
      %v647 = vpack.c.b16 %v583, %v583
      %v648 = vpack.c.b16 %v584, %v584
      %v649 = vpack.c.b16 %v585, %v585
      %v650 = vpack.c.b16 %v586, %v586
      %v651 = vpack.c.b16 %v587, %v587
      %v652 = vpack.c.b16 %v588, %v588
      %v653 = vpack.c.b16 %v589, %v589
      %v654 = vpack.c.b16 %v590, %v590
      %v655 = vpack.c.b16 %v591, %v591
      %v656 = vpack.c.b16 %v592, %v592
      %v657 = vpack.c.b16 %v593, %v593
      %v658 = vpack.c.b16 %v594, %v594
      %v659 = vpack.c.b16 %v595, %v595
      %v660 = vpack.c.b16 %v596, %v596
      %v661 = vpack.c.b16 %v597, %v597
      %v662 = vpack.c.b16 %v598, %v598
      %v663 = vpack.c.b16 %v599, %v599
      %v664 = vpack.c.b16 %v600, %v600
      %v665 = vpack.c.b16 %v601, %v601
      %v666 = vpack.c.b16 %v602, %v602
      %v667 = vpack.c.b16 %v603, %v603
      %v668 = vpack.c.b16 %v604, %v604
      %v669 = vpack.c.b16 %v605, %v605
      %v670 = vpack.c.b16 %v606, %v606
      %v671 = vpack.c.b16 %v607, %v607
      %736 = vst [vmem:[%s208] sm:$0xf] %v608
      %737 = vst [vmem:[%s208 + $0x4] sm:$0xf] %v609
      %738 = vst [vmem:[%s208 + $0x8] sm:$0xf] %v610
      %739 = vst [vmem:[%s208 + $0xc] sm:$0xf] %v611
      %740 = vst [vmem:[%s208 + $0x10] sm:$0xf] %v612
      %741 = vst [vmem:[%s208 + $0x14] sm:$0xf] %v613
      %742 = vst [vmem:[%s208 + $0x18] sm:$0xf] %v614
      %743 = vst [vmem:[%s208 + $0x1c] sm:$0xf] %v615
      %744 = vst [vmem:[%s208 + $0x20] sm:$0xf] %v616
      %745 = vst [vmem:[%s208 + $0x24] sm:$0xf] %v617
      %746 = vst [vmem:[%s208 + $0x28] sm:$0xf] %v618
      %747 = vst [vmem:[%s208 + $0x2c] sm:$0xf] %v619
      %748 = vst [vmem:[%s208 + $0x30] sm:$0xf] %v620
      %749 = vst [vmem:[%s208 + $0x34] sm:$0xf] %v621
      %750 = vst [vmem:[%s208 + $0x38] sm:$0xf] %v622
      %751 = vst [vmem:[%s208 + $0x3c] sm:$0xf] %v623
      %752 = vst [vmem:[%s208 + $0x40] sm:$0xf] %v624
      %753 = vst [vmem:[%s208 + $0x44] sm:$0xf] %v625
      %754 = vst [vmem:[%s208 + $0x48] sm:$0xf] %v626
      %755 = vst [vmem:[%s208 + $0x4c] sm:$0xf] %v627
      %756 = vst [vmem:[%s208 + $0x50] sm:$0xf] %v628
      %757 = vst [vmem:[%s208 + $0x54] sm:$0xf] %v629
      %758 = vst [vmem:[%s208 + $0x58] sm:$0xf] %v630
      %759 = vst [vmem:[%s208 + $0x5c] sm:$0xf] %v631
      %760 = vst [vmem:[%s208 + $0x60] sm:$0xf] %v632
      %761 = vst [vmem:[%s208 + $0x64] sm:$0xf] %v633
      %762 = vst [vmem:[%s208 + $0x68] sm:$0xf] %v634
      %763 = vst [vmem:[%s208 + $0x6c] sm:$0xf] %v635
      %764 = vst [vmem:[%s208 + $0x70] sm:$0xf] %v636
      %765 = vst [vmem:[%s208 + $0x74] sm:$0xf] %v637
      %766 = vst [vmem:[%s208 + $0x78] sm:$0xf] %v638
      %767 = vst [vmem:[%s208 + $0x7c] sm:$0xf] %v639
      %768 = vst [vmem:[%s208 + $0x80] sm:$0xf] %v640
      %769 = vst [vmem:[%s208 + $0x84] sm:$0xf] %v641
      %770 = vst [vmem:[%s208 + $0x88] sm:$0xf] %v642
      %771 = vst [vmem:[%s208 + $0x8c] sm:$0xf] %v643
      %772 = vst [vmem:[%s208 + $0x90] sm:$0xf] %v644
      %773 = vst [vmem:[%s208 + $0x94] sm:$0xf] %v645
      %774 = vst [vmem:[%s208 + $0x98] sm:$0xf] %v646
      %775 = vst [vmem:[%s208 + $0x9c] sm:$0xf] %v647
      %776 = vst [vmem:[%s208 + $0xa0] sm:$0xf] %v648
      %777 = vst [vmem:[%s208 + $0xa4] sm:$0xf] %v649
      %778 = vst [vmem:[%s208 + $0xa8] sm:$0xf] %v650
      %779 = vst [vmem:[%s208 + $0xac] sm:$0xf] %v651
      %780 = vst [vmem:[%s208 + $0xb0] sm:$0xf] %v652
      %781 = vst [vmem:[%s208 + $0xb4] sm:$0xf] %v653
      %782 = vst [vmem:[%s208 + $0xb8] sm:$0xf] %v654
      %783 = vst [vmem:[%s208 + $0xbc] sm:$0xf] %v655
      %784 = vst [vmem:[%s208 + $0xc0] sm:$0xf] %v656
      %785 = vst [vmem:[%s208 + $0xc4] sm:$0xf] %v657
      %786 = vst [vmem:[%s208 + $0xc8] sm:$0xf] %v658
      %787 = vst [vmem:[%s208 + $0xcc] sm:$0xf] %v659
      %788 = vst [vmem:[%s208 + $0xd0] sm:$0xf] %v660
      %789 = vst [vmem:[%s208 + $0xd4] sm:$0xf] %v661
      %790 = vst [vmem:[%s208 + $0xd8] sm:$0xf] %v662
      %791 = vst [vmem:[%s208 + $0xdc] sm:$0xf] %v663
      %792 = vst [vmem:[%s208 + $0xe0] sm:$0xf] %v664
      %793 = vst [vmem:[%s208 + $0xe4] sm:$0xf] %v665
      %794 = vst [vmem:[%s208 + $0xe8] sm:$0xf] %v666
      %795 = vst [vmem:[%s208 + $0xec] sm:$0xf] %v667
      %796 = vst [vmem:[%s208 + $0xf0] sm:$0xf] %v668
      %797 = vst [vmem:[%s208 + $0xf4] sm:$0xf] %v669
      %798 = vst [vmem:[%s208 + $0xf8] sm:$0xf] %v670
      %799 = vst [vmem:[%s208 + $0xfc] sm:$0xf] %v671
      %s800 = smul.u32 64, %s19
      %p801 = scmp.lt.s32.totalorder %s18, 3
      %s802 = scalar_select %p801, %s18, 3
      %p803 = scmp.lt.s32.totalorder %s800, 63
      %s804 = scalar_select %p803, %s800, 63
      %s805 = smul.addr %s802, 64
      %s806 = sadd.s32 %s804, %s805
      %s807 = smul.addr %s806, 4
      %s808 = scalar_lea.vmem %s3, %s807
      // Predicated region
      $region33: #{generator_forward.16} parent=31 // pred_check
        %p809 = pneg %p116
      $region34: #{generator_forward.16} parent=31 // pred_check_branch
        %811 = sbr.rel (%p809) target = $region36
      $region35: #{generator_forward.16} parent=31 // pred_region
        %s812 = smul.u32 64, %s19
      $region36: #{generator_forward.16} parent=31 // pred_fallthru
        _
    $region32: #{generator_forward.16} parent=5 // pred_fallthru
      _
    %p813 = scmp.le.s32.totalorder 2, %s9
    // Predicated region
    $region37: #{generator_forward.16} parent=5 // pred_check
      %p814 = pneg %p813
    $region38: #{generator_forward.16} parent=5 // pred_check_branch
      %816 = sbr.rel (%p814) target = $region40
    $region39: #{generator_forward.16} parent=5 // pred_region
      %s817 = ssub.s32 %s9, 2
      // Predicated region
      $region41: #{generator_forward.16} parent=39 // pred_check
        %p818 = pneg %p122
      $region42: #{generator_forward.16} parent=39 // pred_check_branch
        %820 = sbr.rel (%p818) target = $region44
      $region43: #{generator_forward.16} parent=39 // pred_region
        %s821 = smul.u32 64, %s21
        %p822 = scmp.lt.s32.totalorder %s20, 3
        %s823 = scalar_select %p822, %s20, 3
        %p824 = scmp.lt.s32.totalorder %s821, 63
        %s825 = scalar_select %p824, %s821, 63
        %s826 = smul.addr %s823, 64
        %s827 = sadd.s32 %s825, %s826
        %s828 = smul.addr %s827, 4
        %s829 = scalar_lea.vmem %s3, %s828
      $region44: #{generator_forward.16} parent=39 // pred_fallthru
        _
    $region40: #{generator_forward.16} parent=5 // pred_fallthru
      _
  $region6: #{generator_forward.16} parent=0 // loop_footer
    %s13 = sadd.s32 1, %s9
  $region7: #{generator_forward.16} parent=0 // loop_footer_branch
    %8 = sbr.rel target = $region3
  $region8: #{generator_forward.16} parent=0 // loop_exit
    _

// kernel: generator_forward.15
$region0: #{generator_forward.15}
  #allocation0 [shape = 'u32[]', space=smem, size = 0x4, offset = 0x4, fixed_abs, tag = 'smem constant byte address 0x4 - core index']
  #allocation1 [shape = 'u32[144,128]{1,0:T(1,128)}', space=vmem, size = 0x12000, scoped, tag = 'internal scratch']
  %s0 = inlined_call_operand.vmem [shape: bf16[4,512,64], index: 0, kind: input, shape index: {}]
  %s1 = inlined_call_operand.vmem [shape: bf16[4,64,128], index: 1, kind: input, shape index: {}]
  %s2 = inlined_call_operand.vmem [shape: f32[4,512,128], index: 2, kind: output, shape index: {0}]
  %s3 = inlined_call_operand.vmem [shape: f32[4,1,2,128], index: 3, kind: output, shape index: {1}]
  %4 = xla_tuple %s2, %s3
  %s5 = sld [smem:[#allocation0]]
  $region49: #{generator_forward.15} parent=0
    _
  %s7 = ssub.s32 1, %s5
  %s8 = scalar_select 0, %s7, %s5
  loop: start=0, step=1, limit=6
  $region2: #{generator_forward.15} parent=0 // loop_pre_header
    _
  $region3: #{generator_forward.15} parent=0 // loop_header
    %s10 = sphi 0, %s14
    %p11 = scmp.ge.s32.totalorder %s10, 6
    %s17 = sphi 0, %s29
    %s18 = sphi 0, %s25
    %s19 = sphi 0, %s17
    %s20 = sphi 0, %s18
    %s21 = sphi 0, %s19
    %s22 = sphi 0, %s20
    %s34 = sphi 0, %s36
    %s37 = sphi 0, %s34
    %s38 = sphi 0, %s37
    %s54 = sphi 0, %s38
    %s60 = sphi 0, %s62
    %s63 = sphi 0, %s60
    %s64 = sphi 0, %s63
    %s80 = sphi 0, %s64
    %s88 = sphi 0, %s90
    %s91 = sphi 0, %s88
    %s92 = sphi 0, %s91
    %s108 = sphi 0, %s92
    %s116 = sphi 0, %s118
    %s119 = sphi 0, %s116
    %s120 = sphi 0, %s119
    %s136 = sphi 0, %s120
  $region4: #{generator_forward.15} parent=0 // loop_header_branch
    %13 = sbr.rel (%p11) target = $region8
  $region5: #{generator_forward.15} parent=0 // loop_body
    %s15 = ssub.s32 %s10, 1
    %s16 = ssub.s32 %s10, 2
    %s23 = sadd.s32 1, %s18
    %p24 = scmp.ge.s32.totalorder %s23, 1
    %s25 = scalar_select %p24, 0, %s23
    %s26 = sadd.s32 1, %s17
    %s27 = scalar_select %p24, %s26, %s17
    %p28 = scmp.ge.s32.totalorder %s27, 4
    %s29 = scalar_select %p28, 0, %s27
    %s30 = ssub.s32 %s17, %s29
    %s31 = ssub.s32 %s18, %s25
    %s32 = sor.u32 %s30, %s31
    %p33 = scmp.eq.s32.totalorder %s32, 0
    %s35 = sadd.s32 %s34, 1
    %s36 = scalar_select %p33, %s34, %s35
    %p39 = pneg %p33
    %p40 = scmp.eq.s32.totalorder %s10, 3
    %p41 = por %p39, %p40
    %p42 = scmp.ne.s32.totalorder %s34, %s37
    %p43 = scmp.eq.s32.totalorder %s10, 0
    %p44 = por %p42, %p43
    %p45 = scmp.ne.s32.totalorder %s34, %s37
    %p46 = scmp.eq.s32.totalorder %s15, 3
    %p47 = por %p45, %p46
    %p48 = scmp.ne.s32.totalorder %s37, %s38
    %p49 = scmp.eq.s32.totalorder %s15, 0
    %p50 = por %p48, %p49
    %p51 = scmp.ne.s32.totalorder %s37, %s38
    %p52 = scmp.eq.s32.totalorder %s16, 3
    %p53 = por %p51, %p52
    %p55 = scmp.ne.s32.totalorder %s38, %s54
    %p56 = scmp.eq.s32.totalorder %s16, 0
    %p57 = por %p55, %p56
    %s58 = ssub.s32 %s17, %s29
    %p59 = scmp.eq.s32.totalorder %s58, 0
    %s61 = sadd.s32 %s60, 1
    %s62 = scalar_select %p59, %s60, %s61
    %p65 = pneg %p59
    %p66 = scmp.eq.s32.totalorder %s10, 3
    %p67 = por %p65, %p66
    %p68 = scmp.ne.s32.totalorder %s60, %s63
    %p69 = scmp.eq.s32.totalorder %s10, 0
    %p70 = por %p68, %p69
    %p71 = scmp.ne.s32.totalorder %s60, %s63
    %p72 = scmp.eq.s32.totalorder %s15, 3
    %p73 = por %p71, %p72
    %p74 = scmp.ne.s32.totalorder %s63, %s64
    %p75 = scmp.eq.s32.totalorder %s15, 0
    %p76 = por %p74, %p75
    %p77 = scmp.ne.s32.totalorder %s63, %s64
    %p78 = scmp.eq.s32.totalorder %s16, 3
    %p79 = por %p77, %p78
    %p81 = scmp.ne.s32.totalorder %s64, %s80
    %p82 = scmp.eq.s32.totalorder %s16, 0
    %p83 = por %p81, %p82
    %s84 = ssub.s32 %s17, %s29
    %s85 = ssub.s32 %s18, %s25
    %s86 = sor.u32 %s84, %s85
    %p87 = scmp.eq.s32.totalorder %s86, 0
    %s89 = sadd.s32 %s88, 1
    %s90 = scalar_select %p87, %s88, %s89
    %p93 = pneg %p87
    %p94 = scmp.eq.s32.totalorder %s10, 3
    %p95 = por %p93, %p94
    %p96 = scmp.ne.s32.totalorder %s88, %s91
    %p97 = scmp.eq.s32.totalorder %s10, 0
    %p98 = por %p96, %p97
    %p99 = scmp.ne.s32.totalorder %s88, %s91
    %p100 = scmp.eq.s32.totalorder %s15, 3
    %p101 = por %p99, %p100
    %p102 = scmp.ne.s32.totalorder %s91, %s92
    %p103 = scmp.eq.s32.totalorder %s15, 0
    %p104 = por %p102, %p103
    %p105 = scmp.ne.s32.totalorder %s91, %s92
    %p106 = scmp.eq.s32.totalorder %s16, 3
    %p107 = por %p105, %p106
    %p109 = scmp.ne.s32.totalorder %s92, %s108
    %p110 = scmp.eq.s32.totalorder %s16, 0
    %p111 = por %p109, %p110
    %s112 = ssub.s32 %s17, %s29
    %s113 = ssub.s32 %s18, %s25
    %s114 = sor.u32 %s112, %s113
    %p115 = scmp.eq.s32.totalorder %s114, 0
    %s117 = sadd.s32 %s116, 1
    %s118 = scalar_select %p115, %s116, %s117
    %p121 = pneg %p115
    %p122 = scmp.eq.s32.totalorder %s10, 3
    %p123 = por %p121, %p122
    %p124 = scmp.ne.s32.totalorder %s116, %s119
    %p125 = scmp.eq.s32.totalorder %s10, 0
    %p126 = por %p124, %p125
    %p127 = scmp.ne.s32.totalorder %s116, %s119
    %p128 = scmp.eq.s32.totalorder %s15, 3
    %p129 = por %p127, %p128
    %p130 = scmp.ne.s32.totalorder %s119, %s120
    %p131 = scmp.eq.s32.totalorder %s15, 0
    %p132 = por %p130, %p131
    %p133 = scmp.ne.s32.totalorder %s119, %s120
    %p134 = scmp.eq.s32.totalorder %s16, 3
    %p135 = por %p133, %p134
    %p137 = scmp.ne.s32.totalorder %s120, %s136
    %p138 = scmp.eq.s32.totalorder %s16, 0
    %p139 = por %p137, %p138
    %p140 = scmp.le.s32.totalorder 1, %s10
    %p141 = scmp.lt.s32.totalorder %s10, 5
    %p142 = pnand %p140, %p141
    %p143 = pneg %p142
    // Predicated region
    $region9: #{generator_forward.15} parent=5 // pred_check
      _
    $region10: #{generator_forward.15} parent=5 // pred_check_branch
      %145 = sbr.rel (%p142) target = $region12
    $region11: #{generator_forward.15} parent=5 // pred_region
      %s146 = ssub.s32 %s10, 1
    $region12: #{generator_forward.15} parent=5 // pred_fallthru
      _
    %p147 = scmp.lt.s32.totalorder %s10, 4
    // Predicated region
    $region13: #{generator_forward.15} parent=5 // pred_check
      %p148 = pneg %p147
    $region14: #{generator_forward.15} parent=5 // pred_check_branch
      %150 = sbr.rel (%p148) target = $region16
    $region15: #{generator_forward.15} parent=5 // pred_region
      // Predicated region
      $region17: #{generator_forward.15} parent=15 // pred_check
        %p151 = pneg %p44
      $region18: #{generator_forward.15} parent=15 // pred_check_branch
        %153 = sbr.rel (%p151) target = $region20
      $region19: #{generator_forward.15} parent=15 // pred_region
        %s154 = smul.u32 64, %s18
        %p155 = scmp.lt.s32.totalorder %s17, 3
        %s156 = scalar_select %p155, %s17, 3
        %p157 = scmp.lt.s32.totalorder %s154, 63
        %s158 = scalar_select %p157, %s154, 63
        %s159 = smul.addr %s156, 64
        %s160 = sadd.s32 %s158, %s159
        %s161 = smul.addr %s160, 4
        %s162 = scalar_lea.vmem %s0, %s161
        %s163 = smul.u32 64, %s18
      $region20: #{generator_forward.15} parent=15 // pred_fallthru
        _
      // Predicated region
      $region21: #{generator_forward.15} parent=15 // pred_check
        %p164 = pneg %p70
      $region22: #{generator_forward.15} parent=15 // pred_check_branch
        %166 = sbr.rel (%p164) target = $region24
      $region23: #{generator_forward.15} parent=15 // pred_region
        %p167 = scmp.lt.s32.totalorder %s17, 3
        %s168 = scalar_select %p167, %s17, 3
        %s169 = smul.addr %s168, 8
        %s170 = smul.addr %s169, 4
        %s171 = scalar_lea.vmem %s1, %s170
      $region24: #{generator_forward.15} parent=15 // pred_fallthru
        _
    $region16: #{generator_forward.15} parent=5 // pred_fallthru
      _
    %p172 = scmp.le.s32.totalorder 1, %s10
    %p173 = scmp.lt.s32.totalorder %s10, 5
    %p174 = pnand %p172, %p173
    %p175 = pneg %p174
    // Predicated region
    $region25: #{generator_forward.15} parent=5 // pred_check
      _
    $region26: #{generator_forward.15} parent=5 // pred_check_branch
      %177 = sbr.rel (%p174) target = $region28
    $region27: #{generator_forward.15} parent=5 // pred_region
      %s178 = ssub.s32 %s10, 1
      %s179 = smul.u32 64, %s20
      %p180 = scmp.lt.s32.totalorder %s19, 3
      %s181 = scalar_select %p180, %s19, 3
      %p182 = scmp.lt.s32.totalorder %s179, 63
      %s183 = scalar_select %p182, %s179, 63
      %s184 = smul.addr %s181, 64
      %s185 = sadd.s32 %s183, %s184
      %s186 = smul.addr %s185, 4
      %s187 = scalar_lea.vmem %s0, %s186
      %p188 = pneg %p50
      %p189 = pneg %p47
      %p190 = scmp.lt.s32.totalorder %s19, 3
      %s191 = scalar_select %p190, %s19, 3
      %s192 = smul.addr %s191, 8
      %s193 = smul.addr %s192, 4
      %s194 = scalar_lea.vmem %s1, %s193
      %p195 = pneg %p76
      %p196 = pneg %p73
      %p197 = pneg %p104
      %p198 = pneg %p101
      %s199 = smul.u32 64, %s20
      %p200 = scmp.lt.s32.totalorder %s19, 3
      %s201 = scalar_select %p200, %s19, 3
      %p202 = scmp.lt.s32.totalorder %s199, 63
      %s203 = scalar_select %p202, %s199, 63
      %s204 = smul.addr %s201, 64
      %s205 = sadd.s32 %s203, %s204
      %s206 = smul.addr %s205, 8
      %s207 = scalar_lea.vmem %s2, %s206
      %p208 = pneg %p132
      %p209 = pneg %p129
      %p210 = scmp.lt.s32.totalorder %s19, 3
      %s211 = scalar_select %p210, %s19, 3
      %p212 = scmp.lt.s32.totalorder %s20, 0
      %s213 = scalar_select %p212, %s20, 0
      %s214 = sadd.s32 %s213, %s211
      %s215 = smul.addr %s214, 2
      %s216 = scalar_lea.vmem %s3, %s215
      %s217 = smul.u32 64, %s20
      %p218 = scmp.lt.s32.totalorder %s19, 3
      %s219 = scalar_select %p218, %s19, 3
      %p220 = scmp.lt.s32.totalorder %s217, 63
      %s221 = scalar_select %p220, %s217, 63
      %s222 = smul.addr %s219, 64
      %s223 = sadd.s32 %s221, %s222
      %s224 = smul.addr %s223, 4
      %s225 = scalar_lea.vmem %s0, %s224
      %s226 = smul.u32 64, %s20
      %p227 = scmp.lt.s32.totalorder %s19, 3
      %s228 = scalar_select %p227, %s19, 3
      %s229 = smul.addr %s228, 8
      %s230 = smul.addr %s229, 4
      %s231 = scalar_lea.vmem %s1, %s230
      %s232 = smul.u32 64, %s20
      %p233 = scmp.lt.s32.totalorder %s19, 3
      %s234 = scalar_select %p233, %s19, 3
      %p235 = scmp.lt.s32.totalorder %s232, 63
      %s236 = scalar_select %p235, %s232, 63
      %s237 = smul.addr %s234, 64
      %s238 = sadd.s32 %s236, %s237
      %s239 = smul.addr %s238, 8
      %s240 = scalar_lea.vmem %s2, %s239
      %s241 = smul.u32 64, %s20
      %p242 = scmp.lt.s32.totalorder %s19, 3
      %s243 = scalar_select %p242, %s19, 3
      %p244 = scmp.lt.s32.totalorder %s20, 0
      %s245 = scalar_select %p244, %s20, 0
      %s246 = sadd.s32 %s245, %s243
      %s247 = smul.addr %s246, 2
      %s248 = scalar_lea.vmem %s3, %s247
      %v250 = vld [vmem:[%s225] sm:$0xf]
      %v251 = vld [vmem:[%s225 + $0x4] sm:$0xf]
      %v252 = vld [vmem:[%s225 + $0x8] sm:$0xf]
      %v253 = vld [vmem:[%s225 + $0xc] sm:$0xf]
      %v254 = vld [vmem:[%s225 + $0x10] sm:$0xf]
      %v255 = vld [vmem:[%s225 + $0x14] sm:$0xf]
      %v256 = vld [vmem:[%s225 + $0x18] sm:$0xf]
      %v257 = vld [vmem:[%s225 + $0x1c] sm:$0xf]
      %v258 = vld [vmem:[%s225 + $0x20] sm:$0xf]
      %v259 = vld [vmem:[%s225 + $0x24] sm:$0xf]
      %v260 = vld [vmem:[%s225 + $0x28] sm:$0xf]
      %v261 = vld [vmem:[%s225 + $0x2c] sm:$0xf]
      %v262 = vld [vmem:[%s225 + $0x30] sm:$0xf]
      %v263 = vld [vmem:[%s225 + $0x34] sm:$0xf]
      %v264 = vld [vmem:[%s225 + $0x38] sm:$0xf]
      %v265 = vld [vmem:[%s225 + $0x3c] sm:$0xf]
      %v266 = vld [vmem:[%s225 + $0x40] sm:$0xf]
      %v267 = vld [vmem:[%s225 + $0x44] sm:$0xf]
      %v268 = vld [vmem:[%s225 + $0x48] sm:$0xf]
      %v269 = vld [vmem:[%s225 + $0x4c] sm:$0xf]
      %v270 = vld [vmem:[%s225 + $0x50] sm:$0xf]
      %v271 = vld [vmem:[%s225 + $0x54] sm:$0xf]
      %v272 = vld [vmem:[%s225 + $0x58] sm:$0xf]
      %v273 = vld [vmem:[%s225 + $0x5c] sm:$0xf]
      %v274 = vld [vmem:[%s225 + $0x60] sm:$0xf]
      %v275 = vld [vmem:[%s225 + $0x64] sm:$0xf]
      %v276 = vld [vmem:[%s225 + $0x68] sm:$0xf]
      %v277 = vld [vmem:[%s225 + $0x6c] sm:$0xf]
      %v278 = vld [vmem:[%s225 + $0x70] sm:$0xf]
      %v279 = vld [vmem:[%s225 + $0x74] sm:$0xf]
      %v280 = vld [vmem:[%s225 + $0x78] sm:$0xf]
      %v281 = vld [vmem:[%s225 + $0x7c] sm:$0xf]
      %v282 = vld [vmem:[%s225 + $0x80] sm:$0xf]
      %v283 = vld [vmem:[%s225 + $0x84] sm:$0xf]
      %v284 = vld [vmem:[%s225 + $0x88] sm:$0xf]
      %v285 = vld [vmem:[%s225 + $0x8c] sm:$0xf]
      %v286 = vld [vmem:[%s225 + $0x90] sm:$0xf]
      %v287 = vld [vmem:[%s225 + $0x94] sm:$0xf]
      %v288 = vld [vmem:[%s225 + $0x98] sm:$0xf]
      %v289 = vld [vmem:[%s225 + $0x9c] sm:$0xf]
      %v290 = vld [vmem:[%s225 + $0xa0] sm:$0xf]
      %v291 = vld [vmem:[%s225 + $0xa4] sm:$0xf]
      %v292 = vld [vmem:[%s225 + $0xa8] sm:$0xf]
      %v293 = vld [vmem:[%s225 + $0xac] sm:$0xf]
      %v294 = vld [vmem:[%s225 + $0xb0] sm:$0xf]
      %v295 = vld [vmem:[%s225 + $0xb4] sm:$0xf]
      %v296 = vld [vmem:[%s225 + $0xb8] sm:$0xf]
      %v297 = vld [vmem:[%s225 + $0xbc] sm:$0xf]
      %v298 = vld [vmem:[%s225 + $0xc0] sm:$0xf]
      %v299 = vld [vmem:[%s225 + $0xc4] sm:$0xf]
      %v300 = vld [vmem:[%s225 + $0xc8] sm:$0xf]
      %v301 = vld [vmem:[%s225 + $0xcc] sm:$0xf]
      %v302 = vld [vmem:[%s225 + $0xd0] sm:$0xf]
      %v303 = vld [vmem:[%s225 + $0xd4] sm:$0xf]
      %v304 = vld [vmem:[%s225 + $0xd8] sm:$0xf]
      %v305 = vld [vmem:[%s225 + $0xdc] sm:$0xf]
      %v306 = vld [vmem:[%s225 + $0xe0] sm:$0xf]
      %v307 = vld [vmem:[%s225 + $0xe4] sm:$0xf]
      %v308 = vld [vmem:[%s225 + $0xe8] sm:$0xf]
      %v309 = vld [vmem:[%s225 + $0xec] sm:$0xf]
      %v310 = vld [vmem:[%s225 + $0xf0] sm:$0xf]
      %v311 = vld [vmem:[%s225 + $0xf4] sm:$0xf]
      %v312 = vld [vmem:[%s225 + $0xf8] sm:$0xf]
      %v313 = vld [vmem:[%s225 + $0xfc] sm:$0xf]
      %v314 = vld [vmem:[%s231] sm:$0xf]
      %v315 = vld [vmem:[%s231 + $0x4] sm:$0xf]
      %v316 = vld [vmem:[%s231 + $0x8] sm:$0xf]
      %v317 = vld [vmem:[%s231 + $0xc] sm:$0xf]
      %v318 = vld [vmem:[%s231 + $0x10] sm:$0xf]
      %v319 = vld [vmem:[%s231 + $0x14] sm:$0xf]
      %v320 = vld [vmem:[%s231 + $0x18] sm:$0xf]
      %v321 = vld [vmem:[%s231 + $0x1c] sm:$0xf]
      %v386 = vunpack.c.l.b16 %v250
      %v387 = vunpack.c.l.b16 %v251
      %v388 = vunpack.c.l.b16 %v252
      %v389 = vunpack.c.l.b16 %v253
      %v390 = vunpack.c.l.b16 %v254
      %v391 = vunpack.c.l.b16 %v255
      %v392 = vunpack.c.l.b16 %v256
      %v393 = vunpack.c.l.b16 %v257
      %v394 = vunpack.c.l.b16 %v258
      %v395 = vunpack.c.l.b16 %v259
      %v396 = vunpack.c.l.b16 %v260
      %v397 = vunpack.c.l.b16 %v261
      %v398 = vunpack.c.l.b16 %v262
      %v399 = vunpack.c.l.b16 %v263
      %v400 = vunpack.c.l.b16 %v264
      %v401 = vunpack.c.l.b16 %v265
      %v402 = vunpack.c.l.b16 %v266
      %v403 = vunpack.c.l.b16 %v267
      %v404 = vunpack.c.l.b16 %v268
      %v405 = vunpack.c.l.b16 %v269
      %v406 = vunpack.c.l.b16 %v270
      %v407 = vunpack.c.l.b16 %v271
      %v408 = vunpack.c.l.b16 %v272
      %v409 = vunpack.c.l.b16 %v273
      %v410 = vunpack.c.l.b16 %v274
      %v411 = vunpack.c.l.b16 %v275
      %v412 = vunpack.c.l.b16 %v276
      %v413 = vunpack.c.l.b16 %v277
      %v414 = vunpack.c.l.b16 %v278
      %v415 = vunpack.c.l.b16 %v279
      %v416 = vunpack.c.l.b16 %v280
      %v417 = vunpack.c.l.b16 %v281
      %v418 = vunpack.c.l.b16 %v282
      %v419 = vunpack.c.l.b16 %v283
      %v420 = vunpack.c.l.b16 %v284
      %v421 = vunpack.c.l.b16 %v285
      %v422 = vunpack.c.l.b16 %v286
      %v423 = vunpack.c.l.b16 %v287
      %v424 = vunpack.c.l.b16 %v288
      %v425 = vunpack.c.l.b16 %v289
      %v426 = vunpack.c.l.b16 %v290
      %v427 = vunpack.c.l.b16 %v291
      %v428 = vunpack.c.l.b16 %v292
      %v429 = vunpack.c.l.b16 %v293
      %v430 = vunpack.c.l.b16 %v294
      %v431 = vunpack.c.l.b16 %v295
      %v432 = vunpack.c.l.b16 %v296
      %v433 = vunpack.c.l.b16 %v297
      %v434 = vunpack.c.l.b16 %v298
      %v435 = vunpack.c.l.b16 %v299
      %v436 = vunpack.c.l.b16 %v300
      %v437 = vunpack.c.l.b16 %v301
      %v438 = vunpack.c.l.b16 %v302
      %v439 = vunpack.c.l.b16 %v303
      %v440 = vunpack.c.l.b16 %v304
      %v441 = vunpack.c.l.b16 %v305
      %v442 = vunpack.c.l.b16 %v306
      %v443 = vunpack.c.l.b16 %v307
      %v444 = vunpack.c.l.b16 %v308
      %v445 = vunpack.c.l.b16 %v309
      %v446 = vunpack.c.l.b16 %v310
      %v447 = vunpack.c.l.b16 %v311
      %v448 = vunpack.c.l.b16 %v312
      %v449 = vunpack.c.l.b16 %v313
      %v450 = vpack.c.b16 %v387, %v386
      %v451 = vpack.c.b16 %v389, %v388
      %v452 = vpack.c.b16 %v391, %v390
      %v453 = vpack.c.b16 %v393, %v392
      %v454 = vpack.c.b16 %v395, %v394
      %v455 = vpack.c.b16 %v397, %v396
      %v456 = vpack.c.b16 %v399, %v398
      %v457 = vpack.c.b16 %v401, %v400
      %v458 = vpack.c.b16 %v403, %v402
      %v459 = vpack.c.b16 %v405, %v404
      %v460 = vpack.c.b16 %v407, %v406
      %v461 = vpack.c.b16 %v409, %v408
      %v462 = vpack.c.b16 %v411, %v410
      %v463 = vpack.c.b16 %v413, %v412
      %v464 = vpack.c.b16 %v415, %v414
      %v465 = vpack.c.b16 %v417, %v416
      %v466 = vpack.c.b16 %v419, %v418
      %v467 = vpack.c.b16 %v421, %v420
      %v468 = vpack.c.b16 %v423, %v422
      %v469 = vpack.c.b16 %v425, %v424
      %v470 = vpack.c.b16 %v427, %v426
      %v471 = vpack.c.b16 %v429, %v428
      %v472 = vpack.c.b16 %v431, %v430
      %v473 = vpack.c.b16 %v433, %v432
      %v474 = vpack.c.b16 %v435, %v434
      %v475 = vpack.c.b16 %v437, %v436
      %v476 = vpack.c.b16 %v439, %v438
      %v477 = vpack.c.b16 %v441, %v440
      %v478 = vpack.c.b16 %v443, %v442
      %v479 = vpack.c.b16 %v445, %v444
      %v480 = vpack.c.b16 %v447, %v446
      %v481 = vpack.c.b16 %v449, %v448
      %v490 = vunpack.c.l.b16 %v314
      %v491 = vunpack.c.l.b16 %v315
      %v492 = vunpack.c.l.b16 %v316
      %v493 = vunpack.c.l.b16 %v317
      %v494 = vunpack.c.l.b16 %v318
      %v495 = vunpack.c.l.b16 %v319
      %v496 = vunpack.c.l.b16 %v320
      %v497 = vunpack.c.l.b16 %v321
      %v498 = vpack.c.b16 %v491, %v490
      %v499 = vpack.c.b16 %v493, %v492
      %v500 = vpack.c.b16 %v495, %v494
      %v501 = vpack.c.b16 %v497, %v496
      %vm506 = vcmask 523264
      %v508 = vsel %vm506, %v450, 0
      %v511 = vsel %vm506, %v451, 0
      %v514 = vsel %vm506, %v452, 0
      %v517 = vsel %vm506, %v453, 0
      %v520 = vsel %vm506, %v454, 0
      %v523 = vsel %vm506, %v455, 0
      %v526 = vsel %vm506, %v456, 0
      %v529 = vsel %vm506, %v457, 0
      %v532 = vsel %vm506, %v458, 0
      %v535 = vsel %vm506, %v459, 0
      %v538 = vsel %vm506, %v460, 0
      %v541 = vsel %vm506, %v461, 0
      %v544 = vsel %vm506, %v462, 0
      %v547 = vsel %vm506, %v463, 0
      %v550 = vsel %vm506, %v464, 0
      %v553 = vsel %vm506, %v465, 0
      %v556 = vsel %vm506, %v466, 0
      %v559 = vsel %vm506, %v467, 0
      %v562 = vsel %vm506, %v468, 0
      %v565 = vsel %vm506, %v469, 0
      %v568 = vsel %vm506, %v470, 0
      %v571 = vsel %vm506, %v471, 0
      %v574 = vsel %vm506, %v472, 0
      %v577 = vsel %vm506, %v473, 0
      %v580 = vsel %vm506, %v474, 0
      %v583 = vsel %vm506, %v475, 0
      %v586 = vsel %vm506, %v476, 0
      %v589 = vsel %vm506, %v477, 0
      %v592 = vsel %vm506, %v478, 0
      %v595 = vsel %vm506, %v479, 0
      %v598 = vsel %vm506, %v480, 0
      %v601 = vsel %vm506, %v481, 0
      %603 = vmatprep.subr.bf16.mxu0 0
      %604 = vmatpush1.bf16.msra.mxu0 %v498
      %605 = vmatprep.subr.bf16.mxu0 0
      %606 = vmatpush1.bf16.msra.mxu0 %v499
      %607 = vmatprep.subr.bf16.mxu0 0
      %608 = vmatpush1.bf16.msra.mxu0 %v500
      %609 = vmatprep.subr.bf16.mxu0 0
      %610 = vmatpush1.bf16.msra.mxu0 %v501
      %611 = vmatprep.subr.bf16.mxu0 0
      %612 = vmatpush1.bf16.msra.mxu0 0
      %613 = vmatprep.subr.bf16.mxu0 0
      %614 = vmatpush1.bf16.msra.mxu0 0
      %615 = vmatprep.subr.bf16.mxu0 0
      %616 = vmatpush1.bf16.msra.mxu0 0
      %617 = vmatprep.subr.bf16.mxu0 0
      %618 = vmatpush1.bf16.msra.mxu0 0
      %619 = vmatprep.subr.bf16.mxu0 0
      %620 = vmatpush1.bf16.msra.mxu0 0
      %621 = vmatprep.subr.bf16.mxu0 0
      %622 = vmatpush1.bf16.msra.mxu0 0
      %623 = vmatprep.subr.bf16.mxu0 0
      %624 = vmatpush1.bf16.msra.mxu0 0
      %625 = vmatprep.subr.bf16.mxu0 0
      %626 = vmatpush1.bf16.msra.mxu0 0
      %627 = vmatprep.subr.bf16.mxu0 0
      %628 = vmatpush1.bf16.msra.mxu0 0
      %629 = vmatprep.subr.bf16.mxu0 0
      %630 = vmatpush1.bf16.msra.mxu0 0
      %631 = vmatprep.subr.bf16.mxu0 0
      %632 = vmatpush1.bf16.msra.mxu0 0
      %633 = vmatprep.subr.bf16.mxu0 0
      %634 = vmatpush1.bf16.msra.mxu0 0
      %635 = vmatprep.mubr.bf16.mxu0 0
      %636 = vmatmul.mubr.bf16.gmra.mrb[0].mxu0 %v508
      %v637 = vpop.f32.mrb[0].mxu0
      %v638 = vadd.f32 0.0, %v637
      %v639 = vpop.f32.mrb[0].mxu0
      %v640 = vpop.f32.mrb[0].mxu0
      %v641 = vadd.f32 0.0, %v640
      %v642 = vpop.f32.mrb[0].mxu0
      %643 = vmatprep.mubr.bf16.mxu0 0
      %644 = vmatmul.mubr.bf16.gmra.mrb[0].mxu0 %v511
      %v645 = vpop.f32.mrb[0].mxu0
      %v646 = vadd.f32 0.0, %v645
      %v647 = vpop.f32.mrb[0].mxu0
      %v648 = vpop.f32.mrb[0].mxu0
      %v649 = vadd.f32 0.0, %v648
      %v650 = vpop.f32.mrb[0].mxu0
      %651 = vmatprep.mubr.bf16.mxu0 0
      %652 = vmatmul.mubr.bf16.gmra.mrb[0].mxu0 %v514
      %v653 = vpop.f32.mrb[0].mxu0
      %v654 = vadd.f32 0.0, %v653
      %v655 = vpop.f32.mrb[0].mxu0
      %v656 = vpop.f32.mrb[0].mxu0
      %v657 = vadd.f32 0.0, %v656
      %v658 = vpop.f32.mrb[0].mxu0
      %659 = vmatprep.mubr.bf16.mxu0 0
      %660 = vmatmul.mubr.bf16.gmra.mrb[0].mxu0 %v517
      %v661 = vpop.f32.mrb[0].mxu0
      %v662 = vadd.f32 0.0, %v661
      %v663 = vpop.f32.mrb[0].mxu0
      %v664 = vpop.f32.mrb[0].mxu0
      %v665 = vadd.f32 0.0, %v664
      %v666 = vpop.f32.mrb[0].mxu0
      %667 = vmatprep.mubr.bf16.mxu0 0
      %668 = vmatmul.mubr.bf16.gmra.mrb[0].mxu0 %v520
      %v669 = vpop.f32.mrb[0].mxu0
      %v670 = vadd.f32 0.0, %v669
      %v671 = vpop.f32.mrb[0].mxu0
      %v672 = vpop.f32.mrb[0].mxu0
      %v673 = vadd.f32 0.0, %v672
      %v674 = vpop.f32.mrb[0].mxu0
      %675 = vmatprep.mubr.bf16.mxu0 0
      %676 = vmatmul.mubr.bf16.gmra.mrb[0].mxu0 %v523
      %v677 = vpop.f32.mrb[0].mxu0
      %v678 = vadd.f32 0.0, %v677
      %v679 = vpop.f32.mrb[0].mxu0
      %v680 = vpop.f32.mrb[0].mxu0
      %v681 = vadd.f32 0.0, %v680
      %v682 = vpop.f32.mrb[0].mxu0
      %683 = vmatprep.mubr.bf16.mxu0 0
      %684 = vmatmul.mubr.bf16.gmra.mrb[0].mxu0 %v526
      %v685 = vpop.f32.mrb[0].mxu0
      %v686 = vadd.f32 0.0, %v685
      %v687 = vpop.f32.mrb[0].mxu0
      %v688 = vpop.f32.mrb[0].mxu0
      %v689 = vadd.f32 0.0, %v688
      %v690 = vpop.f32.mrb[0].mxu0
      %691 = vmatprep.mubr.bf16.mxu0 0
      %692 = vmatmul.mubr.bf16.gmra.mrb[0].mxu0 %v529
      %v693 = vpop.f32.mrb[0].mxu0
      %v694 = vadd.f32 0.0, %v693
      %v695 = vpop.f32.mrb[0].mxu0
      %v696 = vpop.f32.mrb[0].mxu0
      %v697 = vadd.f32 0.0, %v696
      %v698 = vpop.f32.mrb[0].mxu0
      %699 = vmatprep.mubr.bf16.mxu0 0
      %700 = vmatmul.mubr.bf16.gmra.mrb[0].mxu0 %v532
      %v701 = vpop.f32.mrb[0].mxu0
      %v702 = vadd.f32 0.0, %v701
      %v703 = vpop.f32.mrb[0].mxu0
      %v704 = vpop.f32.mrb[0].mxu0
      %v705 = vadd.f32 0.0, %v704
      %v706 = vpop.f32.mrb[0].mxu0
      %707 = vmatprep.mubr.bf16.mxu0 0
      %708 = vmatmul.mubr.bf16.gmra.mrb[0].mxu0 %v535
      %v709 = vpop.f32.mrb[0].mxu0
      %v710 = vadd.f32 0.0, %v709
      %v711 = vpop.f32.mrb[0].mxu0
      %v712 = vpop.f32.mrb[0].mxu0
      %v713 = vadd.f32 0.0, %v712
      %v714 = vpop.f32.mrb[0].mxu0
      %715 = vmatprep.mubr.bf16.mxu0 0
      %716 = vmatmul.mubr.bf16.gmra.mrb[0].mxu0 %v538
      %v717 = vpop.f32.mrb[0].mxu0
      %v718 = vadd.f32 0.0, %v717
      %v719 = vpop.f32.mrb[0].mxu0
      %v720 = vpop.f32.mrb[0].mxu0
      %v721 = vadd.f32 0.0, %v720
      %v722 = vpop.f32.mrb[0].mxu0
      %723 = vmatprep.mubr.bf16.mxu0 0
      %724 = vmatmul.mubr.bf16.gmra.mrb[0].mxu0 %v541
      %v725 = vpop.f32.mrb[0].mxu0
      %v726 = vadd.f32 0.0, %v725
      %v727 = vpop.f32.mrb[0].mxu0
      %v728 = vpop.f32.mrb[0].mxu0
      %v729 = vadd.f32 0.0, %v728
      %v730 = vpop.f32.mrb[0].mxu0
      %731 = vmatprep.mubr.bf16.mxu0 0
      %732 = vmatmul.mubr.bf16.gmra.mrb[0].mxu0 %v544
      %v733 = vpop.f32.mrb[0].mxu0
      %v734 = vadd.f32 0.0, %v733
      %v735 = vpop.f32.mrb[0].mxu0
      %v736 = vpop.f32.mrb[0].mxu0
      %v737 = vadd.f32 0.0, %v736
      %v738 = vpop.f32.mrb[0].mxu0
      %739 = vmatprep.mubr.bf16.mxu0 0
      %740 = vmatmul.mubr.bf16.gmra.mrb[0].mxu0 %v547
      %v741 = vpop.f32.mrb[0].mxu0
      %v742 = vadd.f32 0.0, %v741
      %v743 = vpop.f32.mrb[0].mxu0
      %v744 = vpop.f32.mrb[0].mxu0
      %v745 = vadd.f32 0.0, %v744
      %v746 = vpop.f32.mrb[0].mxu0
      %747 = vmatprep.mubr.bf16.mxu0 0
      %748 = vmatmul.mubr.bf16.gmra.mrb[0].mxu0 %v550
      %v749 = vpop.f32.mrb[0].mxu0
      %v750 = vadd.f32 0.0, %v749
      %v751 = vpop.f32.mrb[0].mxu0
      %v752 = vpop.f32.mrb[0].mxu0
      %v753 = vadd.f32 0.0, %v752
      %v754 = vpop.f32.mrb[0].mxu0
      %755 = vmatprep.mubr.bf16.mxu0 0
      %756 = vmatmul.mubr.bf16.gmra.mrb[0].mxu0 %v553
      %v757 = vpop.f32.mrb[0].mxu0
      %v758 = vadd.f32 0.0, %v757
      %v759 = vpop.f32.mrb[0].mxu0
      %v760 = vpop.f32.mrb[0].mxu0
      %v761 = vadd.f32 0.0, %v760
      %v762 = vpop.f32.mrb[0].mxu0
      %763 = vmatprep.mubr.bf16.mxu0 0
      %764 = vmatmul.mubr.bf16.gmra.mrb[0].mxu0 %v556
      %v765 = vpop.f32.mrb[0].mxu0
      %v766 = vadd.f32 0.0, %v765
      %v767 = vpop.f32.mrb[0].mxu0
      %v768 = vpop.f32.mrb[0].mxu0
      %v769 = vadd.f32 0.0, %v768
      %v770 = vpop.f32.mrb[0].mxu0
      %771 = vmatprep.mubr.bf16.mxu0 0
      %772 = vmatmul.mubr.bf16.gmra.mrb[0].mxu0 %v559
      %v773 = vpop.f32.mrb[0].mxu0
      %v774 = vadd.f32 0.0, %v773
      %v775 = vpop.f32.mrb[0].mxu0
      %v776 = vpop.f32.mrb[0].mxu0
      %v777 = vadd.f32 0.0, %v776
      %v778 = vpop.f32.mrb[0].mxu0
      %779 = vmatprep.mubr.bf16.mxu0 0
      %780 = vmatmul.mubr.bf16.gmra.mrb[0].mxu0 %v562
      %v781 = vpop.f32.mrb[0].mxu0
      %v782 = vadd.f32 0.0, %v781
      %v783 = vpop.f32.mrb[0].mxu0
      %v784 = vpop.f32.mrb[0].mxu0
      %v785 = vadd.f32 0.0, %v784
      %v786 = vpop.f32.mrb[0].mxu0
      %787 = vmatprep.mubr.bf16.mxu0 0
      %788 = vmatmul.mubr.bf16.gmra.mrb[0].mxu0 %v565
      %v789 = vpop.f32.mrb[0].mxu0
      %v790 = vadd.f32 0.0, %v789
      %v791 = vpop.f32.mrb[0].mxu0
      %v792 = vpop.f32.mrb[0].mxu0
      %v793 = vadd.f32 0.0, %v792
      %v794 = vpop.f32.mrb[0].mxu0
      %795 = vmatprep.mubr.bf16.mxu0 0
      %796 = vmatmul.mubr.bf16.gmra.mrb[0].mxu0 %v568
      %v797 = vpop.f32.mrb[0].mxu0
      %v798 = vadd.f32 0.0, %v797
      %v799 = vpop.f32.mrb[0].mxu0
      %v800 = vpop.f32.mrb[0].mxu0
      %v801 = vadd.f32 0.0, %v800
      %v802 = vpop.f32.mrb[0].mxu0
      %803 = vmatprep.mubr.bf16.mxu0 0
      %804 = vmatmul.mubr.bf16.gmra.mrb[0].mxu0 %v571
      %v805 = vpop.f32.mrb[0].mxu0
      %v806 = vadd.f32 0.0, %v805
      %v807 = vpop.f32.mrb[0].mxu0
      %v808 = vpop.f32.mrb[0].mxu0
      %v809 = vadd.f32 0.0, %v808
      %v810 = vpop.f32.mrb[0].mxu0
      %811 = vmatprep.mubr.bf16.mxu0 0
      %812 = vmatmul.mubr.bf16.gmra.mrb[0].mxu0 %v574
      %v813 = vpop.f32.mrb[0].mxu0
      %v814 = vadd.f32 0.0, %v813
      %v815 = vpop.f32.mrb[0].mxu0
      %v816 = vpop.f32.mrb[0].mxu0
      %v817 = vadd.f32 0.0, %v816
      %v818 = vpop.f32.mrb[0].mxu0
      %819 = vmatprep.mubr.bf16.mxu0 0
      %820 = vmatmul.mubr.bf16.gmra.mrb[0].mxu0 %v577
      %v821 = vpop.f32.mrb[0].mxu0
      %v822 = vadd.f32 0.0, %v821
      %v823 = vpop.f32.mrb[0].mxu0
      %v824 = vpop.f32.mrb[0].mxu0
      %v825 = vadd.f32 0.0, %v824
      %v826 = vpop.f32.mrb[0].mxu0
      %827 = vmatprep.mubr.bf16.mxu0 0
      %828 = vmatmul.mubr.bf16.gmra.mrb[0].mxu0 %v580
      %v829 = vpop.f32.mrb[0].mxu0
      %v830 = vadd.f32 0.0, %v829
      %v831 = vpop.f32.mrb[0].mxu0
      %v832 = vpop.f32.mrb[0].mxu0
      %v833 = vadd.f32 0.0, %v832
      %v834 = vpop.f32.mrb[0].mxu0
      %835 = vmatprep.mubr.bf16.mxu0 0
      %836 = vmatmul.mubr.bf16.gmra.mrb[0].mxu0 %v583
      %v837 = vpop.f32.mrb[0].mxu0
      %v838 = vadd.f32 0.0, %v837
      %v839 = vpop.f32.mrb[0].mxu0
      %v840 = vpop.f32.mrb[0].mxu0
      %v841 = vadd.f32 0.0, %v840
      %v842 = vpop.f32.mrb[0].mxu0
      %843 = vmatprep.mubr.bf16.mxu0 0
      %844 = vmatmul.mubr.bf16.gmra.mrb[0].mxu0 %v586
      %v845 = vpop.f32.mrb[0].mxu0
      %v846 = vadd.f32 0.0, %v845
      %v847 = vpop.f32.mrb[0].mxu0
      %v848 = vpop.f32.mrb[0].mxu0
      %v849 = vadd.f32 0.0, %v848
      %v850 = vpop.f32.mrb[0].mxu0
      %851 = vmatprep.mubr.bf16.mxu0 0
      %852 = vmatmul.mubr.bf16.gmra.mrb[0].mxu0 %v589
      %v853 = vpop.f32.mrb[0].mxu0
      %v854 = vadd.f32 0.0, %v853
      %v855 = vpop.f32.mrb[0].mxu0
      %v856 = vpop.f32.mrb[0].mxu0
      %v857 = vadd.f32 0.0, %v856
      %v858 = vpop.f32.mrb[0].mxu0
      %859 = vmatprep.mubr.bf16.mxu0 0
      %860 = vmatmul.mubr.bf16.gmra.mrb[0].mxu0 %v592
      %v861 = vpop.f32.mrb[0].mxu0
      %v862 = vadd.f32 0.0, %v861
      %v863 = vpop.f32.mrb[0].mxu0
      %v864 = vpop.f32.mrb[0].mxu0
      %v865 = vadd.f32 0.0, %v864
      %v866 = vpop.f32.mrb[0].mxu0
      %867 = vmatprep.mubr.bf16.mxu0 0
      %868 = vmatmul.mubr.bf16.gmra.mrb[0].mxu0 %v595
      %v869 = vpop.f32.mrb[0].mxu0
      %v870 = vadd.f32 0.0, %v869
      %v871 = vpop.f32.mrb[0].mxu0
      %v872 = vpop.f32.mrb[0].mxu0
      %v873 = vadd.f32 0.0, %v872
      %v874 = vpop.f32.mrb[0].mxu0
      %875 = vmatprep.mubr.bf16.mxu0 0
      %876 = vmatmul.mubr.bf16.gmra.mrb[0].mxu0 %v598
      %v877 = vpop.f32.mrb[0].mxu0
      %v878 = vadd.f32 0.0, %v877
      %v879 = vpop.f32.mrb[0].mxu0
      %v880 = vpop.f32.mrb[0].mxu0
      %v881 = vadd.f32 0.0, %v880
      %v882 = vpop.f32.mrb[0].mxu0
      %883 = vmatprep.mubr.bf16.mxu0 0
      %884 = vmatmul.mubr.bf16.gmra.mrb[0].mxu0 %v601
      %v885 = vpop.f32.mrb[0].mxu0
      %v886 = vadd.f32 0.0, %v885
      %v887 = vpop.f32.mrb[0].mxu0
      %v888 = vpop.f32.mrb[0].mxu0
      %v889 = vadd.f32 0.0, %v888
      %v890 = vpop.f32.mrb[0].mxu0
      %891 = vdwg.mxu0
      %892 = vst [vmem:[%s240] sm:$0xff] %v638
      %893 = vst [vmem:[%s240 + $0x8] sm:$0xff] %v641
      %894 = vst [vmem:[%s240 + $0x10] sm:$0xff] %v646
      %895 = vst [vmem:[%s240 + $0x18] sm:$0xff] %v649
      %896 = vst [vmem:[%s240 + $0x20] sm:$0xff] %v654
      %897 = vst [vmem:[%s240 + $0x28] sm:$0xff] %v657
      %898 = vst [vmem:[%s240 + $0x30] sm:$0xff] %v662
      %899 = vst [vmem:[%s240 + $0x38] sm:$0xff] %v665
      %900 = vst [vmem:[%s240 + $0x40] sm:$0xff] %v670
      %901 = vst [vmem:[%s240 + $0x48] sm:$0xff] %v673
      %902 = vst [vmem:[%s240 + $0x50] sm:$0xff] %v678
      %903 = vst [vmem:[%s240 + $0x58] sm:$0xff] %v681
      %904 = vst [vmem:[%s240 + $0x60] sm:$0xff] %v686
      %905 = vst [vmem:[%s240 + $0x68] sm:$0xff] %v689
      %906 = vst [vmem:[%s240 + $0x70] sm:$0xff] %v694
      %907 = vst [vmem:[%s240 + $0x78] sm:$0xff] %v697
      %908 = vst [vmem:[%s240 + $0x80] sm:$0xff] %v702
      %909 = vst [vmem:[%s240 + $0x88] sm:$0xff] %v705
      %910 = vst [vmem:[%s240 + $0x90] sm:$0xff] %v710
      %911 = vst [vmem:[%s240 + $0x98] sm:$0xff] %v713
      %912 = vst [vmem:[%s240 + $0xa0] sm:$0xff] %v718
      %913 = vst [vmem:[%s240 + $0xa8] sm:$0xff] %v721
      %914 = vst [vmem:[%s240 + $0xb0] sm:$0xff] %v726
      %915 = vst [vmem:[%s240 + $0xb8] sm:$0xff] %v729
      %916 = vst [vmem:[%s240 + $0xc0] sm:$0xff] %v734
      %917 = vst [vmem:[%s240 + $0xc8] sm:$0xff] %v737
      %918 = vst [vmem:[%s240 + $0xd0] sm:$0xff] %v742
      %919 = vst [vmem:[%s240 + $0xd8] sm:$0xff] %v745
      %920 = vst [vmem:[%s240 + $0xe0] sm:$0xff] %v750
      %921 = vst [vmem:[%s240 + $0xe8] sm:$0xff] %v753
      %922 = vst [vmem:[%s240 + $0xf0] sm:$0xff] %v758
      %923 = vst [vmem:[%s240 + $0xf8] sm:$0xff] %v761
      %924 = vst [vmem:[%s240 + $0x100] sm:$0xff] %v766
      %925 = vst [vmem:[%s240 + $0x108] sm:$0xff] %v769
      %926 = vst [vmem:[%s240 + $0x110] sm:$0xff] %v774
      %927 = vst [vmem:[%s240 + $0x118] sm:$0xff] %v777
      %928 = vst [vmem:[%s240 + $0x120] sm:$0xff] %v782
      %929 = vst [vmem:[%s240 + $0x128] sm:$0xff] %v785
      %930 = vst [vmem:[%s240 + $0x130] sm:$0xff] %v790
      %931 = vst [vmem:[%s240 + $0x138] sm:$0xff] %v793
      %932 = vst [vmem:[%s240 + $0x140] sm:$0xff] %v798
      %933 = vst [vmem:[%s240 + $0x148] sm:$0xff] %v801
      %934 = vst [vmem:[%s240 + $0x150] sm:$0xff] %v806
      %935 = vst [vmem:[%s240 + $0x158] sm:$0xff] %v809
      %936 = vst [vmem:[%s240 + $0x160] sm:$0xff] %v814
      %937 = vst [vmem:[%s240 + $0x168] sm:$0xff] %v817
      %938 = vst [vmem:[%s240 + $0x170] sm:$0xff] %v822
      %939 = vst [vmem:[%s240 + $0x178] sm:$0xff] %v825
      %940 = vst [vmem:[%s240 + $0x180] sm:$0xff] %v830
      %941 = vst [vmem:[%s240 + $0x188] sm:$0xff] %v833
      %942 = vst [vmem:[%s240 + $0x190] sm:$0xff] %v838
      %943 = vst [vmem:[%s240 + $0x198] sm:$0xff] %v841
      %944 = vst [vmem:[%s240 + $0x1a0] sm:$0xff] %v846
      %945 = vst [vmem:[%s240 + $0x1a8] sm:$0xff] %v849
      %946 = vst [vmem:[%s240 + $0x1b0] sm:$0xff] %v854
      %947 = vst [vmem:[%s240 + $0x1b8] sm:$0xff] %v857
      %948 = vst [vmem:[%s240 + $0x1c0] sm:$0xff] %v862
      %949 = vst [vmem:[%s240 + $0x1c8] sm:$0xff] %v865
      %950 = vst [vmem:[%s240 + $0x1d0] sm:$0xff] %v870
      %951 = vst [vmem:[%s240 + $0x1d8] sm:$0xff] %v873
      %952 = vst [vmem:[%s240 + $0x1e0] sm:$0xff] %v878
      %953 = vst [vmem:[%s240 + $0x1e8] sm:$0xff] %v881
      %954 = vst [vmem:[%s240 + $0x1f0] sm:$0xff] %v886
      %955 = vst [vmem:[%s240 + $0x1f8] sm:$0xff] %v889
      %v956 = vadd.f32 %v638, %v641
      %v957 = vadd.f32 %v956, %v646
      %v958 = vadd.f32 %v957, %v649
      %v959 = vadd.f32 %v958, %v654
      %v960 = vadd.f32 %v959, %v657
      %v961 = vadd.f32 %v960, %v662
      %v962 = vadd.f32 %v961, %v665
      %v963 = vadd.f32 %v962, %v670
      %v964 = vadd.f32 %v963, %v673
      %v965 = vadd.f32 %v964, %v678
      %v966 = vadd.f32 %v965, %v681
      %v967 = vadd.f32 %v966, %v686
      %v968 = vadd.f32 %v967, %v689
      %v969 = vadd.f32 %v968, %v694
      %v970 = vadd.f32 %v969, %v697
      %v971 = vadd.f32 %v970, %v702
      %v972 = vadd.f32 %v971, %v705
      %v973 = vadd.f32 %v972, %v710
      %v974 = vadd.f32 %v973, %v713
      %v975 = vadd.f32 %v974, %v718
      %v976 = vadd.f32 %v975, %v721
      %v977 = vadd.f32 %v976, %v726
      %v978 = vadd.f32 %v977, %v729
      %v979 = vadd.f32 %v978, %v734
      %v980 = vadd.f32 %v979, %v737
      %v981 = vadd.f32 %v980, %v742
      %v982 = vadd.f32 %v981, %v745
      %v983 = vadd.f32 %v982, %v750
      %v984 = vadd.f32 %v983, %v753
      %v985 = vadd.f32 %v984, %v758
      %v986 = vadd.f32 %v985, %v761
      %v987 = vadd.f32 %v986, %v766
      %v988 = vadd.f32 %v987, %v769
      %v989 = vadd.f32 %v988, %v774
      %v990 = vadd.f32 %v989, %v777
      %v991 = vadd.f32 %v990, %v782
      %v992 = vadd.f32 %v991, %v785
      %v993 = vadd.f32 %v992, %v790
      %v994 = vadd.f32 %v993, %v793
      %v995 = vadd.f32 %v994, %v798
      %v996 = vadd.f32 %v995, %v801
      %v997 = vadd.f32 %v996, %v806
      %v998 = vadd.f32 %v997, %v809
      %v999 = vadd.f32 %v998, %v814
      %v1000 = vadd.f32 %v999, %v817
      %v1001 = vadd.f32 %v1000, %v822
      %v1002 = vadd.f32 %v1001, %v825
      %v1003 = vadd.f32 %v1002, %v830
      %v1004 = vadd.f32 %v1003, %v833
      %v1005 = vadd.f32 %v1004, %v838
      %v1006 = vadd.f32 %v1005, %v841
      %v1007 = vadd.f32 %v1006, %v846
      %v1008 = vadd.f32 %v1007, %v849
      %v1009 = vadd.f32 %v1008, %v854
      %v1010 = vadd.f32 %v1009, %v857
      %v1011 = vadd.f32 %v1010, %v862
      %v1012 = vadd.f32 %v1011, %v865
      %v1013 = vadd.f32 %v1012, %v870
      %v1014 = vadd.f32 %v1013, %v873
      %v1015 = vadd.f32 %v1014, %v878
      %v1016 = vadd.f32 %v1015, %v881
      %v1017 = vadd.f32 %v1016, %v886
      %v1018 = vadd.f32 %v1017, %v889
      %v1019 = vrot.slane %v1018, 4
      %v1020 = vadd.f32 %v1018, %v1019
      %v1021 = vrot.slane %v1020, 2
      %v1022 = vadd.f32 %v1020, %v1021
      %v1023 = vrot.slane %v1022, 1
      %v1024 = vadd.f32 %v1022, %v1023
      %v1025 = vmul.f32 %v638, %v638
      %v1026 = vmul.f32 %v641, %v641
      %v1027 = vmul.f32 %v646, %v646
      %v1028 = vmul.f32 %v649, %v649
      %v1029 = vmul.f32 %v654, %v654
      %v1030 = vmul.f32 %v657, %v657
      %v1031 = vmul.f32 %v662, %v662
      %v1032 = vmul.f32 %v665, %v665
      %v1033 = vmul.f32 %v670, %v670
      %v1034 = vmul.f32 %v673, %v673
      %v1035 = vmul.f32 %v678, %v678
      %v1036 = vmul.f32 %v681, %v681
      %v1037 = vmul.f32 %v686, %v686
      %v1038 = vmul.f32 %v689, %v689
      %v1039 = vmul.f32 %v694, %v694
      %v1040 = vmul.f32 %v697, %v697
      %v1041 = vmul.f32 %v702, %v702
      %v1042 = vmul.f32 %v705, %v705
      %v1043 = vmul.f32 %v710, %v710
      %v1044 = vmul.f32 %v713, %v713
      %v1045 = vmul.f32 %v718, %v718
      %v1046 = vmul.f32 %v721, %v721
      %v1047 = vmul.f32 %v726, %v726
      %v1048 = vmul.f32 %v729, %v729
      %v1049 = vmul.f32 %v734, %v734
      %v1050 = vmul.f32 %v737, %v737
      %v1051 = vmul.f32 %v742, %v742
      %v1052 = vmul.f32 %v745, %v745
      %v1053 = vmul.f32 %v750, %v750
      %v1054 = vmul.f32 %v753, %v753
      %v1055 = vmul.f32 %v758, %v758
      %v1056 = vmul.f32 %v761, %v761
      %v1057 = vmul.f32 %v766, %v766
      %v1058 = vmul.f32 %v769, %v769
      %v1059 = vmul.f32 %v774, %v774
      %v1060 = vmul.f32 %v777, %v777
      %v1061 = vmul.f32 %v782, %v782
      %v1062 = vmul.f32 %v785, %v785
      %v1063 = vmul.f32 %v790, %v790
      %v1064 = vmul.f32 %v793, %v793
      %v1065 = vmul.f32 %v798, %v798
      %v1066 = vmul.f32 %v801, %v801
      %v1067 = vmul.f32 %v806, %v806
      %v1068 = vmul.f32 %v809, %v809
      %v1069 = vmul.f32 %v814, %v814
      %v1070 = vmul.f32 %v817, %v817
      %v1071 = vmul.f32 %v822, %v822
      %v1072 = vmul.f32 %v825, %v825
      %v1073 = vmul.f32 %v830, %v830
      %v1074 = vmul.f32 %v833, %v833
      %v1075 = vmul.f32 %v838, %v838
      %v1076 = vmul.f32 %v841, %v841
      %v1077 = vmul.f32 %v846, %v846
      %v1078 = vmul.f32 %v849, %v849
      %v1079 = vmul.f32 %v854, %v854
      %v1080 = vmul.f32 %v857, %v857
      %v1081 = vmul.f32 %v862, %v862
      %v1082 = vmul.f32 %v865, %v865
      %v1083 = vmul.f32 %v870, %v870
      %v1084 = vmul.f32 %v873, %v873
      %v1085 = vmul.f32 %v878, %v878
      %v1086 = vmul.f32 %v881, %v881
      %v1087 = vmul.f32 %v886, %v886
      %v1088 = vmul.f32 %v889, %v889
      %v1089 = vadd.f32 %v1025, %v1026
      %v1090 = vadd.f32 %v1089, %v1027
      %v1091 = vadd.f32 %v1090, %v1028
      %v1092 = vadd.f32 %v1091, %v1029
      %v1093 = vadd.f32 %v1092, %v1030
      %v1094 = vadd.f32 %v1093, %v1031
      %v1095 = vadd.f32 %v1094, %v1032
      %v1096 = vadd.f32 %v1095, %v1033
      %v1097 = vadd.f32 %v1096, %v1034
      %v1098 = vadd.f32 %v1097, %v1035
      %v1099 = vadd.f32 %v1098, %v1036
      %v1100 = vadd.f32 %v1099, %v1037
      %v1101 = vadd.f32 %v1100, %v1038
      %v1102 = vadd.f32 %v1101, %v1039
      %v1103 = vadd.f32 %v1102, %v1040
      %v1104 = vadd.f32 %v1103, %v1041
      %v1105 = vadd.f32 %v1104, %v1042
      %v1106 = vadd.f32 %v1105, %v1043
      %v1107 = vadd.f32 %v1106, %v1044
      %v1108 = vadd.f32 %v1107, %v1045
      %v1109 = vadd.f32 %v1108, %v1046
      %v1110 = vadd.f32 %v1109, %v1047
      %v1111 = vadd.f32 %v1110, %v1048
      %v1112 = vadd.f32 %v1111, %v1049
      %v1113 = vadd.f32 %v1112, %v1050
      %v1114 = vadd.f32 %v1113, %v1051
      %v1115 = vadd.f32 %v1114, %v1052
      %v1116 = vadd.f32 %v1115, %v1053
      %v1117 = vadd.f32 %v1116, %v1054
      %v1118 = vadd.f32 %v1117, %v1055
      %v1119 = vadd.f32 %v1118, %v1056
      %v1120 = vadd.f32 %v1119, %v1057
      %v1121 = vadd.f32 %v1120, %v1058
      %v1122 = vadd.f32 %v1121, %v1059
      %v1123 = vadd.f32 %v1122, %v1060
      %v1124 = vadd.f32 %v1123, %v1061
      %v1125 = vadd.f32 %v1124, %v1062
      %v1126 = vadd.f32 %v1125, %v1063
      %v1127 = vadd.f32 %v1126, %v1064
      %v1128 = vadd.f32 %v1127, %v1065
      %v1129 = vadd.f32 %v1128, %v1066
      %v1130 = vadd.f32 %v1129, %v1067
      %v1131 = vadd.f32 %v1130, %v1068
      %v1132 = vadd.f32 %v1131, %v1069
      %v1133 = vadd.f32 %v1132, %v1070
      %v1134 = vadd.f32 %v1133, %v1071
      %v1135 = vadd.f32 %v1134, %v1072
      %v1136 = vadd.f32 %v1135, %v1073
      %v1137 = vadd.f32 %v1136, %v1074
      %v1138 = vadd.f32 %v1137, %v1075
      %v1139 = vadd.f32 %v1138, %v1076
      %v1140 = vadd.f32 %v1139, %v1077
      %v1141 = vadd.f32 %v1140, %v1078
      %v1142 = vadd.f32 %v1141, %v1079
      %v1143 = vadd.f32 %v1142, %v1080
      %v1144 = vadd.f32 %v1143, %v1081
      %v1145 = vadd.f32 %v1144, %v1082
      %v1146 = vadd.f32 %v1145, %v1083
      %v1147 = vadd.f32 %v1146, %v1084
      %v1148 = vadd.f32 %v1147, %v1085
      %v1149 = vadd.f32 %v1148, %v1086
      %v1150 = vadd.f32 %v1149, %v1087
      %v1151 = vadd.f32 %v1150, %v1088
      %v1152 = vrot.slane %v1151, 4
      %v1153 = vadd.f32 %v1151, %v1152
      %v1154 = vrot.slane %v1153, 2
      %v1155 = vadd.f32 %v1153, %v1154
      %v1156 = vrot.slane %v1155, 1
      %v1157 = vadd.f32 %v1155, %v1156
      %vm1158 = vcmask 1040384
      %v1159 = vsel %vm1158, %v1024, %v1157
      %1160 = vst [vmem:[%s248] sm:$0x3] %v1159
      %s1161 = smul.u32 64, %s20
      %p1162 = scmp.lt.s32.totalorder %s19, 3
      %s1163 = scalar_select %p1162, %s19, 3
      %p1164 = scmp.lt.s32.totalorder %s1161, 63
      %s1165 = scalar_select %p1164, %s1161, 63
      %s1166 = smul.addr %s1163, 64
      %s1167 = sadd.s32 %s1165, %s1166
      %s1168 = smul.addr %s1167, 8
      %s1169 = scalar_lea.vmem %s2, %s1168
      %p1170 = scmp.lt.s32.totalorder %s19, 3
      %s1171 = scalar_select %p1170, %s19, 3
      %p1172 = scmp.lt.s32.totalorder %s20, 0
      %s1173 = scalar_select %p1172, %s20, 0
      %s1174 = sadd.s32 %s1173, %s1171
      %s1175 = smul.addr %s1174, 2
      %s1176 = scalar_lea.vmem %s3, %s1175
      // Predicated region
      $region29: #{generator_forward.15} parent=27 // pred_check
        %p1177 = pneg %p101
      $region30: #{generator_forward.15} parent=27 // pred_check_branch
        %1179 = sbr.rel (%p1177) target = $region32
      $region31: #{generator_forward.15} parent=27 // pred_region
        %s1180 = smul.u32 64, %s20
      $region32: #{generator_forward.15} parent=27 // pred_fallthru
        _
      // Predicated region
      $region33: #{generator_forward.15} parent=27 // pred_check
        %p1181 = pneg %p129
      $region34: #{generator_forward.15} parent=27 // pred_check_branch
        %1183 = sbr.rel (%p1181) target = $region36
      $region35: #{generator_forward.15} parent=27 // pred_region
        _
      $region36: #{generator_forward.15} parent=27 // pred_fallthru
        _
    $region28: #{generator_forward.15} parent=5 // pred_fallthru
      _
    %p1184 = scmp.le.s32.totalorder 2, %s10
    // Predicated region
    $region37: #{generator_forward.15} parent=5 // pred_check
      %p1185 = pneg %p1184
    $region38: #{generator_forward.15} parent=5 // pred_check_branch
      %1187 = sbr.rel (%p1185) target = $region40
    $region39: #{generator_forward.15} parent=5 // pred_region
      %s1188 = ssub.s32 %s10, 2
      // Predicated region
      $region41: #{generator_forward.15} parent=39 // pred_check
        %p1189 = pneg %p107
      $region42: #{generator_forward.15} parent=39 // pred_check_branch
        %1191 = sbr.rel (%p1189) target = $region44
      $region43: #{generator_forward.15} parent=39 // pred_region
        %s1192 = smul.u32 64, %s22
        %p1193 = scmp.lt.s32.totalorder %s21, 3
        %s1194 = scalar_select %p1193, %s21, 3
        %p1195 = scmp.lt.s32.totalorder %s1192, 63
        %s1196 = scalar_select %p1195, %s1192, 63
        %s1197 = smul.addr %s1194, 64
        %s1198 = sadd.s32 %s1196, %s1197
        %s1199 = smul.addr %s1198, 8
        %s1200 = scalar_lea.vmem %s2, %s1199
      $region44: #{generator_forward.15} parent=39 // pred_fallthru
        _
      // Predicated region
      $region45: #{generator_forward.15} parent=39 // pred_check
        %p1201 = pneg %p135
      $region46: #{generator_forward.15} parent=39 // pred_check_branch
        %1203 = sbr.rel (%p1201) target = $region48
      $region47: #{generator_forward.15} parent=39 // pred_region
        %p1204 = scmp.lt.s32.totalorder %s21, 3
        %s1205 = scalar_select %p1204, %s21, 3
        %p1206 = scmp.lt.s32.totalorder %s22, 0
        %s1207 = scalar_select %p1206, %s22, 0
        %s1208 = sadd.s32 %s1207, %s1205
        %s1209 = smul.addr %s1208, 2
        %s1210 = scalar_lea.vmem %s3, %s1209
      $region48: #{generator_forward.15} parent=39 // pred_fallthru
        _
    $region40: #{generator_forward.15} parent=5 // pred_fallthru
      _
  $region6: #{generator_forward.15} parent=0 // loop_footer
    %s14 = sadd.s32 1, %s10
  $region7: #{generator_forward.15} parent=0 // loop_footer_branch
    %9 = sbr.rel target = $region3
  $region8: #{generator_forward.15} parent=0 // loop_exit
    _

// kernel: generator_forward.17
$region0: #{generator_forward.17}
  #allocation0 [shape = 'u32[]', space=smem, size = 0x4, offset = 0x4, fixed_abs, tag = 'smem constant byte address 0x4 - core index']
  #allocation1 [shape = 'u32[144,128]{1,0:T(1,128)}', space=vmem, size = 0x12000, scoped, tag = 'internal scratch']
  %s0 = inlined_call_operand.vmem [shape: bf16[4,2048,32], index: 0, kind: input, shape index: {}]
  %s1 = inlined_call_operand.vmem [shape: bf16[4,32,128], index: 1, kind: input, shape index: {}]
  %s2 = inlined_call_operand.vmem [shape: f32[1,128], index: 2, kind: input, shape index: {}]
  %s3 = inlined_call_operand.vmem [shape: f32[4,2048,128], index: 3, kind: output, shape index: {}]
  %s4 = sld [smem:[#allocation0]]
  $region45: #{generator_forward.17} parent=0
    _
  %s6 = ssub.s32 1, %s4
  %s7 = scalar_select 0, %s6, %s4
  loop: start=0, step=1, limit=10
  $region2: #{generator_forward.17} parent=0 // loop_pre_header
    _
  $region3: #{generator_forward.17} parent=0 // loop_header
    %s9 = sphi 0, %s13
    %p10 = scmp.ge.s32.totalorder %s9, 10
    %s16 = sphi 0, %s28
    %s17 = sphi 0, %s24
    %s18 = sphi 0, %s16
    %s19 = sphi 0, %s17
    %s20 = sphi 0, %s18
    %s21 = sphi 0, %s19
    %s33 = sphi 0, %s35
    %s36 = sphi 0, %s33
    %s37 = sphi 0, %s36
    %s53 = sphi 0, %s37
    %s59 = sphi 0, %s61
    %s62 = sphi 0, %s59
    %s63 = sphi 0, %s62
    %s79 = sphi 0, %s63
    %s83 = sphi 0, %s83
    %s85 = sphi 0, %s83
    %s86 = sphi 0, %s85
    %s100 = sphi 0, %s86
    %s108 = sphi 0, %s110
    %s111 = sphi 0, %s108
    %s112 = sphi 0, %s111
    %s128 = sphi 0, %s112
  $region4: #{generator_forward.17} parent=0 // loop_header_branch
    %12 = sbr.rel (%p10) target = $region8
  $region5: #{generator_forward.17} parent=0 // loop_body
    %s14 = ssub.s32 %s9, 1
    %s15 = ssub.s32 %s9, 2
    %s22 = sadd.s32 1, %s17
    %p23 = scmp.ge.s32.totalorder %s22, 2
    %s24 = scalar_select %p23, 0, %s22
    %s25 = sadd.s32 1, %s16
    %s26 = scalar_select %p23, %s25, %s16
    %p27 = scmp.ge.s32.totalorder %s26, 4
    %s28 = scalar_select %p27, 0, %s26
    %s29 = ssub.s32 %s16, %s28
    %s30 = ssub.s32 %s17, %s24
    %s31 = sor.u32 %s29, %s30
    %p32 = scmp.eq.s32.totalorder %s31, 0
    %s34 = sadd.s32 %s33, 1
    %s35 = scalar_select %p32, %s33, %s34
    %p38 = pneg %p32
    %p39 = scmp.eq.s32.totalorder %s9, 7
    %p40 = por %p38, %p39
    %p41 = scmp.ne.s32.totalorder %s33, %s36
    %p42 = scmp.eq.s32.totalorder %s9, 0
    %p43 = por %p41, %p42
    %p44 = scmp.ne.s32.totalorder %s33, %s36
    %p45 = scmp.eq.s32.totalorder %s14, 7
    %p46 = por %p44, %p45
    %p47 = scmp.ne.s32.totalorder %s36, %s37
    %p48 = scmp.eq.s32.totalorder %s14, 0
    %p49 = por %p47, %p48
    %p50 = scmp.ne.s32.totalorder %s36, %s37
    %p51 = scmp.eq.s32.totalorder %s15, 7
    %p52 = por %p50, %p51
    %p54 = scmp.ne.s32.totalorder %s37, %s53
    %p55 = scmp.eq.s32.totalorder %s15, 0
    %p56 = por %p54, %p55
    %s57 = ssub.s32 %s16, %s28
    %p58 = scmp.eq.s32.totalorder %s57, 0
    %s60 = sadd.s32 %s59, 1
    %s61 = scalar_select %p58, %s59, %s60
    %p64 = pneg %p58
    %p65 = scmp.eq.s32.totalorder %s9, 7
    %p66 = por %p64, %p65
    %p67 = scmp.ne.s32.totalorder %s59, %s62
    %p68 = scmp.eq.s32.totalorder %s9, 0
    %p69 = por %p67, %p68
    %p70 = scmp.ne.s32.totalorder %s59, %s62
    %p71 = scmp.eq.s32.totalorder %s14, 7
    %p72 = por %p70, %p71
    %p73 = scmp.ne.s32.totalorder %s62, %s63
    %p74 = scmp.eq.s32.totalorder %s14, 0
    %p75 = por %p73, %p74
    %p76 = scmp.ne.s32.totalorder %s62, %s63
    %p77 = scmp.eq.s32.totalorder %s15, 7
    %p78 = por %p76, %p77
    %p80 = scmp.ne.s32.totalorder %s63, %s79
    %p81 = scmp.eq.s32.totalorder %s15, 0
    %p82 = por %p80, %p81
    %s84 = sadd.s32 %s83, 1
    %p87 = scmp.eq.s32.totalorder %s9, 7
    %p88 = scmp.ne.s32.totalorder %s83, %s85
    %p89 = scmp.eq.s32.totalorder %s9, 0
    %p90 = por %p88, %p89
    %p91 = scmp.ne.s32.totalorder %s83, %s85
    %p92 = scmp.eq.s32.totalorder %s14, 7
    %p93 = por %p91, %p92
    %p94 = scmp.ne.s32.totalorder %s85, %s86
    %p95 = scmp.eq.s32.totalorder %s14, 0
    %p96 = por %p94, %p95
    %p97 = scmp.ne.s32.totalorder %s85, %s86
    %p98 = scmp.eq.s32.totalorder %s15, 7
    %p99 = por %p97, %p98
    %p101 = scmp.ne.s32.totalorder %s86, %s100
    %p102 = scmp.eq.s32.totalorder %s15, 0
    %p103 = por %p101, %p102
    %s104 = ssub.s32 %s16, %s28
    %s105 = ssub.s32 %s17, %s24
    %s106 = sor.u32 %s104, %s105
    %p107 = scmp.eq.s32.totalorder %s106, 0
    %s109 = sadd.s32 %s108, 1
    %s110 = scalar_select %p107, %s108, %s109
    %p113 = pneg %p107
    %p114 = scmp.eq.s32.totalorder %s9, 7
    %p115 = por %p113, %p114
    %p116 = scmp.ne.s32.totalorder %s108, %s111
    %p117 = scmp.eq.s32.totalorder %s9, 0
    %p118 = por %p116, %p117
    %p119 = scmp.ne.s32.totalorder %s108, %s111
    %p120 = scmp.eq.s32.totalorder %s14, 7
    %p121 = por %p119, %p120
    %p122 = scmp.ne.s32.totalorder %s111, %s112
    %p123 = scmp.eq.s32.totalorder %s14, 0
    %p124 = por %p122, %p123
    %p125 = scmp.ne.s32.totalorder %s111, %s112
    %p126 = scmp.eq.s32.totalorder %s15, 7
    %p127 = por %p125, %p126
    %p129 = scmp.ne.s32.totalorder %s112, %s128
    %p130 = scmp.eq.s32.totalorder %s15, 0
    %p131 = por %p129, %p130
    %p132 = scmp.le.s32.totalorder 1, %s9
    %p133 = scmp.lt.s32.totalorder %s9, 9
    %p134 = pnand %p132, %p133
    %p135 = pneg %p134
    // Predicated region
    $region9: #{generator_forward.17} parent=5 // pred_check
      _
    $region10: #{generator_forward.17} parent=5 // pred_check_branch
      %137 = sbr.rel (%p134) target = $region12
    $region11: #{generator_forward.17} parent=5 // pred_region
      %s138 = ssub.s32 %s9, 1
      // Predicated region
      $region13: #{generator_forward.17} parent=11 // pred_check
        %p139 = pneg %p96
      $region14: #{generator_forward.17} parent=11 // pred_check_branch
        %141 = sbr.rel (%p139) target = $region16
      $region15: #{generator_forward.17} parent=11 // pred_region
        _
      $region16: #{generator_forward.17} parent=11 // pred_fallthru
        _
    $region12: #{generator_forward.17} parent=5 // pred_fallthru
      _
    %p142 = scmp.lt.s32.totalorder %s9, 8
    // Predicated region
    $region17: #{generator_forward.17} parent=5 // pred_check
      %p143 = pneg %p142
    $region18: #{generator_forward.17} parent=5 // pred_check_branch
      %145 = sbr.rel (%p143) target = $region20
    $region19: #{generator_forward.17} parent=5 // pred_region
      // Predicated region
      $region21: #{generator_forward.17} parent=19 // pred_check
        %p146 = pneg %p43
      $region22: #{generator_forward.17} parent=19 // pred_check_branch
        %148 = sbr.rel (%p146) target = $region24
      $region23: #{generator_forward.17} parent=19 // pred_region
        %s149 = smul.u32 128, %s17
        %p150 = scmp.lt.s32.totalorder %s16, 3
        %s151 = scalar_select %p150, %s16, 3
        %p152 = scmp.lt.s32.totalorder %s149, 255
        %s153 = scalar_select %p152, %s149, 255
        %s154 = smul.addr %s151, 256
        %s155 = sadd.s32 %s153, %s154
        %s156 = smul.addr %s155, 4
        %s157 = scalar_lea.vmem %s0, %s156
        %s158 = smul.u32 128, %s17
      $region24: #{generator_forward.17} parent=19 // pred_fallthru
        _
      // Predicated region
      $region25: #{generator_forward.17} parent=19 // pred_check
        %p159 = pneg %p69
      $region26: #{generator_forward.17} parent=19 // pred_check_branch
        %161 = sbr.rel (%p159) target = $region28
      $region27: #{generator_forward.17} parent=19 // pred_region
        %p162 = scmp.lt.s32.totalorder %s16, 3
        %s163 = scalar_select %p162, %s16, 3
        %s164 = smul.addr %s163, 4
        %s165 = smul.addr %s164, 4
        %s166 = scalar_lea.vmem %s1, %s165
      $region28: #{generator_forward.17} parent=19 // pred_fallthru
        _
    $region20: #{generator_forward.17} parent=5 // pred_fallthru
      _
    %p167 = scmp.le.s32.totalorder 1, %s9
    %p168 = scmp.lt.s32.totalorder %s9, 9
    %p169 = pnand %p167, %p168
    %p170 = pneg %p169
    // Predicated region
    $region29: #{generator_forward.17} parent=5 // pred_check
      _
    $region30: #{generator_forward.17} parent=5 // pred_check_branch
      %172 = sbr.rel (%p169) target = $region32
    $region31: #{generator_forward.17} parent=5 // pred_region
      %s173 = ssub.s32 %s9, 1
      %s174 = smul.u32 128, %s19
      %p175 = scmp.lt.s32.totalorder %s18, 3
      %s176 = scalar_select %p175, %s18, 3
      %p177 = scmp.lt.s32.totalorder %s174, 255
      %s178 = scalar_select %p177, %s174, 255
      %s179 = smul.addr %s176, 256
      %s180 = sadd.s32 %s178, %s179
      %s181 = smul.addr %s180, 4
      %s182 = scalar_lea.vmem %s0, %s181
      %p183 = pneg %p49
      %p184 = pneg %p46
      %p185 = scmp.lt.s32.totalorder %s18, 3
      %s186 = scalar_select %p185, %s18, 3
      %s187 = smul.addr %s186, 4
      %s188 = smul.addr %s187, 4
      %s189 = scalar_lea.vmem %s1, %s188
      %p190 = pneg %p75
      %p191 = pneg %p72
      %p192 = pneg %p96
      %p193 = pneg %p93
      %p194 = pneg %p124
      %p195 = pneg %p121
      %s196 = smul.u32 128, %s19
      %p197 = scmp.lt.s32.totalorder %s18, 3
      %s198 = scalar_select %p197, %s18, 3
      %p199 = scmp.lt.s32.totalorder %s196, 255
      %s200 = scalar_select %p199, %s196, 255
      %s201 = smul.addr %s198, 256
      %s202 = sadd.s32 %s200, %s201
      %s203 = smul.addr %s202, 8
      %s204 = scalar_lea.vmem %s3, %s203
      %s205 = smul.u32 128, %s19
      %p206 = scmp.lt.s32.totalorder %s18, 3
      %s207 = scalar_select %p206, %s18, 3
      %p208 = scmp.lt.s32.totalorder %s205, 255
      %s209 = scalar_select %p208, %s205, 255
      %s210 = smul.addr %s207, 256
      %s211 = sadd.s32 %s209, %s210
      %s212 = smul.addr %s211, 4
      %s213 = scalar_lea.vmem %s0, %s212
      %s214 = smul.u32 128, %s19
      %p215 = scmp.lt.s32.totalorder %s18, 3
      %s216 = scalar_select %p215, %s18, 3
      %s217 = smul.addr %s216, 4
      %s218 = smul.addr %s217, 4
      %s219 = scalar_lea.vmem %s1, %s218
      %s220 = smul.u32 128, %s19
      %p221 = scmp.lt.s32.totalorder %s18, 3
      %s222 = scalar_select %p221, %s18, 3
      %p223 = scmp.lt.s32.totalorder %s220, 255
      %s224 = scalar_select %p223, %s220, 255
      %s225 = smul.addr %s222, 256
      %s226 = sadd.s32 %s224, %s225
      %s227 = smul.addr %s226, 8
      %s228 = scalar_lea.vmem %s3, %s227
      %s229 = smul.u32 128, %s19
      %v231 = vld [vmem:[%s213] sm:$0xf]
      %v232 = vld [vmem:[%s213 + $0x4] sm:$0xf]
      %v233 = vld [vmem:[%s213 + $0x8] sm:$0xf]
      %v234 = vld [vmem:[%s213 + $0xc] sm:$0xf]
      %v235 = vld [vmem:[%s213 + $0x10] sm:$0xf]
      %v236 = vld [vmem:[%s213 + $0x14] sm:$0xf]
      %v237 = vld [vmem:[%s213 + $0x18] sm:$0xf]
      %v238 = vld [vmem:[%s213 + $0x1c] sm:$0xf]
      %v239 = vld [vmem:[%s213 + $0x20] sm:$0xf]
      %v240 = vld [vmem:[%s213 + $0x24] sm:$0xf]
      %v241 = vld [vmem:[%s213 + $0x28] sm:$0xf]
      %v242 = vld [vmem:[%s213 + $0x2c] sm:$0xf]
      %v243 = vld [vmem:[%s213 + $0x30] sm:$0xf]
      %v244 = vld [vmem:[%s213 + $0x34] sm:$0xf]
      %v245 = vld [vmem:[%s213 + $0x38] sm:$0xf]
      %v246 = vld [vmem:[%s213 + $0x3c] sm:$0xf]
      %v247 = vld [vmem:[%s213 + $0x40] sm:$0xf]
      %v248 = vld [vmem:[%s213 + $0x44] sm:$0xf]
      %v249 = vld [vmem:[%s213 + $0x48] sm:$0xf]
      %v250 = vld [vmem:[%s213 + $0x4c] sm:$0xf]
      %v251 = vld [vmem:[%s213 + $0x50] sm:$0xf]
      %v252 = vld [vmem:[%s213 + $0x54] sm:$0xf]
      %v253 = vld [vmem:[%s213 + $0x58] sm:$0xf]
      %v254 = vld [vmem:[%s213 + $0x5c] sm:$0xf]
      %v255 = vld [vmem:[%s213 + $0x60] sm:$0xf]
      %v256 = vld [vmem:[%s213 + $0x64] sm:$0xf]
      %v257 = vld [vmem:[%s213 + $0x68] sm:$0xf]
      %v258 = vld [vmem:[%s213 + $0x6c] sm:$0xf]
      %v259 = vld [vmem:[%s213 + $0x70] sm:$0xf]
      %v260 = vld [vmem:[%s213 + $0x74] sm:$0xf]
      %v261 = vld [vmem:[%s213 + $0x78] sm:$0xf]
      %v262 = vld [vmem:[%s213 + $0x7c] sm:$0xf]
      %v263 = vld [vmem:[%s213 + $0x80] sm:$0xf]
      %v264 = vld [vmem:[%s213 + $0x84] sm:$0xf]
      %v265 = vld [vmem:[%s213 + $0x88] sm:$0xf]
      %v266 = vld [vmem:[%s213 + $0x8c] sm:$0xf]
      %v267 = vld [vmem:[%s213 + $0x90] sm:$0xf]
      %v268 = vld [vmem:[%s213 + $0x94] sm:$0xf]
      %v269 = vld [vmem:[%s213 + $0x98] sm:$0xf]
      %v270 = vld [vmem:[%s213 + $0x9c] sm:$0xf]
      %v271 = vld [vmem:[%s213 + $0xa0] sm:$0xf]
      %v272 = vld [vmem:[%s213 + $0xa4] sm:$0xf]
      %v273 = vld [vmem:[%s213 + $0xa8] sm:$0xf]
      %v274 = vld [vmem:[%s213 + $0xac] sm:$0xf]
      %v275 = vld [vmem:[%s213 + $0xb0] sm:$0xf]
      %v276 = vld [vmem:[%s213 + $0xb4] sm:$0xf]
      %v277 = vld [vmem:[%s213 + $0xb8] sm:$0xf]
      %v278 = vld [vmem:[%s213 + $0xbc] sm:$0xf]
      %v279 = vld [vmem:[%s213 + $0xc0] sm:$0xf]
      %v280 = vld [vmem:[%s213 + $0xc4] sm:$0xf]
      %v281 = vld [vmem:[%s213 + $0xc8] sm:$0xf]
      %v282 = vld [vmem:[%s213 + $0xcc] sm:$0xf]
      %v283 = vld [vmem:[%s213 + $0xd0] sm:$0xf]
      %v284 = vld [vmem:[%s213 + $0xd4] sm:$0xf]
      %v285 = vld [vmem:[%s213 + $0xd8] sm:$0xf]
      %v286 = vld [vmem:[%s213 + $0xdc] sm:$0xf]
      %v287 = vld [vmem:[%s213 + $0xe0] sm:$0xf]
      %v288 = vld [vmem:[%s213 + $0xe4] sm:$0xf]
      %v289 = vld [vmem:[%s213 + $0xe8] sm:$0xf]
      %v290 = vld [vmem:[%s213 + $0xec] sm:$0xf]
      %v291 = vld [vmem:[%s213 + $0xf0] sm:$0xf]
      %v292 = vld [vmem:[%s213 + $0xf4] sm:$0xf]
      %v293 = vld [vmem:[%s213 + $0xf8] sm:$0xf]
      %v294 = vld [vmem:[%s213 + $0xfc] sm:$0xf]
      %v295 = vld [vmem:[%s213 + $0x100] sm:$0xf]
      %v296 = vld [vmem:[%s213 + $0x104] sm:$0xf]
      %v297 = vld [vmem:[%s213 + $0x108] sm:$0xf]
      %v298 = vld [vmem:[%s213 + $0x10c] sm:$0xf]
      %v299 = vld [vmem:[%s213 + $0x110] sm:$0xf]
      %v300 = vld [vmem:[%s213 + $0x114] sm:$0xf]
      %v301 = vld [vmem:[%s213 + $0x118] sm:$0xf]
      %v302 = vld [vmem:[%s213 + $0x11c] sm:$0xf]
      %v303 = vld [vmem:[%s213 + $0x120] sm:$0xf]
      %v304 = vld [vmem:[%s213 + $0x124] sm:$0xf]
      %v305 = vld [vmem:[%s213 + $0x128] sm:$0xf]
      %v306 = vld [vmem:[%s213 + $0x12c] sm:$0xf]
      %v307 = vld [vmem:[%s213 + $0x130] sm:$0xf]
      %v308 = vld [vmem:[%s213 + $0x134] sm:$0xf]
      %v309 = vld [vmem:[%s213 + $0x138] sm:$0xf]
      %v310 = vld [vmem:[%s213 + $0x13c] sm:$0xf]
      %v311 = vld [vmem:[%s213 + $0x140] sm:$0xf]
      %v312 = vld [vmem:[%s213 + $0x144] sm:$0xf]
      %v313 = vld [vmem:[%s213 + $0x148] sm:$0xf]
      %v314 = vld [vmem:[%s213 + $0x14c] sm:$0xf]
      %v315 = vld [vmem:[%s213 + $0x150] sm:$0xf]
      %v316 = vld [vmem:[%s213 + $0x154] sm:$0xf]
      %v317 = vld [vmem:[%s213 + $0x158] sm:$0xf]
      %v318 = vld [vmem:[%s213 + $0x15c] sm:$0xf]
      %v319 = vld [vmem:[%s213 + $0x160] sm:$0xf]
      %v320 = vld [vmem:[%s213 + $0x164] sm:$0xf]
      %v321 = vld [vmem:[%s213 + $0x168] sm:$0xf]
      %v322 = vld [vmem:[%s213 + $0x16c] sm:$0xf]
      %v323 = vld [vmem:[%s213 + $0x170] sm:$0xf]
      %v324 = vld [vmem:[%s213 + $0x174] sm:$0xf]
      %v325 = vld [vmem:[%s213 + $0x178] sm:$0xf]
      %v326 = vld [vmem:[%s213 + $0x17c] sm:$0xf]
      %v327 = vld [vmem:[%s213 + $0x180] sm:$0xf]
      %v328 = vld [vmem:[%s213 + $0x184] sm:$0xf]
      %v329 = vld [vmem:[%s213 + $0x188] sm:$0xf]
      %v330 = vld [vmem:[%s213 + $0x18c] sm:$0xf]
      %v331 = vld [vmem:[%s213 + $0x190] sm:$0xf]
      %v332 = vld [vmem:[%s213 + $0x194] sm:$0xf]
      %v333 = vld [vmem:[%s213 + $0x198] sm:$0xf]
      %v334 = vld [vmem:[%s213 + $0x19c] sm:$0xf]
      %v335 = vld [vmem:[%s213 + $0x1a0] sm:$0xf]
      %v336 = vld [vmem:[%s213 + $0x1a4] sm:$0xf]
      %v337 = vld [vmem:[%s213 + $0x1a8] sm:$0xf]
      %v338 = vld [vmem:[%s213 + $0x1ac] sm:$0xf]
      %v339 = vld [vmem:[%s213 + $0x1b0] sm:$0xf]
      %v340 = vld [vmem:[%s213 + $0x1b4] sm:$0xf]
      %v341 = vld [vmem:[%s213 + $0x1b8] sm:$0xf]
      %v342 = vld [vmem:[%s213 + $0x1bc] sm:$0xf]
      %v343 = vld [vmem:[%s213 + $0x1c0] sm:$0xf]
      %v344 = vld [vmem:[%s213 + $0x1c4] sm:$0xf]
      %v345 = vld [vmem:[%s213 + $0x1c8] sm:$0xf]
      %v346 = vld [vmem:[%s213 + $0x1cc] sm:$0xf]
      %v347 = vld [vmem:[%s213 + $0x1d0] sm:$0xf]
      %v348 = vld [vmem:[%s213 + $0x1d4] sm:$0xf]
      %v349 = vld [vmem:[%s213 + $0x1d8] sm:$0xf]
      %v350 = vld [vmem:[%s213 + $0x1dc] sm:$0xf]
      %v351 = vld [vmem:[%s213 + $0x1e0] sm:$0xf]
      %v352 = vld [vmem:[%s213 + $0x1e4] sm:$0xf]
      %v353 = vld [vmem:[%s213 + $0x1e8] sm:$0xf]
      %v354 = vld [vmem:[%s213 + $0x1ec] sm:$0xf]
      %v355 = vld [vmem:[%s213 + $0x1f0] sm:$0xf]
      %v356 = vld [vmem:[%s213 + $0x1f4] sm:$0xf]
      %v357 = vld [vmem:[%s213 + $0x1f8] sm:$0xf]
      %v358 = vld [vmem:[%s213 + $0x1fc] sm:$0xf]
      %v359 = vld [vmem:[%s219] sm:$0xf]
      %v360 = vld [vmem:[%s219 + $0x4] sm:$0xf]
      %v361 = vld [vmem:[%s219 + $0x8] sm:$0xf]
      %v362 = vld [vmem:[%s219 + $0xc] sm:$0xf]
      %v363 = vld [vmem:[%s2] sm:$0x1]
      %v365 = vlaneseq
      %v366 = vshrl.u32 %v365, 7
      %v367 = vsub.s32 0, %v366
      %v368 = vrot.slane %v363, %v367
      %v498 = vunpack.c.l.b16 %v231
      %v499 = vunpack.c.l.b16 %v232
      %v500 = vunpack.c.l.b16 %v233
      %v501 = vunpack.c.l.b16 %v234
      %v502 = vunpack.c.l.b16 %v235
      %v503 = vunpack.c.l.b16 %v236
      %v504 = vunpack.c.l.b16 %v237
      %v505 = vunpack.c.l.b16 %v238
      %v506 = vunpack.c.l.b16 %v239
      %v507 = vunpack.c.l.b16 %v240
      %v508 = vunpack.c.l.b16 %v241
      %v509 = vunpack.c.l.b16 %v242
      %v510 = vunpack.c.l.b16 %v243
      %v511 = vunpack.c.l.b16 %v244
      %v512 = vunpack.c.l.b16 %v245
      %v513 = vunpack.c.l.b16 %v246
      %v514 = vunpack.c.l.b16 %v247
      %v515 = vunpack.c.l.b16 %v248
      %v516 = vunpack.c.l.b16 %v249
      %v517 = vunpack.c.l.b16 %v250
      %v518 = vunpack.c.l.b16 %v251
      %v519 = vunpack.c.l.b16 %v252
      %v520 = vunpack.c.l.b16 %v253
      %v521 = vunpack.c.l.b16 %v254
      %v522 = vunpack.c.l.b16 %v255
      %v523 = vunpack.c.l.b16 %v256
      %v524 = vunpack.c.l.b16 %v257
      %v525 = vunpack.c.l.b16 %v258
      %v526 = vunpack.c.l.b16 %v259
      %v527 = vunpack.c.l.b16 %v260
      %v528 = vunpack.c.l.b16 %v261
      %v529 = vunpack.c.l.b16 %v262
      %v530 = vunpack.c.l.b16 %v263
      %v531 = vunpack.c.l.b16 %v264
      %v532 = vunpack.c.l.b16 %v265
      %v533 = vunpack.c.l.b16 %v266
      %v534 = vunpack.c.l.b16 %v267
      %v535 = vunpack.c.l.b16 %v268
      %v536 = vunpack.c.l.b16 %v269
      %v537 = vunpack.c.l.b16 %v270
      %v538 = vunpack.c.l.b16 %v271
      %v539 = vunpack.c.l.b16 %v272
      %v540 = vunpack.c.l.b16 %v273
      %v541 = vunpack.c.l.b16 %v274
      %v542 = vunpack.c.l.b16 %v275
      %v543 = vunpack.c.l.b16 %v276
      %v544 = vunpack.c.l.b16 %v277
      %v545 = vunpack.c.l.b16 %v278
      %v546 = vunpack.c.l.b16 %v279
      %v547 = vunpack.c.l.b16 %v280
      %v548 = vunpack.c.l.b16 %v281
      %v549 = vunpack.c.l.b16 %v282
      %v550 = vunpack.c.l.b16 %v283
      %v551 = vunpack.c.l.b16 %v284
      %v552 = vunpack.c.l.b16 %v285
      %v553 = vunpack.c.l.b16 %v286
      %v554 = vunpack.c.l.b16 %v287
      %v555 = vunpack.c.l.b16 %v288
      %v556 = vunpack.c.l.b16 %v289
      %v557 = vunpack.c.l.b16 %v290
      %v558 = vunpack.c.l.b16 %v291
      %v559 = vunpack.c.l.b16 %v292
      %v560 = vunpack.c.l.b16 %v293
      %v561 = vunpack.c.l.b16 %v294
      %v562 = vunpack.c.l.b16 %v295
      %v563 = vunpack.c.l.b16 %v296
      %v564 = vunpack.c.l.b16 %v297
      %v565 = vunpack.c.l.b16 %v298
      %v566 = vunpack.c.l.b16 %v299
      %v567 = vunpack.c.l.b16 %v300
      %v568 = vunpack.c.l.b16 %v301
      %v569 = vunpack.c.l.b16 %v302
      %v570 = vunpack.c.l.b16 %v303
      %v571 = vunpack.c.l.b16 %v304
      %v572 = vunpack.c.l.b16 %v305
      %v573 = vunpack.c.l.b16 %v306
      %v574 = vunpack.c.l.b16 %v307
      %v575 = vunpack.c.l.b16 %v308
      %v576 = vunpack.c.l.b16 %v309
      %v577 = vunpack.c.l.b16 %v310
      %v578 = vunpack.c.l.b16 %v311
      %v579 = vunpack.c.l.b16 %v312
      %v580 = vunpack.c.l.b16 %v313
      %v581 = vunpack.c.l.b16 %v314
      %v582 = vunpack.c.l.b16 %v315
      %v583 = vunpack.c.l.b16 %v316
      %v584 = vunpack.c.l.b16 %v317
      %v585 = vunpack.c.l.b16 %v318
      %v586 = vunpack.c.l.b16 %v319
      %v587 = vunpack.c.l.b16 %v320
      %v588 = vunpack.c.l.b16 %v321
      %v589 = vunpack.c.l.b16 %v322
      %v590 = vunpack.c.l.b16 %v323
      %v591 = vunpack.c.l.b16 %v324
      %v592 = vunpack.c.l.b16 %v325
      %v593 = vunpack.c.l.b16 %v326
      %v594 = vunpack.c.l.b16 %v327
      %v595 = vunpack.c.l.b16 %v328
      %v596 = vunpack.c.l.b16 %v329
      %v597 = vunpack.c.l.b16 %v330
      %v598 = vunpack.c.l.b16 %v331
      %v599 = vunpack.c.l.b16 %v332
      %v600 = vunpack.c.l.b16 %v333
      %v601 = vunpack.c.l.b16 %v334
      %v602 = vunpack.c.l.b16 %v335
      %v603 = vunpack.c.l.b16 %v336
      %v604 = vunpack.c.l.b16 %v337
      %v605 = vunpack.c.l.b16 %v338
      %v606 = vunpack.c.l.b16 %v339
      %v607 = vunpack.c.l.b16 %v340
      %v608 = vunpack.c.l.b16 %v341
      %v609 = vunpack.c.l.b16 %v342
      %v610 = vunpack.c.l.b16 %v343
      %v611 = vunpack.c.l.b16 %v344
      %v612 = vunpack.c.l.b16 %v345
      %v613 = vunpack.c.l.b16 %v346
      %v614 = vunpack.c.l.b16 %v347
      %v615 = vunpack.c.l.b16 %v348
      %v616 = vunpack.c.l.b16 %v349
      %v617 = vunpack.c.l.b16 %v350
      %v618 = vunpack.c.l.b16 %v351
      %v619 = vunpack.c.l.b16 %v352
      %v620 = vunpack.c.l.b16 %v353
      %v621 = vunpack.c.l.b16 %v354
      %v622 = vunpack.c.l.b16 %v355
      %v623 = vunpack.c.l.b16 %v356
      %v624 = vunpack.c.l.b16 %v357
      %v625 = vunpack.c.l.b16 %v358
      %v626 = vpack.c.b16 %v499, %v498
      %v627 = vpack.c.b16 %v501, %v500
      %v628 = vpack.c.b16 %v503, %v502
      %v629 = vpack.c.b16 %v505, %v504
      %v630 = vpack.c.b16 %v507, %v506
      %v631 = vpack.c.b16 %v509, %v508
      %v632 = vpack.c.b16 %v511, %v510
      %v633 = vpack.c.b16 %v513, %v512
      %v634 = vpack.c.b16 %v515, %v514
      %v635 = vpack.c.b16 %v517, %v516
      %v636 = vpack.c.b16 %v519, %v518
      %v637 = vpack.c.b16 %v521, %v520
      %v638 = vpack.c.b16 %v523, %v522
      %v639 = vpack.c.b16 %v525, %v524
      %v640 = vpack.c.b16 %v527, %v526
      %v641 = vpack.c.b16 %v529, %v528
      %v642 = vpack.c.b16 %v531, %v530
      %v643 = vpack.c.b16 %v533, %v532
      %v644 = vpack.c.b16 %v535, %v534
      %v645 = vpack.c.b16 %v537, %v536
      %v646 = vpack.c.b16 %v539, %v538
      %v647 = vpack.c.b16 %v541, %v540
      %v648 = vpack.c.b16 %v543, %v542
      %v649 = vpack.c.b16 %v545, %v544
      %v650 = vpack.c.b16 %v547, %v546
      %v651 = vpack.c.b16 %v549, %v548
      %v652 = vpack.c.b16 %v551, %v550
      %v653 = vpack.c.b16 %v553, %v552
      %v654 = vpack.c.b16 %v555, %v554
      %v655 = vpack.c.b16 %v557, %v556
      %v656 = vpack.c.b16 %v559, %v558
      %v657 = vpack.c.b16 %v561, %v560
      %v658 = vpack.c.b16 %v563, %v562
      %v659 = vpack.c.b16 %v565, %v564
      %v660 = vpack.c.b16 %v567, %v566
      %v661 = vpack.c.b16 %v569, %v568
      %v662 = vpack.c.b16 %v571, %v570
      %v663 = vpack.c.b16 %v573, %v572
      %v664 = vpack.c.b16 %v575, %v574
      %v665 = vpack.c.b16 %v577, %v576
      %v666 = vpack.c.b16 %v579, %v578
      %v667 = vpack.c.b16 %v581, %v580
      %v668 = vpack.c.b16 %v583, %v582
      %v669 = vpack.c.b16 %v585, %v584
      %v670 = vpack.c.b16 %v587, %v586
      %v671 = vpack.c.b16 %v589, %v588
      %v672 = vpack.c.b16 %v591, %v590
      %v673 = vpack.c.b16 %v593, %v592
      %v674 = vpack.c.b16 %v595, %v594
      %v675 = vpack.c.b16 %v597, %v596
      %v676 = vpack.c.b16 %v599, %v598
      %v677 = vpack.c.b16 %v601, %v600
      %v678 = vpack.c.b16 %v603, %v602
      %v679 = vpack.c.b16 %v605, %v604
      %v680 = vpack.c.b16 %v607, %v606
      %v681 = vpack.c.b16 %v609, %v608
      %v682 = vpack.c.b16 %v611, %v610
      %v683 = vpack.c.b16 %v613, %v612
      %v684 = vpack.c.b16 %v615, %v614
      %v685 = vpack.c.b16 %v617, %v616
      %v686 = vpack.c.b16 %v619, %v618
      %v687 = vpack.c.b16 %v621, %v620
      %v688 = vpack.c.b16 %v623, %v622
      %v689 = vpack.c.b16 %v625, %v624
      %v694 = vunpack.c.l.b16 %v359
      %v695 = vunpack.c.l.b16 %v360
      %v696 = vunpack.c.l.b16 %v361
      %v697 = vunpack.c.l.b16 %v362
      %v698 = vpack.c.b16 %v695, %v694
      %v699 = vpack.c.b16 %v697, %v696
      %vm702 = vcmask 261120
      %v704 = vsel %vm702, %v626, 0
      %v707 = vsel %vm702, %v627, 0
      %v710 = vsel %vm702, %v628, 0
      %v713 = vsel %vm702, %v629, 0
      %v716 = vsel %vm702, %v630, 0
      %v719 = vsel %vm702, %v631, 0
      %v722 = vsel %vm702, %v632, 0
      %v725 = vsel %vm702, %v633, 0
      %v728 = vsel %vm702, %v634, 0
      %v731 = vsel %vm702, %v635, 0
      %v734 = vsel %vm702, %v636, 0
      %v737 = vsel %vm702, %v637, 0
      %v740 = vsel %vm702, %v638, 0
      %v743 = vsel %vm702, %v639, 0
      %v746 = vsel %vm702, %v640, 0
      %v749 = vsel %vm702, %v641, 0
      %v752 = vsel %vm702, %v642, 0
      %v755 = vsel %vm702, %v643, 0
      %v758 = vsel %vm702, %v644, 0
      %v761 = vsel %vm702, %v645, 0
      %v764 = vsel %vm702, %v646, 0
      %v767 = vsel %vm702, %v647, 0
      %v770 = vsel %vm702, %v648, 0
      %v773 = vsel %vm702, %v649, 0
      %v776 = vsel %vm702, %v650, 0
      %v779 = vsel %vm702, %v651, 0
      %v782 = vsel %vm702, %v652, 0
      %v785 = vsel %vm702, %v653, 0
      %v788 = vsel %vm702, %v654, 0
      %v791 = vsel %vm702, %v655, 0
      %v794 = vsel %vm702, %v656, 0
      %v797 = vsel %vm702, %v657, 0
      %v800 = vsel %vm702, %v658, 0
      %v803 = vsel %vm702, %v659, 0
      %v806 = vsel %vm702, %v660, 0
      %v809 = vsel %vm702, %v661, 0
      %v812 = vsel %vm702, %v662, 0
      %v815 = vsel %vm702, %v663, 0
      %v818 = vsel %vm702, %v664, 0
      %v821 = vsel %vm702, %v665, 0
      %v824 = vsel %vm702, %v666, 0
      %v827 = vsel %vm702, %v667, 0
      %v830 = vsel %vm702, %v668, 0
      %v833 = vsel %vm702, %v669, 0
      %v836 = vsel %vm702, %v670, 0
      %v839 = vsel %vm702, %v671, 0
      %v842 = vsel %vm702, %v672, 0
      %v845 = vsel %vm702, %v673, 0
      %v848 = vsel %vm702, %v674, 0
      %v851 = vsel %vm702, %v675, 0
      %v854 = vsel %vm702, %v676, 0
      %v857 = vsel %vm702, %v677, 0
      %v860 = vsel %vm702, %v678, 0
      %v863 = vsel %vm702, %v679, 0
      %v866 = vsel %vm702, %v680, 0
      %v869 = vsel %vm702, %v681, 0
      %v872 = vsel %vm702, %v682, 0
      %v875 = vsel %vm702, %v683, 0
      %v878 = vsel %vm702, %v684, 0
      %v881 = vsel %vm702, %v685, 0
      %v884 = vsel %vm702, %v686, 0
      %v887 = vsel %vm702, %v687, 0
      %v890 = vsel %vm702, %v688, 0
      %v893 = vsel %vm702, %v689, 0
      %895 = vmatprep.subr.bf16.mxu0 0
      %896 = vmatpush1.bf16.msra.mxu0 %v698
      %897 = vmatprep.subr.bf16.mxu0 0
      %898 = vmatpush1.bf16.msra.mxu0 %v699
      %899 = vmatprep.subr.bf16.mxu0 0
      %900 = vmatpush1.bf16.msra.mxu0 0
      %901 = vmatprep.subr.bf16.mxu0 0
      %902 = vmatpush1.bf16.msra.mxu0 0
      %903 = vmatprep.subr.bf16.mxu0 0
      %904 = vmatpush1.bf16.msra.mxu0 0
      %905 = vmatprep.subr.bf16.mxu0 0
      %906 = vmatpush1.bf16.msra.mxu0 0
      %907 = vmatprep.subr.bf16.mxu0 0
      %908 = vmatpush1.bf16.msra.mxu0 0
      %909 = vmatprep.subr.bf16.mxu0 0
      %910 = vmatpush1.bf16.msra.mxu0 0
      %911 = vmatprep.subr.bf16.mxu0 0
      %912 = vmatpush1.bf16.msra.mxu0 0
      %913 = vmatprep.subr.bf16.mxu0 0
      %914 = vmatpush1.bf16.msra.mxu0 0
      %915 = vmatprep.subr.bf16.mxu0 0
      %916 = vmatpush1.bf16.msra.mxu0 0
      %917 = vmatprep.subr.bf16.mxu0 0
      %918 = vmatpush1.bf16.msra.mxu0 0
      %919 = vmatprep.subr.bf16.mxu0 0
      %920 = vmatpush1.bf16.msra.mxu0 0
      %921 = vmatprep.subr.bf16.mxu0 0
      %922 = vmatpush1.bf16.msra.mxu0 0
      %923 = vmatprep.subr.bf16.mxu0 0
      %924 = vmatpush1.bf16.msra.mxu0 0
      %925 = vmatprep.subr.bf16.mxu0 0
      %926 = vmatpush1.bf16.msra.mxu0 0
      %927 = vmatprep.mubr.bf16.mxu0 0
      %928 = vmatmul.mubr.bf16.gmra.mrb[0].mxu0 %v704
      %v929 = vpop.f32.mrb[0].mxu0
      %v930 = vadd.f32 %v368, %v929
      %v931 = vpop.f32.mrb[0].mxu0
      %v932 = vpop.f32.mrb[0].mxu0
      %v933 = vadd.f32 %v368, %v932
      %v934 = vpop.f32.mrb[0].mxu0
      %935 = vmatprep.mubr.bf16.mxu0 0
      %936 = vmatmul.mubr.bf16.gmra.mrb[0].mxu0 %v707
      %v937 = vpop.f32.mrb[0].mxu0
      %v938 = vadd.f32 %v368, %v937
      %v939 = vpop.f32.mrb[0].mxu0
      %v940 = vpop.f32.mrb[0].mxu0
      %v941 = vadd.f32 %v368, %v940
      %v942 = vpop.f32.mrb[0].mxu0
      %943 = vmatprep.mubr.bf16.mxu0 0
      %944 = vmatmul.mubr.bf16.gmra.mrb[0].mxu0 %v710
      %v945 = vpop.f32.mrb[0].mxu0
      %v946 = vadd.f32 %v368, %v945
      %v947 = vpop.f32.mrb[0].mxu0
      %v948 = vpop.f32.mrb[0].mxu0
      %v949 = vadd.f32 %v368, %v948
      %v950 = vpop.f32.mrb[0].mxu0
      %951 = vmatprep.mubr.bf16.mxu0 0
      %952 = vmatmul.mubr.bf16.gmra.mrb[0].mxu0 %v713
      %v953 = vpop.f32.mrb[0].mxu0
      %v954 = vadd.f32 %v368, %v953
      %v955 = vpop.f32.mrb[0].mxu0
      %v956 = vpop.f32.mrb[0].mxu0
      %v957 = vadd.f32 %v368, %v956
      %v958 = vpop.f32.mrb[0].mxu0
      %959 = vmatprep.mubr.bf16.mxu0 0
      %960 = vmatmul.mubr.bf16.gmra.mrb[0].mxu0 %v716
      %v961 = vpop.f32.mrb[0].mxu0
      %v962 = vadd.f32 %v368, %v961
      %v963 = vpop.f32.mrb[0].mxu0
      %v964 = vpop.f32.mrb[0].mxu0
      %v965 = vadd.f32 %v368, %v964
      %v966 = vpop.f32.mrb[0].mxu0
      %967 = vmatprep.mubr.bf16.mxu0 0
      %968 = vmatmul.mubr.bf16.gmra.mrb[0].mxu0 %v719
      %v969 = vpop.f32.mrb[0].mxu0
      %v970 = vadd.f32 %v368, %v969
      %v971 = vpop.f32.mrb[0].mxu0
      %v972 = vpop.f32.mrb[0].mxu0
      %v973 = vadd.f32 %v368, %v972
      %v974 = vpop.f32.mrb[0].mxu0
      %975 = vmatprep.mubr.bf16.mxu0 0
      %976 = vmatmul.mubr.bf16.gmra.mrb[0].mxu0 %v722
      %v977 = vpop.f32.mrb[0].mxu0
      %v978 = vadd.f32 %v368, %v977
      %v979 = vpop.f32.mrb[0].mxu0
      %v980 = vpop.f32.mrb[0].mxu0
      %v981 = vadd.f32 %v368, %v980
      %v982 = vpop.f32.mrb[0].mxu0
      %983 = vmatprep.mubr.bf16.mxu0 0
      %984 = vmatmul.mubr.bf16.gmra.mrb[0].mxu0 %v725
      %v985 = vpop.f32.mrb[0].mxu0
      %v986 = vadd.f32 %v368, %v985
      %v987 = vpop.f32.mrb[0].mxu0
      %v988 = vpop.f32.mrb[0].mxu0
      %v989 = vadd.f32 %v368, %v988
      %v990 = vpop.f32.mrb[0].mxu0
      %991 = vmatprep.mubr.bf16.mxu0 0
      %992 = vmatmul.mubr.bf16.gmra.mrb[0].mxu0 %v728
      %v993 = vpop.f32.mrb[0].mxu0
      %v994 = vadd.f32 %v368, %v993
      %v995 = vpop.f32.mrb[0].mxu0
      %v996 = vpop.f32.mrb[0].mxu0
      %v997 = vadd.f32 %v368, %v996
      %v998 = vpop.f32.mrb[0].mxu0
      %999 = vmatprep.mubr.bf16.mxu0 0
      %1000 = vmatmul.mubr.bf16.gmra.mrb[0].mxu0 %v731
      %v1001 = vpop.f32.mrb[0].mxu0
      %v1002 = vadd.f32 %v368, %v1001
      %v1003 = vpop.f32.mrb[0].mxu0
      %v1004 = vpop.f32.mrb[0].mxu0
      %v1005 = vadd.f32 %v368, %v1004
      %v1006 = vpop.f32.mrb[0].mxu0
      %1007 = vmatprep.mubr.bf16.mxu0 0
      %1008 = vmatmul.mubr.bf16.gmra.mrb[0].mxu0 %v734
      %v1009 = vpop.f32.mrb[0].mxu0
      %v1010 = vadd.f32 %v368, %v1009
      %v1011 = vpop.f32.mrb[0].mxu0
      %v1012 = vpop.f32.mrb[0].mxu0
      %v1013 = vadd.f32 %v368, %v1012
      %v1014 = vpop.f32.mrb[0].mxu0
      %1015 = vmatprep.mubr.bf16.mxu0 0
      %1016 = vmatmul.mubr.bf16.gmra.mrb[0].mxu0 %v737
      %v1017 = vpop.f32.mrb[0].mxu0
      %v1018 = vadd.f32 %v368, %v1017
      %v1019 = vpop.f32.mrb[0].mxu0
      %v1020 = vpop.f32.mrb[0].mxu0
      %v1021 = vadd.f32 %v368, %v1020
      %v1022 = vpop.f32.mrb[0].mxu0
      %1023 = vmatprep.mubr.bf16.mxu0 0
      %1024 = vmatmul.mubr.bf16.gmra.mrb[0].mxu0 %v740
      %v1025 = vpop.f32.mrb[0].mxu0
      %v1026 = vadd.f32 %v368, %v1025
      %v1027 = vpop.f32.mrb[0].mxu0
      %v1028 = vpop.f32.mrb[0].mxu0
      %v1029 = vadd.f32 %v368, %v1028
      %v1030 = vpop.f32.mrb[0].mxu0
      %1031 = vmatprep.mubr.bf16.mxu0 0
      %1032 = vmatmul.mubr.bf16.gmra.mrb[0].mxu0 %v743
      %v1033 = vpop.f32.mrb[0].mxu0
      %v1034 = vadd.f32 %v368, %v1033
      %v1035 = vpop.f32.mrb[0].mxu0
      %v1036 = vpop.f32.mrb[0].mxu0
      %v1037 = vadd.f32 %v368, %v1036
      %v1038 = vpop.f32.mrb[0].mxu0
      %1039 = vmatprep.mubr.bf16.mxu0 0
      %1040 = vmatmul.mubr.bf16.gmra.mrb[0].mxu0 %v746
      %v1041 = vpop.f32.mrb[0].mxu0
      %v1042 = vadd.f32 %v368, %v1041
      %v1043 = vpop.f32.mrb[0].mxu0
      %v1044 = vpop.f32.mrb[0].mxu0
      %v1045 = vadd.f32 %v368, %v1044
      %v1046 = vpop.f32.mrb[0].mxu0
      %1047 = vmatprep.mubr.bf16.mxu0 0
      %1048 = vmatmul.mubr.bf16.gmra.mrb[0].mxu0 %v749
      %v1049 = vpop.f32.mrb[0].mxu0
      %v1050 = vadd.f32 %v368, %v1049
      %v1051 = vpop.f32.mrb[0].mxu0
      %v1052 = vpop.f32.mrb[0].mxu0
      %v1053 = vadd.f32 %v368, %v1052
      %v1054 = vpop.f32.mrb[0].mxu0
      %1055 = vmatprep.mubr.bf16.mxu0 0
      %1056 = vmatmul.mubr.bf16.gmra.mrb[0].mxu0 %v752
      %v1057 = vpop.f32.mrb[0].mxu0
      %v1058 = vadd.f32 %v368, %v1057
      %v1059 = vpop.f32.mrb[0].mxu0
      %v1060 = vpop.f32.mrb[0].mxu0
      %v1061 = vadd.f32 %v368, %v1060
      %v1062 = vpop.f32.mrb[0].mxu0
      %1063 = vmatprep.mubr.bf16.mxu0 0
      %1064 = vmatmul.mubr.bf16.gmra.mrb[0].mxu0 %v755
      %v1065 = vpop.f32.mrb[0].mxu0
      %v1066 = vadd.f32 %v368, %v1065
      %v1067 = vpop.f32.mrb[0].mxu0
      %v1068 = vpop.f32.mrb[0].mxu0
      %v1069 = vadd.f32 %v368, %v1068
      %v1070 = vpop.f32.mrb[0].mxu0
      %1071 = vmatprep.mubr.bf16.mxu0 0
      %1072 = vmatmul.mubr.bf16.gmra.mrb[0].mxu0 %v758
      %v1073 = vpop.f32.mrb[0].mxu0
      %v1074 = vadd.f32 %v368, %v1073
      %v1075 = vpop.f32.mrb[0].mxu0
      %v1076 = vpop.f32.mrb[0].mxu0
      %v1077 = vadd.f32 %v368, %v1076
      %v1078 = vpop.f32.mrb[0].mxu0
      %1079 = vmatprep.mubr.bf16.mxu0 0
      %1080 = vmatmul.mubr.bf16.gmra.mrb[0].mxu0 %v761
      %v1081 = vpop.f32.mrb[0].mxu0
      %v1082 = vadd.f32 %v368, %v1081
      %v1083 = vpop.f32.mrb[0].mxu0
      %v1084 = vpop.f32.mrb[0].mxu0
      %v1085 = vadd.f32 %v368, %v1084
      %v1086 = vpop.f32.mrb[0].mxu0
      %1087 = vmatprep.mubr.bf16.mxu0 0
      %1088 = vmatmul.mubr.bf16.gmra.mrb[0].mxu0 %v764
      %v1089 = vpop.f32.mrb[0].mxu0
      %v1090 = vadd.f32 %v368, %v1089
      %v1091 = vpop.f32.mrb[0].mxu0
      %v1092 = vpop.f32.mrb[0].mxu0
      %v1093 = vadd.f32 %v368, %v1092
      %v1094 = vpop.f32.mrb[0].mxu0
      %1095 = vmatprep.mubr.bf16.mxu0 0
      %1096 = vmatmul.mubr.bf16.gmra.mrb[0].mxu0 %v767
      %v1097 = vpop.f32.mrb[0].mxu0
      %v1098 = vadd.f32 %v368, %v1097
      %v1099 = vpop.f32.mrb[0].mxu0
      %v1100 = vpop.f32.mrb[0].mxu0
      %v1101 = vadd.f32 %v368, %v1100
      %v1102 = vpop.f32.mrb[0].mxu0
      %1103 = vmatprep.mubr.bf16.mxu0 0
      %1104 = vmatmul.mubr.bf16.gmra.mrb[0].mxu0 %v770
      %v1105 = vpop.f32.mrb[0].mxu0
      %v1106 = vadd.f32 %v368, %v1105
      %v1107 = vpop.f32.mrb[0].mxu0
      %v1108 = vpop.f32.mrb[0].mxu0
      %v1109 = vadd.f32 %v368, %v1108
      %v1110 = vpop.f32.mrb[0].mxu0
      %1111 = vmatprep.mubr.bf16.mxu0 0
      %1112 = vmatmul.mubr.bf16.gmra.mrb[0].mxu0 %v773
      %v1113 = vpop.f32.mrb[0].mxu0
      %v1114 = vadd.f32 %v368, %v1113
      %v1115 = vpop.f32.mrb[0].mxu0
      %v1116 = vpop.f32.mrb[0].mxu0
      %v1117 = vadd.f32 %v368, %v1116
      %v1118 = vpop.f32.mrb[0].mxu0
      %1119 = vmatprep.mubr.bf16.mxu0 0
      %1120 = vmatmul.mubr.bf16.gmra.mrb[0].mxu0 %v776
      %v1121 = vpop.f32.mrb[0].mxu0
      %v1122 = vadd.f32 %v368, %v1121
      %v1123 = vpop.f32.mrb[0].mxu0
      %v1124 = vpop.f32.mrb[0].mxu0
      %v1125 = vadd.f32 %v368, %v1124
      %v1126 = vpop.f32.mrb[0].mxu0
      %1127 = vmatprep.mubr.bf16.mxu0 0
      %1128 = vmatmul.mubr.bf16.gmra.mrb[0].mxu0 %v779
      %v1129 = vpop.f32.mrb[0].mxu0
      %v1130 = vadd.f32 %v368, %v1129
      %v1131 = vpop.f32.mrb[0].mxu0
      %v1132 = vpop.f32.mrb[0].mxu0
      %v1133 = vadd.f32 %v368, %v1132
      %v1134 = vpop.f32.mrb[0].mxu0
      %1135 = vmatprep.mubr.bf16.mxu0 0
      %1136 = vmatmul.mubr.bf16.gmra.mrb[0].mxu0 %v782
      %v1137 = vpop.f32.mrb[0].mxu0
      %v1138 = vadd.f32 %v368, %v1137
      %v1139 = vpop.f32.mrb[0].mxu0
      %v1140 = vpop.f32.mrb[0].mxu0
      %v1141 = vadd.f32 %v368, %v1140
      %v1142 = vpop.f32.mrb[0].mxu0
      %1143 = vmatprep.mubr.bf16.mxu0 0
      %1144 = vmatmul.mubr.bf16.gmra.mrb[0].mxu0 %v785
      %v1145 = vpop.f32.mrb[0].mxu0
      %v1146 = vadd.f32 %v368, %v1145
      %v1147 = vpop.f32.mrb[0].mxu0
      %v1148 = vpop.f32.mrb[0].mxu0
      %v1149 = vadd.f32 %v368, %v1148
      %v1150 = vpop.f32.mrb[0].mxu0
      %1151 = vmatprep.mubr.bf16.mxu0 0
      %1152 = vmatmul.mubr.bf16.gmra.mrb[0].mxu0 %v788
      %v1153 = vpop.f32.mrb[0].mxu0
      %v1154 = vadd.f32 %v368, %v1153
      %v1155 = vpop.f32.mrb[0].mxu0
      %v1156 = vpop.f32.mrb[0].mxu0
      %v1157 = vadd.f32 %v368, %v1156
      %v1158 = vpop.f32.mrb[0].mxu0
      %1159 = vmatprep.mubr.bf16.mxu0 0
      %1160 = vmatmul.mubr.bf16.gmra.mrb[0].mxu0 %v791
      %v1161 = vpop.f32.mrb[0].mxu0
      %v1162 = vadd.f32 %v368, %v1161
      %v1163 = vpop.f32.mrb[0].mxu0
      %v1164 = vpop.f32.mrb[0].mxu0
      %v1165 = vadd.f32 %v368, %v1164
      %v1166 = vpop.f32.mrb[0].mxu0
      %1167 = vmatprep.mubr.bf16.mxu0 0
      %1168 = vmatmul.mubr.bf16.gmra.mrb[0].mxu0 %v794
      %v1169 = vpop.f32.mrb[0].mxu0
      %v1170 = vadd.f32 %v368, %v1169
      %v1171 = vpop.f32.mrb[0].mxu0
      %v1172 = vpop.f32.mrb[0].mxu0
      %v1173 = vadd.f32 %v368, %v1172
      %v1174 = vpop.f32.mrb[0].mxu0
      %1175 = vmatprep.mubr.bf16.mxu0 0
      %1176 = vmatmul.mubr.bf16.gmra.mrb[0].mxu0 %v797
      %v1177 = vpop.f32.mrb[0].mxu0
      %v1178 = vadd.f32 %v368, %v1177
      %v1179 = vpop.f32.mrb[0].mxu0
      %v1180 = vpop.f32.mrb[0].mxu0
      %v1181 = vadd.f32 %v368, %v1180
      %v1182 = vpop.f32.mrb[0].mxu0
      %1183 = vmatprep.mubr.bf16.mxu0 0
      %1184 = vmatmul.mubr.bf16.gmra.mrb[0].mxu0 %v800
      %v1185 = vpop.f32.mrb[0].mxu0
      %v1186 = vadd.f32 %v368, %v1185
      %v1187 = vpop.f32.mrb[0].mxu0
      %v1188 = vpop.f32.mrb[0].mxu0
      %v1189 = vadd.f32 %v368, %v1188
      %v1190 = vpop.f32.mrb[0].mxu0
      %1191 = vmatprep.mubr.bf16.mxu0 0
      %1192 = vmatmul.mubr.bf16.gmra.mrb[0].mxu0 %v803
      %v1193 = vpop.f32.mrb[0].mxu0
      %v1194 = vadd.f32 %v368, %v1193
      %v1195 = vpop.f32.mrb[0].mxu0
      %v1196 = vpop.f32.mrb[0].mxu0
      %v1197 = vadd.f32 %v368, %v1196
      %v1198 = vpop.f32.mrb[0].mxu0
      %1199 = vmatprep.mubr.bf16.mxu0 0
      %1200 = vmatmul.mubr.bf16.gmra.mrb[0].mxu0 %v806
      %v1201 = vpop.f32.mrb[0].mxu0
      %v1202 = vadd.f32 %v368, %v1201
      %v1203 = vpop.f32.mrb[0].mxu0
      %v1204 = vpop.f32.mrb[0].mxu0
      %v1205 = vadd.f32 %v368, %v1204
      %v1206 = vpop.f32.mrb[0].mxu0
      %1207 = vmatprep.mubr.bf16.mxu0 0
      %1208 = vmatmul.mubr.bf16.gmra.mrb[0].mxu0 %v809
      %v1209 = vpop.f32.mrb[0].mxu0
      %v1210 = vadd.f32 %v368, %v1209
      %v1211 = vpop.f32.mrb[0].mxu0
      %v1212 = vpop.f32.mrb[0].mxu0
      %v1213 = vadd.f32 %v368, %v1212
      %v1214 = vpop.f32.mrb[0].mxu0
      %1215 = vmatprep.mubr.bf16.mxu0 0
      %1216 = vmatmul.mubr.bf16.gmra.mrb[0].mxu0 %v812
      %v1217 = vpop.f32.mrb[0].mxu0
      %v1218 = vadd.f32 %v368, %v1217
      %v1219 = vpop.f32.mrb[0].mxu0
      %v1220 = vpop.f32.mrb[0].mxu0
      %v1221 = vadd.f32 %v368, %v1220
      %v1222 = vpop.f32.mrb[0].mxu0
      %1223 = vmatprep.mubr.bf16.mxu0 0
      %1224 = vmatmul.mubr.bf16.gmra.mrb[0].mxu0 %v815
      %v1225 = vpop.f32.mrb[0].mxu0
      %v1226 = vadd.f32 %v368, %v1225
      %v1227 = vpop.f32.mrb[0].mxu0
      %v1228 = vpop.f32.mrb[0].mxu0
      %v1229 = vadd.f32 %v368, %v1228
      %v1230 = vpop.f32.mrb[0].mxu0
      %1231 = vmatprep.mubr.bf16.mxu0 0
      %1232 = vmatmul.mubr.bf16.gmra.mrb[0].mxu0 %v818
      %v1233 = vpop.f32.mrb[0].mxu0
      %v1234 = vadd.f32 %v368, %v1233
      %v1235 = vpop.f32.mrb[0].mxu0
      %v1236 = vpop.f32.mrb[0].mxu0
      %v1237 = vadd.f32 %v368, %v1236
      %v1238 = vpop.f32.mrb[0].mxu0
      %1239 = vmatprep.mubr.bf16.mxu0 0
      %1240 = vmatmul.mubr.bf16.gmra.mrb[0].mxu0 %v821
      %v1241 = vpop.f32.mrb[0].mxu0
      %v1242 = vadd.f32 %v368, %v1241
      %v1243 = vpop.f32.mrb[0].mxu0
      %v1244 = vpop.f32.mrb[0].mxu0
      %v1245 = vadd.f32 %v368, %v1244
      %v1246 = vpop.f32.mrb[0].mxu0
      %1247 = vmatprep.mubr.bf16.mxu0 0
      %1248 = vmatmul.mubr.bf16.gmra.mrb[0].mxu0 %v824
      %v1249 = vpop.f32.mrb[0].mxu0
      %v1250 = vadd.f32 %v368, %v1249
      %v1251 = vpop.f32.mrb[0].mxu0
      %v1252 = vpop.f32.mrb[0].mxu0
      %v1253 = vadd.f32 %v368, %v1252
      %v1254 = vpop.f32.mrb[0].mxu0
      %1255 = vmatprep.mubr.bf16.mxu0 0
      %1256 = vmatmul.mubr.bf16.gmra.mrb[0].mxu0 %v827
      %v1257 = vpop.f32.mrb[0].mxu0
      %v1258 = vadd.f32 %v368, %v1257
      %v1259 = vpop.f32.mrb[0].mxu0
      %v1260 = vpop.f32.mrb[0].mxu0
      %v1261 = vadd.f32 %v368, %v1260
      %v1262 = vpop.f32.mrb[0].mxu0
      %1263 = vmatprep.mubr.bf16.mxu0 0
      %1264 = vmatmul.mubr.bf16.gmra.mrb[0].mxu0 %v830
      %v1265 = vpop.f32.mrb[0].mxu0
      %v1266 = vadd.f32 %v368, %v1265
      %v1267 = vpop.f32.mrb[0].mxu0
      %v1268 = vpop.f32.mrb[0].mxu0
      %v1269 = vadd.f32 %v368, %v1268
      %v1270 = vpop.f32.mrb[0].mxu0
      %1271 = vmatprep.mubr.bf16.mxu0 0
      %1272 = vmatmul.mubr.bf16.gmra.mrb[0].mxu0 %v833
      %v1273 = vpop.f32.mrb[0].mxu0
      %v1274 = vadd.f32 %v368, %v1273
      %v1275 = vpop.f32.mrb[0].mxu0
      %v1276 = vpop.f32.mrb[0].mxu0
      %v1277 = vadd.f32 %v368, %v1276
      %v1278 = vpop.f32.mrb[0].mxu0
      %1279 = vmatprep.mubr.bf16.mxu0 0
      %1280 = vmatmul.mubr.bf16.gmra.mrb[0].mxu0 %v836
      %v1281 = vpop.f32.mrb[0].mxu0
      %v1282 = vadd.f32 %v368, %v1281
      %v1283 = vpop.f32.mrb[0].mxu0
      %v1284 = vpop.f32.mrb[0].mxu0
      %v1285 = vadd.f32 %v368, %v1284
      %v1286 = vpop.f32.mrb[0].mxu0
      %1287 = vmatprep.mubr.bf16.mxu0 0
      %1288 = vmatmul.mubr.bf16.gmra.mrb[0].mxu0 %v839
      %v1289 = vpop.f32.mrb[0].mxu0
      %v1290 = vadd.f32 %v368, %v1289
      %v1291 = vpop.f32.mrb[0].mxu0
      %v1292 = vpop.f32.mrb[0].mxu0
      %v1293 = vadd.f32 %v368, %v1292
      %v1294 = vpop.f32.mrb[0].mxu0
      %1295 = vmatprep.mubr.bf16.mxu0 0
      %1296 = vmatmul.mubr.bf16.gmra.mrb[0].mxu0 %v842
      %v1297 = vpop.f32.mrb[0].mxu0
      %v1298 = vadd.f32 %v368, %v1297
      %v1299 = vpop.f32.mrb[0].mxu0
      %v1300 = vpop.f32.mrb[0].mxu0
      %v1301 = vadd.f32 %v368, %v1300
      %v1302 = vpop.f32.mrb[0].mxu0
      %1303 = vmatprep.mubr.bf16.mxu0 0
      %1304 = vmatmul.mubr.bf16.gmra.mrb[0].mxu0 %v845
      %v1305 = vpop.f32.mrb[0].mxu0
      %v1306 = vadd.f32 %v368, %v1305
      %v1307 = vpop.f32.mrb[0].mxu0
      %v1308 = vpop.f32.mrb[0].mxu0
      %v1309 = vadd.f32 %v368, %v1308
      %v1310 = vpop.f32.mrb[0].mxu0
      %1311 = vmatprep.mubr.bf16.mxu0 0
      %1312 = vmatmul.mubr.bf16.gmra.mrb[0].mxu0 %v848
      %v1313 = vpop.f32.mrb[0].mxu0
      %v1314 = vadd.f32 %v368, %v1313
      %v1315 = vpop.f32.mrb[0].mxu0
      %v1316 = vpop.f32.mrb[0].mxu0
      %v1317 = vadd.f32 %v368, %v1316
      %v1318 = vpop.f32.mrb[0].mxu0
      %1319 = vmatprep.mubr.bf16.mxu0 0
      %1320 = vmatmul.mubr.bf16.gmra.mrb[0].mxu0 %v851
      %v1321 = vpop.f32.mrb[0].mxu0
      %v1322 = vadd.f32 %v368, %v1321
      %v1323 = vpop.f32.mrb[0].mxu0
      %v1324 = vpop.f32.mrb[0].mxu0
      %v1325 = vadd.f32 %v368, %v1324
      %v1326 = vpop.f32.mrb[0].mxu0
      %1327 = vmatprep.mubr.bf16.mxu0 0
      %1328 = vmatmul.mubr.bf16.gmra.mrb[0].mxu0 %v854
      %v1329 = vpop.f32.mrb[0].mxu0
      %v1330 = vadd.f32 %v368, %v1329
      %v1331 = vpop.f32.mrb[0].mxu0
      %v1332 = vpop.f32.mrb[0].mxu0
      %v1333 = vadd.f32 %v368, %v1332
      %v1334 = vpop.f32.mrb[0].mxu0
      %1335 = vmatprep.mubr.bf16.mxu0 0
      %1336 = vmatmul.mubr.bf16.gmra.mrb[0].mxu0 %v857
      %v1337 = vpop.f32.mrb[0].mxu0
      %v1338 = vadd.f32 %v368, %v1337
      %v1339 = vpop.f32.mrb[0].mxu0
      %v1340 = vpop.f32.mrb[0].mxu0
      %v1341 = vadd.f32 %v368, %v1340
      %v1342 = vpop.f32.mrb[0].mxu0
      %1343 = vmatprep.mubr.bf16.mxu0 0
      %1344 = vmatmul.mubr.bf16.gmra.mrb[0].mxu0 %v860
      %v1345 = vpop.f32.mrb[0].mxu0
      %v1346 = vadd.f32 %v368, %v1345
      %v1347 = vpop.f32.mrb[0].mxu0
      %v1348 = vpop.f32.mrb[0].mxu0
      %v1349 = vadd.f32 %v368, %v1348
      %v1350 = vpop.f32.mrb[0].mxu0
      %1351 = vmatprep.mubr.bf16.mxu0 0
      %1352 = vmatmul.mubr.bf16.gmra.mrb[0].mxu0 %v863
      %v1353 = vpop.f32.mrb[0].mxu0
      %v1354 = vadd.f32 %v368, %v1353
      %v1355 = vpop.f32.mrb[0].mxu0
      %v1356 = vpop.f32.mrb[0].mxu0
      %v1357 = vadd.f32 %v368, %v1356
      %v1358 = vpop.f32.mrb[0].mxu0
      %1359 = vmatprep.mubr.bf16.mxu0 0
      %1360 = vmatmul.mubr.bf16.gmra.mrb[0].mxu0 %v866
      %v1361 = vpop.f32.mrb[0].mxu0
      %v1362 = vadd.f32 %v368, %v1361
      %v1363 = vpop.f32.mrb[0].mxu0
      %v1364 = vpop.f32.mrb[0].mxu0
      %v1365 = vadd.f32 %v368, %v1364
      %v1366 = vpop.f32.mrb[0].mxu0
      %1367 = vmatprep.mubr.bf16.mxu0 0
      %1368 = vmatmul.mubr.bf16.gmra.mrb[0].mxu0 %v869
      %v1369 = vpop.f32.mrb[0].mxu0
      %v1370 = vadd.f32 %v368, %v1369
      %v1371 = vpop.f32.mrb[0].mxu0
      %v1372 = vpop.f32.mrb[0].mxu0
      %v1373 = vadd.f32 %v368, %v1372
      %v1374 = vpop.f32.mrb[0].mxu0
      %1375 = vmatprep.mubr.bf16.mxu0 0
      %1376 = vmatmul.mubr.bf16.gmra.mrb[0].mxu0 %v872
      %v1377 = vpop.f32.mrb[0].mxu0
      %v1378 = vadd.f32 %v368, %v1377
      %v1379 = vpop.f32.mrb[0].mxu0
      %v1380 = vpop.f32.mrb[0].mxu0
      %v1381 = vadd.f32 %v368, %v1380
      %v1382 = vpop.f32.mrb[0].mxu0
      %1383 = vmatprep.mubr.bf16.mxu0 0
      %1384 = vmatmul.mubr.bf16.gmra.mrb[0].mxu0 %v875
      %v1385 = vpop.f32.mrb[0].mxu0
      %v1386 = vadd.f32 %v368, %v1385
      %v1387 = vpop.f32.mrb[0].mxu0
      %v1388 = vpop.f32.mrb[0].mxu0
      %v1389 = vadd.f32 %v368, %v1388
      %v1390 = vpop.f32.mrb[0].mxu0
      %1391 = vmatprep.mubr.bf16.mxu0 0
      %1392 = vmatmul.mubr.bf16.gmra.mrb[0].mxu0 %v878
      %v1393 = vpop.f32.mrb[0].mxu0
      %v1394 = vadd.f32 %v368, %v1393
      %v1395 = vpop.f32.mrb[0].mxu0
      %v1396 = vpop.f32.mrb[0].mxu0
      %v1397 = vadd.f32 %v368, %v1396
      %v1398 = vpop.f32.mrb[0].mxu0
      %1399 = vmatprep.mubr.bf16.mxu0 0
      %1400 = vmatmul.mubr.bf16.gmra.mrb[0].mxu0 %v881
      %v1401 = vpop.f32.mrb[0].mxu0
      %v1402 = vadd.f32 %v368, %v1401
      %v1403 = vpop.f32.mrb[0].mxu0
      %v1404 = vpop.f32.mrb[0].mxu0
      %v1405 = vadd.f32 %v368, %v1404
      %v1406 = vpop.f32.mrb[0].mxu0
      %1407 = vmatprep.mubr.bf16.mxu0 0
      %1408 = vmatmul.mubr.bf16.gmra.mrb[0].mxu0 %v884
      %v1409 = vpop.f32.mrb[0].mxu0
      %v1410 = vadd.f32 %v368, %v1409
      %v1411 = vpop.f32.mrb[0].mxu0
      %v1412 = vpop.f32.mrb[0].mxu0
      %v1413 = vadd.f32 %v368, %v1412
      %v1414 = vpop.f32.mrb[0].mxu0
      %1415 = vmatprep.mubr.bf16.mxu0 0
      %1416 = vmatmul.mubr.bf16.gmra.mrb[0].mxu0 %v887
      %v1417 = vpop.f32.mrb[0].mxu0
      %v1418 = vadd.f32 %v368, %v1417
      %v1419 = vpop.f32.mrb[0].mxu0
      %v1420 = vpop.f32.mrb[0].mxu0
      %v1421 = vadd.f32 %v368, %v1420
      %v1422 = vpop.f32.mrb[0].mxu0
      %1423 = vmatprep.mubr.bf16.mxu0 0
      %1424 = vmatmul.mubr.bf16.gmra.mrb[0].mxu0 %v890
      %v1425 = vpop.f32.mrb[0].mxu0
      %v1426 = vadd.f32 %v368, %v1425
      %v1427 = vpop.f32.mrb[0].mxu0
      %v1428 = vpop.f32.mrb[0].mxu0
      %v1429 = vadd.f32 %v368, %v1428
      %v1430 = vpop.f32.mrb[0].mxu0
      %1431 = vmatprep.mubr.bf16.mxu0 0
      %1432 = vmatmul.mubr.bf16.gmra.mrb[0].mxu0 %v893
      %v1433 = vpop.f32.mrb[0].mxu0
      %v1434 = vadd.f32 %v368, %v1433
      %v1435 = vpop.f32.mrb[0].mxu0
      %v1436 = vpop.f32.mrb[0].mxu0
      %v1437 = vadd.f32 %v368, %v1436
      %v1438 = vpop.f32.mrb[0].mxu0
      %1439 = vdwg.mxu0
      %v1440 = vtanh.pop %v930
      %v1441 = vtanh.pop %v933
      %v1442 = vtanh.pop %v938
      %v1443 = vtanh.pop %v941
      %v1444 = vtanh.pop %v946
      %v1445 = vtanh.pop %v949
      %v1446 = vtanh.pop %v954
      %v1447 = vtanh.pop %v957
      %v1448 = vtanh.pop %v962
      %v1449 = vtanh.pop %v965
      %v1450 = vtanh.pop %v970
      %v1451 = vtanh.pop %v973
      %v1452 = vtanh.pop %v978
      %v1453 = vtanh.pop %v981
      %v1454 = vtanh.pop %v986
      %v1455 = vtanh.pop %v989
      %v1456 = vtanh.pop %v994
      %v1457 = vtanh.pop %v997
      %v1458 = vtanh.pop %v1002
      %v1459 = vtanh.pop %v1005
      %v1460 = vtanh.pop %v1010
      %v1461 = vtanh.pop %v1013
      %v1462 = vtanh.pop %v1018
      %v1463 = vtanh.pop %v1021
      %v1464 = vtanh.pop %v1026
      %v1465 = vtanh.pop %v1029
      %v1466 = vtanh.pop %v1034
      %v1467 = vtanh.pop %v1037
      %v1468 = vtanh.pop %v1042
      %v1469 = vtanh.pop %v1045
      %v1470 = vtanh.pop %v1050
      %v1471 = vtanh.pop %v1053
      %v1472 = vtanh.pop %v1058
      %v1473 = vtanh.pop %v1061
      %v1474 = vtanh.pop %v1066
      %v1475 = vtanh.pop %v1069
      %v1476 = vtanh.pop %v1074
      %v1477 = vtanh.pop %v1077
      %v1478 = vtanh.pop %v1082
      %v1479 = vtanh.pop %v1085
      %v1480 = vtanh.pop %v1090
      %v1481 = vtanh.pop %v1093
      %v1482 = vtanh.pop %v1098
      %v1483 = vtanh.pop %v1101
      %v1484 = vtanh.pop %v1106
      %v1485 = vtanh.pop %v1109
      %v1486 = vtanh.pop %v1114
      %v1487 = vtanh.pop %v1117
      %v1488 = vtanh.pop %v1122
      %v1489 = vtanh.pop %v1125
      %v1490 = vtanh.pop %v1130
      %v1491 = vtanh.pop %v1133
      %v1492 = vtanh.pop %v1138
      %v1493 = vtanh.pop %v1141
      %v1494 = vtanh.pop %v1146
      %v1495 = vtanh.pop %v1149
      %v1496 = vtanh.pop %v1154
      %v1497 = vtanh.pop %v1157
      %v1498 = vtanh.pop %v1162
      %v1499 = vtanh.pop %v1165
      %v1500 = vtanh.pop %v1170
      %v1501 = vtanh.pop %v1173
      %v1502 = vtanh.pop %v1178
      %v1503 = vtanh.pop %v1181
      %v1504 = vtanh.pop %v1186
      %v1505 = vtanh.pop %v1189
      %v1506 = vtanh.pop %v1194
      %v1507 = vtanh.pop %v1197
      %v1508 = vtanh.pop %v1202
      %v1509 = vtanh.pop %v1205
      %v1510 = vtanh.pop %v1210
      %v1511 = vtanh.pop %v1213
      %v1512 = vtanh.pop %v1218
      %v1513 = vtanh.pop %v1221
      %v1514 = vtanh.pop %v1226
      %v1515 = vtanh.pop %v1229
      %v1516 = vtanh.pop %v1234
      %v1517 = vtanh.pop %v1237
      %v1518 = vtanh.pop %v1242
      %v1519 = vtanh.pop %v1245
      %v1520 = vtanh.pop %v1250
      %v1521 = vtanh.pop %v1253
      %v1522 = vtanh.pop %v1258
      %v1523 = vtanh.pop %v1261
      %v1524 = vtanh.pop %v1266
      %v1525 = vtanh.pop %v1269
      %v1526 = vtanh.pop %v1274
      %v1527 = vtanh.pop %v1277
      %v1528 = vtanh.pop %v1282
      %v1529 = vtanh.pop %v1285
      %v1530 = vtanh.pop %v1290
      %v1531 = vtanh.pop %v1293
      %v1532 = vtanh.pop %v1298
      %v1533 = vtanh.pop %v1301
      %v1534 = vtanh.pop %v1306
      %v1535 = vtanh.pop %v1309
      %v1536 = vtanh.pop %v1314
      %v1537 = vtanh.pop %v1317
      %v1538 = vtanh.pop %v1322
      %v1539 = vtanh.pop %v1325
      %v1540 = vtanh.pop %v1330
      %v1541 = vtanh.pop %v1333
      %v1542 = vtanh.pop %v1338
      %v1543 = vtanh.pop %v1341
      %v1544 = vtanh.pop %v1346
      %v1545 = vtanh.pop %v1349
      %v1546 = vtanh.pop %v1354
      %v1547 = vtanh.pop %v1357
      %v1548 = vtanh.pop %v1362
      %v1549 = vtanh.pop %v1365
      %v1550 = vtanh.pop %v1370
      %v1551 = vtanh.pop %v1373
      %v1552 = vtanh.pop %v1378
      %v1553 = vtanh.pop %v1381
      %v1554 = vtanh.pop %v1386
      %v1555 = vtanh.pop %v1389
      %v1556 = vtanh.pop %v1394
      %v1557 = vtanh.pop %v1397
      %v1558 = vtanh.pop %v1402
      %v1559 = vtanh.pop %v1405
      %v1560 = vtanh.pop %v1410
      %v1561 = vtanh.pop %v1413
      %v1562 = vtanh.pop %v1418
      %v1563 = vtanh.pop %v1421
      %v1564 = vtanh.pop %v1426
      %v1565 = vtanh.pop %v1429
      %v1566 = vtanh.pop %v1434
      %v1567 = vtanh.pop %v1437
      %1568 = vst [vmem:[%s228] sm:$0xff] %v1440
      %1569 = vst [vmem:[%s228 + $0x8] sm:$0xff] %v1441
      %1570 = vst [vmem:[%s228 + $0x10] sm:$0xff] %v1442
      %1571 = vst [vmem:[%s228 + $0x18] sm:$0xff] %v1443
      %1572 = vst [vmem:[%s228 + $0x20] sm:$0xff] %v1444
      %1573 = vst [vmem:[%s228 + $0x28] sm:$0xff] %v1445
      %1574 = vst [vmem:[%s228 + $0x30] sm:$0xff] %v1446
      %1575 = vst [vmem:[%s228 + $0x38] sm:$0xff] %v1447
      %1576 = vst [vmem:[%s228 + $0x40] sm:$0xff] %v1448
      %1577 = vst [vmem:[%s228 + $0x48] sm:$0xff] %v1449
      %1578 = vst [vmem:[%s228 + $0x50] sm:$0xff] %v1450
      %1579 = vst [vmem:[%s228 + $0x58] sm:$0xff] %v1451
      %1580 = vst [vmem:[%s228 + $0x60] sm:$0xff] %v1452
      %1581 = vst [vmem:[%s228 + $0x68] sm:$0xff] %v1453
      %1582 = vst [vmem:[%s228 + $0x70] sm:$0xff] %v1454
      %1583 = vst [vmem:[%s228 + $0x78] sm:$0xff] %v1455
      %1584 = vst [vmem:[%s228 + $0x80] sm:$0xff] %v1456
      %1585 = vst [vmem:[%s228 + $0x88] sm:$0xff] %v1457
      %1586 = vst [vmem:[%s228 + $0x90] sm:$0xff] %v1458
      %1587 = vst [vmem:[%s228 + $0x98] sm:$0xff] %v1459
      %1588 = vst [vmem:[%s228 + $0xa0] sm:$0xff] %v1460
      %1589 = vst [vmem:[%s228 + $0xa8] sm:$0xff] %v1461
      %1590 = vst [vmem:[%s228 + $0xb0] sm:$0xff] %v1462
      %1591 = vst [vmem:[%s228 + $0xb8] sm:$0xff] %v1463
      %1592 = vst [vmem:[%s228 + $0xc0] sm:$0xff] %v1464
      %1593 = vst [vmem:[%s228 + $0xc8] sm:$0xff] %v1465
      %1594 = vst [vmem:[%s228 + $0xd0] sm:$0xff] %v1466
      %1595 = vst [vmem:[%s228 + $0xd8] sm:$0xff] %v1467
      %1596 = vst [vmem:[%s228 + $0xe0] sm:$0xff] %v1468
      %1597 = vst [vmem:[%s228 + $0xe8] sm:$0xff] %v1469
      %1598 = vst [vmem:[%s228 + $0xf0] sm:$0xff] %v1470
      %1599 = vst [vmem:[%s228 + $0xf8] sm:$0xff] %v1471
      %1600 = vst [vmem:[%s228 + $0x100] sm:$0xff] %v1472
      %1601 = vst [vmem:[%s228 + $0x108] sm:$0xff] %v1473
      %1602 = vst [vmem:[%s228 + $0x110] sm:$0xff] %v1474
      %1603 = vst [vmem:[%s228 + $0x118] sm:$0xff] %v1475
      %1604 = vst [vmem:[%s228 + $0x120] sm:$0xff] %v1476
      %1605 = vst [vmem:[%s228 + $0x128] sm:$0xff] %v1477
      %1606 = vst [vmem:[%s228 + $0x130] sm:$0xff] %v1478
      %1607 = vst [vmem:[%s228 + $0x138] sm:$0xff] %v1479
      %1608 = vst [vmem:[%s228 + $0x140] sm:$0xff] %v1480
      %1609 = vst [vmem:[%s228 + $0x148] sm:$0xff] %v1481
      %1610 = vst [vmem:[%s228 + $0x150] sm:$0xff] %v1482
      %1611 = vst [vmem:[%s228 + $0x158] sm:$0xff] %v1483
      %1612 = vst [vmem:[%s228 + $0x160] sm:$0xff] %v1484
      %1613 = vst [vmem:[%s228 + $0x168] sm:$0xff] %v1485
      %1614 = vst [vmem:[%s228 + $0x170] sm:$0xff] %v1486
      %1615 = vst [vmem:[%s228 + $0x178] sm:$0xff] %v1487
      %1616 = vst [vmem:[%s228 + $0x180] sm:$0xff] %v1488
      %1617 = vst [vmem:[%s228 + $0x188] sm:$0xff] %v1489
      %1618 = vst [vmem:[%s228 + $0x190] sm:$0xff] %v1490
      %1619 = vst [vmem:[%s228 + $0x198] sm:$0xff] %v1491
      %1620 = vst [vmem:[%s228 + $0x1a0] sm:$0xff] %v1492
      %1621 = vst [vmem:[%s228 + $0x1a8] sm:$0xff] %v1493
      %1622 = vst [vmem:[%s228 + $0x1b0] sm:$0xff] %v1494
      %1623 = vst [vmem:[%s228 + $0x1b8] sm:$0xff] %v1495
      %1624 = vst [vmem:[%s228 + $0x1c0] sm:$0xff] %v1496
      %1625 = vst [vmem:[%s228 + $0x1c8] sm:$0xff] %v1497
      %1626 = vst [vmem:[%s228 + $0x1d0] sm:$0xff] %v1498
      %1627 = vst [vmem:[%s228 + $0x1d8] sm:$0xff] %v1499
      %1628 = vst [vmem:[%s228 + $0x1e0] sm:$0xff] %v1500
      %1629 = vst [vmem:[%s228 + $0x1e8] sm:$0xff] %v1501
      %1630 = vst [vmem:[%s228 + $0x1f0] sm:$0xff] %v1502
      %1631 = vst [vmem:[%s228 + $0x1f8] sm:$0xff] %v1503
      %1632 = vst [vmem:[%s228 + $0x200] sm:$0xff] %v1504
      %1633 = vst [vmem:[%s228 + $0x208] sm:$0xff] %v1505
      %1634 = vst [vmem:[%s228 + $0x210] sm:$0xff] %v1506
      %1635 = vst [vmem:[%s228 + $0x218] sm:$0xff] %v1507
      %1636 = vst [vmem:[%s228 + $0x220] sm:$0xff] %v1508
      %1637 = vst [vmem:[%s228 + $0x228] sm:$0xff] %v1509
      %1638 = vst [vmem:[%s228 + $0x230] sm:$0xff] %v1510
      %1639 = vst [vmem:[%s228 + $0x238] sm:$0xff] %v1511
      %1640 = vst [vmem:[%s228 + $0x240] sm:$0xff] %v1512
      %1641 = vst [vmem:[%s228 + $0x248] sm:$0xff] %v1513
      %1642 = vst [vmem:[%s228 + $0x250] sm:$0xff] %v1514
      %1643 = vst [vmem:[%s228 + $0x258] sm:$0xff] %v1515
      %1644 = vst [vmem:[%s228 + $0x260] sm:$0xff] %v1516
      %1645 = vst [vmem:[%s228 + $0x268] sm:$0xff] %v1517
      %1646 = vst [vmem:[%s228 + $0x270] sm:$0xff] %v1518
      %1647 = vst [vmem:[%s228 + $0x278] sm:$0xff] %v1519
      %1648 = vst [vmem:[%s228 + $0x280] sm:$0xff] %v1520
      %1649 = vst [vmem:[%s228 + $0x288] sm:$0xff] %v1521
      %1650 = vst [vmem:[%s228 + $0x290] sm:$0xff] %v1522
      %1651 = vst [vmem:[%s228 + $0x298] sm:$0xff] %v1523
      %1652 = vst [vmem:[%s228 + $0x2a0] sm:$0xff] %v1524
      %1653 = vst [vmem:[%s228 + $0x2a8] sm:$0xff] %v1525
      %1654 = vst [vmem:[%s228 + $0x2b0] sm:$0xff] %v1526
      %1655 = vst [vmem:[%s228 + $0x2b8] sm:$0xff] %v1527
      %1656 = vst [vmem:[%s228 + $0x2c0] sm:$0xff] %v1528
      %1657 = vst [vmem:[%s228 + $0x2c8] sm:$0xff] %v1529
      %1658 = vst [vmem:[%s228 + $0x2d0] sm:$0xff] %v1530
      %1659 = vst [vmem:[%s228 + $0x2d8] sm:$0xff] %v1531
      %1660 = vst [vmem:[%s228 + $0x2e0] sm:$0xff] %v1532
      %1661 = vst [vmem:[%s228 + $0x2e8] sm:$0xff] %v1533
      %1662 = vst [vmem:[%s228 + $0x2f0] sm:$0xff] %v1534
      %1663 = vst [vmem:[%s228 + $0x2f8] sm:$0xff] %v1535
      %1664 = vst [vmem:[%s228 + $0x300] sm:$0xff] %v1536
      %1665 = vst [vmem:[%s228 + $0x308] sm:$0xff] %v1537
      %1666 = vst [vmem:[%s228 + $0x310] sm:$0xff] %v1538
      %1667 = vst [vmem:[%s228 + $0x318] sm:$0xff] %v1539
      %1668 = vst [vmem:[%s228 + $0x320] sm:$0xff] %v1540
      %1669 = vst [vmem:[%s228 + $0x328] sm:$0xff] %v1541
      %1670 = vst [vmem:[%s228 + $0x330] sm:$0xff] %v1542
      %1671 = vst [vmem:[%s228 + $0x338] sm:$0xff] %v1543
      %1672 = vst [vmem:[%s228 + $0x340] sm:$0xff] %v1544
      %1673 = vst [vmem:[%s228 + $0x348] sm:$0xff] %v1545
      %1674 = vst [vmem:[%s228 + $0x350] sm:$0xff] %v1546
      %1675 = vst [vmem:[%s228 + $0x358] sm:$0xff] %v1547
      %1676 = vst [vmem:[%s228 + $0x360] sm:$0xff] %v1548
      %1677 = vst [vmem:[%s228 + $0x368] sm:$0xff] %v1549
      %1678 = vst [vmem:[%s228 + $0x370] sm:$0xff] %v1550
      %1679 = vst [vmem:[%s228 + $0x378] sm:$0xff] %v1551
      %1680 = vst [vmem:[%s228 + $0x380] sm:$0xff] %v1552
      %1681 = vst [vmem:[%s228 + $0x388] sm:$0xff] %v1553
      %1682 = vst [vmem:[%s228 + $0x390] sm:$0xff] %v1554
      %1683 = vst [vmem:[%s228 + $0x398] sm:$0xff] %v1555
      %1684 = vst [vmem:[%s228 + $0x3a0] sm:$0xff] %v1556
      %1685 = vst [vmem:[%s228 + $0x3a8] sm:$0xff] %v1557
      %1686 = vst [vmem:[%s228 + $0x3b0] sm:$0xff] %v1558
      %1687 = vst [vmem:[%s228 + $0x3b8] sm:$0xff] %v1559
      %1688 = vst [vmem:[%s228 + $0x3c0] sm:$0xff] %v1560
      %1689 = vst [vmem:[%s228 + $0x3c8] sm:$0xff] %v1561
      %1690 = vst [vmem:[%s228 + $0x3d0] sm:$0xff] %v1562
      %1691 = vst [vmem:[%s228 + $0x3d8] sm:$0xff] %v1563
      %1692 = vst [vmem:[%s228 + $0x3e0] sm:$0xff] %v1564
      %1693 = vst [vmem:[%s228 + $0x3e8] sm:$0xff] %v1565
      %1694 = vst [vmem:[%s228 + $0x3f0] sm:$0xff] %v1566
      %1695 = vst [vmem:[%s228 + $0x3f8] sm:$0xff] %v1567
      %s1696 = smul.u32 128, %s19
      %p1697 = scmp.lt.s32.totalorder %s18, 3
      %s1698 = scalar_select %p1697, %s18, 3
      %p1699 = scmp.lt.s32.totalorder %s1696, 255
      %s1700 = scalar_select %p1699, %s1696, 255
      %s1701 = smul.addr %s1698, 256
      %s1702 = sadd.s32 %s1700, %s1701
      %s1703 = smul.addr %s1702, 8
      %s1704 = scalar_lea.vmem %s3, %s1703
      // Predicated region
      $region33: #{generator_forward.17} parent=31 // pred_check
        %p1705 = pneg %p121
      $region34: #{generator_forward.17} parent=31 // pred_check_branch
        %1707 = sbr.rel (%p1705) target = $region36
      $region35: #{generator_forward.17} parent=31 // pred_region
        %s1708 = smul.u32 128, %s19
      $region36: #{generator_forward.17} parent=31 // pred_fallthru
        _
    $region32: #{generator_forward.17} parent=5 // pred_fallthru
      _
    %p1709 = scmp.le.s32.totalorder 2, %s9
    // Predicated region
    $region37: #{generator_forward.17} parent=5 // pred_check
      %p1710 = pneg %p1709
    $region38: #{generator_forward.17} parent=5 // pred_check_branch
      %1712 = sbr.rel (%p1710) target = $region40
    $region39: #{generator_forward.17} parent=5 // pred_region
      %s1713 = ssub.s32 %s9, 2
      // Predicated region
      $region41: #{generator_forward.17} parent=39 // pred_check
        %p1714 = pneg %p127
      $region42: #{generator_forward.17} parent=39 // pred_check_branch
        %1716 = sbr.rel (%p1714) target = $region44
      $region43: #{generator_forward.17} parent=39 // pred_region
        %s1717 = smul.u32 128, %s21
        %p1718 = scmp.lt.s32.totalorder %s20, 3
        %s1719 = scalar_select %p1718, %s20, 3
        %p1720 = scmp.lt.s32.totalorder %s1717, 255
        %s1721 = scalar_select %p1720, %s1717, 255
        %s1722 = smul.addr %s1719, 256
        %s1723 = sadd.s32 %s1721, %s1722
        %s1724 = smul.addr %s1723, 8
        %s1725 = scalar_lea.vmem %s3, %s1724
      $region44: #{generator_forward.17} parent=39 // pred_fallthru
        _
    $region40: #{generator_forward.17} parent=5 // pred_fallthru
      _
  $region6: #{generator_forward.17} parent=0 // loop_footer
    %s13 = sadd.s32 1, %s9
  $region7: #{generator_forward.17} parent=0 // loop_footer_branch
    %8 = sbr.rel target = $region3
  $region8: #{generator_forward.17} parent=0 // loop_exit
    _

</llo_original>
